<compile_context>
chip_gen: v5e
topology: v5e:2x2
jax: 0.10.0
libtpu: 0.0.40
codegen_flags: <defaults>
</compile_context>

<pallas_src>
import jax
import jax.numpy as jnp
from jax.experimental import pallas as pl
from jax.experimental.pallas import tpu as pltpu

LATENT_DIM = 100
LATENT_PAD = 128          # 100 -> 128 (one lane tile; pad rows of W1 are zero)
H1, H2, H3 = 256, 512, 1024
OUT = 28 * 28             # 784 = 6*128 + 16, stored directly (full last dim)


def generator_kernel(z_ref,
                     w1_ref, b1_ref,
                     w2_ref, b2_ref,
                     w3_ref, b3_ref,
                     w4_ref, b4_ref,
                     o_ref):
    # bf16 operands into the MXU with f32 accumulation; bias add + ReLU on the
    # VPU in f32 (v5e has no bf16 VALU), tanh on the EUP, bf16 store.
    h = jnp.dot(z_ref[...], w1_ref[...], preferred_element_type=jnp.float32)
    h = jnp.maximum(h + b1_ref[...], 0.0).astype(jnp.bfloat16)

    h = jnp.dot(h, w2_ref[...], preferred_element_type=jnp.float32)
    h = jnp.maximum(h + b2_ref[...], 0.0).astype(jnp.bfloat16)

    h = jnp.dot(h, w3_ref[...], preferred_element_type=jnp.float32)
    h = jnp.maximum(h + b3_ref[...], 0.0).astype(jnp.bfloat16)

    h = jnp.dot(h, w4_ref[...], preferred_element_type=jnp.float32) + b4_ref[...]
    o_ref[...] = jnp.tanh(h).astype(o_ref.dtype)


def _round_up(x, m):
    return (x + m - 1) // m * m


def _make_call(tb, b_pad, *, vmem_limit_bytes, weight_pipeline_mode):
    wkw = ({} if weight_pipeline_mode is None
           else {"pipeline_mode": weight_pipeline_mode})

    # Advisory cost estimate for XLA's scheduler.
    flops = 2 * b_pad * (LATENT_PAD * H1 + H1 * H2 + H2 * H3 + H3 * OUT)
    bytes_accessed = (
        (LATENT_PAD * H1 + H1 * H2 + H2 * H3 + H3 * OUT) * 2      # bf16 weights
        + (H1 + H2 + H3 + OUT) * 4                                # f32 biases
        + b_pad * LATENT_PAD * 2                                  # bf16 z in
        + b_pad * OUT * 2)                                        # bf16 out

    return pl.pallas_call(
        generator_kernel,
        out_shape=jax.ShapeDtypeStruct((b_pad, OUT), jnp.bfloat16),
        grid=(b_pad // tb,),
        in_specs=[
            pl.BlockSpec((tb, LATENT_PAD), lambda i: (i, 0)),           # z tile
            pl.BlockSpec((LATENT_PAD, H1), lambda i: (0, 0), **wkw),    # resident weights
            pl.BlockSpec((1, H1),          lambda i: (0, 0), **wkw),
            pl.BlockSpec((H1, H2),         lambda i: (0, 0), **wkw),
            pl.BlockSpec((1, H2),          lambda i: (0, 0), **wkw),
            pl.BlockSpec((H2, H3),         lambda i: (0, 0), **wkw),
            pl.BlockSpec((1, H3),          lambda i: (0, 0), **wkw),
            pl.BlockSpec((H3, OUT),        lambda i: (0, 0), **wkw),
            pl.BlockSpec((1, OUT),         lambda i: (0, 0), **wkw),
        ],
        out_specs=pl.BlockSpec((tb, OUT), lambda i: (i, 0)),
        compiler_params=pltpu.CompilerParams(
            dimension_semantics=("parallel",),
            vmem_limit_bytes=vmem_limit_bytes,
        ),
        cost_estimate=pl.CostEstimate(
            flops=flops,
            transcendentals=b_pad * OUT,
            bytes_accessed=bytes_accessed,
        ),
    )


def generator_forward(z, packed_params, *, batch_tile=512,
                      vmem_limit_bytes=32 << 20, out_dtype=jnp.float32):
    """z: (B, LATENT_DIM) float32 -> (B, 1, 28, 28) out_dtype (default f32)."""
    (w1, b1), (w2, b2), (w3, b3), (w4, b4) = packed_params
    B = z.shape[0]

    # Batch tile: multiple of 16 sublanes (bf16 packing), capped at batch_tile.
    tb = min(batch_tile, _round_up(B, 16))
    # Ensure >= 2 grid steps when B allows, so dimension_semantics=("parallel",)
    # actually shards the batch axis across both v7x TensorCores.
    if _round_up(B, tb) // tb < 2:
        tb = max(16, _round_up(tb // 2, 16))
    b_pad = _round_up(B, tb)

    # Pad latent features 100 -> 128 (matching the zero rows already in W1)
    # and the batch B -> b_pad (padded rows sliced away below).
    z = jnp.pad(z.astype(jnp.bfloat16),
                ((0, b_pad - B), (0, LATENT_PAD - LATENT_DIM)))

    args = (z, w1, b1, w2, b2, w3, b3, w4, b4)
    try:
        # Weights/biases are revisited every grid step -> single-buffer them,
        # freeing ~3 MiB of VMEM headroom.
        flat = _make_call(tb, b_pad, vmem_limit_bytes=vmem_limit_bytes,
                          weight_pipeline_mode=pl.Buffered(1))(*args)
    except Exception:
        # Fallback for jax versions that reject Buffered(1) on pallas_call inputs.
        flat = _make_call(tb, b_pad, vmem_limit_bytes=vmem_limit_bytes,
                          weight_pipeline_mode=None)(*args)

    # Glue: drop batch padding, cast (kernel stores bf16), PyTorch's .view().
    return flat[:B].astype(out_dtype).reshape(B, 1, 28, 28)


def init_params(key):
    """Synthetic nn.Linear-style params; weights stored (in, out), biases (1, out)."""
    dims = [(LATENT_DIM, H1), (H1, H2), (H2, H3), (H3, OUT)]
    params = []
    for i, (fan_in, fan_out) in enumerate(dims):
        kw, kb = jax.random.split(jax.random.fold_in(key, i))
        scale = 1.0 / jnp.sqrt(fan_in)   # matches nn.Linear default U(-1/sqrt(in), 1/sqrt(in))
        w = jax.random.uniform(kw, (fan_in, fan_out), jnp.float32, -scale, scale)
        b = jax.random.uniform(kb, (1, fan_out), jnp.float32, -scale, scale)
        params.append((w, b))
    return params


def pack_params(params):
    """Zero-pad W1 rows to the 128-lane latent and cast weights to bf16 for HBM."""
    (w1, b1), (w2, b2), (w3, b3), (w4, b4) = params
    w1 = jnp.pad(w1, ((0, LATENT_PAD - LATENT_DIM), (0, 0)))   # pad rows -> zeros
    bf16 = lambda w: w.astype(jnp.bfloat16)
    return ((bf16(w1), b1), (bf16(w2), b2), (bf16(w3), b3), (bf16(w4), b4))


if __name__ == "__main__":
    key = jax.random.PRNGKey(0)
    k_z, k_p = jax.random.split(key)

    batch = 8
    z = jax.random.normal(k_z, (batch, LATENT_DIM), dtype=jnp.float32)
    params = init_params(k_p)
    packed = pack_params(params)

    out = generator_forward(z, packed)
    jax.block_until_ready(out)

    assert out.shape == (batch, 1, 28, 28), out.shape
    assert out.dtype == jnp.float32
    # Tanh output must stay in [-1, 1]
    assert bool(jnp.all(jnp.abs(out) <= 1.0 + 1e-6))

    # Plain-JAX reference with the same numerics (bf16 weights, f32 accumulate).
    def ref_forward(z, packed):
        h = jnp.pad(z.astype(jnp.bfloat16), ((0, 0), (0, LATENT_PAD - LATENT_DIM)))
        for idx, (w, b) in enumerate(packed):
            h = jnp.dot(h, w, preferred_element_type=jnp.float32) + b
            h = jnp.tanh(h) if idx == 3 else jnp.maximum(h, 0.0).astype(jnp.bfloat16)
        return h.reshape(-1, 1, 28, 28)

    ref = ref_forward(z, packed)
    # 1e-2 tolerance: bf16 weights/activations plus bf16 output quantization
    # (~2e-3 near tanh saturation) vs. the f32 reference output.
    err = float(jnp.max(jnp.abs(out - ref)))
    assert err < 1e-2, err

    print("KERNEL_OK")
</pallas_src>

<mosaic_0001>
module attributes {stable_mosaic.version = 11 : i64} {
  func.func @generator_kernel(%arg0: i32, %arg1: memref<16x128xbf16, #tpu.memory_space<vmem>>, %arg2: memref<128x256xbf16, #tpu.memory_space<vmem>>, %arg3: memref<1x256xf32, #tpu.memory_space<vmem>>, %arg4: memref<256x512xbf16, #tpu.memory_space<vmem>>, %arg5: memref<1x512xf32, #tpu.memory_space<vmem>>, %arg6: memref<512x1024xbf16, #tpu.memory_space<vmem>>, %arg7: memref<1x1024xf32, #tpu.memory_space<vmem>>, %arg8: memref<1024x784xbf16, #tpu.memory_space<vmem>>, %arg9: memref<1x784xf32, #tpu.memory_space<vmem>>, %arg10: memref<16x784xbf16, #tpu.memory_space<vmem>>) attributes {dimension_semantics = [#tpu.dimension_semantics<parallel>], iteration_bounds = array<i64: 1>, scalar_prefetch = 0 : i64, scratch_operands = 0 : i64, tpu.core_type = #tpu.core_type<tc>, window_params = [{transform_indices = @transform_0, window_bounds = array<i64: 16, 128>}, {pipeline_mode = #tpu.pipeline_mode<synchronous>, transform_indices = @transform_1, window_bounds = array<i64: 128, 256>}, {pipeline_mode = #tpu.pipeline_mode<synchronous>, transform_indices = @transform_2, window_bounds = array<i64: 1, 256>}, {pipeline_mode = #tpu.pipeline_mode<synchronous>, transform_indices = @transform_3, window_bounds = array<i64: 256, 512>}, {pipeline_mode = #tpu.pipeline_mode<synchronous>, transform_indices = @transform_4, window_bounds = array<i64: 1, 512>}, {pipeline_mode = #tpu.pipeline_mode<synchronous>, transform_indices = @transform_5, window_bounds = array<i64: 512, 1024>}, {pipeline_mode = #tpu.pipeline_mode<synchronous>, transform_indices = @transform_6, window_bounds = array<i64: 1, 1024>}, {pipeline_mode = #tpu.pipeline_mode<synchronous>, transform_indices = @transform_7, window_bounds = array<i64: 1024, 784>}, {pipeline_mode = #tpu.pipeline_mode<synchronous>, transform_indices = @transform_8, window_bounds = array<i64: 1, 784>}, {transform_indices = @transform_9, window_bounds = array<i64: 16, 784>}]} {
    %c0 = arith.constant 0 : index
    %c0_0 = arith.constant 0 : index
    %0 = vector.load %arg1[%c0, %c0_0] : memref<16x128xbf16, #tpu.memory_space<vmem>>, vector<16x128xbf16>
    %c0_1 = arith.constant 0 : index
    %c0_2 = arith.constant 0 : index
    %1 = vector.load %arg2[%c0_1, %c0_2] : memref<128x256xbf16, #tpu.memory_space<vmem>>, vector<128x256xbf16>
    %cst = arith.constant dense<0.000000e+00> : vector<16x256xf32>
    %2 = tpu.matmul %0, %1, %cst {dimension_numbers = #tpu.dot_dimension_numbers<[1], [0], [0], [1], [0, 0, 1, 1], [], []>} : vector<16x128xbf16>, vector<128x256xbf16>, vector<16x256xf32> -> vector<16x256xf32>
    %c0_3 = arith.constant 0 : index
    %c0_4 = arith.constant 0 : index
    %3 = vector.load %arg3[%c0_3, %c0_4] : memref<1x256xf32, #tpu.memory_space<vmem>>, vector<1x256xf32>
    %4 = vector.broadcast %3 : vector<1x256xf32> to vector<16x256xf32>
    %5 = arith.addf %2, %4 : vector<16x256xf32>
    %cst_5 = arith.constant 0.000000e+00 : f32
    %6 = vector.broadcast %cst_5 : f32 to vector<16x256xf32>
    %7 = arith.maximumf %5, %6 : vector<16x256xf32>
    %8 = arith.truncf %7 : vector<16x256xf32> to vector<16x256xbf16>
    %c0_6 = arith.constant 0 : index
    %c0_7 = arith.constant 0 : index
    %9 = vector.load %arg4[%c0_6, %c0_7] : memref<256x512xbf16, #tpu.memory_space<vmem>>, vector<256x512xbf16>
    %cst_8 = arith.constant dense<0.000000e+00> : vector<16x512xf32>
    %10 = tpu.matmul %8, %9, %cst_8 {dimension_numbers = #tpu.dot_dimension_numbers<[1], [0], [0], [1], [0, 0, 1, 1], [], []>} : vector<16x256xbf16>, vector<256x512xbf16>, vector<16x512xf32> -> vector<16x512xf32>
    %c0_9 = arith.constant 0 : index
    %c0_10 = arith.constant 0 : index
    %11 = vector.load %arg5[%c0_9, %c0_10] : memref<1x512xf32, #tpu.memory_space<vmem>>, vector<1x512xf32>
    %12 = vector.broadcast %11 : vector<1x512xf32> to vector<16x512xf32>
    %13 = arith.addf %10, %12 : vector<16x512xf32>
    %cst_11 = arith.constant 0.000000e+00 : f32
    %14 = vector.broadcast %cst_11 : f32 to vector<16x512xf32>
    %15 = arith.maximumf %13, %14 : vector<16x512xf32>
    %16 = arith.truncf %15 : vector<16x512xf32> to vector<16x512xbf16>
    %c0_12 = arith.constant 0 : index
    %c0_13 = arith.constant 0 : index
    %17 = vector.load %arg6[%c0_12, %c0_13] : memref<512x1024xbf16, #tpu.memory_space<vmem>>, vector<512x1024xbf16>
    %cst_14 = arith.constant dense<0.000000e+00> : vector<16x1024xf32>
    %18 = tpu.matmul %16, %17, %cst_14 {dimension_numbers = #tpu.dot_dimension_numbers<[1], [0], [0], [1], [0, 0, 1, 1], [], []>} : vector<16x512xbf16>, vector<512x1024xbf16>, vector<16x1024xf32> -> vector<16x1024xf32>
    %c0_15 = arith.constant 0 : index
    %c0_16 = arith.constant 0 : index
    %19 = vector.load %arg7[%c0_15, %c0_16] : memref<1x1024xf32, #tpu.memory_space<vmem>>, vector<1x1024xf32>
    %20 = vector.broadcast %19 : vector<1x1024xf32> to vector<16x1024xf32>
    %21 = arith.addf %18, %20 : vector<16x1024xf32>
    %cst_17 = arith.constant 0.000000e+00 : f32
    %22 = vector.broadcast %cst_17 : f32 to vector<16x1024xf32>
    %23 = arith.maximumf %21, %22 : vector<16x1024xf32>
    %24 = arith.truncf %23 : vector<16x1024xf32> to vector<16x1024xbf16>
    %c0_18 = arith.constant 0 : index
    %c0_19 = arith.constant 0 : index
    %25 = vector.load %arg8[%c0_18, %c0_19] : memref<1024x784xbf16, #tpu.memory_space<vmem>>, vector<1024x784xbf16>
    %cst_20 = arith.constant dense<0.000000e+00> : vector<16x784xf32>
    %26 = tpu.matmul %24, %25, %cst_20 {dimension_numbers = #tpu.dot_dimension_numbers<[1], [0], [0], [1], [0, 0, 1, 1], [], []>} : vector<16x1024xbf16>, vector<1024x784xbf16>, vector<16x784xf32> -> vector<16x784xf32>
    %c0_21 = arith.constant 0 : index
    %c0_22 = arith.constant 0 : index
    %27 = vector.load %arg9[%c0_21, %c0_22] : memref<1x784xf32, #tpu.memory_space<vmem>>, vector<1x784xf32>
    %28 = vector.broadcast %27 : vector<1x784xf32> to vector<16x784xf32>
    %29 = arith.addf %26, %28 : vector<16x784xf32>
    %30 = math.tanh %29 : vector<16x784xf32>
    %31 = arith.truncf %30 : vector<16x784xf32> to vector<16x784xbf16>
    %c0_23 = arith.constant 0 : index
    %c0_24 = arith.constant 0 : index
    %32 = vector.load %arg10[%c0_23, %c0_24] : memref<16x784xbf16, #tpu.memory_space<vmem>>, vector<16x784xbf16>
    tpu.vector_store %arg10[%c0_23, %c0_24], %31 {strides = array<i32>} : memref<16x784xbf16, #tpu.memory_space<vmem>>, vector<16x784xbf16>,
    return
  }
  func.func @transform_0(%arg0: i32) -> (i32, i32) {
    %c0_i32 = arith.constant 0 : i32
    %c0_i32_0 = arith.constant 0 : i32
    return %arg0, %c0_i32 : i32, i32
  }
  func.func @transform_1(%arg0: i32) -> (i32, i32) {
    %c0_i32 = arith.constant 0 : i32
    %c0_i32_0 = arith.constant 0 : i32
    %c0_i32_1 = arith.constant 0 : i32
    return %c0_i32, %c0_i32_0 : i32, i32
  }
  func.func @transform_2(%arg0: i32) -> (i32, i32) {
    %c0_i32 = arith.constant 0 : i32
    %c0_i32_0 = arith.constant 0 : i32
    %c0_i32_1 = arith.constant 0 : i32
    return %c0_i32, %c0_i32_0 : i32, i32
  }
  func.func @transform_3(%arg0: i32) -> (i32, i32) {
    %c0_i32 = arith.constant 0 : i32
    %c0_i32_0 = arith.constant 0 : i32
    %c0_i32_1 = arith.constant 0 : i32
    return %c0_i32, %c0_i32_0 : i32, i32
  }
  func.func @transform_4(%arg0: i32) -> (i32, i32) {
    %c0_i32 = arith.constant 0 : i32
    %c0_i32_0 = arith.constant 0 : i32
    %c0_i32_1 = arith.constant 0 : i32
    return %c0_i32, %c0_i32_0 : i32, i32
  }
  func.func @transform_5(%arg0: i32) -> (i32, i32) {
    %c0_i32 = arith.constant 0 : i32
    %c0_i32_0 = arith.constant 0 : i32
    %c0_i32_1 = arith.constant 0 : i32
    return %c0_i32, %c0_i32_0 : i32, i32
  }
  func.func @transform_6(%arg0: i32) -> (i32, i32) {
    %c0_i32 = arith.constant 0 : i32
    %c0_i32_0 = arith.constant 0 : i32
    %c0_i32_1 = arith.constant 0 : i32
    return %c0_i32, %c0_i32_0 : i32, i32
  }
  func.func @transform_7(%arg0: i32) -> (i32, i32) {
    %c0_i32 = arith.constant 0 : i32
    %c0_i32_0 = arith.constant 0 : i32
    %c0_i32_1 = arith.constant 0 : i32
    return %c0_i32, %c0_i32_0 : i32, i32
  }
  func.func @transform_8(%arg0: i32) -> (i32, i32) {
    %c0_i32 = arith.constant 0 : i32
    %c0_i32_0 = arith.constant 0 : i32
    %c0_i32_1 = arith.constant 0 : i32
    return %c0_i32, %c0_i32_0 : i32, i32
  }
  func.func @transform_9(%arg0: i32) -> (i32, i32) {
    %c0_i32 = arith.constant 0 : i32
    %c0_i32_0 = arith.constant 0 : i32
    return %arg0, %c0_i32 : i32, i32
  }
}

module attributes {stable_mosaic.version = 11 : i64} {
  func.func @generator_kernel(%arg0: i32, %arg1: memref<16x128xbf16, #tpu.memory_space<vmem>>, %arg2: memref<128x256xbf16, #tpu.memory_space<vmem>>, %arg3: memref<1x256xf32, #tpu.memory_space<vmem>>, %arg4: memref<256x512xbf16, #tpu.memory_space<vmem>>, %arg5: memref<1x512xf32, #tpu.memory_space<vmem>>, %arg6: memref<512x1024xbf16, #tpu.memory_space<vmem>>, %arg7: memref<1x1024xf32, #tpu.memory_space<vmem>>, %arg8: memref<1024x784xbf16, #tpu.memory_space<vmem>>, %arg9: memref<1x784xf32, #tpu.memory_space<vmem>>, %arg10: memref<16x784xbf16, #tpu.memory_space<vmem>>) attributes {dimension_semantics = [#tpu.dimension_semantics<parallel>], iteration_bounds = array<i64: 1>, scalar_prefetch = 0 : i64, scratch_operands = 0 : i64, tpu.core_type = #tpu.core_type<tc>, window_params = [{transform_indices = @transform_0, window_bounds = array<i64: 16, 128>}, {pipeline_mode = #tpu.pipeline_mode<synchronous>, transform_indices = @transform_1, window_bounds = array<i64: 128, 256>}, {pipeline_mode = #tpu.pipeline_mode<synchronous>, transform_indices = @transform_2, window_bounds = array<i64: 1, 256>}, {pipeline_mode = #tpu.pipeline_mode<synchronous>, transform_indices = @transform_3, window_bounds = array<i64: 256, 512>}, {pipeline_mode = #tpu.pipeline_mode<synchronous>, transform_indices = @transform_4, window_bounds = array<i64: 1, 512>}, {pipeline_mode = #tpu.pipeline_mode<synchronous>, transform_indices = @transform_5, window_bounds = array<i64: 512, 1024>}, {pipeline_mode = #tpu.pipeline_mode<synchronous>, transform_indices = @transform_6, window_bounds = array<i64: 1, 1024>}, {pipeline_mode = #tpu.pipeline_mode<synchronous>, transform_indices = @transform_7, window_bounds = array<i64: 1024, 784>}, {pipeline_mode = #tpu.pipeline_mode<synchronous>, transform_indices = @transform_8, window_bounds = array<i64: 1, 784>}, {transform_indices = @transform_9, window_bounds = array<i64: 16, 784>}]} {
    %c0 = arith.constant 0 : index
    %c0_0 = arith.constant 0 : index
    %0 = vector.load %arg1[%c0, %c0_0] : memref<16x128xbf16, #tpu.memory_space<vmem>>, vector<16x128xbf16>
    %c0_1 = arith.constant 0 : index
    %c0_2 = arith.constant 0 : index
    %1 = vector.load %arg2[%c0_1, %c0_2] : memref<128x256xbf16, #tpu.memory_space<vmem>>, vector<128x256xbf16>
    %cst = arith.constant dense<0.000000e+00> : vector<16x256xf32>
    %2 = tpu.matmul %0, %1, %cst {dimension_numbers = #tpu.dot_dimension_numbers<[1], [0], [0], [1], [0, 0, 1, 1], [], []>} : vector<16x128xbf16>, vector<128x256xbf16>, vector<16x256xf32> -> vector<16x256xf32>
    %c0_3 = arith.constant 0 : index
    %c0_4 = arith.constant 0 : index
    %3 = vector.load %arg3[%c0_3, %c0_4] : memref<1x256xf32, #tpu.memory_space<vmem>>, vector<1x256xf32>
    %4 = vector.broadcast %3 : vector<1x256xf32> to vector<16x256xf32>
    %5 = arith.addf %2, %4 : vector<16x256xf32>
    %cst_5 = arith.constant 0.000000e+00 : f32
    %6 = vector.broadcast %cst_5 : f32 to vector<16x256xf32>
    %7 = arith.maximumf %5, %6 : vector<16x256xf32>
    %8 = arith.truncf %7 : vector<16x256xf32> to vector<16x256xbf16>
    %c0_6 = arith.constant 0 : index
    %c0_7 = arith.constant 0 : index
    %9 = vector.load %arg4[%c0_6, %c0_7] : memref<256x512xbf16, #tpu.memory_space<vmem>>, vector<256x512xbf16>
    %cst_8 = arith.constant dense<0.000000e+00> : vector<16x512xf32>
    %10 = tpu.matmul %8, %9, %cst_8 {dimension_numbers = #tpu.dot_dimension_numbers<[1], [0], [0], [1], [0, 0, 1, 1], [], []>} : vector<16x256xbf16>, vector<256x512xbf16>, vector<16x512xf32> -> vector<16x512xf32>
    %c0_9 = arith.constant 0 : index
    %c0_10 = arith.constant 0 : index
    %11 = vector.load %arg5[%c0_9, %c0_10] : memref<1x512xf32, #tpu.memory_space<vmem>>, vector<1x512xf32>
    %12 = vector.broadcast %11 : vector<1x512xf32> to vector<16x512xf32>
    %13 = arith.addf %10, %12 : vector<16x512xf32>
    %cst_11 = arith.constant 0.000000e+00 : f32
    %14 = vector.broadcast %cst_11 : f32 to vector<16x512xf32>
    %15 = arith.maximumf %13, %14 : vector<16x512xf32>
    %16 = arith.truncf %15 : vector<16x512xf32> to vector<16x512xbf16>
    %c0_12 = arith.constant 0 : index
    %c0_13 = arith.constant 0 : index
    %17 = vector.load %arg6[%c0_12, %c0_13] : memref<512x1024xbf16, #tpu.memory_space<vmem>>, vector<512x1024xbf16>
    %cst_14 = arith.constant dense<0.000000e+00> : vector<16x1024xf32>
    %18 = tpu.matmul %16, %17, %cst_14 {dimension_numbers = #tpu.dot_dimension_numbers<[1], [0], [0], [1], [0, 0, 1, 1], [], []>} : vector<16x512xbf16>, vector<512x1024xbf16>, vector<16x1024xf32> -> vector<16x1024xf32>
    %c0_15 = arith.constant 0 : index
    %c0_16 = arith.constant 0 : index
    %19 = vector.load %arg7[%c0_15, %c0_16] : memref<1x1024xf32, #tpu.memory_space<vmem>>, vector<1x1024xf32>
    %20 = vector.broadcast %19 : vector<1x1024xf32> to vector<16x1024xf32>
    %21 = arith.addf %18, %20 : vector<16x1024xf32>
    %cst_17 = arith.constant 0.000000e+00 : f32
    %22 = vector.broadcast %cst_17 : f32 to vector<16x1024xf32>
    %23 = arith.maximumf %21, %22 : vector<16x1024xf32>
    %24 = arith.truncf %23 : vector<16x1024xf32> to vector<16x1024xbf16>
    %c0_18 = arith.constant 0 : index
    %c0_19 = arith.constant 0 : index
    %25 = vector.load %arg8[%c0_18, %c0_19] : memref<1024x784xbf16, #tpu.memory_space<vmem>>, vector<1024x784xbf16>
    %cst_20 = arith.constant dense<0.000000e+00> : vector<16x784xf32>
    %26 = tpu.matmul %24, %25, %cst_20 {dimension_numbers = #tpu.dot_dimension_numbers<[1], [0], [0], [1], [0, 0, 1, 1], [], []>} : vector<16x1024xbf16>, vector<1024x784xbf16>, vector<16x784xf32> -> vector<16x784xf32>
    %c0_21 = arith.constant 0 : index
    %c0_22 = arith.constant 0 : index
    %27 = vector.load %arg9[%c0_21, %c0_22] : memref<1x784xf32, #tpu.memory_space<vmem>>, vector<1x784xf32>
    %28 = vector.broadcast %27 : vector<1x784xf32> to vector<16x784xf32>
    %29 = arith.addf %26, %28 : vector<16x784xf32>
    %30 = math.tanh %29 : vector<16x784xf32>
    %31 = arith.truncf %30 : vector<16x784xf32> to vector<16x784xbf16>
    %c0_23 = arith.constant 0 : index
    %c0_24 = arith.constant 0 : index
    %32 = vector.load %arg10[%c0_23, %c0_24] : memref<16x784xbf16, #tpu.memory_space<vmem>>, vector<16x784xbf16>
    tpu.vector_store %arg10[%c0_23, %c0_24], %31 {strides = array<i32>} : memref<16x784xbf16, #tpu.memory_space<vmem>>, vector<16x784xbf16>,
    return
  }
  func.func @transform_0(%arg0: i32) -> (i32, i32) {
    %c0_i32 = arith.constant 0 : i32
    %c0_i32_0 = arith.constant 0 : i32
    return %arg0, %c0_i32 : i32, i32
  }
  func.func @transform_1(%arg0: i32) -> (i32, i32) {
    %c0_i32 = arith.constant 0 : i32
    %c0_i32_0 = arith.constant 0 : i32
    %c0_i32_1 = arith.constant 0 : i32
    return %c0_i32, %c0_i32_0 : i32, i32
  }
  func.func @transform_2(%arg0: i32) -> (i32, i32) {
    %c0_i32 = arith.constant 0 : i32
    %c0_i32_0 = arith.constant 0 : i32
    %c0_i32_1 = arith.constant 0 : i32
    return %c0_i32, %c0_i32_0 : i32, i32
  }
  func.func @transform_3(%arg0: i32) -> (i32, i32) {
    %c0_i32 = arith.constant 0 : i32
    %c0_i32_0 = arith.constant 0 : i32
    %c0_i32_1 = arith.constant 0 : i32
    return %c0_i32, %c0_i32_0 : i32, i32
  }
  func.func @transform_4(%arg0: i32) -> (i32, i32) {
    %c0_i32 = arith.constant 0 : i32
    %c0_i32_0 = arith.constant 0 : i32
    %c0_i32_1 = arith.constant 0 : i32
    return %c0_i32, %c0_i32_0 : i32, i32
  }
  func.func @transform_5(%arg0: i32) -> (i32, i32) {
    %c0_i32 = arith.constant 0 : i32
    %c0_i32_0 = arith.constant 0 : i32
    %c0_i32_1 = arith.constant 0 : i32
    return %c0_i32, %c0_i32_0 : i32, i32
  }
  func.func @transform_6(%arg0: i32) -> (i32, i32) {
    %c0_i32 = arith.constant 0 : i32
    %c0_i32_0 = arith.constant 0 : i32
    %c0_i32_1 = arith.constant 0 : i32
    return %c0_i32, %c0_i32_0 : i32, i32
  }
  func.func @transform_7(%arg0: i32) -> (i32, i32) {
    %c0_i32 = arith.constant 0 : i32
    %c0_i32_0 = arith.constant 0 : i32
    %c0_i32_1 = arith.constant 0 : i32
    return %c0_i32, %c0_i32_0 : i32, i32
  }
  func.func @transform_8(%arg0: i32) -> (i32, i32) {
    %c0_i32 = arith.constant 0 : i32
    %c0_i32_0 = arith.constant 0 : i32
    %c0_i32_1 = arith.constant 0 : i32
    return %c0_i32, %c0_i32_0 : i32, i32
  }
  func.func @transform_9(%arg0: i32) -> (i32, i32) {
    %c0_i32 = arith.constant 0 : i32
    %c0_i32_0 = arith.constant 0 : i32
    return %arg0, %c0_i32 : i32, i32
  }
}

</mosaic_0001>

<llo_original>
// kernel: tpu_custom_call.1
$region0: #{tpu_custom_call.1}
  #allocation0 [shape = 'u32[]', space=smem, size = 0x4, offset = 0x4, fixed_abs, tag = 'smem constant byte address 0x4 - core index']
  #allocation1 [shape = 'u32[72,128]{1,0:T(1,128)}', space=vmem, size = 0x9000, scoped, tag = 'internal scratch']
  %s0 = inlined_call_operand.vmem [shape: bf16[16,128], index: 0, kind: input, shape index: {}]
  %s1 = inlined_call_operand.vmem [shape: bf16[128,256], index: 1, kind: input, shape index: {}]
  %s2 = inlined_call_operand.vmem [shape: f32[1,256], index: 2, kind: input, shape index: {}]
  %s3 = inlined_call_operand.vmem [shape: bf16[256,512], index: 3, kind: input, shape index: {}]
  %s4 = inlined_call_operand.vmem [shape: f32[1,512], index: 4, kind: input, shape index: {}]
  %s5 = inlined_call_operand.vmem [shape: bf16[512,1024], index: 5, kind: input, shape index: {}]
  %s6 = inlined_call_operand.vmem [shape: f32[1,1024], index: 6, kind: input, shape index: {}]
  %s7 = inlined_call_operand.vmem [shape: bf16[1024,784], index: 7, kind: input, shape index: {}]
  %s8 = inlined_call_operand.vmem [shape: f32[1,784], index: 8, kind: input, shape index: {}]
  %s9 = inlined_call_operand.hbm [shape: bf16[16,784], index: 9, kind: output, shape index: {}]
  %s10 = sld [smem:[#allocation0]]
  $region46: #{tpu_custom_call.1} parent=0
    _
  %s12 = ssub.s32 1, %s10
  %s13 = scalar_select 0, %s12, %s10
  $region1: #{tpu_custom_call.1} parent=0
    #allocation2 [shape = 'u8[28672]{0}', space=vmem, size = 0x7000, scoped, tag = 'output window, operand 0, single buffered']
    #allocation3 [shape = 's32[1]{0}', space=sflag, size = 0x4, scoped, tag = 'scoped memory for tpu_custom_call.1']
    %14 = vsyncpa [#allocation3], 0
    // Predicated region
    $region2: #{tpu_custom_call.1} parent=1 // pred_check
      _
    $region3: #{tpu_custom_call.1} parent=1 // pred_check_branch
      %16 = sbr.rel (0) target = $region5
    $region4: #{tpu_custom_call.1} parent=1 // pred_region
      _
    $region5: #{tpu_custom_call.1} parent=1 // pred_fallthru
      _
    // Predicated region
    $region6: #{tpu_custom_call.1} parent=1 // pred_check
      _
    $region7: #{tpu_custom_call.1} parent=1 // pred_check_branch
      %18 = sbr.rel (0) target = $region9
    $region8: #{tpu_custom_call.1} parent=1 // pred_region
      _
    $region9: #{tpu_custom_call.1} parent=1 // pred_fallthru
      _
    // Predicated region
    $region10: #{tpu_custom_call.1} parent=1 // pred_check
      _
    $region11: #{tpu_custom_call.1} parent=1 // pred_check_branch
      %20 = sbr.rel (0) target = $region13
    $region12: #{tpu_custom_call.1} parent=1 // pred_region
      _
    $region13: #{tpu_custom_call.1} parent=1 // pred_fallthru
      _
    // Predicated region
    $region14: #{tpu_custom_call.1} parent=1 // pred_check
      _
    $region15: #{tpu_custom_call.1} parent=1 // pred_check_branch
      %22 = sbr.rel (0) target = $region17
    $region16: #{tpu_custom_call.1} parent=1 // pred_region
      _
    $region17: #{tpu_custom_call.1} parent=1 // pred_fallthru
      _
    // Predicated region
    $region18: #{tpu_custom_call.1} parent=1 // pred_check
      _
    $region19: #{tpu_custom_call.1} parent=1 // pred_check_branch
      %24 = sbr.rel (0) target = $region21
    $region20: #{tpu_custom_call.1} parent=1 // pred_region
      _
    $region21: #{tpu_custom_call.1} parent=1 // pred_fallthru
      _
    // Predicated region
    $region22: #{tpu_custom_call.1} parent=1 // pred_check
      _
    $region23: #{tpu_custom_call.1} parent=1 // pred_check_branch
      %26 = sbr.rel (0) target = $region25
    $region24: #{tpu_custom_call.1} parent=1 // pred_region
      _
    $region25: #{tpu_custom_call.1} parent=1 // pred_fallthru
      _
    // Predicated region
    $region26: #{tpu_custom_call.1} parent=1 // pred_check
      _
    $region27: #{tpu_custom_call.1} parent=1 // pred_check_branch
      %28 = sbr.rel (0) target = $region29
    $region28: #{tpu_custom_call.1} parent=1 // pred_region
      _
    $region29: #{tpu_custom_call.1} parent=1 // pred_fallthru
      _
    // Predicated region
    $region30: #{tpu_custom_call.1} parent=1 // pred_check
      _
    $region31: #{tpu_custom_call.1} parent=1 // pred_check_branch
      %30 = sbr.rel (0) target = $region33
    $region32: #{tpu_custom_call.1} parent=1 // pred_region
      _
    $region33: #{tpu_custom_call.1} parent=1 // pred_fallthru
      _
    // Predicated region
    $region34: #{tpu_custom_call.1} parent=1 // pred_check
      _
    $region35: #{tpu_custom_call.1} parent=1 // pred_check_branch
      %32 = sbr.rel (0) target = $region37
    $region36: #{tpu_custom_call.1} parent=1 // pred_region
      _
    $region37: #{tpu_custom_call.1} parent=1 // pred_fallthru
      _
    %v33 = vld [vmem:[%s0] sm:$0xf]
    %v34 = vld [vmem:[%s0 + $0x4] sm:$0xf]
    %v35 = vld [vmem:[%s1] sm:$0xff]
    %v36 = vld [vmem:[%s1 + $0x8] sm:$0xff]
    %v37 = vld [vmem:[%s1 + $0x10] sm:$0xff]
    %v38 = vld [vmem:[%s1 + $0x18] sm:$0xff]
    %v39 = vld [vmem:[%s1 + $0x20] sm:$0xff]
    %v40 = vld [vmem:[%s1 + $0x28] sm:$0xff]
    %v41 = vld [vmem:[%s1 + $0x30] sm:$0xff]
    %v42 = vld [vmem:[%s1 + $0x38] sm:$0xff]
    %v43 = vld [vmem:[%s1 + $0x40] sm:$0xff]
    %v44 = vld [vmem:[%s1 + $0x48] sm:$0xff]
    %v45 = vld [vmem:[%s1 + $0x50] sm:$0xff]
    %v46 = vld [vmem:[%s1 + $0x58] sm:$0xff]
    %v47 = vld [vmem:[%s1 + $0x60] sm:$0xff]
    %v48 = vld [vmem:[%s1 + $0x68] sm:$0xff]
    %v49 = vld [vmem:[%s1 + $0x70] sm:$0xff]
    %v50 = vld [vmem:[%s1 + $0x78] sm:$0xff]
    %v51 = vld [vmem:[%s2] sm:$0x3]
    %v53 = vperm.slane %v51, 0
    %v54 = vperm.slane %v51, 1
    %v59 = vunpack.c.l.b16 %v33
    %v60 = vunpack.c.l.b16 %v34
    %v61 = vpack.c.b16 %v60, %v59
    %v79 = vunpack.c.l.b16 %v35
    %v80 = vunpack.c.h.b16 %v35
    %v81 = vunpack.c.l.b16 %v36
    %v82 = vunpack.c.h.b16 %v36
    %v83 = vunpack.c.l.b16 %v37
    %v84 = vunpack.c.h.b16 %v37
    %v85 = vunpack.c.l.b16 %v38
    %v86 = vunpack.c.h.b16 %v38
    %v87 = vunpack.c.l.b16 %v39
    %v88 = vunpack.c.h.b16 %v39
    %v89 = vunpack.c.l.b16 %v40
    %v90 = vunpack.c.h.b16 %v40
    %v91 = vunpack.c.l.b16 %v41
    %v92 = vunpack.c.h.b16 %v41
    %v93 = vunpack.c.l.b16 %v42
    %v94 = vunpack.c.h.b16 %v42
    %v95 = vunpack.c.l.b16 %v43
    %v96 = vunpack.c.h.b16 %v43
    %v97 = vunpack.c.l.b16 %v44
    %v98 = vunpack.c.h.b16 %v44
    %v99 = vunpack.c.l.b16 %v45
    %v100 = vunpack.c.h.b16 %v45
    %v101 = vunpack.c.l.b16 %v46
    %v102 = vunpack.c.h.b16 %v46
    %v103 = vunpack.c.l.b16 %v47
    %v104 = vunpack.c.h.b16 %v47
    %v105 = vunpack.c.l.b16 %v48
    %v106 = vunpack.c.h.b16 %v48
    %v107 = vunpack.c.l.b16 %v49
    %v108 = vunpack.c.h.b16 %v49
    %v109 = vunpack.c.l.b16 %v50
    %v110 = vunpack.c.h.b16 %v50
    %v111 = vpack.c.b16 %v81, %v79
    %v112 = vpack.c.b16 %v82, %v80
    %v113 = vpack.c.b16 %v85, %v83
    %v114 = vpack.c.b16 %v86, %v84
    %v115 = vpack.c.b16 %v89, %v87
    %v116 = vpack.c.b16 %v90, %v88
    %v117 = vpack.c.b16 %v93, %v91
    %v118 = vpack.c.b16 %v94, %v92
    %v119 = vpack.c.b16 %v97, %v95
    %v120 = vpack.c.b16 %v98, %v96
    %v121 = vpack.c.b16 %v101, %v99
    %v122 = vpack.c.b16 %v102, %v100
    %v123 = vpack.c.b16 %v105, %v103
    %v124 = vpack.c.b16 %v106, %v104
    %v125 = vpack.c.b16 %v109, %v107
    %v126 = vpack.c.b16 %v110, %v108
    %143 = vmatpush.bf16.msra.mxu0 %v125
    %144 = vmatpush.bf16.msra.mxu0 %v123
    %145 = vmatpush.bf16.msra.mxu0 %v121
    %146 = vmatpush.bf16.msra.mxu0 %v119
    %147 = vmatpush.bf16.msra.mxu0 %v117
    %148 = vmatpush.bf16.msra.mxu0 %v115
    %149 = vmatpush.bf16.msra.mxu0 %v113
    %150 = vmatpush.bf16.msra.mxu0 %v111
    %151 = vmatmul.bf16.gmra.mxu0 %v61
    %v152 = vpop.f32.mrf.mxu0
    %v153 = vadd.f32 %v53, %v152
    %v154 = vpop.f32.mrf.mxu0
    %v155 = vadd.f32 %v53, %v154
    %156 = vdwg.mxu0
    %157 = vmatpush.bf16.msra.mxu0 %v126
    %158 = vmatpush.bf16.msra.mxu0 %v124
    %159 = vmatpush.bf16.msra.mxu0 %v122
    %160 = vmatpush.bf16.msra.mxu0 %v120
    %161 = vmatpush.bf16.msra.mxu0 %v118
    %162 = vmatpush.bf16.msra.mxu0 %v116
    %163 = vmatpush.bf16.msra.mxu0 %v114
    %164 = vmatpush.bf16.msra.mxu0 %v112
    %165 = vmatmul.bf16.gmra.mxu0 %v61
    %v166 = vpop.f32.mrf.mxu0
    %v167 = vadd.f32 %v54, %v166
    %v168 = vpop.f32.mrf.mxu0
    %v169 = vadd.f32 %v54, %v168
    %170 = vdwg.mxu0
    %v171 = vmax.f32 %v153, 0.0
    %v172 = vmax.f32 %v167, 0.0
    %v173 = vmax.f32 %v155, 0.0
    %v174 = vmax.f32 %v169, 0.0
    %v175 = vpack.c.bf16 %v173, %v171
    %v176 = vpack.c.bf16 %v174, %v172
    %v177 = vld [vmem:[%s3] sm:$0xff]
    %v178 = vld [vmem:[%s3 + $0x8] sm:$0xff]
    %v179 = vld [vmem:[%s3 + $0x10] sm:$0xff]
    %v180 = vld [vmem:[%s3 + $0x18] sm:$0xff]
    %v181 = vld [vmem:[%s3 + $0x20] sm:$0xff]
    %v182 = vld [vmem:[%s3 + $0x28] sm:$0xff]
    %v183 = vld [vmem:[%s3 + $0x30] sm:$0xff]
    %v184 = vld [vmem:[%s3 + $0x38] sm:$0xff]
    %v185 = vld [vmem:[%s3 + $0x40] sm:$0xff]
    %v186 = vld [vmem:[%s3 + $0x48] sm:$0xff]
    %v187 = vld [vmem:[%s3 + $0x50] sm:$0xff]
    %v188 = vld [vmem:[%s3 + $0x58] sm:$0xff]
    %v189 = vld [vmem:[%s3 + $0x60] sm:$0xff]
    %v190 = vld [vmem:[%s3 + $0x68] sm:$0xff]
    %v191 = vld [vmem:[%s3 + $0x70] sm:$0xff]
    %v192 = vld [vmem:[%s3 + $0x78] sm:$0xff]
    %v193 = vld [vmem:[%s3 + $0x80] sm:$0xff]
    %v194 = vld [vmem:[%s3 + $0x88] sm:$0xff]
    %v195 = vld [vmem:[%s3 + $0x90] sm:$0xff]
    %v196 = vld [vmem:[%s3 + $0x98] sm:$0xff]
    %v197 = vld [vmem:[%s3 + $0xa0] sm:$0xff]
    %v198 = vld [vmem:[%s3 + $0xa8] sm:$0xff]
    %v199 = vld [vmem:[%s3 + $0xb0] sm:$0xff]
    %v200 = vld [vmem:[%s3 + $0xb8] sm:$0xff]
    %v201 = vld [vmem:[%s3 + $0xc0] sm:$0xff]
    %v202 = vld [vmem:[%s3 + $0xc8] sm:$0xff]
    %v203 = vld [vmem:[%s3 + $0xd0] sm:$0xff]
    %v204 = vld [vmem:[%s3 + $0xd8] sm:$0xff]
    %v205 = vld [vmem:[%s3 + $0xe0] sm:$0xff]
    %v206 = vld [vmem:[%s3 + $0xe8] sm:$0xff]
    %v207 = vld [vmem:[%s3 + $0xf0] sm:$0xff]
    %v208 = vld [vmem:[%s3 + $0xf8] sm:$0xff]
    %v209 = vld [vmem:[%s3 + $0x100] sm:$0xff]
    %v210 = vld [vmem:[%s3 + $0x108] sm:$0xff]
    %v211 = vld [vmem:[%s3 + $0x110] sm:$0xff]
    %v212 = vld [vmem:[%s3 + $0x118] sm:$0xff]
    %v213 = vld [vmem:[%s3 + $0x120] sm:$0xff]
    %v214 = vld [vmem:[%s3 + $0x128] sm:$0xff]
    %v215 = vld [vmem:[%s3 + $0x130] sm:$0xff]
    %v216 = vld [vmem:[%s3 + $0x138] sm:$0xff]
    %v217 = vld [vmem:[%s3 + $0x140] sm:$0xff]
    %v218 = vld [vmem:[%s3 + $0x148] sm:$0xff]
    %v219 = vld [vmem:[%s3 + $0x150] sm:$0xff]
    %v220 = vld [vmem:[%s3 + $0x158] sm:$0xff]
    %v221 = vld [vmem:[%s3 + $0x160] sm:$0xff]
    %v222 = vld [vmem:[%s3 + $0x168] sm:$0xff]
    %v223 = vld [vmem:[%s3 + $0x170] sm:$0xff]
    %v224 = vld [vmem:[%s3 + $0x178] sm:$0xff]
    %v225 = vld [vmem:[%s3 + $0x180] sm:$0xff]
    %v226 = vld [vmem:[%s3 + $0x188] sm:$0xff]
    %v227 = vld [vmem:[%s3 + $0x190] sm:$0xff]
    %v228 = vld [vmem:[%s3 + $0x198] sm:$0xff]
    %v229 = vld [vmem:[%s3 + $0x1a0] sm:$0xff]
    %v230 = vld [vmem:[%s3 + $0x1a8] sm:$0xff]
    %v231 = vld [vmem:[%s3 + $0x1b0] sm:$0xff]
    %v232 = vld [vmem:[%s3 + $0x1b8] sm:$0xff]
    %v233 = vld [vmem:[%s3 + $0x1c0] sm:$0xff]
    %v234 = vld [vmem:[%s3 + $0x1c8] sm:$0xff]
    %v235 = vld [vmem:[%s3 + $0x1d0] sm:$0xff]
    %v236 = vld [vmem:[%s3 + $0x1d8] sm:$0xff]
    %v237 = vld [vmem:[%s3 + $0x1e0] sm:$0xff]
    %v238 = vld [vmem:[%s3 + $0x1e8] sm:$0xff]
    %v239 = vld [vmem:[%s3 + $0x1f0] sm:$0xff]
    %v240 = vld [vmem:[%s3 + $0x1f8] sm:$0xff]
    %v241 = vld [vmem:[%s4] sm:$0xf]
    %v243 = vperm.slane %v241, 0
    %v244 = vperm.slane %v241, 1
    %v245 = vperm.slane %v241, 2
    %v246 = vperm.slane %v241, 3
    %v315 = vunpack.c.l.b16 %v177
    %v316 = vunpack.c.h.b16 %v177
    %v317 = vunpack.c.l.b16 %v178
    %v318 = vunpack.c.h.b16 %v178
    %v319 = vunpack.c.l.b16 %v179
    %v320 = vunpack.c.h.b16 %v179
    %v321 = vunpack.c.l.b16 %v180
    %v322 = vunpack.c.h.b16 %v180
    %v323 = vunpack.c.l.b16 %v181
    %v324 = vunpack.c.h.b16 %v181
    %v325 = vunpack.c.l.b16 %v182
    %v326 = vunpack.c.h.b16 %v182
    %v327 = vunpack.c.l.b16 %v183
    %v328 = vunpack.c.h.b16 %v183
    %v329 = vunpack.c.l.b16 %v184
    %v330 = vunpack.c.h.b16 %v184
    %v331 = vunpack.c.l.b16 %v185
    %v332 = vunpack.c.h.b16 %v185
    %v333 = vunpack.c.l.b16 %v186
    %v334 = vunpack.c.h.b16 %v186
    %v335 = vunpack.c.l.b16 %v187
    %v336 = vunpack.c.h.b16 %v187
    %v337 = vunpack.c.l.b16 %v188
    %v338 = vunpack.c.h.b16 %v188
    %v339 = vunpack.c.l.b16 %v189
    %v340 = vunpack.c.h.b16 %v189
    %v341 = vunpack.c.l.b16 %v190
    %v342 = vunpack.c.h.b16 %v190
    %v343 = vunpack.c.l.b16 %v191
    %v344 = vunpack.c.h.b16 %v191
    %v345 = vunpack.c.l.b16 %v192
    %v346 = vunpack.c.h.b16 %v192
    %v347 = vunpack.c.l.b16 %v193
    %v348 = vunpack.c.h.b16 %v193
    %v349 = vunpack.c.l.b16 %v194
    %v350 = vunpack.c.h.b16 %v194
    %v351 = vunpack.c.l.b16 %v195
    %v352 = vunpack.c.h.b16 %v195
    %v353 = vunpack.c.l.b16 %v196
    %v354 = vunpack.c.h.b16 %v196
    %v355 = vunpack.c.l.b16 %v197
    %v356 = vunpack.c.h.b16 %v197
    %v357 = vunpack.c.l.b16 %v198
    %v358 = vunpack.c.h.b16 %v198
    %v359 = vunpack.c.l.b16 %v199
    %v360 = vunpack.c.h.b16 %v199
    %v361 = vunpack.c.l.b16 %v200
    %v362 = vunpack.c.h.b16 %v200
    %v363 = vunpack.c.l.b16 %v201
    %v364 = vunpack.c.h.b16 %v201
    %v365 = vunpack.c.l.b16 %v202
    %v366 = vunpack.c.h.b16 %v202
    %v367 = vunpack.c.l.b16 %v203
    %v368 = vunpack.c.h.b16 %v203
    %v369 = vunpack.c.l.b16 %v204
    %v370 = vunpack.c.h.b16 %v204
    %v371 = vunpack.c.l.b16 %v205
    %v372 = vunpack.c.h.b16 %v205
    %v373 = vunpack.c.l.b16 %v206
    %v374 = vunpack.c.h.b16 %v206
    %v375 = vunpack.c.l.b16 %v207
    %v376 = vunpack.c.h.b16 %v207
    %v377 = vunpack.c.l.b16 %v208
    %v378 = vunpack.c.h.b16 %v208
    %v379 = vunpack.c.l.b16 %v209
    %v380 = vunpack.c.h.b16 %v209
    %v381 = vunpack.c.l.b16 %v210
    %v382 = vunpack.c.h.b16 %v210
    %v383 = vunpack.c.l.b16 %v211
    %v384 = vunpack.c.h.b16 %v211
    %v385 = vunpack.c.l.b16 %v212
    %v386 = vunpack.c.h.b16 %v212
    %v387 = vunpack.c.l.b16 %v213
    %v388 = vunpack.c.h.b16 %v213
    %v389 = vunpack.c.l.b16 %v214
    %v390 = vunpack.c.h.b16 %v214
    %v391 = vunpack.c.l.b16 %v215
    %v392 = vunpack.c.h.b16 %v215
    %v393 = vunpack.c.l.b16 %v216
    %v394 = vunpack.c.h.b16 %v216
    %v395 = vunpack.c.l.b16 %v217
    %v396 = vunpack.c.h.b16 %v217
    %v397 = vunpack.c.l.b16 %v218
    %v398 = vunpack.c.h.b16 %v218
    %v399 = vunpack.c.l.b16 %v219
    %v400 = vunpack.c.h.b16 %v219
    %v401 = vunpack.c.l.b16 %v220
    %v402 = vunpack.c.h.b16 %v220
    %v403 = vunpack.c.l.b16 %v221
    %v404 = vunpack.c.h.b16 %v221
    %v405 = vunpack.c.l.b16 %v222
    %v406 = vunpack.c.h.b16 %v222
    %v407 = vunpack.c.l.b16 %v223
    %v408 = vunpack.c.h.b16 %v223
    %v409 = vunpack.c.l.b16 %v224
    %v410 = vunpack.c.h.b16 %v224
    %v411 = vunpack.c.l.b16 %v225
    %v412 = vunpack.c.h.b16 %v225
    %v413 = vunpack.c.l.b16 %v226
    %v414 = vunpack.c.h.b16 %v226
    %v415 = vunpack.c.l.b16 %v227
    %v416 = vunpack.c.h.b16 %v227
    %v417 = vunpack.c.l.b16 %v228
    %v418 = vunpack.c.h.b16 %v228
    %v419 = vunpack.c.l.b16 %v229
    %v420 = vunpack.c.h.b16 %v229
    %v421 = vunpack.c.l.b16 %v230
    %v422 = vunpack.c.h.b16 %v230
    %v423 = vunpack.c.l.b16 %v231
    %v424 = vunpack.c.h.b16 %v231
    %v425 = vunpack.c.l.b16 %v232
    %v426 = vunpack.c.h.b16 %v232
    %v427 = vunpack.c.l.b16 %v233
    %v428 = vunpack.c.h.b16 %v233
    %v429 = vunpack.c.l.b16 %v234
    %v430 = vunpack.c.h.b16 %v234
    %v431 = vunpack.c.l.b16 %v235
    %v432 = vunpack.c.h.b16 %v235
    %v433 = vunpack.c.l.b16 %v236
    %v434 = vunpack.c.h.b16 %v236
    %v435 = vunpack.c.l.b16 %v237
    %v436 = vunpack.c.h.b16 %v237
    %v437 = vunpack.c.l.b16 %v238
    %v438 = vunpack.c.h.b16 %v238
    %v439 = vunpack.c.l.b16 %v239
    %v440 = vunpack.c.h.b16 %v239
    %v441 = vunpack.c.l.b16 %v240
    %v442 = vunpack.c.h.b16 %v240
    %v443 = vpack.c.b16 %v319, %v315
    %v444 = vpack.c.b16 %v320, %v316
    %v445 = vpack.c.b16 %v321, %v317
    %v446 = vpack.c.b16 %v322, %v318
    %v447 = vpack.c.b16 %v327, %v323
    %v448 = vpack.c.b16 %v328, %v324
    %v449 = vpack.c.b16 %v329, %v325
    %v450 = vpack.c.b16 %v330, %v326
    %v451 = vpack.c.b16 %v335, %v331
    %v452 = vpack.c.b16 %v336, %v332
    %v453 = vpack.c.b16 %v337, %v333
    %v454 = vpack.c.b16 %v338, %v334
    %v455 = vpack.c.b16 %v343, %v339
    %v456 = vpack.c.b16 %v344, %v340
    %v457 = vpack.c.b16 %v345, %v341
    %v458 = vpack.c.b16 %v346, %v342
    %v459 = vpack.c.b16 %v351, %v347
    %v460 = vpack.c.b16 %v352, %v348
    %v461 = vpack.c.b16 %v353, %v349
    %v462 = vpack.c.b16 %v354, %v350
    %v463 = vpack.c.b16 %v359, %v355
    %v464 = vpack.c.b16 %v360, %v356
    %v465 = vpack.c.b16 %v361, %v357
    %v466 = vpack.c.b16 %v362, %v358
    %v467 = vpack.c.b16 %v367, %v363
    %v468 = vpack.c.b16 %v368, %v364
    %v469 = vpack.c.b16 %v369, %v365
    %v470 = vpack.c.b16 %v370, %v366
    %v471 = vpack.c.b16 %v375, %v371
    %v472 = vpack.c.b16 %v376, %v372
    %v473 = vpack.c.b16 %v377, %v373
    %v474 = vpack.c.b16 %v378, %v374
    %v475 = vpack.c.b16 %v383, %v379
    %v476 = vpack.c.b16 %v384, %v380
    %v477 = vpack.c.b16 %v385, %v381
    %v478 = vpack.c.b16 %v386, %v382
    %v479 = vpack.c.b16 %v391, %v387
    %v480 = vpack.c.b16 %v392, %v388
    %v481 = vpack.c.b16 %v393, %v389
    %v482 = vpack.c.b16 %v394, %v390
    %v483 = vpack.c.b16 %v399, %v395
    %v484 = vpack.c.b16 %v400, %v396
    %v485 = vpack.c.b16 %v401, %v397
    %v486 = vpack.c.b16 %v402, %v398
    %v487 = vpack.c.b16 %v407, %v403
    %v488 = vpack.c.b16 %v408, %v404
    %v489 = vpack.c.b16 %v409, %v405
    %v490 = vpack.c.b16 %v410, %v406
    %v491 = vpack.c.b16 %v415, %v411
    %v492 = vpack.c.b16 %v416, %v412
    %v493 = vpack.c.b16 %v417, %v413
    %v494 = vpack.c.b16 %v418, %v414
    %v495 = vpack.c.b16 %v423, %v419
    %v496 = vpack.c.b16 %v424, %v420
    %v497 = vpack.c.b16 %v425, %v421
    %v498 = vpack.c.b16 %v426, %v422
    %v499 = vpack.c.b16 %v431, %v427
    %v500 = vpack.c.b16 %v432, %v428
    %v501 = vpack.c.b16 %v433, %v429
    %v502 = vpack.c.b16 %v434, %v430
    %v503 = vpack.c.b16 %v439, %v435
    %v504 = vpack.c.b16 %v440, %v436
    %v505 = vpack.c.b16 %v441, %v437
    %v506 = vpack.c.b16 %v442, %v438
    %571 = vmatpush.bf16.msra.mxu0 %v471
    %572 = vmatpush.bf16.msra.mxu0 %v467
    %573 = vmatpush.bf16.msra.mxu0 %v463
    %574 = vmatpush.bf16.msra.mxu0 %v459
    %575 = vmatpush.bf16.msra.mxu0 %v455
    %576 = vmatpush.bf16.msra.mxu0 %v451
    %577 = vmatpush.bf16.msra.mxu0 %v447
    %578 = vmatpush.bf16.msra.mxu0 %v443
    %579 = vmatmul.bf16.gmra.mxu0 %v175
    %v580 = vpop.f32.mrf.mxu0
    %v581 = vadd.f32 %v243, %v580
    %v582 = vpop.f32.mrf.mxu0
    %v583 = vadd.f32 %v243, %v582
    %584 = vdwg.mxu0
    %585 = vmatpush.bf16.msra.mxu0 %v503
    %586 = vmatpush.bf16.msra.mxu0 %v499
    %587 = vmatpush.bf16.msra.mxu0 %v495
    %588 = vmatpush.bf16.msra.mxu0 %v491
    %589 = vmatpush.bf16.msra.mxu0 %v487
    %590 = vmatpush.bf16.msra.mxu0 %v483
    %591 = vmatpush.bf16.msra.mxu0 %v479
    %592 = vmatpush.bf16.msra.mxu0 %v475
    %593 = vmatmul.bf16.gmra.mxu0 %v176
    %v594 = vpop.f32.mrf.mxu0
    %v595 = vadd.f32 %v581, %v594
    %v596 = vpop.f32.mrf.mxu0
    %v597 = vadd.f32 %v583, %v596
    %598 = vdwg.mxu0
    %599 = vmatpush.bf16.msra.mxu0 %v472
    %600 = vmatpush.bf16.msra.mxu0 %v468
    %601 = vmatpush.bf16.msra.mxu0 %v464
    %602 = vmatpush.bf16.msra.mxu0 %v460
    %603 = vmatpush.bf16.msra.mxu0 %v456
    %604 = vmatpush.bf16.msra.mxu0 %v452
    %605 = vmatpush.bf16.msra.mxu0 %v448
    %606 = vmatpush.bf16.msra.mxu0 %v444
    %607 = vmatmul.bf16.gmra.mxu0 %v175
    %v608 = vpop.f32.mrf.mxu0
    %v609 = vadd.f32 %v244, %v608
    %v610 = vpop.f32.mrf.mxu0
    %v611 = vadd.f32 %v244, %v610
    %612 = vdwg.mxu0
    %613 = vmatpush.bf16.msra.mxu0 %v504
    %614 = vmatpush.bf16.msra.mxu0 %v500
    %615 = vmatpush.bf16.msra.mxu0 %v496
    %616 = vmatpush.bf16.msra.mxu0 %v492
    %617 = vmatpush.bf16.msra.mxu0 %v488
    %618 = vmatpush.bf16.msra.mxu0 %v484
    %619 = vmatpush.bf16.msra.mxu0 %v480
    %620 = vmatpush.bf16.msra.mxu0 %v476
    %621 = vmatmul.bf16.gmra.mxu0 %v176
    %v622 = vpop.f32.mrf.mxu0
    %v623 = vadd.f32 %v609, %v622
    %v624 = vpop.f32.mrf.mxu0
    %v625 = vadd.f32 %v611, %v624
    %626 = vdwg.mxu0
    %627 = vmatpush.bf16.msra.mxu0 %v473
    %628 = vmatpush.bf16.msra.mxu0 %v469
    %629 = vmatpush.bf16.msra.mxu0 %v465
    %630 = vmatpush.bf16.msra.mxu0 %v461
    %631 = vmatpush.bf16.msra.mxu0 %v457
    %632 = vmatpush.bf16.msra.mxu0 %v453
    %633 = vmatpush.bf16.msra.mxu0 %v449
    %634 = vmatpush.bf16.msra.mxu0 %v445
    %635 = vmatmul.bf16.gmra.mxu0 %v175
    %v636 = vpop.f32.mrf.mxu0
    %v637 = vadd.f32 %v245, %v636
    %v638 = vpop.f32.mrf.mxu0
    %v639 = vadd.f32 %v245, %v638
    %640 = vdwg.mxu0
    %641 = vmatpush.bf16.msra.mxu0 %v505
    %642 = vmatpush.bf16.msra.mxu0 %v501
    %643 = vmatpush.bf16.msra.mxu0 %v497
    %644 = vmatpush.bf16.msra.mxu0 %v493
    %645 = vmatpush.bf16.msra.mxu0 %v489
    %646 = vmatpush.bf16.msra.mxu0 %v485
    %647 = vmatpush.bf16.msra.mxu0 %v481
    %648 = vmatpush.bf16.msra.mxu0 %v477
    %649 = vmatmul.bf16.gmra.mxu0 %v176
    %v650 = vpop.f32.mrf.mxu0
    %v651 = vadd.f32 %v637, %v650
    %v652 = vpop.f32.mrf.mxu0
    %v653 = vadd.f32 %v639, %v652
    %654 = vdwg.mxu0
    %655 = vmatpush.bf16.msra.mxu0 %v474
    %656 = vmatpush.bf16.msra.mxu0 %v470
    %657 = vmatpush.bf16.msra.mxu0 %v466
    %658 = vmatpush.bf16.msra.mxu0 %v462
    %659 = vmatpush.bf16.msra.mxu0 %v458
    %660 = vmatpush.bf16.msra.mxu0 %v454
    %661 = vmatpush.bf16.msra.mxu0 %v450
    %662 = vmatpush.bf16.msra.mxu0 %v446
    %663 = vmatmul.bf16.gmra.mxu0 %v175
    %v664 = vpop.f32.mrf.mxu0
    %v665 = vadd.f32 %v246, %v664
    %v666 = vpop.f32.mrf.mxu0
    %v667 = vadd.f32 %v246, %v666
    %668 = vdwg.mxu0
    %669 = vmatpush.bf16.msra.mxu0 %v506
    %670 = vmatpush.bf16.msra.mxu0 %v502
    %671 = vmatpush.bf16.msra.mxu0 %v498
    %672 = vmatpush.bf16.msra.mxu0 %v494
    %673 = vmatpush.bf16.msra.mxu0 %v490
    %674 = vmatpush.bf16.msra.mxu0 %v486
    %675 = vmatpush.bf16.msra.mxu0 %v482
    %676 = vmatpush.bf16.msra.mxu0 %v478
    %677 = vmatmul.bf16.gmra.mxu0 %v176
    %v678 = vpop.f32.mrf.mxu0
    %v679 = vadd.f32 %v665, %v678
    %v680 = vpop.f32.mrf.mxu0
    %v681 = vadd.f32 %v667, %v680
    %682 = vdwg.mxu0
    %v683 = vmax.f32 %v595, 0.0
    %v684 = vmax.f32 %v623, 0.0
    %v685 = vmax.f32 %v651, 0.0
    %v686 = vmax.f32 %v679, 0.0
    %v687 = vmax.f32 %v597, 0.0
    %v688 = vmax.f32 %v625, 0.0
    %v689 = vmax.f32 %v653, 0.0
    %v690 = vmax.f32 %v681, 0.0
    %v691 = vpack.c.bf16 %v687, %v683
    %v692 = vpack.c.bf16 %v688, %v684
    %v693 = vpack.c.bf16 %v689, %v685
    %v694 = vpack.c.bf16 %v690, %v686
    %v695 = vld [vmem:[%s5] sm:$0xff]
    %v696 = vld [vmem:[%s5 + $0x8] sm:$0xff]
    %v697 = vld [vmem:[%s5 + $0x10] sm:$0xff]
    %v698 = vld [vmem:[%s5 + $0x18] sm:$0xff]
    %v699 = vld [vmem:[%s5 + $0x20] sm:$0xff]
    %v700 = vld [vmem:[%s5 + $0x28] sm:$0xff]
    %v701 = vld [vmem:[%s5 + $0x30] sm:$0xff]
    %v702 = vld [vmem:[%s5 + $0x38] sm:$0xff]
    %v703 = vld [vmem:[%s5 + $0x40] sm:$0xff]
    %v704 = vld [vmem:[%s5 + $0x48] sm:$0xff]
    %v705 = vld [vmem:[%s5 + $0x50] sm:$0xff]
    %v706 = vld [vmem:[%s5 + $0x58] sm:$0xff]
    %v707 = vld [vmem:[%s5 + $0x60] sm:$0xff]
    %v708 = vld [vmem:[%s5 + $0x68] sm:$0xff]
    %v709 = vld [vmem:[%s5 + $0x70] sm:$0xff]
    %v710 = vld [vmem:[%s5 + $0x78] sm:$0xff]
    %v711 = vld [vmem:[%s5 + $0x80] sm:$0xff]
    %v712 = vld [vmem:[%s5 + $0x88] sm:$0xff]
    %v713 = vld [vmem:[%s5 + $0x90] sm:$0xff]
    %v714 = vld [vmem:[%s5 + $0x98] sm:$0xff]
    %v715 = vld [vmem:[%s5 + $0xa0] sm:$0xff]
    %v716 = vld [vmem:[%s5 + $0xa8] sm:$0xff]
    %v717 = vld [vmem:[%s5 + $0xb0] sm:$0xff]
    %v718 = vld [vmem:[%s5 + $0xb8] sm:$0xff]
    %v719 = vld [vmem:[%s5 + $0xc0] sm:$0xff]
    %v720 = vld [vmem:[%s5 + $0xc8] sm:$0xff]
    %v721 = vld [vmem:[%s5 + $0xd0] sm:$0xff]
    %v722 = vld [vmem:[%s5 + $0xd8] sm:$0xff]
    %v723 = vld [vmem:[%s5 + $0xe0] sm:$0xff]
    %v724 = vld [vmem:[%s5 + $0xe8] sm:$0xff]
    %v725 = vld [vmem:[%s5 + $0xf0] sm:$0xff]
    %v726 = vld [vmem:[%s5 + $0xf8] sm:$0xff]
    %v727 = vld [vmem:[%s5 + $0x100] sm:$0xff]
    %v728 = vld [vmem:[%s5 + $0x108] sm:$0xff]
    %v729 = vld [vmem:[%s5 + $0x110] sm:$0xff]
    %v730 = vld [vmem:[%s5 + $0x118] sm:$0xff]
    %v731 = vld [vmem:[%s5 + $0x120] sm:$0xff]
    %v732 = vld [vmem:[%s5 + $0x128] sm:$0xff]
    %v733 = vld [vmem:[%s5 + $0x130] sm:$0xff]
    %v734 = vld [vmem:[%s5 + $0x138] sm:$0xff]
    %v735 = vld [vmem:[%s5 + $0x140] sm:$0xff]
    %v736 = vld [vmem:[%s5 + $0x148] sm:$0xff]
    %v737 = vld [vmem:[%s5 + $0x150] sm:$0xff]
    %v738 = vld [vmem:[%s5 + $0x158] sm:$0xff]
    %v739 = vld [vmem:[%s5 + $0x160] sm:$0xff]
    %v740 = vld [vmem:[%s5 + $0x168] sm:$0xff]
    %v741 = vld [vmem:[%s5 + $0x170] sm:$0xff]
    %v742 = vld [vmem:[%s5 + $0x178] sm:$0xff]
    %v743 = vld [vmem:[%s5 + $0x180] sm:$0xff]
    %v744 = vld [vmem:[%s5 + $0x188] sm:$0xff]
    %v745 = vld [vmem:[%s5 + $0x190] sm:$0xff]
    %v746 = vld [vmem:[%s5 + $0x198] sm:$0xff]
    %v747 = vld [vmem:[%s5 + $0x1a0] sm:$0xff]
    %v748 = vld [vmem:[%s5 + $0x1a8] sm:$0xff]
    %v749 = vld [vmem:[%s5 + $0x1b0] sm:$0xff]
    %v750 = vld [vmem:[%s5 + $0x1b8] sm:$0xff]
    %v751 = vld [vmem:[%s5 + $0x1c0] sm:$0xff]
    %v752 = vld [vmem:[%s5 + $0x1c8] sm:$0xff]
    %v753 = vld [vmem:[%s5 + $0x1d0] sm:$0xff]
    %v754 = vld [vmem:[%s5 + $0x1d8] sm:$0xff]
    %v755 = vld [vmem:[%s5 + $0x1e0] sm:$0xff]
    %v756 = vld [vmem:[%s5 + $0x1e8] sm:$0xff]
    %v757 = vld [vmem:[%s5 + $0x1f0] sm:$0xff]
    %v758 = vld [vmem:[%s5 + $0x1f8] sm:$0xff]
    %v759 = vld [vmem:[%s5 + $0x200] sm:$0xff]
    %v760 = vld [vmem:[%s5 + $0x208] sm:$0xff]
    %v761 = vld [vmem:[%s5 + $0x210] sm:$0xff]
    %v762 = vld [vmem:[%s5 + $0x218] sm:$0xff]
    %v763 = vld [vmem:[%s5 + $0x220] sm:$0xff]
    %v764 = vld [vmem:[%s5 + $0x228] sm:$0xff]
    %v765 = vld [vmem:[%s5 + $0x230] sm:$0xff]
    %v766 = vld [vmem:[%s5 + $0x238] sm:$0xff]
    %v767 = vld [vmem:[%s5 + $0x240] sm:$0xff]
    %v768 = vld [vmem:[%s5 + $0x248] sm:$0xff]
    %v769 = vld [vmem:[%s5 + $0x250] sm:$0xff]
    %v770 = vld [vmem:[%s5 + $0x258] sm:$0xff]
    %v771 = vld [vmem:[%s5 + $0x260] sm:$0xff]
    %v772 = vld [vmem:[%s5 + $0x268] sm:$0xff]
    %v773 = vld [vmem:[%s5 + $0x270] sm:$0xff]
    %v774 = vld [vmem:[%s5 + $0x278] sm:$0xff]
    %v775 = vld [vmem:[%s5 + $0x280] sm:$0xff]
    %v776 = vld [vmem:[%s5 + $0x288] sm:$0xff]
    %v777 = vld [vmem:[%s5 + $0x290] sm:$0xff]
    %v778 = vld [vmem:[%s5 + $0x298] sm:$0xff]
    %v779 = vld [vmem:[%s5 + $0x2a0] sm:$0xff]
    %v780 = vld [vmem:[%s5 + $0x2a8] sm:$0xff]
    %v781 = vld [vmem:[%s5 + $0x2b0] sm:$0xff]
    %v782 = vld [vmem:[%s5 + $0x2b8] sm:$0xff]
    %v783 = vld [vmem:[%s5 + $0x2c0] sm:$0xff]
    %v784 = vld [vmem:[%s5 + $0x2c8] sm:$0xff]
    %v785 = vld [vmem:[%s5 + $0x2d0] sm:$0xff]
    %v786 = vld [vmem:[%s5 + $0x2d8] sm:$0xff]
    %v787 = vld [vmem:[%s5 + $0x2e0] sm:$0xff]
    %v788 = vld [vmem:[%s5 + $0x2e8] sm:$0xff]
    %v789 = vld [vmem:[%s5 + $0x2f0] sm:$0xff]
    %v790 = vld [vmem:[%s5 + $0x2f8] sm:$0xff]
    %v791 = vld [vmem:[%s5 + $0x300] sm:$0xff]
    %v792 = vld [vmem:[%s5 + $0x308] sm:$0xff]
    %v793 = vld [vmem:[%s5 + $0x310] sm:$0xff]
    %v794 = vld [vmem:[%s5 + $0x318] sm:$0xff]
    %v795 = vld [vmem:[%s5 + $0x320] sm:$0xff]
    %v796 = vld [vmem:[%s5 + $0x328] sm:$0xff]
    %v797 = vld [vmem:[%s5 + $0x330] sm:$0xff]
    %v798 = vld [vmem:[%s5 + $0x338] sm:$0xff]
    %v799 = vld [vmem:[%s5 + $0x340] sm:$0xff]
    %v800 = vld [vmem:[%s5 + $0x348] sm:$0xff]
    %v801 = vld [vmem:[%s5 + $0x350] sm:$0xff]
    %v802 = vld [vmem:[%s5 + $0x358] sm:$0xff]
    %v803 = vld [vmem:[%s5 + $0x360] sm:$0xff]
    %v804 = vld [vmem:[%s5 + $0x368] sm:$0xff]
    %v805 = vld [vmem:[%s5 + $0x370] sm:$0xff]
    %v806 = vld [vmem:[%s5 + $0x378] sm:$0xff]
    %v807 = vld [vmem:[%s5 + $0x380] sm:$0xff]
    %v808 = vld [vmem:[%s5 + $0x388] sm:$0xff]
    %v809 = vld [vmem:[%s5 + $0x390] sm:$0xff]
    %v810 = vld [vmem:[%s5 + $0x398] sm:$0xff]
    %v811 = vld [vmem:[%s5 + $0x3a0] sm:$0xff]
    %v812 = vld [vmem:[%s5 + $0x3a8] sm:$0xff]
    %v813 = vld [vmem:[%s5 + $0x3b0] sm:$0xff]
    %v814 = vld [vmem:[%s5 + $0x3b8] sm:$0xff]
    %v815 = vld [vmem:[%s5 + $0x3c0] sm:$0xff]
    %v816 = vld [vmem:[%s5 + $0x3c8] sm:$0xff]
    %v817 = vld [vmem:[%s5 + $0x3d0] sm:$0xff]
    %v818 = vld [vmem:[%s5 + $0x3d8] sm:$0xff]
    %v819 = vld [vmem:[%s5 + $0x3e0] sm:$0xff]
    %v820 = vld [vmem:[%s5 + $0x3e8] sm:$0xff]
    %v821 = vld [vmem:[%s5 + $0x3f0] sm:$0xff]
    %v822 = vld [vmem:[%s5 + $0x3f8] sm:$0xff]
    %v823 = vld [vmem:[%s5 + $0x400] sm:$0xff]
    %v824 = vld [vmem:[%s5 + $0x408] sm:$0xff]
    %v825 = vld [vmem:[%s5 + $0x410] sm:$0xff]
    %v826 = vld [vmem:[%s5 + $0x418] sm:$0xff]
    %v827 = vld [vmem:[%s5 + $0x420] sm:$0xff]
    %v828 = vld [vmem:[%s5 + $0x428] sm:$0xff]
    %v829 = vld [vmem:[%s5 + $0x430] sm:$0xff]
    %v830 = vld [vmem:[%s5 + $0x438] sm:$0xff]
    %v831 = vld [vmem:[%s5 + $0x440] sm:$0xff]
    %v832 = vld [vmem:[%s5 + $0x448] sm:$0xff]
    %v833 = vld [vmem:[%s5 + $0x450] sm:$0xff]
    %v834 = vld [vmem:[%s5 + $0x458] sm:$0xff]
    %v835 = vld [vmem:[%s5 + $0x460] sm:$0xff]
    %v836 = vld [vmem:[%s5 + $0x468] sm:$0xff]
    %v837 = vld [vmem:[%s5 + $0x470] sm:$0xff]
    %v838 = vld [vmem:[%s5 + $0x478] sm:$0xff]
    %v839 = vld [vmem:[%s5 + $0x480] sm:$0xff]
    %v840 = vld [vmem:[%s5 + $0x488] sm:$0xff]
    %v841 = vld [vmem:[%s5 + $0x490] sm:$0xff]
    %v842 = vld [vmem:[%s5 + $0x498] sm:$0xff]
    %v843 = vld [vmem:[%s5 + $0x4a0] sm:$0xff]
    %v844 = vld [vmem:[%s5 + $0x4a8] sm:$0xff]
    %v845 = vld [vmem:[%s5 + $0x4b0] sm:$0xff]
    %v846 = vld [vmem:[%s5 + $0x4b8] sm:$0xff]
    %v847 = vld [vmem:[%s5 + $0x4c0] sm:$0xff]
    %v848 = vld [vmem:[%s5 + $0x4c8] sm:$0xff]
    %v849 = vld [vmem:[%s5 + $0x4d0] sm:$0xff]
    %v850 = vld [vmem:[%s5 + $0x4d8] sm:$0xff]
    %v851 = vld [vmem:[%s5 + $0x4e0] sm:$0xff]
    %v852 = vld [vmem:[%s5 + $0x4e8] sm:$0xff]
    %v853 = vld [vmem:[%s5 + $0x4f0] sm:$0xff]
    %v854 = vld [vmem:[%s5 + $0x4f8] sm:$0xff]
    %v855 = vld [vmem:[%s5 + $0x500] sm:$0xff]
    %v856 = vld [vmem:[%s5 + $0x508] sm:$0xff]
    %v857 = vld [vmem:[%s5 + $0x510] sm:$0xff]
    %v858 = vld [vmem:[%s5 + $0x518] sm:$0xff]
    %v859 = vld [vmem:[%s5 + $0x520] sm:$0xff]
    %v860 = vld [vmem:[%s5 + $0x528] sm:$0xff]
    %v861 = vld [vmem:[%s5 + $0x530] sm:$0xff]
    %v862 = vld [vmem:[%s5 + $0x538] sm:$0xff]
    %v863 = vld [vmem:[%s5 + $0x540] sm:$0xff]
    %v864 = vld [vmem:[%s5 + $0x548] sm:$0xff]
    %v865 = vld [vmem:[%s5 + $0x550] sm:$0xff]
    %v866 = vld [vmem:[%s5 + $0x558] sm:$0xff]
    %v867 = vld [vmem:[%s5 + $0x560] sm:$0xff]
    %v868 = vld [vmem:[%s5 + $0x568] sm:$0xff]
    %v869 = vld [vmem:[%s5 + $0x570] sm:$0xff]
    %v870 = vld [vmem:[%s5 + $0x578] sm:$0xff]
    %v871 = vld [vmem:[%s5 + $0x580] sm:$0xff]
    %v872 = vld [vmem:[%s5 + $0x588] sm:$0xff]
    %v873 = vld [vmem:[%s5 + $0x590] sm:$0xff]
    %v874 = vld [vmem:[%s5 + $0x598] sm:$0xff]
    %v875 = vld [vmem:[%s5 + $0x5a0] sm:$0xff]
    %v876 = vld [vmem:[%s5 + $0x5a8] sm:$0xff]
    %v877 = vld [vmem:[%s5 + $0x5b0] sm:$0xff]
    %v878 = vld [vmem:[%s5 + $0x5b8] sm:$0xff]
    %v879 = vld [vmem:[%s5 + $0x5c0] sm:$0xff]
    %v880 = vld [vmem:[%s5 + $0x5c8] sm:$0xff]
    %v881 = vld [vmem:[%s5 + $0x5d0] sm:$0xff]
    %v882 = vld [vmem:[%s5 + $0x5d8] sm:$0xff]
    %v883 = vld [vmem:[%s5 + $0x5e0] sm:$0xff]
    %v884 = vld [vmem:[%s5 + $0x5e8] sm:$0xff]
    %v885 = vld [vmem:[%s5 + $0x5f0] sm:$0xff]
    %v886 = vld [vmem:[%s5 + $0x5f8] sm:$0xff]
    %v887 = vld [vmem:[%s5 + $0x600] sm:$0xff]
    %v888 = vld [vmem:[%s5 + $0x608] sm:$0xff]
    %v889 = vld [vmem:[%s5 + $0x610] sm:$0xff]
    %v890 = vld [vmem:[%s5 + $0x618] sm:$0xff]
    %v891 = vld [vmem:[%s5 + $0x620] sm:$0xff]
    %v892 = vld [vmem:[%s5 + $0x628] sm:$0xff]
    %v893 = vld [vmem:[%s5 + $0x630] sm:$0xff]
    %v894 = vld [vmem:[%s5 + $0x638] sm:$0xff]
    %v895 = vld [vmem:[%s5 + $0x640] sm:$0xff]
    %v896 = vld [vmem:[%s5 + $0x648] sm:$0xff]
    %v897 = vld [vmem:[%s5 + $0x650] sm:$0xff]
    %v898 = vld [vmem:[%s5 + $0x658] sm:$0xff]
    %v899 = vld [vmem:[%s5 + $0x660] sm:$0xff]
    %v900 = vld [vmem:[%s5 + $0x668] sm:$0xff]
    %v901 = vld [vmem:[%s5 + $0x670] sm:$0xff]
    %v902 = vld [vmem:[%s5 + $0x678] sm:$0xff]
    %v903 = vld [vmem:[%s5 + $0x680] sm:$0xff]
    %v904 = vld [vmem:[%s5 + $0x688] sm:$0xff]
    %v905 = vld [vmem:[%s5 + $0x690] sm:$0xff]
    %v906 = vld [vmem:[%s5 + $0x698] sm:$0xff]
    %v907 = vld [vmem:[%s5 + $0x6a0] sm:$0xff]
    %v908 = vld [vmem:[%s5 + $0x6a8] sm:$0xff]
    %v909 = vld [vmem:[%s5 + $0x6b0] sm:$0xff]
    %v910 = vld [vmem:[%s5 + $0x6b8] sm:$0xff]
    %v911 = vld [vmem:[%s5 + $0x6c0] sm:$0xff]
    %v912 = vld [vmem:[%s5 + $0x6c8] sm:$0xff]
    %v913 = vld [vmem:[%s5 + $0x6d0] sm:$0xff]
    %v914 = vld [vmem:[%s5 + $0x6d8] sm:$0xff]
    %v915 = vld [vmem:[%s5 + $0x6e0] sm:$0xff]
    %v916 = vld [vmem:[%s5 + $0x6e8] sm:$0xff]
    %v917 = vld [vmem:[%s5 + $0x6f0] sm:$0xff]
    %v918 = vld [vmem:[%s5 + $0x6f8] sm:$0xff]
    %v919 = vld [vmem:[%s5 + $0x700] sm:$0xff]
    %v920 = vld [vmem:[%s5 + $0x708] sm:$0xff]
    %v921 = vld [vmem:[%s5 + $0x710] sm:$0xff]
    %v922 = vld [vmem:[%s5 + $0x718] sm:$0xff]
    %v923 = vld [vmem:[%s5 + $0x720] sm:$0xff]
    %v924 = vld [vmem:[%s5 + $0x728] sm:$0xff]
    %v925 = vld [vmem:[%s5 + $0x730] sm:$0xff]
    %v926 = vld [vmem:[%s5 + $0x738] sm:$0xff]
    %v927 = vld [vmem:[%s5 + $0x740] sm:$0xff]
    %v928 = vld [vmem:[%s5 + $0x748] sm:$0xff]
    %v929 = vld [vmem:[%s5 + $0x750] sm:$0xff]
    %v930 = vld [vmem:[%s5 + $0x758] sm:$0xff]
    %v931 = vld [vmem:[%s5 + $0x760] sm:$0xff]
    %v932 = vld [vmem:[%s5 + $0x768] sm:$0xff]
    %v933 = vld [vmem:[%s5 + $0x770] sm:$0xff]
    %v934 = vld [vmem:[%s5 + $0x778] sm:$0xff]
    %v935 = vld [vmem:[%s5 + $0x780] sm:$0xff]
    %v936 = vld [vmem:[%s5 + $0x788] sm:$0xff]
    %v937 = vld [vmem:[%s5 + $0x790] sm:$0xff]
    %v938 = vld [vmem:[%s5 + $0x798] sm:$0xff]
    %v939 = vld [vmem:[%s5 + $0x7a0] sm:$0xff]
    %v940 = vld [vmem:[%s5 + $0x7a8] sm:$0xff]
    %v941 = vld [vmem:[%s5 + $0x7b0] sm:$0xff]
    %v942 = vld [vmem:[%s5 + $0x7b8] sm:$0xff]
    %v943 = vld [vmem:[%s5 + $0x7c0] sm:$0xff]
    %v944 = vld [vmem:[%s5 + $0x7c8] sm:$0xff]
    %v945 = vld [vmem:[%s5 + $0x7d0] sm:$0xff]
    %v946 = vld [vmem:[%s5 + $0x7d8] sm:$0xff]
    %v947 = vld [vmem:[%s5 + $0x7e0] sm:$0xff]
    %v948 = vld [vmem:[%s5 + $0x7e8] sm:$0xff]
    %v949 = vld [vmem:[%s5 + $0x7f0] sm:$0xff]
    %v950 = vld [vmem:[%s5 + $0x7f8] sm:$0xff]
    %v951 = vld [vmem:[%s6] sm:$0xff]
    %v953 = vperm.slane %v951, 0
    %v954 = vperm.slane %v951, 1
    %v955 = vperm.slane %v951, 2
    %v956 = vperm.slane %v951, 3
    %v957 = vperm.slane %v951, 4
    %v958 = vperm.slane %v951, 5
    %v959 = vperm.slane %v951, 6
    %v960 = vperm.slane %v951, 7
    %v1225 = vunpack.c.l.b16 %v695
    %v1226 = vunpack.c.h.b16 %v695
    %v1227 = vunpack.c.l.b16 %v696
    %v1228 = vunpack.c.h.b16 %v696
    %v1229 = vunpack.c.l.b16 %v697
    %v1230 = vunpack.c.h.b16 %v697
    %v1231 = vunpack.c.l.b16 %v698
    %v1232 = vunpack.c.h.b16 %v698
    %v1233 = vunpack.c.l.b16 %v699
    %v1234 = vunpack.c.h.b16 %v699
    %v1235 = vunpack.c.l.b16 %v700
    %v1236 = vunpack.c.h.b16 %v700
    %v1237 = vunpack.c.l.b16 %v701
    %v1238 = vunpack.c.h.b16 %v701
    %v1239 = vunpack.c.l.b16 %v702
    %v1240 = vunpack.c.h.b16 %v702
    %v1241 = vunpack.c.l.b16 %v703
    %v1242 = vunpack.c.h.b16 %v703
    %v1243 = vunpack.c.l.b16 %v704
    %v1244 = vunpack.c.h.b16 %v704
    %v1245 = vunpack.c.l.b16 %v705
    %v1246 = vunpack.c.h.b16 %v705
    %v1247 = vunpack.c.l.b16 %v706
    %v1248 = vunpack.c.h.b16 %v706
    %v1249 = vunpack.c.l.b16 %v707
    %v1250 = vunpack.c.h.b16 %v707
    %v1251 = vunpack.c.l.b16 %v708
    %v1252 = vunpack.c.h.b16 %v708
    %v1253 = vunpack.c.l.b16 %v709
    %v1254 = vunpack.c.h.b16 %v709
    %v1255 = vunpack.c.l.b16 %v710
    %v1256 = vunpack.c.h.b16 %v710
    %v1257 = vunpack.c.l.b16 %v711
    %v1258 = vunpack.c.h.b16 %v711
    %v1259 = vunpack.c.l.b16 %v712
    %v1260 = vunpack.c.h.b16 %v712
    %v1261 = vunpack.c.l.b16 %v713
    %v1262 = vunpack.c.h.b16 %v713
    %v1263 = vunpack.c.l.b16 %v714
    %v1264 = vunpack.c.h.b16 %v714
    %v1265 = vunpack.c.l.b16 %v715
    %v1266 = vunpack.c.h.b16 %v715
    %v1267 = vunpack.c.l.b16 %v716
    %v1268 = vunpack.c.h.b16 %v716
    %v1269 = vunpack.c.l.b16 %v717
    %v1270 = vunpack.c.h.b16 %v717
    %v1271 = vunpack.c.l.b16 %v718
    %v1272 = vunpack.c.h.b16 %v718
    %v1273 = vunpack.c.l.b16 %v719
    %v1274 = vunpack.c.h.b16 %v719
    %v1275 = vunpack.c.l.b16 %v720
    %v1276 = vunpack.c.h.b16 %v720
    %v1277 = vunpack.c.l.b16 %v721
    %v1278 = vunpack.c.h.b16 %v721
    %v1279 = vunpack.c.l.b16 %v722
    %v1280 = vunpack.c.h.b16 %v722
    %v1281 = vunpack.c.l.b16 %v723
    %v1282 = vunpack.c.h.b16 %v723
    %v1283 = vunpack.c.l.b16 %v724
    %v1284 = vunpack.c.h.b16 %v724
    %v1285 = vunpack.c.l.b16 %v725
    %v1286 = vunpack.c.h.b16 %v725
    %v1287 = vunpack.c.l.b16 %v726
    %v1288 = vunpack.c.h.b16 %v726
    %v1289 = vunpack.c.l.b16 %v727
    %v1290 = vunpack.c.h.b16 %v727
    %v1291 = vunpack.c.l.b16 %v728
    %v1292 = vunpack.c.h.b16 %v728
    %v1293 = vunpack.c.l.b16 %v729
    %v1294 = vunpack.c.h.b16 %v729
    %v1295 = vunpack.c.l.b16 %v730
    %v1296 = vunpack.c.h.b16 %v730
    %v1297 = vunpack.c.l.b16 %v731
    %v1298 = vunpack.c.h.b16 %v731
    %v1299 = vunpack.c.l.b16 %v732
    %v1300 = vunpack.c.h.b16 %v732
    %v1301 = vunpack.c.l.b16 %v733
    %v1302 = vunpack.c.h.b16 %v733
    %v1303 = vunpack.c.l.b16 %v734
    %v1304 = vunpack.c.h.b16 %v734
    %v1305 = vunpack.c.l.b16 %v735
    %v1306 = vunpack.c.h.b16 %v735
    %v1307 = vunpack.c.l.b16 %v736
    %v1308 = vunpack.c.h.b16 %v736
    %v1309 = vunpack.c.l.b16 %v737
    %v1310 = vunpack.c.h.b16 %v737
    %v1311 = vunpack.c.l.b16 %v738
    %v1312 = vunpack.c.h.b16 %v738
    %v1313 = vunpack.c.l.b16 %v739
    %v1314 = vunpack.c.h.b16 %v739
    %v1315 = vunpack.c.l.b16 %v740
    %v1316 = vunpack.c.h.b16 %v740
    %v1317 = vunpack.c.l.b16 %v741
    %v1318 = vunpack.c.h.b16 %v741
    %v1319 = vunpack.c.l.b16 %v742
    %v1320 = vunpack.c.h.b16 %v742
    %v1321 = vunpack.c.l.b16 %v743
    %v1322 = vunpack.c.h.b16 %v743
    %v1323 = vunpack.c.l.b16 %v744
    %v1324 = vunpack.c.h.b16 %v744
    %v1325 = vunpack.c.l.b16 %v745
    %v1326 = vunpack.c.h.b16 %v745
    %v1327 = vunpack.c.l.b16 %v746
    %v1328 = vunpack.c.h.b16 %v746
    %v1329 = vunpack.c.l.b16 %v747
    %v1330 = vunpack.c.h.b16 %v747
    %v1331 = vunpack.c.l.b16 %v748
    %v1332 = vunpack.c.h.b16 %v748
    %v1333 = vunpack.c.l.b16 %v749
    %v1334 = vunpack.c.h.b16 %v749
    %v1335 = vunpack.c.l.b16 %v750
    %v1336 = vunpack.c.h.b16 %v750
    %v1337 = vunpack.c.l.b16 %v751
    %v1338 = vunpack.c.h.b16 %v751
    %v1339 = vunpack.c.l.b16 %v752
    %v1340 = vunpack.c.h.b16 %v752
    %v1341 = vunpack.c.l.b16 %v753
    %v1342 = vunpack.c.h.b16 %v753
    %v1343 = vunpack.c.l.b16 %v754
    %v1344 = vunpack.c.h.b16 %v754
    %v1345 = vunpack.c.l.b16 %v755
    %v1346 = vunpack.c.h.b16 %v755
    %v1347 = vunpack.c.l.b16 %v756
    %v1348 = vunpack.c.h.b16 %v756
    %v1349 = vunpack.c.l.b16 %v757
    %v1350 = vunpack.c.h.b16 %v757
    %v1351 = vunpack.c.l.b16 %v758
    %v1352 = vunpack.c.h.b16 %v758
    %v1353 = vunpack.c.l.b16 %v759
    %v1354 = vunpack.c.h.b16 %v759
    %v1355 = vunpack.c.l.b16 %v760
    %v1356 = vunpack.c.h.b16 %v760
    %v1357 = vunpack.c.l.b16 %v761
    %v1358 = vunpack.c.h.b16 %v761
    %v1359 = vunpack.c.l.b16 %v762
    %v1360 = vunpack.c.h.b16 %v762
    %v1361 = vunpack.c.l.b16 %v763
    %v1362 = vunpack.c.h.b16 %v763
    %v1363 = vunpack.c.l.b16 %v764
    %v1364 = vunpack.c.h.b16 %v764
    %v1365 = vunpack.c.l.b16 %v765
    %v1366 = vunpack.c.h.b16 %v765
    %v1367 = vunpack.c.l.b16 %v766
    %v1368 = vunpack.c.h.b16 %v766
    %v1369 = vunpack.c.l.b16 %v767
    %v1370 = vunpack.c.h.b16 %v767
    %v1371 = vunpack.c.l.b16 %v768
    %v1372 = vunpack.c.h.b16 %v768
    %v1373 = vunpack.c.l.b16 %v769
    %v1374 = vunpack.c.h.b16 %v769
    %v1375 = vunpack.c.l.b16 %v770
    %v1376 = vunpack.c.h.b16 %v770
    %v1377 = vunpack.c.l.b16 %v771
    %v1378 = vunpack.c.h.b16 %v771
    %v1379 = vunpack.c.l.b16 %v772
    %v1380 = vunpack.c.h.b16 %v772
    %v1381 = vunpack.c.l.b16 %v773
    %v1382 = vunpack.c.h.b16 %v773
    %v1383 = vunpack.c.l.b16 %v774
    %v1384 = vunpack.c.h.b16 %v774
    %v1385 = vunpack.c.l.b16 %v775
    %v1386 = vunpack.c.h.b16 %v775
    %v1387 = vunpack.c.l.b16 %v776
    %v1388 = vunpack.c.h.b16 %v776
    %v1389 = vunpack.c.l.b16 %v777
    %v1390 = vunpack.c.h.b16 %v777
    %v1391 = vunpack.c.l.b16 %v778
    %v1392 = vunpack.c.h.b16 %v778
    %v1393 = vunpack.c.l.b16 %v779
    %v1394 = vunpack.c.h.b16 %v779
    %v1395 = vunpack.c.l.b16 %v780
    %v1396 = vunpack.c.h.b16 %v780
    %v1397 = vunpack.c.l.b16 %v781
    %v1398 = vunpack.c.h.b16 %v781
    %v1399 = vunpack.c.l.b16 %v782
    %v1400 = vunpack.c.h.b16 %v782
    %v1401 = vunpack.c.l.b16 %v783
    %v1402 = vunpack.c.h.b16 %v783
    %v1403 = vunpack.c.l.b16 %v784
    %v1404 = vunpack.c.h.b16 %v784
    %v1405 = vunpack.c.l.b16 %v785
    %v1406 = vunpack.c.h.b16 %v785
    %v1407 = vunpack.c.l.b16 %v786
    %v1408 = vunpack.c.h.b16 %v786
    %v1409 = vunpack.c.l.b16 %v787
    %v1410 = vunpack.c.h.b16 %v787
    %v1411 = vunpack.c.l.b16 %v788
    %v1412 = vunpack.c.h.b16 %v788
    %v1413 = vunpack.c.l.b16 %v789
    %v1414 = vunpack.c.h.b16 %v789
    %v1415 = vunpack.c.l.b16 %v790
    %v1416 = vunpack.c.h.b16 %v790
    %v1417 = vunpack.c.l.b16 %v791
    %v1418 = vunpack.c.h.b16 %v791
    %v1419 = vunpack.c.l.b16 %v792
    %v1420 = vunpack.c.h.b16 %v792
    %v1421 = vunpack.c.l.b16 %v793
    %v1422 = vunpack.c.h.b16 %v793
    %v1423 = vunpack.c.l.b16 %v794
    %v1424 = vunpack.c.h.b16 %v794
    %v1425 = vunpack.c.l.b16 %v795
    %v1426 = vunpack.c.h.b16 %v795
    %v1427 = vunpack.c.l.b16 %v796
    %v1428 = vunpack.c.h.b16 %v796
    %v1429 = vunpack.c.l.b16 %v797
    %v1430 = vunpack.c.h.b16 %v797
    %v1431 = vunpack.c.l.b16 %v798
    %v1432 = vunpack.c.h.b16 %v798
    %v1433 = vunpack.c.l.b16 %v799
    %v1434 = vunpack.c.h.b16 %v799
    %v1435 = vunpack.c.l.b16 %v800
    %v1436 = vunpack.c.h.b16 %v800
    %v1437 = vunpack.c.l.b16 %v801
    %v1438 = vunpack.c.h.b16 %v801
    %v1439 = vunpack.c.l.b16 %v802
    %v1440 = vunpack.c.h.b16 %v802
    %v1441 = vunpack.c.l.b16 %v803
    %v1442 = vunpack.c.h.b16 %v803
    %v1443 = vunpack.c.l.b16 %v804
    %v1444 = vunpack.c.h.b16 %v804
    %v1445 = vunpack.c.l.b16 %v805
    %v1446 = vunpack.c.h.b16 %v805
    %v1447 = vunpack.c.l.b16 %v806
    %v1448 = vunpack.c.h.b16 %v806
    %v1449 = vunpack.c.l.b16 %v807
    %v1450 = vunpack.c.h.b16 %v807
    %v1451 = vunpack.c.l.b16 %v808
    %v1452 = vunpack.c.h.b16 %v808
    %v1453 = vunpack.c.l.b16 %v809
    %v1454 = vunpack.c.h.b16 %v809
    %v1455 = vunpack.c.l.b16 %v810
    %v1456 = vunpack.c.h.b16 %v810
    %v1457 = vunpack.c.l.b16 %v811
    %v1458 = vunpack.c.h.b16 %v811
    %v1459 = vunpack.c.l.b16 %v812
    %v1460 = vunpack.c.h.b16 %v812
    %v1461 = vunpack.c.l.b16 %v813
    %v1462 = vunpack.c.h.b16 %v813
    %v1463 = vunpack.c.l.b16 %v814
    %v1464 = vunpack.c.h.b16 %v814
    %v1465 = vunpack.c.l.b16 %v815
    %v1466 = vunpack.c.h.b16 %v815
    %v1467 = vunpack.c.l.b16 %v816
    %v1468 = vunpack.c.h.b16 %v816
    %v1469 = vunpack.c.l.b16 %v817
    %v1470 = vunpack.c.h.b16 %v817
    %v1471 = vunpack.c.l.b16 %v818
    %v1472 = vunpack.c.h.b16 %v818
    %v1473 = vunpack.c.l.b16 %v819
    %v1474 = vunpack.c.h.b16 %v819
    %v1475 = vunpack.c.l.b16 %v820
    %v1476 = vunpack.c.h.b16 %v820
    %v1477 = vunpack.c.l.b16 %v821
    %v1478 = vunpack.c.h.b16 %v821
    %v1479 = vunpack.c.l.b16 %v822
    %v1480 = vunpack.c.h.b16 %v822
    %v1481 = vunpack.c.l.b16 %v823
    %v1482 = vunpack.c.h.b16 %v823
    %v1483 = vunpack.c.l.b16 %v824
    %v1484 = vunpack.c.h.b16 %v824
    %v1485 = vunpack.c.l.b16 %v825
    %v1486 = vunpack.c.h.b16 %v825
    %v1487 = vunpack.c.l.b16 %v826
    %v1488 = vunpack.c.h.b16 %v826
    %v1489 = vunpack.c.l.b16 %v827
    %v1490 = vunpack.c.h.b16 %v827
    %v1491 = vunpack.c.l.b16 %v828
    %v1492 = vunpack.c.h.b16 %v828
    %v1493 = vunpack.c.l.b16 %v829
    %v1494 = vunpack.c.h.b16 %v829
    %v1495 = vunpack.c.l.b16 %v830
    %v1496 = vunpack.c.h.b16 %v830
    %v1497 = vunpack.c.l.b16 %v831
    %v1498 = vunpack.c.h.b16 %v831
    %v1499 = vunpack.c.l.b16 %v832
    %v1500 = vunpack.c.h.b16 %v832
    %v1501 = vunpack.c.l.b16 %v833
    %v1502 = vunpack.c.h.b16 %v833
    %v1503 = vunpack.c.l.b16 %v834
    %v1504 = vunpack.c.h.b16 %v834
    %v1505 = vunpack.c.l.b16 %v835
    %v1506 = vunpack.c.h.b16 %v835
    %v1507 = vunpack.c.l.b16 %v836
    %v1508 = vunpack.c.h.b16 %v836
    %v1509 = vunpack.c.l.b16 %v837
    %v1510 = vunpack.c.h.b16 %v837
    %v1511 = vunpack.c.l.b16 %v838
    %v1512 = vunpack.c.h.b16 %v838
    %v1513 = vunpack.c.l.b16 %v839
    %v1514 = vunpack.c.h.b16 %v839
    %v1515 = vunpack.c.l.b16 %v840
    %v1516 = vunpack.c.h.b16 %v840
    %v1517 = vunpack.c.l.b16 %v841
    %v1518 = vunpack.c.h.b16 %v841
    %v1519 = vunpack.c.l.b16 %v842
    %v1520 = vunpack.c.h.b16 %v842
    %v1521 = vunpack.c.l.b16 %v843
    %v1522 = vunpack.c.h.b16 %v843
    %v1523 = vunpack.c.l.b16 %v844
    %v1524 = vunpack.c.h.b16 %v844
    %v1525 = vunpack.c.l.b16 %v845
    %v1526 = vunpack.c.h.b16 %v845
    %v1527 = vunpack.c.l.b16 %v846
    %v1528 = vunpack.c.h.b16 %v846
    %v1529 = vunpack.c.l.b16 %v847
    %v1530 = vunpack.c.h.b16 %v847
    %v1531 = vunpack.c.l.b16 %v848
    %v1532 = vunpack.c.h.b16 %v848
    %v1533 = vunpack.c.l.b16 %v849
    %v1534 = vunpack.c.h.b16 %v849
    %v1535 = vunpack.c.l.b16 %v850
    %v1536 = vunpack.c.h.b16 %v850
    %v1537 = vunpack.c.l.b16 %v851
    %v1538 = vunpack.c.h.b16 %v851
    %v1539 = vunpack.c.l.b16 %v852
    %v1540 = vunpack.c.h.b16 %v852
    %v1541 = vunpack.c.l.b16 %v853
    %v1542 = vunpack.c.h.b16 %v853
    %v1543 = vunpack.c.l.b16 %v854
    %v1544 = vunpack.c.h.b16 %v854
    %v1545 = vunpack.c.l.b16 %v855
    %v1546 = vunpack.c.h.b16 %v855
    %v1547 = vunpack.c.l.b16 %v856
    %v1548 = vunpack.c.h.b16 %v856
    %v1549 = vunpack.c.l.b16 %v857
    %v1550 = vunpack.c.h.b16 %v857
    %v1551 = vunpack.c.l.b16 %v858
    %v1552 = vunpack.c.h.b16 %v858
    %v1553 = vunpack.c.l.b16 %v859
    %v1554 = vunpack.c.h.b16 %v859
    %v1555 = vunpack.c.l.b16 %v860
    %v1556 = vunpack.c.h.b16 %v860
    %v1557 = vunpack.c.l.b16 %v861
    %v1558 = vunpack.c.h.b16 %v861
    %v1559 = vunpack.c.l.b16 %v862
    %v1560 = vunpack.c.h.b16 %v862
    %v1561 = vunpack.c.l.b16 %v863
    %v1562 = vunpack.c.h.b16 %v863
    %v1563 = vunpack.c.l.b16 %v864
    %v1564 = vunpack.c.h.b16 %v864
    %v1565 = vunpack.c.l.b16 %v865
    %v1566 = vunpack.c.h.b16 %v865
    %v1567 = vunpack.c.l.b16 %v866
    %v1568 = vunpack.c.h.b16 %v866
    %v1569 = vunpack.c.l.b16 %v867
    %v1570 = vunpack.c.h.b16 %v867
    %v1571 = vunpack.c.l.b16 %v868
    %v1572 = vunpack.c.h.b16 %v868
    %v1573 = vunpack.c.l.b16 %v869
    %v1574 = vunpack.c.h.b16 %v869
    %v1575 = vunpack.c.l.b16 %v870
    %v1576 = vunpack.c.h.b16 %v870
    %v1577 = vunpack.c.l.b16 %v871
    %v1578 = vunpack.c.h.b16 %v871
    %v1579 = vunpack.c.l.b16 %v872
    %v1580 = vunpack.c.h.b16 %v872
    %v1581 = vunpack.c.l.b16 %v873
    %v1582 = vunpack.c.h.b16 %v873
    %v1583 = vunpack.c.l.b16 %v874
    %v1584 = vunpack.c.h.b16 %v874
    %v1585 = vunpack.c.l.b16 %v875
    %v1586 = vunpack.c.h.b16 %v875
    %v1587 = vunpack.c.l.b16 %v876
    %v1588 = vunpack.c.h.b16 %v876
    %v1589 = vunpack.c.l.b16 %v877
    %v1590 = vunpack.c.h.b16 %v877
    %v1591 = vunpack.c.l.b16 %v878
    %v1592 = vunpack.c.h.b16 %v878
    %v1593 = vunpack.c.l.b16 %v879
    %v1594 = vunpack.c.h.b16 %v879
    %v1595 = vunpack.c.l.b16 %v880
    %v1596 = vunpack.c.h.b16 %v880
    %v1597 = vunpack.c.l.b16 %v881
    %v1598 = vunpack.c.h.b16 %v881
    %v1599 = vunpack.c.l.b16 %v882
    %v1600 = vunpack.c.h.b16 %v882
    %v1601 = vunpack.c.l.b16 %v883
    %v1602 = vunpack.c.h.b16 %v883
    %v1603 = vunpack.c.l.b16 %v884
    %v1604 = vunpack.c.h.b16 %v884
    %v1605 = vunpack.c.l.b16 %v885
    %v1606 = vunpack.c.h.b16 %v885
    %v1607 = vunpack.c.l.b16 %v886
    %v1608 = vunpack.c.h.b16 %v886
    %v1609 = vunpack.c.l.b16 %v887
    %v1610 = vunpack.c.h.b16 %v887
    %v1611 = vunpack.c.l.b16 %v888
    %v1612 = vunpack.c.h.b16 %v888
    %v1613 = vunpack.c.l.b16 %v889
    %v1614 = vunpack.c.h.b16 %v889
    %v1615 = vunpack.c.l.b16 %v890
    %v1616 = vunpack.c.h.b16 %v890
    %v1617 = vunpack.c.l.b16 %v891
    %v1618 = vunpack.c.h.b16 %v891
    %v1619 = vunpack.c.l.b16 %v892
    %v1620 = vunpack.c.h.b16 %v892
    %v1621 = vunpack.c.l.b16 %v893
    %v1622 = vunpack.c.h.b16 %v893
    %v1623 = vunpack.c.l.b16 %v894
    %v1624 = vunpack.c.h.b16 %v894
    %v1625 = vunpack.c.l.b16 %v895
    %v1626 = vunpack.c.h.b16 %v895
    %v1627 = vunpack.c.l.b16 %v896
    %v1628 = vunpack.c.h.b16 %v896
    %v1629 = vunpack.c.l.b16 %v897
    %v1630 = vunpack.c.h.b16 %v897
    %v1631 = vunpack.c.l.b16 %v898
    %v1632 = vunpack.c.h.b16 %v898
    %v1633 = vunpack.c.l.b16 %v899
    %v1634 = vunpack.c.h.b16 %v899
    %v1635 = vunpack.c.l.b16 %v900
    %v1636 = vunpack.c.h.b16 %v900
    %v1637 = vunpack.c.l.b16 %v901
    %v1638 = vunpack.c.h.b16 %v901
    %v1639 = vunpack.c.l.b16 %v902
    %v1640 = vunpack.c.h.b16 %v902
    %v1641 = vunpack.c.l.b16 %v903
    %v1642 = vunpack.c.h.b16 %v903
    %v1643 = vunpack.c.l.b16 %v904
    %v1644 = vunpack.c.h.b16 %v904
    %v1645 = vunpack.c.l.b16 %v905
    %v1646 = vunpack.c.h.b16 %v905
    %v1647 = vunpack.c.l.b16 %v906
    %v1648 = vunpack.c.h.b16 %v906
    %v1649 = vunpack.c.l.b16 %v907
    %v1650 = vunpack.c.h.b16 %v907
    %v1651 = vunpack.c.l.b16 %v908
    %v1652 = vunpack.c.h.b16 %v908
    %v1653 = vunpack.c.l.b16 %v909
    %v1654 = vunpack.c.h.b16 %v909
    %v1655 = vunpack.c.l.b16 %v910
    %v1656 = vunpack.c.h.b16 %v910
    %v1657 = vunpack.c.l.b16 %v911
    %v1658 = vunpack.c.h.b16 %v911
    %v1659 = vunpack.c.l.b16 %v912
    %v1660 = vunpack.c.h.b16 %v912
    %v1661 = vunpack.c.l.b16 %v913
    %v1662 = vunpack.c.h.b16 %v913
    %v1663 = vunpack.c.l.b16 %v914
    %v1664 = vunpack.c.h.b16 %v914
    %v1665 = vunpack.c.l.b16 %v915
    %v1666 = vunpack.c.h.b16 %v915
    %v1667 = vunpack.c.l.b16 %v916
    %v1668 = vunpack.c.h.b16 %v916
    %v1669 = vunpack.c.l.b16 %v917
    %v1670 = vunpack.c.h.b16 %v917
    %v1671 = vunpack.c.l.b16 %v918
    %v1672 = vunpack.c.h.b16 %v918
    %v1673 = vunpack.c.l.b16 %v919
    %v1674 = vunpack.c.h.b16 %v919
    %v1675 = vunpack.c.l.b16 %v920
    %v1676 = vunpack.c.h.b16 %v920
    %v1677 = vunpack.c.l.b16 %v921
    %v1678 = vunpack.c.h.b16 %v921
    %v1679 = vunpack.c.l.b16 %v922
    %v1680 = vunpack.c.h.b16 %v922
    %v1681 = vunpack.c.l.b16 %v923
    %v1682 = vunpack.c.h.b16 %v923
    %v1683 = vunpack.c.l.b16 %v924
    %v1684 = vunpack.c.h.b16 %v924
    %v1685 = vunpack.c.l.b16 %v925
    %v1686 = vunpack.c.h.b16 %v925
    %v1687 = vunpack.c.l.b16 %v926
    %v1688 = vunpack.c.h.b16 %v926
    %v1689 = vunpack.c.l.b16 %v927
    %v1690 = vunpack.c.h.b16 %v927
    %v1691 = vunpack.c.l.b16 %v928
    %v1692 = vunpack.c.h.b16 %v928
    %v1693 = vunpack.c.l.b16 %v929
    %v1694 = vunpack.c.h.b16 %v929
    %v1695 = vunpack.c.l.b16 %v930
    %v1696 = vunpack.c.h.b16 %v930
    %v1697 = vunpack.c.l.b16 %v931
    %v1698 = vunpack.c.h.b16 %v931
    %v1699 = vunpack.c.l.b16 %v932
    %v1700 = vunpack.c.h.b16 %v932
    %v1701 = vunpack.c.l.b16 %v933
    %v1702 = vunpack.c.h.b16 %v933
    %v1703 = vunpack.c.l.b16 %v934
    %v1704 = vunpack.c.h.b16 %v934
    %v1705 = vunpack.c.l.b16 %v935
    %v1706 = vunpack.c.h.b16 %v935
    %v1707 = vunpack.c.l.b16 %v936
    %v1708 = vunpack.c.h.b16 %v936
    %v1709 = vunpack.c.l.b16 %v937
    %v1710 = vunpack.c.h.b16 %v937
    %v1711 = vunpack.c.l.b16 %v938
    %v1712 = vunpack.c.h.b16 %v938
    %v1713 = vunpack.c.l.b16 %v939
    %v1714 = vunpack.c.h.b16 %v939
    %v1715 = vunpack.c.l.b16 %v940
    %v1716 = vunpack.c.h.b16 %v940
    %v1717 = vunpack.c.l.b16 %v941
    %v1718 = vunpack.c.h.b16 %v941
    %v1719 = vunpack.c.l.b16 %v942
    %v1720 = vunpack.c.h.b16 %v942
    %v1721 = vunpack.c.l.b16 %v943
    %v1722 = vunpack.c.h.b16 %v943
    %v1723 = vunpack.c.l.b16 %v944
    %v1724 = vunpack.c.h.b16 %v944
    %v1725 = vunpack.c.l.b16 %v945
    %v1726 = vunpack.c.h.b16 %v945
    %v1727 = vunpack.c.l.b16 %v946
    %v1728 = vunpack.c.h.b16 %v946
    %v1729 = vunpack.c.l.b16 %v947
    %v1730 = vunpack.c.h.b16 %v947
    %v1731 = vunpack.c.l.b16 %v948
    %v1732 = vunpack.c.h.b16 %v948
    %v1733 = vunpack.c.l.b16 %v949
    %v1734 = vunpack.c.h.b16 %v949
    %v1735 = vunpack.c.l.b16 %v950
    %v1736 = vunpack.c.h.b16 %v950
    %v1737 = vpack.c.b16 %v1233, %v1225
    %v1738 = vpack.c.b16 %v1234, %v1226
    %v1739 = vpack.c.b16 %v1235, %v1227
    %v1740 = vpack.c.b16 %v1236, %v1228
    %v1741 = vpack.c.b16 %v1237, %v1229
    %v1742 = vpack.c.b16 %v1238, %v1230
    %v1743 = vpack.c.b16 %v1239, %v1231
    %v1744 = vpack.c.b16 %v1240, %v1232
    %v1745 = vpack.c.b16 %v1249, %v1241
    %v1746 = vpack.c.b16 %v1250, %v1242
    %v1747 = vpack.c.b16 %v1251, %v1243
    %v1748 = vpack.c.b16 %v1252, %v1244
    %v1749 = vpack.c.b16 %v1253, %v1245
    %v1750 = vpack.c.b16 %v1254, %v1246
    %v1751 = vpack.c.b16 %v1255, %v1247
    %v1752 = vpack.c.b16 %v1256, %v1248
    %v1753 = vpack.c.b16 %v1265, %v1257
    %v1754 = vpack.c.b16 %v1266, %v1258
    %v1755 = vpack.c.b16 %v1267, %v1259
    %v1756 = vpack.c.b16 %v1268, %v1260
    %v1757 = vpack.c.b16 %v1269, %v1261
    %v1758 = vpack.c.b16 %v1270, %v1262
    %v1759 = vpack.c.b16 %v1271, %v1263
    %v1760 = vpack.c.b16 %v1272, %v1264
    %v1761 = vpack.c.b16 %v1281, %v1273
    %v1762 = vpack.c.b16 %v1282, %v1274
    %v1763 = vpack.c.b16 %v1283, %v1275
    %v1764 = vpack.c.b16 %v1284, %v1276
    %v1765 = vpack.c.b16 %v1285, %v1277
    %v1766 = vpack.c.b16 %v1286, %v1278
    %v1767 = vpack.c.b16 %v1287, %v1279
    %v1768 = vpack.c.b16 %v1288, %v1280
    %v1769 = vpack.c.b16 %v1297, %v1289
    %v1770 = vpack.c.b16 %v1298, %v1290
    %v1771 = vpack.c.b16 %v1299, %v1291
    %v1772 = vpack.c.b16 %v1300, %v1292
    %v1773 = vpack.c.b16 %v1301, %v1293
    %v1774 = vpack.c.b16 %v1302, %v1294
    %v1775 = vpack.c.b16 %v1303, %v1295
    %v1776 = vpack.c.b16 %v1304, %v1296
    %v1777 = vpack.c.b16 %v1313, %v1305
    %v1778 = vpack.c.b16 %v1314, %v1306
    %v1779 = vpack.c.b16 %v1315, %v1307
    %v1780 = vpack.c.b16 %v1316, %v1308
    %v1781 = vpack.c.b16 %v1317, %v1309
    %v1782 = vpack.c.b16 %v1318, %v1310
    %v1783 = vpack.c.b16 %v1319, %v1311
    %v1784 = vpack.c.b16 %v1320, %v1312
    %v1785 = vpack.c.b16 %v1329, %v1321
    %v1786 = vpack.c.b16 %v1330, %v1322
    %v1787 = vpack.c.b16 %v1331, %v1323
    %v1788 = vpack.c.b16 %v1332, %v1324
    %v1789 = vpack.c.b16 %v1333, %v1325
    %v1790 = vpack.c.b16 %v1334, %v1326
    %v1791 = vpack.c.b16 %v1335, %v1327
    %v1792 = vpack.c.b16 %v1336, %v1328
    %v1793 = vpack.c.b16 %v1345, %v1337
    %v1794 = vpack.c.b16 %v1346, %v1338
    %v1795 = vpack.c.b16 %v1347, %v1339
    %v1796 = vpack.c.b16 %v1348, %v1340
    %v1797 = vpack.c.b16 %v1349, %v1341
    %v1798 = vpack.c.b16 %v1350, %v1342
    %v1799 = vpack.c.b16 %v1351, %v1343
    %v1800 = vpack.c.b16 %v1352, %v1344
    %v1801 = vpack.c.b16 %v1361, %v1353
    %v1802 = vpack.c.b16 %v1362, %v1354
    %v1803 = vpack.c.b16 %v1363, %v1355
    %v1804 = vpack.c.b16 %v1364, %v1356
    %v1805 = vpack.c.b16 %v1365, %v1357
    %v1806 = vpack.c.b16 %v1366, %v1358
    %v1807 = vpack.c.b16 %v1367, %v1359
    %v1808 = vpack.c.b16 %v1368, %v1360
    %v1809 = vpack.c.b16 %v1377, %v1369
    %v1810 = vpack.c.b16 %v1378, %v1370
    %v1811 = vpack.c.b16 %v1379, %v1371
    %v1812 = vpack.c.b16 %v1380, %v1372
    %v1813 = vpack.c.b16 %v1381, %v1373
    %v1814 = vpack.c.b16 %v1382, %v1374
    %v1815 = vpack.c.b16 %v1383, %v1375
    %v1816 = vpack.c.b16 %v1384, %v1376
    %v1817 = vpack.c.b16 %v1393, %v1385
    %v1818 = vpack.c.b16 %v1394, %v1386
    %v1819 = vpack.c.b16 %v1395, %v1387
    %v1820 = vpack.c.b16 %v1396, %v1388
    %v1821 = vpack.c.b16 %v1397, %v1389
    %v1822 = vpack.c.b16 %v1398, %v1390
    %v1823 = vpack.c.b16 %v1399, %v1391
    %v1824 = vpack.c.b16 %v1400, %v1392
    %v1825 = vpack.c.b16 %v1409, %v1401
    %v1826 = vpack.c.b16 %v1410, %v1402
    %v1827 = vpack.c.b16 %v1411, %v1403
    %v1828 = vpack.c.b16 %v1412, %v1404
    %v1829 = vpack.c.b16 %v1413, %v1405
    %v1830 = vpack.c.b16 %v1414, %v1406
    %v1831 = vpack.c.b16 %v1415, %v1407
    %v1832 = vpack.c.b16 %v1416, %v1408
    %v1833 = vpack.c.b16 %v1425, %v1417
    %v1834 = vpack.c.b16 %v1426, %v1418
    %v1835 = vpack.c.b16 %v1427, %v1419
    %v1836 = vpack.c.b16 %v1428, %v1420
    %v1837 = vpack.c.b16 %v1429, %v1421
    %v1838 = vpack.c.b16 %v1430, %v1422
    %v1839 = vpack.c.b16 %v1431, %v1423
    %v1840 = vpack.c.b16 %v1432, %v1424
    %v1841 = vpack.c.b16 %v1441, %v1433
    %v1842 = vpack.c.b16 %v1442, %v1434
    %v1843 = vpack.c.b16 %v1443, %v1435
    %v1844 = vpack.c.b16 %v1444, %v1436
    %v1845 = vpack.c.b16 %v1445, %v1437
    %v1846 = vpack.c.b16 %v1446, %v1438
    %v1847 = vpack.c.b16 %v1447, %v1439
    %v1848 = vpack.c.b16 %v1448, %v1440
    %v1849 = vpack.c.b16 %v1457, %v1449
    %v1850 = vpack.c.b16 %v1458, %v1450
    %v1851 = vpack.c.b16 %v1459, %v1451
    %v1852 = vpack.c.b16 %v1460, %v1452
    %v1853 = vpack.c.b16 %v1461, %v1453
    %v1854 = vpack.c.b16 %v1462, %v1454
    %v1855 = vpack.c.b16 %v1463, %v1455
    %v1856 = vpack.c.b16 %v1464, %v1456
    %v1857 = vpack.c.b16 %v1473, %v1465
    %v1858 = vpack.c.b16 %v1474, %v1466
    %v1859 = vpack.c.b16 %v1475, %v1467
    %v1860 = vpack.c.b16 %v1476, %v1468
    %v1861 = vpack.c.b16 %v1477, %v1469
    %v1862 = vpack.c.b16 %v1478, %v1470
    %v1863 = vpack.c.b16 %v1479, %v1471
    %v1864 = vpack.c.b16 %v1480, %v1472
    %v1865 = vpack.c.b16 %v1489, %v1481
    %v1866 = vpack.c.b16 %v1490, %v1482
    %v1867 = vpack.c.b16 %v1491, %v1483
    %v1868 = vpack.c.b16 %v1492, %v1484
    %v1869 = vpack.c.b16 %v1493, %v1485
    %v1870 = vpack.c.b16 %v1494, %v1486
    %v1871 = vpack.c.b16 %v1495, %v1487
    %v1872 = vpack.c.b16 %v1496, %v1488
    %v1873 = vpack.c.b16 %v1505, %v1497
    %v1874 = vpack.c.b16 %v1506, %v1498
    %v1875 = vpack.c.b16 %v1507, %v1499
    %v1876 = vpack.c.b16 %v1508, %v1500
    %v1877 = vpack.c.b16 %v1509, %v1501
    %v1878 = vpack.c.b16 %v1510, %v1502
    %v1879 = vpack.c.b16 %v1511, %v1503
    %v1880 = vpack.c.b16 %v1512, %v1504
    %v1881 = vpack.c.b16 %v1521, %v1513
    %v1882 = vpack.c.b16 %v1522, %v1514
    %v1883 = vpack.c.b16 %v1523, %v1515
    %v1884 = vpack.c.b16 %v1524, %v1516
    %v1885 = vpack.c.b16 %v1525, %v1517
    %v1886 = vpack.c.b16 %v1526, %v1518
    %v1887 = vpack.c.b16 %v1527, %v1519
    %v1888 = vpack.c.b16 %v1528, %v1520
    %v1889 = vpack.c.b16 %v1537, %v1529
    %v1890 = vpack.c.b16 %v1538, %v1530
    %v1891 = vpack.c.b16 %v1539, %v1531
    %v1892 = vpack.c.b16 %v1540, %v1532
    %v1893 = vpack.c.b16 %v1541, %v1533
    %v1894 = vpack.c.b16 %v1542, %v1534
    %v1895 = vpack.c.b16 %v1543, %v1535
    %v1896 = vpack.c.b16 %v1544, %v1536
    %v1897 = vpack.c.b16 %v1553, %v1545
    %v1898 = vpack.c.b16 %v1554, %v1546
    %v1899 = vpack.c.b16 %v1555, %v1547
    %v1900 = vpack.c.b16 %v1556, %v1548
    %v1901 = vpack.c.b16 %v1557, %v1549
    %v1902 = vpack.c.b16 %v1558, %v1550
    %v1903 = vpack.c.b16 %v1559, %v1551
    %v1904 = vpack.c.b16 %v1560, %v1552
    %v1905 = vpack.c.b16 %v1569, %v1561
    %v1906 = vpack.c.b16 %v1570, %v1562
    %v1907 = vpack.c.b16 %v1571, %v1563
    %v1908 = vpack.c.b16 %v1572, %v1564
    %v1909 = vpack.c.b16 %v1573, %v1565
    %v1910 = vpack.c.b16 %v1574, %v1566
    %v1911 = vpack.c.b16 %v1575, %v1567
    %v1912 = vpack.c.b16 %v1576, %v1568
    %v1913 = vpack.c.b16 %v1585, %v1577
    %v1914 = vpack.c.b16 %v1586, %v1578
    %v1915 = vpack.c.b16 %v1587, %v1579
    %v1916 = vpack.c.b16 %v1588, %v1580
    %v1917 = vpack.c.b16 %v1589, %v1581
    %v1918 = vpack.c.b16 %v1590, %v1582
    %v1919 = vpack.c.b16 %v1591, %v1583
    %v1920 = vpack.c.b16 %v1592, %v1584
    %v1921 = vpack.c.b16 %v1601, %v1593
    %v1922 = vpack.c.b16 %v1602, %v1594
    %v1923 = vpack.c.b16 %v1603, %v1595
    %v1924 = vpack.c.b16 %v1604, %v1596
    %v1925 = vpack.c.b16 %v1605, %v1597
    %v1926 = vpack.c.b16 %v1606, %v1598
    %v1927 = vpack.c.b16 %v1607, %v1599
    %v1928 = vpack.c.b16 %v1608, %v1600
    %v1929 = vpack.c.b16 %v1617, %v1609
    %v1930 = vpack.c.b16 %v1618, %v1610
    %v1931 = vpack.c.b16 %v1619, %v1611
    %v1932 = vpack.c.b16 %v1620, %v1612
    %v1933 = vpack.c.b16 %v1621, %v1613
    %v1934 = vpack.c.b16 %v1622, %v1614
    %v1935 = vpack.c.b16 %v1623, %v1615
    %v1936 = vpack.c.b16 %v1624, %v1616
    %v1937 = vpack.c.b16 %v1633, %v1625
    %v1938 = vpack.c.b16 %v1634, %v1626
    %v1939 = vpack.c.b16 %v1635, %v1627
    %v1940 = vpack.c.b16 %v1636, %v1628
    %v1941 = vpack.c.b16 %v1637, %v1629
    %v1942 = vpack.c.b16 %v1638, %v1630
    %v1943 = vpack.c.b16 %v1639, %v1631
    %v1944 = vpack.c.b16 %v1640, %v1632
    %v1945 = vpack.c.b16 %v1649, %v1641
    %v1946 = vpack.c.b16 %v1650, %v1642
    %v1947 = vpack.c.b16 %v1651, %v1643
    %v1948 = vpack.c.b16 %v1652, %v1644
    %v1949 = vpack.c.b16 %v1653, %v1645
    %v1950 = vpack.c.b16 %v1654, %v1646
    %v1951 = vpack.c.b16 %v1655, %v1647
    %v1952 = vpack.c.b16 %v1656, %v1648
    %v1953 = vpack.c.b16 %v1665, %v1657
    %v1954 = vpack.c.b16 %v1666, %v1658
    %v1955 = vpack.c.b16 %v1667, %v1659
    %v1956 = vpack.c.b16 %v1668, %v1660
    %v1957 = vpack.c.b16 %v1669, %v1661
    %v1958 = vpack.c.b16 %v1670, %v1662
    %v1959 = vpack.c.b16 %v1671, %v1663
    %v1960 = vpack.c.b16 %v1672, %v1664
    %v1961 = vpack.c.b16 %v1681, %v1673
    %v1962 = vpack.c.b16 %v1682, %v1674
    %v1963 = vpack.c.b16 %v1683, %v1675
    %v1964 = vpack.c.b16 %v1684, %v1676
    %v1965 = vpack.c.b16 %v1685, %v1677
    %v1966 = vpack.c.b16 %v1686, %v1678
    %v1967 = vpack.c.b16 %v1687, %v1679
    %v1968 = vpack.c.b16 %v1688, %v1680
    %v1969 = vpack.c.b16 %v1697, %v1689
    %v1970 = vpack.c.b16 %v1698, %v1690
    %v1971 = vpack.c.b16 %v1699, %v1691
    %v1972 = vpack.c.b16 %v1700, %v1692
    %v1973 = vpack.c.b16 %v1701, %v1693
    %v1974 = vpack.c.b16 %v1702, %v1694
    %v1975 = vpack.c.b16 %v1703, %v1695
    %v1976 = vpack.c.b16 %v1704, %v1696
    %v1977 = vpack.c.b16 %v1713, %v1705
    %v1978 = vpack.c.b16 %v1714, %v1706
    %v1979 = vpack.c.b16 %v1715, %v1707
    %v1980 = vpack.c.b16 %v1716, %v1708
    %v1981 = vpack.c.b16 %v1717, %v1709
    %v1982 = vpack.c.b16 %v1718, %v1710
    %v1983 = vpack.c.b16 %v1719, %v1711
    %v1984 = vpack.c.b16 %v1720, %v1712
    %v1985 = vpack.c.b16 %v1729, %v1721
    %v1986 = vpack.c.b16 %v1730, %v1722
    %v1987 = vpack.c.b16 %v1731, %v1723
    %v1988 = vpack.c.b16 %v1732, %v1724
    %v1989 = vpack.c.b16 %v1733, %v1725
    %v1990 = vpack.c.b16 %v1734, %v1726
    %v1991 = vpack.c.b16 %v1735, %v1727
    %v1992 = vpack.c.b16 %v1736, %v1728
    %2249 = vmatpush.bf16.msra.mxu0 %v1793
    %2250 = vmatpush.bf16.msra.mxu0 %v1785
    %2251 = vmatpush.bf16.msra.mxu0 %v1777
    %2252 = vmatpush.bf16.msra.mxu0 %v1769
    %2253 = vmatpush.bf16.msra.mxu0 %v1761
    %2254 = vmatpush.bf16.msra.mxu0 %v1753
    %2255 = vmatpush.bf16.msra.mxu0 %v1745
    %2256 = vmatpush.bf16.msra.mxu0 %v1737
    %2257 = vmatmul.bf16.gmra.mxu0 %v691
    %v2258 = vpop.f32.mrf.mxu0
    %v2259 = vadd.f32 %v953, %v2258
    %v2260 = vpop.f32.mrf.mxu0
    %v2261 = vadd.f32 %v953, %v2260
    %2262 = vdwg.mxu0
    %2263 = vmatpush.bf16.msra.mxu0 %v1857
    %2264 = vmatpush.bf16.msra.mxu0 %v1849
    %2265 = vmatpush.bf16.msra.mxu0 %v1841
    %2266 = vmatpush.bf16.msra.mxu0 %v1833
    %2267 = vmatpush.bf16.msra.mxu0 %v1825
    %2268 = vmatpush.bf16.msra.mxu0 %v1817
    %2269 = vmatpush.bf16.msra.mxu0 %v1809
    %2270 = vmatpush.bf16.msra.mxu0 %v1801
    %2271 = vmatmul.bf16.gmra.mxu0 %v692
    %v2272 = vpop.f32.mrf.mxu0
    %v2273 = vadd.f32 %v2259, %v2272
    %v2274 = vpop.f32.mrf.mxu0
    %v2275 = vadd.f32 %v2261, %v2274
    %2276 = vdwg.mxu0
    %2277 = vmatpush.bf16.msra.mxu0 %v1921
    %2278 = vmatpush.bf16.msra.mxu0 %v1913
    %2279 = vmatpush.bf16.msra.mxu0 %v1905
    %2280 = vmatpush.bf16.msra.mxu0 %v1897
    %2281 = vmatpush.bf16.msra.mxu0 %v1889
    %2282 = vmatpush.bf16.msra.mxu0 %v1881
    %2283 = vmatpush.bf16.msra.mxu0 %v1873
    %2284 = vmatpush.bf16.msra.mxu0 %v1865
    %2285 = vmatmul.bf16.gmra.mxu0 %v693
    %v2286 = vpop.f32.mrf.mxu0
    %v2287 = vadd.f32 %v2273, %v2286
    %v2288 = vpop.f32.mrf.mxu0
    %v2289 = vadd.f32 %v2275, %v2288
    %2290 = vdwg.mxu0
    %2291 = vmatpush.bf16.msra.mxu0 %v1985
    %2292 = vmatpush.bf16.msra.mxu0 %v1977
    %2293 = vmatpush.bf16.msra.mxu0 %v1969
    %2294 = vmatpush.bf16.msra.mxu0 %v1961
    %2295 = vmatpush.bf16.msra.mxu0 %v1953
    %2296 = vmatpush.bf16.msra.mxu0 %v1945
    %2297 = vmatpush.bf16.msra.mxu0 %v1937
    %2298 = vmatpush.bf16.msra.mxu0 %v1929
    %2299 = vmatmul.bf16.gmra.mxu0 %v694
    %v2300 = vpop.f32.mrf.mxu0
    %v2301 = vadd.f32 %v2287, %v2300
    %v2302 = vpop.f32.mrf.mxu0
    %v2303 = vadd.f32 %v2289, %v2302
    %2304 = vdwg.mxu0
    %2305 = vmatpush.bf16.msra.mxu0 %v1794
    %2306 = vmatpush.bf16.msra.mxu0 %v1786
    %2307 = vmatpush.bf16.msra.mxu0 %v1778
    %2308 = vmatpush.bf16.msra.mxu0 %v1770
    %2309 = vmatpush.bf16.msra.mxu0 %v1762
    %2310 = vmatpush.bf16.msra.mxu0 %v1754
    %2311 = vmatpush.bf16.msra.mxu0 %v1746
    %2312 = vmatpush.bf16.msra.mxu0 %v1738
    %2313 = vmatmul.bf16.gmra.mxu0 %v691
    %v2314 = vpop.f32.mrf.mxu0
    %v2315 = vadd.f32 %v954, %v2314
    %v2316 = vpop.f32.mrf.mxu0
    %v2317 = vadd.f32 %v954, %v2316
    %2318 = vdwg.mxu0
    %2319 = vmatpush.bf16.msra.mxu0 %v1858
    %2320 = vmatpush.bf16.msra.mxu0 %v1850
    %2321 = vmatpush.bf16.msra.mxu0 %v1842
    %2322 = vmatpush.bf16.msra.mxu0 %v1834
    %2323 = vmatpush.bf16.msra.mxu0 %v1826
    %2324 = vmatpush.bf16.msra.mxu0 %v1818
    %2325 = vmatpush.bf16.msra.mxu0 %v1810
    %2326 = vmatpush.bf16.msra.mxu0 %v1802
    %2327 = vmatmul.bf16.gmra.mxu0 %v692
    %v2328 = vpop.f32.mrf.mxu0
    %v2329 = vadd.f32 %v2315, %v2328
    %v2330 = vpop.f32.mrf.mxu0
    %v2331 = vadd.f32 %v2317, %v2330
    %2332 = vdwg.mxu0
    %2333 = vmatpush.bf16.msra.mxu0 %v1922
    %2334 = vmatpush.bf16.msra.mxu0 %v1914
    %2335 = vmatpush.bf16.msra.mxu0 %v1906
    %2336 = vmatpush.bf16.msra.mxu0 %v1898
    %2337 = vmatpush.bf16.msra.mxu0 %v1890
    %2338 = vmatpush.bf16.msra.mxu0 %v1882
    %2339 = vmatpush.bf16.msra.mxu0 %v1874
    %2340 = vmatpush.bf16.msra.mxu0 %v1866
    %2341 = vmatmul.bf16.gmra.mxu0 %v693
    %v2342 = vpop.f32.mrf.mxu0
    %v2343 = vadd.f32 %v2329, %v2342
    %v2344 = vpop.f32.mrf.mxu0
    %v2345 = vadd.f32 %v2331, %v2344
    %2346 = vdwg.mxu0
    %2347 = vmatpush.bf16.msra.mxu0 %v1986
    %2348 = vmatpush.bf16.msra.mxu0 %v1978
    %2349 = vmatpush.bf16.msra.mxu0 %v1970
    %2350 = vmatpush.bf16.msra.mxu0 %v1962
    %2351 = vmatpush.bf16.msra.mxu0 %v1954
    %2352 = vmatpush.bf16.msra.mxu0 %v1946
    %2353 = vmatpush.bf16.msra.mxu0 %v1938
    %2354 = vmatpush.bf16.msra.mxu0 %v1930
    %2355 = vmatmul.bf16.gmra.mxu0 %v694
    %v2356 = vpop.f32.mrf.mxu0
    %v2357 = vadd.f32 %v2343, %v2356
    %v2358 = vpop.f32.mrf.mxu0
    %v2359 = vadd.f32 %v2345, %v2358
    %2360 = vdwg.mxu0
    %2361 = vmatpush.bf16.msra.mxu0 %v1795
    %2362 = vmatpush.bf16.msra.mxu0 %v1787
    %2363 = vmatpush.bf16.msra.mxu0 %v1779
    %2364 = vmatpush.bf16.msra.mxu0 %v1771
    %2365 = vmatpush.bf16.msra.mxu0 %v1763
    %2366 = vmatpush.bf16.msra.mxu0 %v1755
    %2367 = vmatpush.bf16.msra.mxu0 %v1747
    %2368 = vmatpush.bf16.msra.mxu0 %v1739
    %2369 = vmatmul.bf16.gmra.mxu0 %v691
    %v2370 = vpop.f32.mrf.mxu0
    %v2371 = vadd.f32 %v955, %v2370
    %v2372 = vpop.f32.mrf.mxu0
    %v2373 = vadd.f32 %v955, %v2372
    %2374 = vdwg.mxu0
    %2375 = vmatpush.bf16.msra.mxu0 %v1859
    %2376 = vmatpush.bf16.msra.mxu0 %v1851
    %2377 = vmatpush.bf16.msra.mxu0 %v1843
    %2378 = vmatpush.bf16.msra.mxu0 %v1835
    %2379 = vmatpush.bf16.msra.mxu0 %v1827
    %2380 = vmatpush.bf16.msra.mxu0 %v1819
    %2381 = vmatpush.bf16.msra.mxu0 %v1811
    %2382 = vmatpush.bf16.msra.mxu0 %v1803
    %2383 = vmatmul.bf16.gmra.mxu0 %v692
    %v2384 = vpop.f32.mrf.mxu0
    %v2385 = vadd.f32 %v2371, %v2384
    %v2386 = vpop.f32.mrf.mxu0
    %v2387 = vadd.f32 %v2373, %v2386
    %2388 = vdwg.mxu0
    %2389 = vmatpush.bf16.msra.mxu0 %v1923
    %2390 = vmatpush.bf16.msra.mxu0 %v1915
    %2391 = vmatpush.bf16.msra.mxu0 %v1907
    %2392 = vmatpush.bf16.msra.mxu0 %v1899
    %2393 = vmatpush.bf16.msra.mxu0 %v1891
    %2394 = vmatpush.bf16.msra.mxu0 %v1883
    %2395 = vmatpush.bf16.msra.mxu0 %v1875
    %2396 = vmatpush.bf16.msra.mxu0 %v1867
    %2397 = vmatmul.bf16.gmra.mxu0 %v693
    %v2398 = vpop.f32.mrf.mxu0
    %v2399 = vadd.f32 %v2385, %v2398
    %v2400 = vpop.f32.mrf.mxu0
    %v2401 = vadd.f32 %v2387, %v2400
    %2402 = vdwg.mxu0
    %2403 = vmatpush.bf16.msra.mxu0 %v1987
    %2404 = vmatpush.bf16.msra.mxu0 %v1979
    %2405 = vmatpush.bf16.msra.mxu0 %v1971
    %2406 = vmatpush.bf16.msra.mxu0 %v1963
    %2407 = vmatpush.bf16.msra.mxu0 %v1955
    %2408 = vmatpush.bf16.msra.mxu0 %v1947
    %2409 = vmatpush.bf16.msra.mxu0 %v1939
    %2410 = vmatpush.bf16.msra.mxu0 %v1931
    %2411 = vmatmul.bf16.gmra.mxu0 %v694
    %v2412 = vpop.f32.mrf.mxu0
    %v2413 = vadd.f32 %v2399, %v2412
    %v2414 = vpop.f32.mrf.mxu0
    %v2415 = vadd.f32 %v2401, %v2414
    %2416 = vdwg.mxu0
    %2417 = vmatpush.bf16.msra.mxu0 %v1796
    %2418 = vmatpush.bf16.msra.mxu0 %v1788
    %2419 = vmatpush.bf16.msra.mxu0 %v1780
    %2420 = vmatpush.bf16.msra.mxu0 %v1772
    %2421 = vmatpush.bf16.msra.mxu0 %v1764
    %2422 = vmatpush.bf16.msra.mxu0 %v1756
    %2423 = vmatpush.bf16.msra.mxu0 %v1748
    %2424 = vmatpush.bf16.msra.mxu0 %v1740
    %2425 = vmatmul.bf16.gmra.mxu0 %v691
    %v2426 = vpop.f32.mrf.mxu0
    %v2427 = vadd.f32 %v956, %v2426
    %v2428 = vpop.f32.mrf.mxu0
    %v2429 = vadd.f32 %v956, %v2428
    %2430 = vdwg.mxu0
    %2431 = vmatpush.bf16.msra.mxu0 %v1860
    %2432 = vmatpush.bf16.msra.mxu0 %v1852
    %2433 = vmatpush.bf16.msra.mxu0 %v1844
    %2434 = vmatpush.bf16.msra.mxu0 %v1836
    %2435 = vmatpush.bf16.msra.mxu0 %v1828
    %2436 = vmatpush.bf16.msra.mxu0 %v1820
    %2437 = vmatpush.bf16.msra.mxu0 %v1812
    %2438 = vmatpush.bf16.msra.mxu0 %v1804
    %2439 = vmatmul.bf16.gmra.mxu0 %v692
    %v2440 = vpop.f32.mrf.mxu0
    %v2441 = vadd.f32 %v2427, %v2440
    %v2442 = vpop.f32.mrf.mxu0
    %v2443 = vadd.f32 %v2429, %v2442
    %2444 = vdwg.mxu0
    %2445 = vmatpush.bf16.msra.mxu0 %v1924
    %2446 = vmatpush.bf16.msra.mxu0 %v1916
    %2447 = vmatpush.bf16.msra.mxu0 %v1908
    %2448 = vmatpush.bf16.msra.mxu0 %v1900
    %2449 = vmatpush.bf16.msra.mxu0 %v1892
    %2450 = vmatpush.bf16.msra.mxu0 %v1884
    %2451 = vmatpush.bf16.msra.mxu0 %v1876
    %2452 = vmatpush.bf16.msra.mxu0 %v1868
    %2453 = vmatmul.bf16.gmra.mxu0 %v693
    %v2454 = vpop.f32.mrf.mxu0
    %v2455 = vadd.f32 %v2441, %v2454
    %v2456 = vpop.f32.mrf.mxu0
    %v2457 = vadd.f32 %v2443, %v2456
    %2458 = vdwg.mxu0
    %2459 = vmatpush.bf16.msra.mxu0 %v1988
    %2460 = vmatpush.bf16.msra.mxu0 %v1980
    %2461 = vmatpush.bf16.msra.mxu0 %v1972
    %2462 = vmatpush.bf16.msra.mxu0 %v1964
    %2463 = vmatpush.bf16.msra.mxu0 %v1956
    %2464 = vmatpush.bf16.msra.mxu0 %v1948
    %2465 = vmatpush.bf16.msra.mxu0 %v1940
    %2466 = vmatpush.bf16.msra.mxu0 %v1932
    %2467 = vmatmul.bf16.gmra.mxu0 %v694
    %v2468 = vpop.f32.mrf.mxu0
    %v2469 = vadd.f32 %v2455, %v2468
    %v2470 = vpop.f32.mrf.mxu0
    %v2471 = vadd.f32 %v2457, %v2470
    %2472 = vdwg.mxu0
    %2473 = vmatpush.bf16.msra.mxu0 %v1797
    %2474 = vmatpush.bf16.msra.mxu0 %v1789
    %2475 = vmatpush.bf16.msra.mxu0 %v1781
    %2476 = vmatpush.bf16.msra.mxu0 %v1773
    %2477 = vmatpush.bf16.msra.mxu0 %v1765
    %2478 = vmatpush.bf16.msra.mxu0 %v1757
    %2479 = vmatpush.bf16.msra.mxu0 %v1749
    %2480 = vmatpush.bf16.msra.mxu0 %v1741
    %2481 = vmatmul.bf16.gmra.mxu0 %v691
    %v2482 = vpop.f32.mrf.mxu0
    %v2483 = vadd.f32 %v957, %v2482
    %v2484 = vpop.f32.mrf.mxu0
    %v2485 = vadd.f32 %v957, %v2484
    %2486 = vdwg.mxu0
    %2487 = vmatpush.bf16.msra.mxu0 %v1861
    %2488 = vmatpush.bf16.msra.mxu0 %v1853
    %2489 = vmatpush.bf16.msra.mxu0 %v1845
    %2490 = vmatpush.bf16.msra.mxu0 %v1837
    %2491 = vmatpush.bf16.msra.mxu0 %v1829
    %2492 = vmatpush.bf16.msra.mxu0 %v1821
    %2493 = vmatpush.bf16.msra.mxu0 %v1813
    %2494 = vmatpush.bf16.msra.mxu0 %v1805
    %2495 = vmatmul.bf16.gmra.mxu0 %v692
    %v2496 = vpop.f32.mrf.mxu0
    %v2497 = vadd.f32 %v2483, %v2496
    %v2498 = vpop.f32.mrf.mxu0
    %v2499 = vadd.f32 %v2485, %v2498
    %2500 = vdwg.mxu0
    %2501 = vmatpush.bf16.msra.mxu0 %v1925
    %2502 = vmatpush.bf16.msra.mxu0 %v1917
    %2503 = vmatpush.bf16.msra.mxu0 %v1909
    %2504 = vmatpush.bf16.msra.mxu0 %v1901
    %2505 = vmatpush.bf16.msra.mxu0 %v1893
    %2506 = vmatpush.bf16.msra.mxu0 %v1885
    %2507 = vmatpush.bf16.msra.mxu0 %v1877
    %2508 = vmatpush.bf16.msra.mxu0 %v1869
    %2509 = vmatmul.bf16.gmra.mxu0 %v693
    %v2510 = vpop.f32.mrf.mxu0
    %v2511 = vadd.f32 %v2497, %v2510
    %v2512 = vpop.f32.mrf.mxu0
    %v2513 = vadd.f32 %v2499, %v2512
    %2514 = vdwg.mxu0
    %2515 = vmatpush.bf16.msra.mxu0 %v1989
    %2516 = vmatpush.bf16.msra.mxu0 %v1981
    %2517 = vmatpush.bf16.msra.mxu0 %v1973
    %2518 = vmatpush.bf16.msra.mxu0 %v1965
    %2519 = vmatpush.bf16.msra.mxu0 %v1957
    %2520 = vmatpush.bf16.msra.mxu0 %v1949
    %2521 = vmatpush.bf16.msra.mxu0 %v1941
    %2522 = vmatpush.bf16.msra.mxu0 %v1933
    %2523 = vmatmul.bf16.gmra.mxu0 %v694
    %v2524 = vpop.f32.mrf.mxu0
    %v2525 = vadd.f32 %v2511, %v2524
    %v2526 = vpop.f32.mrf.mxu0
    %v2527 = vadd.f32 %v2513, %v2526
    %2528 = vdwg.mxu0
    %2529 = vmatpush.bf16.msra.mxu0 %v1798
    %2530 = vmatpush.bf16.msra.mxu0 %v1790
    %2531 = vmatpush.bf16.msra.mxu0 %v1782
    %2532 = vmatpush.bf16.msra.mxu0 %v1774
    %2533 = vmatpush.bf16.msra.mxu0 %v1766
    %2534 = vmatpush.bf16.msra.mxu0 %v1758
    %2535 = vmatpush.bf16.msra.mxu0 %v1750
    %2536 = vmatpush.bf16.msra.mxu0 %v1742
    %2537 = vmatmul.bf16.gmra.mxu0 %v691
    %v2538 = vpop.f32.mrf.mxu0
    %v2539 = vadd.f32 %v958, %v2538
    %v2540 = vpop.f32.mrf.mxu0
    %v2541 = vadd.f32 %v958, %v2540
    %2542 = vdwg.mxu0
    %2543 = vmatpush.bf16.msra.mxu0 %v1862
    %2544 = vmatpush.bf16.msra.mxu0 %v1854
    %2545 = vmatpush.bf16.msra.mxu0 %v1846
    %2546 = vmatpush.bf16.msra.mxu0 %v1838
    %2547 = vmatpush.bf16.msra.mxu0 %v1830
    %2548 = vmatpush.bf16.msra.mxu0 %v1822
    %2549 = vmatpush.bf16.msra.mxu0 %v1814
    %2550 = vmatpush.bf16.msra.mxu0 %v1806
    %2551 = vmatmul.bf16.gmra.mxu0 %v692
    %v2552 = vpop.f32.mrf.mxu0
    %v2553 = vadd.f32 %v2539, %v2552
    %v2554 = vpop.f32.mrf.mxu0
    %v2555 = vadd.f32 %v2541, %v2554
    %2556 = vdwg.mxu0
    %2557 = vmatpush.bf16.msra.mxu0 %v1926
    %2558 = vmatpush.bf16.msra.mxu0 %v1918
    %2559 = vmatpush.bf16.msra.mxu0 %v1910
    %2560 = vmatpush.bf16.msra.mxu0 %v1902
    %2561 = vmatpush.bf16.msra.mxu0 %v1894
    %2562 = vmatpush.bf16.msra.mxu0 %v1886
    %2563 = vmatpush.bf16.msra.mxu0 %v1878
    %2564 = vmatpush.bf16.msra.mxu0 %v1870
    %2565 = vmatmul.bf16.gmra.mxu0 %v693
    %v2566 = vpop.f32.mrf.mxu0
    %v2567 = vadd.f32 %v2553, %v2566
    %v2568 = vpop.f32.mrf.mxu0
    %v2569 = vadd.f32 %v2555, %v2568
    %2570 = vdwg.mxu0
    %2571 = vmatpush.bf16.msra.mxu0 %v1990
    %2572 = vmatpush.bf16.msra.mxu0 %v1982
    %2573 = vmatpush.bf16.msra.mxu0 %v1974
    %2574 = vmatpush.bf16.msra.mxu0 %v1966
    %2575 = vmatpush.bf16.msra.mxu0 %v1958
    %2576 = vmatpush.bf16.msra.mxu0 %v1950
    %2577 = vmatpush.bf16.msra.mxu0 %v1942
    %2578 = vmatpush.bf16.msra.mxu0 %v1934
    %2579 = vmatmul.bf16.gmra.mxu0 %v694
    %v2580 = vpop.f32.mrf.mxu0
    %v2581 = vadd.f32 %v2567, %v2580
    %v2582 = vpop.f32.mrf.mxu0
    %v2583 = vadd.f32 %v2569, %v2582
    %2584 = vdwg.mxu0
    %2585 = vmatpush.bf16.msra.mxu0 %v1799
    %2586 = vmatpush.bf16.msra.mxu0 %v1791
    %2587 = vmatpush.bf16.msra.mxu0 %v1783
    %2588 = vmatpush.bf16.msra.mxu0 %v1775
    %2589 = vmatpush.bf16.msra.mxu0 %v1767
    %2590 = vmatpush.bf16.msra.mxu0 %v1759
    %2591 = vmatpush.bf16.msra.mxu0 %v1751
    %2592 = vmatpush.bf16.msra.mxu0 %v1743
    %2593 = vmatmul.bf16.gmra.mxu0 %v691
    %v2594 = vpop.f32.mrf.mxu0
    %v2595 = vadd.f32 %v959, %v2594
    %v2596 = vpop.f32.mrf.mxu0
    %v2597 = vadd.f32 %v959, %v2596
    %2598 = vdwg.mxu0
    %2599 = vmatpush.bf16.msra.mxu0 %v1863
    %2600 = vmatpush.bf16.msra.mxu0 %v1855
    %2601 = vmatpush.bf16.msra.mxu0 %v1847
    %2602 = vmatpush.bf16.msra.mxu0 %v1839
    %2603 = vmatpush.bf16.msra.mxu0 %v1831
    %2604 = vmatpush.bf16.msra.mxu0 %v1823
    %2605 = vmatpush.bf16.msra.mxu0 %v1815
    %2606 = vmatpush.bf16.msra.mxu0 %v1807
    %2607 = vmatmul.bf16.gmra.mxu0 %v692
    %v2608 = vpop.f32.mrf.mxu0
    %v2609 = vadd.f32 %v2595, %v2608
    %v2610 = vpop.f32.mrf.mxu0
    %v2611 = vadd.f32 %v2597, %v2610
    %2612 = vdwg.mxu0
    %2613 = vmatpush.bf16.msra.mxu0 %v1927
    %2614 = vmatpush.bf16.msra.mxu0 %v1919
    %2615 = vmatpush.bf16.msra.mxu0 %v1911
    %2616 = vmatpush.bf16.msra.mxu0 %v1903
    %2617 = vmatpush.bf16.msra.mxu0 %v1895
    %2618 = vmatpush.bf16.msra.mxu0 %v1887
    %2619 = vmatpush.bf16.msra.mxu0 %v1879
    %2620 = vmatpush.bf16.msra.mxu0 %v1871
    %2621 = vmatmul.bf16.gmra.mxu0 %v693
    %v2622 = vpop.f32.mrf.mxu0
    %v2623 = vadd.f32 %v2609, %v2622
    %v2624 = vpop.f32.mrf.mxu0
    %v2625 = vadd.f32 %v2611, %v2624
    %2626 = vdwg.mxu0
    %2627 = vmatpush.bf16.msra.mxu0 %v1991
    %2628 = vmatpush.bf16.msra.mxu0 %v1983
    %2629 = vmatpush.bf16.msra.mxu0 %v1975
    %2630 = vmatpush.bf16.msra.mxu0 %v1967
    %2631 = vmatpush.bf16.msra.mxu0 %v1959
    %2632 = vmatpush.bf16.msra.mxu0 %v1951
    %2633 = vmatpush.bf16.msra.mxu0 %v1943
    %2634 = vmatpush.bf16.msra.mxu0 %v1935
    %2635 = vmatmul.bf16.gmra.mxu0 %v694
    %v2636 = vpop.f32.mrf.mxu0
    %v2637 = vadd.f32 %v2623, %v2636
    %v2638 = vpop.f32.mrf.mxu0
    %v2639 = vadd.f32 %v2625, %v2638
    %2640 = vdwg.mxu0
    %2641 = vmatpush.bf16.msra.mxu0 %v1800
    %2642 = vmatpush.bf16.msra.mxu0 %v1792
    %2643 = vmatpush.bf16.msra.mxu0 %v1784
    %2644 = vmatpush.bf16.msra.mxu0 %v1776
    %2645 = vmatpush.bf16.msra.mxu0 %v1768
    %2646 = vmatpush.bf16.msra.mxu0 %v1760
    %2647 = vmatpush.bf16.msra.mxu0 %v1752
    %2648 = vmatpush.bf16.msra.mxu0 %v1744
    %2649 = vmatmul.bf16.gmra.mxu0 %v691
    %v2650 = vpop.f32.mrf.mxu0
    %v2651 = vadd.f32 %v960, %v2650
    %v2652 = vpop.f32.mrf.mxu0
    %v2653 = vadd.f32 %v960, %v2652
    %2654 = vdwg.mxu0
    %2655 = vmatpush.bf16.msra.mxu0 %v1864
    %2656 = vmatpush.bf16.msra.mxu0 %v1856
    %2657 = vmatpush.bf16.msra.mxu0 %v1848
    %2658 = vmatpush.bf16.msra.mxu0 %v1840
    %2659 = vmatpush.bf16.msra.mxu0 %v1832
    %2660 = vmatpush.bf16.msra.mxu0 %v1824
    %2661 = vmatpush.bf16.msra.mxu0 %v1816
    %2662 = vmatpush.bf16.msra.mxu0 %v1808
    %2663 = vmatmul.bf16.gmra.mxu0 %v692
    %v2664 = vpop.f32.mrf.mxu0
    %v2665 = vadd.f32 %v2651, %v2664
    %v2666 = vpop.f32.mrf.mxu0
    %v2667 = vadd.f32 %v2653, %v2666
    %2668 = vdwg.mxu0
    %2669 = vmatpush.bf16.msra.mxu0 %v1928
    %2670 = vmatpush.bf16.msra.mxu0 %v1920
    %2671 = vmatpush.bf16.msra.mxu0 %v1912
    %2672 = vmatpush.bf16.msra.mxu0 %v1904
    %2673 = vmatpush.bf16.msra.mxu0 %v1896
    %2674 = vmatpush.bf16.msra.mxu0 %v1888
    %2675 = vmatpush.bf16.msra.mxu0 %v1880
    %2676 = vmatpush.bf16.msra.mxu0 %v1872
    %2677 = vmatmul.bf16.gmra.mxu0 %v693
    %v2678 = vpop.f32.mrf.mxu0
    %v2679 = vadd.f32 %v2665, %v2678
    %v2680 = vpop.f32.mrf.mxu0
    %v2681 = vadd.f32 %v2667, %v2680
    %2682 = vdwg.mxu0
    %2683 = vmatpush.bf16.msra.mxu0 %v1992
    %2684 = vmatpush.bf16.msra.mxu0 %v1984
    %2685 = vmatpush.bf16.msra.mxu0 %v1976
    %2686 = vmatpush.bf16.msra.mxu0 %v1968
    %2687 = vmatpush.bf16.msra.mxu0 %v1960
    %2688 = vmatpush.bf16.msra.mxu0 %v1952
    %2689 = vmatpush.bf16.msra.mxu0 %v1944
    %2690 = vmatpush.bf16.msra.mxu0 %v1936
    %2691 = vmatmul.bf16.gmra.mxu0 %v694
    %v2692 = vpop.f32.mrf.mxu0
    %v2693 = vadd.f32 %v2679, %v2692
    %v2694 = vpop.f32.mrf.mxu0
    %v2695 = vadd.f32 %v2681, %v2694
    %2696 = vdwg.mxu0
    %v2697 = vmax.f32 %v2301, 0.0
    %v2698 = vmax.f32 %v2357, 0.0
    %v2699 = vmax.f32 %v2413, 0.0
    %v2700 = vmax.f32 %v2469, 0.0
    %v2701 = vmax.f32 %v2525, 0.0
    %v2702 = vmax.f32 %v2581, 0.0
    %v2703 = vmax.f32 %v2637, 0.0
    %v2704 = vmax.f32 %v2693, 0.0
    %v2705 = vmax.f32 %v2303, 0.0
    %v2706 = vmax.f32 %v2359, 0.0
    %v2707 = vmax.f32 %v2415, 0.0
    %v2708 = vmax.f32 %v2471, 0.0
    %v2709 = vmax.f32 %v2527, 0.0
    %v2710 = vmax.f32 %v2583, 0.0
    %v2711 = vmax.f32 %v2639, 0.0
    %v2712 = vmax.f32 %v2695, 0.0
    %v2713 = vpack.c.bf16 %v2705, %v2697
    %v2714 = vpack.c.bf16 %v2706, %v2698
    %v2715 = vpack.c.bf16 %v2707, %v2699
    %v2716 = vpack.c.bf16 %v2708, %v2700
    %v2717 = vpack.c.bf16 %v2709, %v2701
    %v2718 = vpack.c.bf16 %v2710, %v2702
    %v2719 = vpack.c.bf16 %v2711, %v2703
    %v2720 = vpack.c.bf16 %v2712, %v2704
    %v2721 = vld [vmem:[%s7] sm:$0xff]
    %v2722 = vld [vmem:[%s7 + $0x8] sm:$0xff]
    %v2723 = vld [vmem:[%s7 + $0x10] sm:$0xff]
    %v2724 = vld [vmem:[%s7 + $0x18] sm:$0xf]
    %v2725 = vld [vmem:[%s7 + $0x1c] sm:$0xff]
    %v2726 = vld [vmem:[%s7 + $0x24] sm:$0xff]
    %v2727 = vld [vmem:[%s7 + $0x2c] sm:$0xff]
    %v2728 = vld [vmem:[%s7 + $0x34] sm:$0xf]
    %v2729 = vld [vmem:[%s7 + $0x38] sm:$0xff]
    %v2730 = vld [vmem:[%s7 + $0x40] sm:$0xff]
    %v2731 = vld [vmem:[%s7 + $0x48] sm:$0xff]
    %v2732 = vld [vmem:[%s7 + $0x50] sm:$0xf]
    %v2733 = vld [vmem:[%s7 + $0x54] sm:$0xff]
    %v2734 = vld [vmem:[%s7 + $0x5c] sm:$0xff]
    %v2735 = vld [vmem:[%s7 + $0x64] sm:$0xff]
    %v2736 = vld [vmem:[%s7 + $0x6c] sm:$0xf]
    %v2737 = vld [vmem:[%s7 + $0x70] sm:$0xff]
    %v2738 = vld [vmem:[%s7 + $0x78] sm:$0xff]
    %v2739 = vld [vmem:[%s7 + $0x80] sm:$0xff]
    %v2740 = vld [vmem:[%s7 + $0x88] sm:$0xf]
    %v2741 = vld [vmem:[%s7 + $0x8c] sm:$0xff]
    %v2742 = vld [vmem:[%s7 + $0x94] sm:$0xff]
    %v2743 = vld [vmem:[%s7 + $0x9c] sm:$0xff]
    %v2744 = vld [vmem:[%s7 + $0xa4] sm:$0xf]
    %v2745 = vld [vmem:[%s7 + $0xa8] sm:$0xff]
    %v2746 = vld [vmem:[%s7 + $0xb0] sm:$0xff]
    %v2747 = vld [vmem:[%s7 + $0xb8] sm:$0xff]
    %v2748 = vld [vmem:[%s7 + $0xc0] sm:$0xf]
    %v2749 = vld [vmem:[%s7 + $0xc4] sm:$0xff]
    %v2750 = vld [vmem:[%s7 + $0xcc] sm:$0xff]
    %v2751 = vld [vmem:[%s7 + $0xd4] sm:$0xff]
    %v2752 = vld [vmem:[%s7 + $0xdc] sm:$0xf]
    %v2753 = vld [vmem:[%s7 + $0xe0] sm:$0xff]
    %v2754 = vld [vmem:[%s7 + $0xe8] sm:$0xff]
    %v2755 = vld [vmem:[%s7 + $0xf0] sm:$0xff]
    %v2756 = vld [vmem:[%s7 + $0xf8] sm:$0xf]
    %v2757 = vld [vmem:[%s7 + $0xfc] sm:$0xff]
    %v2758 = vld [vmem:[%s7 + $0x104] sm:$0xff]
    %v2759 = vld [vmem:[%s7 + $0x10c] sm:$0xff]
    %v2760 = vld [vmem:[%s7 + $0x114] sm:$0xf]
    %v2761 = vld [vmem:[%s7 + $0x118] sm:$0xff]
    %v2762 = vld [vmem:[%s7 + $0x120] sm:$0xff]
    %v2763 = vld [vmem:[%s7 + $0x128] sm:$0xff]
    %v2764 = vld [vmem:[%s7 + $0x130] sm:$0xf]
    %v2765 = vld [vmem:[%s7 + $0x134] sm:$0xff]
    %v2766 = vld [vmem:[%s7 + $0x13c] sm:$0xff]
    %v2767 = vld [vmem:[%s7 + $0x144] sm:$0xff]
    %v2768 = vld [vmem:[%s7 + $0x14c] sm:$0xf]
    %v2769 = vld [vmem:[%s7 + $0x150] sm:$0xff]
    %v2770 = vld [vmem:[%s7 + $0x158] sm:$0xff]
    %v2771 = vld [vmem:[%s7 + $0x160] sm:$0xff]
    %v2772 = vld [vmem:[%s7 + $0x168] sm:$0xf]
    %v2773 = vld [vmem:[%s7 + $0x16c] sm:$0xff]
    %v2774 = vld [vmem:[%s7 + $0x174] sm:$0xff]
    %v2775 = vld [vmem:[%s7 + $0x17c] sm:$0xff]
    %v2776 = vld [vmem:[%s7 + $0x184] sm:$0xf]
    %v2777 = vld [vmem:[%s7 + $0x188] sm:$0xff]
    %v2778 = vld [vmem:[%s7 + $0x190] sm:$0xff]
    %v2779 = vld [vmem:[%s7 + $0x198] sm:$0xff]
    %v2780 = vld [vmem:[%s7 + $0x1a0] sm:$0xf]
    %v2781 = vld [vmem:[%s7 + $0x1a4] sm:$0xff]
    %v2782 = vld [vmem:[%s7 + $0x1ac] sm:$0xff]
    %v2783 = vld [vmem:[%s7 + $0x1b4] sm:$0xff]
    %v2784 = vld [vmem:[%s7 + $0x1bc] sm:$0xf]
    %v2785 = vld [vmem:[%s7 + $0x1c0] sm:$0xff]
    %v2786 = vld [vmem:[%s7 + $0x1c8] sm:$0xff]
    %v2787 = vld [vmem:[%s7 + $0x1d0] sm:$0xff]
    %v2788 = vld [vmem:[%s7 + $0x1d8] sm:$0xf]
    %v2789 = vld [vmem:[%s7 + $0x1dc] sm:$0xff]
    %v2790 = vld [vmem:[%s7 + $0x1e4] sm:$0xff]
    %v2791 = vld [vmem:[%s7 + $0x1ec] sm:$0xff]
    %v2792 = vld [vmem:[%s7 + $0x1f4] sm:$0xf]
    %v2793 = vld [vmem:[%s7 + $0x1f8] sm:$0xff]
    %v2794 = vld [vmem:[%s7 + $0x200] sm:$0xff]
    %v2795 = vld [vmem:[%s7 + $0x208] sm:$0xff]
    %v2796 = vld [vmem:[%s7 + $0x210] sm:$0xf]
    %v2797 = vld [vmem:[%s7 + $0x214] sm:$0xff]
    %v2798 = vld [vmem:[%s7 + $0x21c] sm:$0xff]
    %v2799 = vld [vmem:[%s7 + $0x224] sm:$0xff]
    %v2800 = vld [vmem:[%s7 + $0x22c] sm:$0xf]
    %v2801 = vld [vmem:[%s7 + $0x230] sm:$0xff]
    %v2802 = vld [vmem:[%s7 + $0x238] sm:$0xff]
    %v2803 = vld [vmem:[%s7 + $0x240] sm:$0xff]
    %v2804 = vld [vmem:[%s7 + $0x248] sm:$0xf]
    %v2805 = vld [vmem:[%s7 + $0x24c] sm:$0xff]
    %v2806 = vld [vmem:[%s7 + $0x254] sm:$0xff]
    %v2807 = vld [vmem:[%s7 + $0x25c] sm:$0xff]
    %v2808 = vld [vmem:[%s7 + $0x264] sm:$0xf]
    %v2809 = vld [vmem:[%s7 + $0x268] sm:$0xff]
    %v2810 = vld [vmem:[%s7 + $0x270] sm:$0xff]
    %v2811 = vld [vmem:[%s7 + $0x278] sm:$0xff]
    %v2812 = vld [vmem:[%s7 + $0x280] sm:$0xf]
    %v2813 = vld [vmem:[%s7 + $0x284] sm:$0xff]
    %v2814 = vld [vmem:[%s7 + $0x28c] sm:$0xff]
    %v2815 = vld [vmem:[%s7 + $0x294] sm:$0xff]
    %v2816 = vld [vmem:[%s7 + $0x29c] sm:$0xf]
    %v2817 = vld [vmem:[%s7 + $0x2a0] sm:$0xff]
    %v2818 = vld [vmem:[%s7 + $0x2a8] sm:$0xff]
    %v2819 = vld [vmem:[%s7 + $0x2b0] sm:$0xff]
    %v2820 = vld [vmem:[%s7 + $0x2b8] sm:$0xf]
    %v2821 = vld [vmem:[%s7 + $0x2bc] sm:$0xff]
    %v2822 = vld [vmem:[%s7 + $0x2c4] sm:$0xff]
    %v2823 = vld [vmem:[%s7 + $0x2cc] sm:$0xff]
    %v2824 = vld [vmem:[%s7 + $0x2d4] sm:$0xf]
    %v2825 = vld [vmem:[%s7 + $0x2d8] sm:$0xff]
    %v2826 = vld [vmem:[%s7 + $0x2e0] sm:$0xff]
    %v2827 = vld [vmem:[%s7 + $0x2e8] sm:$0xff]
    %v2828 = vld [vmem:[%s7 + $0x2f0] sm:$0xf]
    %v2829 = vld [vmem:[%s7 + $0x2f4] sm:$0xff]
    %v2830 = vld [vmem:[%s7 + $0x2fc] sm:$0xff]
    %v2831 = vld [vmem:[%s7 + $0x304] sm:$0xff]
    %v2832 = vld [vmem:[%s7 + $0x30c] sm:$0xf]
    %v2833 = vld [vmem:[%s7 + $0x310] sm:$0xff]
    %v2834 = vld [vmem:[%s7 + $0x318] sm:$0xff]
    %v2835 = vld [vmem:[%s7 + $0x320] sm:$0xff]
    %v2836 = vld [vmem:[%s7 + $0x328] sm:$0xf]
    %v2837 = vld [vmem:[%s7 + $0x32c] sm:$0xff]
    %v2838 = vld [vmem:[%s7 + $0x334] sm:$0xff]
    %v2839 = vld [vmem:[%s7 + $0x33c] sm:$0xff]
    %v2840 = vld [vmem:[%s7 + $0x344] sm:$0xf]
    %v2841 = vld [vmem:[%s7 + $0x348] sm:$0xff]
    %v2842 = vld [vmem:[%s7 + $0x350] sm:$0xff]
    %v2843 = vld [vmem:[%s7 + $0x358] sm:$0xff]
    %v2844 = vld [vmem:[%s7 + $0x360] sm:$0xf]
    %v2845 = vld [vmem:[%s7 + $0x364] sm:$0xff]
    %v2846 = vld [vmem:[%s7 + $0x36c] sm:$0xff]
    %v2847 = vld [vmem:[%s7 + $0x374] sm:$0xff]
    %v2848 = vld [vmem:[%s7 + $0x37c] sm:$0xf]
    %v2849 = vld [vmem:[%s7 + $0x380] sm:$0xff]
    %v2850 = vld [vmem:[%s7 + $0x388] sm:$0xff]
    %v2851 = vld [vmem:[%s7 + $0x390] sm:$0xff]
    %v2852 = vld [vmem:[%s7 + $0x398] sm:$0xf]
    %v2853 = vld [vmem:[%s7 + $0x39c] sm:$0xff]
    %v2854 = vld [vmem:[%s7 + $0x3a4] sm:$0xff]
    %v2855 = vld [vmem:[%s7 + $0x3ac] sm:$0xff]
    %v2856 = vld [vmem:[%s7 + $0x3b4] sm:$0xf]
    %v2857 = vld [vmem:[%s7 + $0x3b8] sm:$0xff]
    %v2858 = vld [vmem:[%s7 + $0x3c0] sm:$0xff]
    %v2859 = vld [vmem:[%s7 + $0x3c8] sm:$0xff]
    %v2860 = vld [vmem:[%s7 + $0x3d0] sm:$0xf]
    %v2861 = vld [vmem:[%s7 + $0x3d4] sm:$0xff]
    %v2862 = vld [vmem:[%s7 + $0x3dc] sm:$0xff]
    %v2863 = vld [vmem:[%s7 + $0x3e4] sm:$0xff]
    %v2864 = vld [vmem:[%s7 + $0x3ec] sm:$0xf]
    %v2865 = vld [vmem:[%s7 + $0x3f0] sm:$0xff]
    %v2866 = vld [vmem:[%s7 + $0x3f8] sm:$0xff]
    %v2867 = vld [vmem:[%s7 + $0x400] sm:$0xff]
    %v2868 = vld [vmem:[%s7 + $0x408] sm:$0xf]
    %v2869 = vld [vmem:[%s7 + $0x40c] sm:$0xff]
    %v2870 = vld [vmem:[%s7 + $0x414] sm:$0xff]
    %v2871 = vld [vmem:[%s7 + $0x41c] sm:$0xff]
    %v2872 = vld [vmem:[%s7 + $0x424] sm:$0xf]
    %v2873 = vld [vmem:[%s7 + $0x428] sm:$0xff]
    %v2874 = vld [vmem:[%s7 + $0x430] sm:$0xff]
    %v2875 = vld [vmem:[%s7 + $0x438] sm:$0xff]
    %v2876 = vld [vmem:[%s7 + $0x440] sm:$0xf]
    %v2877 = vld [vmem:[%s7 + $0x444] sm:$0xff]
    %v2878 = vld [vmem:[%s7 + $0x44c] sm:$0xff]
    %v2879 = vld [vmem:[%s7 + $0x454] sm:$0xff]
    %v2880 = vld [vmem:[%s7 + $0x45c] sm:$0xf]
    %v2881 = vld [vmem:[%s7 + $0x460] sm:$0xff]
    %v2882 = vld [vmem:[%s7 + $0x468] sm:$0xff]
    %v2883 = vld [vmem:[%s7 + $0x470] sm:$0xff]
    %v2884 = vld [vmem:[%s7 + $0x478] sm:$0xf]
    %v2885 = vld [vmem:[%s7 + $0x47c] sm:$0xff]
    %v2886 = vld [vmem:[%s7 + $0x484] sm:$0xff]
    %v2887 = vld [vmem:[%s7 + $0x48c] sm:$0xff]
    %v2888 = vld [vmem:[%s7 + $0x494] sm:$0xf]
    %v2889 = vld [vmem:[%s7 + $0x498] sm:$0xff]
    %v2890 = vld [vmem:[%s7 + $0x4a0] sm:$0xff]
    %v2891 = vld [vmem:[%s7 + $0x4a8] sm:$0xff]
    %v2892 = vld [vmem:[%s7 + $0x4b0] sm:$0xf]
    %v2893 = vld [vmem:[%s7 + $0x4b4] sm:$0xff]
    %v2894 = vld [vmem:[%s7 + $0x4bc] sm:$0xff]
    %v2895 = vld [vmem:[%s7 + $0x4c4] sm:$0xff]
    %v2896 = vld [vmem:[%s7 + $0x4cc] sm:$0xf]
    %v2897 = vld [vmem:[%s7 + $0x4d0] sm:$0xff]
    %v2898 = vld [vmem:[%s7 + $0x4d8] sm:$0xff]
    %v2899 = vld [vmem:[%s7 + $0x4e0] sm:$0xff]
    %v2900 = vld [vmem:[%s7 + $0x4e8] sm:$0xf]
    %v2901 = vld [vmem:[%s7 + $0x4ec] sm:$0xff]
    %v2902 = vld [vmem:[%s7 + $0x4f4] sm:$0xff]
    %v2903 = vld [vmem:[%s7 + $0x4fc] sm:$0xff]
    %v2904 = vld [vmem:[%s7 + $0x504] sm:$0xf]
    %v2905 = vld [vmem:[%s7 + $0x508] sm:$0xff]
    %v2906 = vld [vmem:[%s7 + $0x510] sm:$0xff]
    %v2907 = vld [vmem:[%s7 + $0x518] sm:$0xff]
    %v2908 = vld [vmem:[%s7 + $0x520] sm:$0xf]
    %v2909 = vld [vmem:[%s7 + $0x524] sm:$0xff]
    %v2910 = vld [vmem:[%s7 + $0x52c] sm:$0xff]
    %v2911 = vld [vmem:[%s7 + $0x534] sm:$0xff]
    %v2912 = vld [vmem:[%s7 + $0x53c] sm:$0xf]
    %v2913 = vld [vmem:[%s7 + $0x540] sm:$0xff]
    %v2914 = vld [vmem:[%s7 + $0x548] sm:$0xff]
    %v2915 = vld [vmem:[%s7 + $0x550] sm:$0xff]
    %v2916 = vld [vmem:[%s7 + $0x558] sm:$0xf]
    %v2917 = vld [vmem:[%s7 + $0x55c] sm:$0xff]
    %v2918 = vld [vmem:[%s7 + $0x564] sm:$0xff]
    %v2919 = vld [vmem:[%s7 + $0x56c] sm:$0xff]
    %v2920 = vld [vmem:[%s7 + $0x574] sm:$0xf]
    %v2921 = vld [vmem:[%s7 + $0x578] sm:$0xff]
    %v2922 = vld [vmem:[%s7 + $0x580] sm:$0xff]
    %v2923 = vld [vmem:[%s7 + $0x588] sm:$0xff]
    %v2924 = vld [vmem:[%s7 + $0x590] sm:$0xf]
    %v2925 = vld [vmem:[%s7 + $0x594] sm:$0xff]
    %v2926 = vld [vmem:[%s7 + $0x59c] sm:$0xff]
    %v2927 = vld [vmem:[%s7 + $0x5a4] sm:$0xff]
    %v2928 = vld [vmem:[%s7 + $0x5ac] sm:$0xf]
    %v2929 = vld [vmem:[%s7 + $0x5b0] sm:$0xff]
    %v2930 = vld [vmem:[%s7 + $0x5b8] sm:$0xff]
    %v2931 = vld [vmem:[%s7 + $0x5c0] sm:$0xff]
    %v2932 = vld [vmem:[%s7 + $0x5c8] sm:$0xf]
    %v2933 = vld [vmem:[%s7 + $0x5cc] sm:$0xff]
    %v2934 = vld [vmem:[%s7 + $0x5d4] sm:$0xff]
    %v2935 = vld [vmem:[%s7 + $0x5dc] sm:$0xff]
    %v2936 = vld [vmem:[%s7 + $0x5e4] sm:$0xf]
    %v2937 = vld [vmem:[%s7 + $0x5e8] sm:$0xff]
    %v2938 = vld [vmem:[%s7 + $0x5f0] sm:$0xff]
    %v2939 = vld [vmem:[%s7 + $0x5f8] sm:$0xff]
    %v2940 = vld [vmem:[%s7 + $0x600] sm:$0xf]
    %v2941 = vld [vmem:[%s7 + $0x604] sm:$0xff]
    %v2942 = vld [vmem:[%s7 + $0x60c] sm:$0xff]
    %v2943 = vld [vmem:[%s7 + $0x614] sm:$0xff]
    %v2944 = vld [vmem:[%s7 + $0x61c] sm:$0xf]
    %v2945 = vld [vmem:[%s7 + $0x620] sm:$0xff]
    %v2946 = vld [vmem:[%s7 + $0x628] sm:$0xff]
    %v2947 = vld [vmem:[%s7 + $0x630] sm:$0xff]
    %v2948 = vld [vmem:[%s7 + $0x638] sm:$0xf]
    %v2949 = vld [vmem:[%s7 + $0x63c] sm:$0xff]
    %v2950 = vld [vmem:[%s7 + $0x644] sm:$0xff]
    %v2951 = vld [vmem:[%s7 + $0x64c] sm:$0xff]
    %v2952 = vld [vmem:[%s7 + $0x654] sm:$0xf]
    %v2953 = vld [vmem:[%s7 + $0x658] sm:$0xff]
    %v2954 = vld [vmem:[%s7 + $0x660] sm:$0xff]
    %v2955 = vld [vmem:[%s7 + $0x668] sm:$0xff]
    %v2956 = vld [vmem:[%s7 + $0x670] sm:$0xf]
    %v2957 = vld [vmem:[%s7 + $0x674] sm:$0xff]
    %v2958 = vld [vmem:[%s7 + $0x67c] sm:$0xff]
    %v2959 = vld [vmem:[%s7 + $0x684] sm:$0xff]
    %v2960 = vld [vmem:[%s7 + $0x68c] sm:$0xf]
    %v2961 = vld [vmem:[%s7 + $0x690] sm:$0xff]
    %v2962 = vld [vmem:[%s7 + $0x698] sm:$0xff]
    %v2963 = vld [vmem:[%s7 + $0x6a0] sm:$0xff]
    %v2964 = vld [vmem:[%s7 + $0x6a8] sm:$0xf]
    %v2965 = vld [vmem:[%s7 + $0x6ac] sm:$0xff]
    %v2966 = vld [vmem:[%s7 + $0x6b4] sm:$0xff]
    %v2967 = vld [vmem:[%s7 + $0x6bc] sm:$0xff]
    %v2968 = vld [vmem:[%s7 + $0x6c4] sm:$0xf]
    %v2969 = vld [vmem:[%s7 + $0x6c8] sm:$0xff]
    %v2970 = vld [vmem:[%s7 + $0x6d0] sm:$0xff]
    %v2971 = vld [vmem:[%s7 + $0x6d8] sm:$0xff]
    %v2972 = vld [vmem:[%s7 + $0x6e0] sm:$0xf]
    %v2973 = vld [vmem:[%s7 + $0x6e4] sm:$0xff]
    %v2974 = vld [vmem:[%s7 + $0x6ec] sm:$0xff]
    %v2975 = vld [vmem:[%s7 + $0x6f4] sm:$0xff]
    %v2976 = vld [vmem:[%s7 + $0x6fc] sm:$0xf]
    %v2977 = vld [vmem:[%s7 + $0x700] sm:$0xff]
    %v2978 = vld [vmem:[%s7 + $0x708] sm:$0xff]
    %v2979 = vld [vmem:[%s7 + $0x710] sm:$0xff]
    %v2980 = vld [vmem:[%s7 + $0x718] sm:$0xf]
    %v2981 = vld [vmem:[%s7 + $0x71c] sm:$0xff]
    %v2982 = vld [vmem:[%s7 + $0x724] sm:$0xff]
    %v2983 = vld [vmem:[%s7 + $0x72c] sm:$0xff]
    %v2984 = vld [vmem:[%s7 + $0x734] sm:$0xf]
    %v2985 = vld [vmem:[%s7 + $0x738] sm:$0xff]
    %v2986 = vld [vmem:[%s7 + $0x740] sm:$0xff]
    %v2987 = vld [vmem:[%s7 + $0x748] sm:$0xff]
    %v2988 = vld [vmem:[%s7 + $0x750] sm:$0xf]
    %v2989 = vld [vmem:[%s7 + $0x754] sm:$0xff]
    %v2990 = vld [vmem:[%s7 + $0x75c] sm:$0xff]
    %v2991 = vld [vmem:[%s7 + $0x764] sm:$0xff]
    %v2992 = vld [vmem:[%s7 + $0x76c] sm:$0xf]
    %v2993 = vld [vmem:[%s7 + $0x770] sm:$0xff]
    %v2994 = vld [vmem:[%s7 + $0x778] sm:$0xff]
    %v2995 = vld [vmem:[%s7 + $0x780] sm:$0xff]
    %v2996 = vld [vmem:[%s7 + $0x788] sm:$0xf]
    %v2997 = vld [vmem:[%s7 + $0x78c] sm:$0xff]
    %v2998 = vld [vmem:[%s7 + $0x794] sm:$0xff]
    %v2999 = vld [vmem:[%s7 + $0x79c] sm:$0xff]
    %v3000 = vld [vmem:[%s7 + $0x7a4] sm:$0xf]
    %v3001 = vld [vmem:[%s7 + $0x7a8] sm:$0xff]
    %v3002 = vld [vmem:[%s7 + $0x7b0] sm:$0xff]
    %v3003 = vld [vmem:[%s7 + $0x7b8] sm:$0xff]
    %v3004 = vld [vmem:[%s7 + $0x7c0] sm:$0xf]
    %v3005 = vld [vmem:[%s7 + $0x7c4] sm:$0xff]
    %v3006 = vld [vmem:[%s7 + $0x7cc] sm:$0xff]
    %v3007 = vld [vmem:[%s7 + $0x7d4] sm:$0xff]
    %v3008 = vld [vmem:[%s7 + $0x7dc] sm:$0xf]
    %v3009 = vld [vmem:[%s7 + $0x7e0] sm:$0xff]
    %v3010 = vld [vmem:[%s7 + $0x7e8] sm:$0xff]
    %v3011 = vld [vmem:[%s7 + $0x7f0] sm:$0xff]
    %v3012 = vld [vmem:[%s7 + $0x7f8] sm:$0xf]
    %v3013 = vld [vmem:[%s7 + $0x7fc] sm:$0xff]
    %v3014 = vld [vmem:[%s7 + $0x804] sm:$0xff]
    %v3015 = vld [vmem:[%s7 + $0x80c] sm:$0xff]
    %v3016 = vld [vmem:[%s7 + $0x814] sm:$0xf]
    %v3017 = vld [vmem:[%s7 + $0x818] sm:$0xff]
    %v3018 = vld [vmem:[%s7 + $0x820] sm:$0xff]
    %v3019 = vld [vmem:[%s7 + $0x828] sm:$0xff]
    %v3020 = vld [vmem:[%s7 + $0x830] sm:$0xf]
    %v3021 = vld [vmem:[%s7 + $0x834] sm:$0xff]
    %v3022 = vld [vmem:[%s7 + $0x83c] sm:$0xff]
    %v3023 = vld [vmem:[%s7 + $0x844] sm:$0xff]
    %v3024 = vld [vmem:[%s7 + $0x84c] sm:$0xf]
    %v3025 = vld [vmem:[%s7 + $0x850] sm:$0xff]
    %v3026 = vld [vmem:[%s7 + $0x858] sm:$0xff]
    %v3027 = vld [vmem:[%s7 + $0x860] sm:$0xff]
    %v3028 = vld [vmem:[%s7 + $0x868] sm:$0xf]
    %v3029 = vld [vmem:[%s7 + $0x86c] sm:$0xff]
    %v3030 = vld [vmem:[%s7 + $0x874] sm:$0xff]
    %v3031 = vld [vmem:[%s7 + $0x87c] sm:$0xff]
    %v3032 = vld [vmem:[%s7 + $0x884] sm:$0xf]
    %v3033 = vld [vmem:[%s7 + $0x888] sm:$0xff]
    %v3034 = vld [vmem:[%s7 + $0x890] sm:$0xff]
    %v3035 = vld [vmem:[%s7 + $0x898] sm:$0xff]
    %v3036 = vld [vmem:[%s7 + $0x8a0] sm:$0xf]
    %v3037 = vld [vmem:[%s7 + $0x8a4] sm:$0xff]
    %v3038 = vld [vmem:[%s7 + $0x8ac] sm:$0xff]
    %v3039 = vld [vmem:[%s7 + $0x8b4] sm:$0xff]
    %v3040 = vld [vmem:[%s7 + $0x8bc] sm:$0xf]
    %v3041 = vld [vmem:[%s7 + $0x8c0] sm:$0xff]
    %v3042 = vld [vmem:[%s7 + $0x8c8] sm:$0xff]
    %v3043 = vld [vmem:[%s7 + $0x8d0] sm:$0xff]
    %v3044 = vld [vmem:[%s7 + $0x8d8] sm:$0xf]
    %v3045 = vld [vmem:[%s7 + $0x8dc] sm:$0xff]
    %v3046 = vld [vmem:[%s7 + $0x8e4] sm:$0xff]
    %v3047 = vld [vmem:[%s7 + $0x8ec] sm:$0xff]
    %v3048 = vld [vmem:[%s7 + $0x8f4] sm:$0xf]
    %v3049 = vld [vmem:[%s7 + $0x8f8] sm:$0xff]
    %v3050 = vld [vmem:[%s7 + $0x900] sm:$0xff]
    %v3051 = vld [vmem:[%s7 + $0x908] sm:$0xff]
    %v3052 = vld [vmem:[%s7 + $0x910] sm:$0xf]
    %v3053 = vld [vmem:[%s7 + $0x914] sm:$0xff]
    %v3054 = vld [vmem:[%s7 + $0x91c] sm:$0xff]
    %v3055 = vld [vmem:[%s7 + $0x924] sm:$0xff]
    %v3056 = vld [vmem:[%s7 + $0x92c] sm:$0xf]
    %v3057 = vld [vmem:[%s7 + $0x930] sm:$0xff]
    %v3058 = vld [vmem:[%s7 + $0x938] sm:$0xff]
    %v3059 = vld [vmem:[%s7 + $0x940] sm:$0xff]
    %v3060 = vld [vmem:[%s7 + $0x948] sm:$0xf]
    %v3061 = vld [vmem:[%s7 + $0x94c] sm:$0xff]
    %v3062 = vld [vmem:[%s7 + $0x954] sm:$0xff]
    %v3063 = vld [vmem:[%s7 + $0x95c] sm:$0xff]
    %v3064 = vld [vmem:[%s7 + $0x964] sm:$0xf]
    %v3065 = vld [vmem:[%s7 + $0x968] sm:$0xff]
    %v3066 = vld [vmem:[%s7 + $0x970] sm:$0xff]
    %v3067 = vld [vmem:[%s7 + $0x978] sm:$0xff]
    %v3068 = vld [vmem:[%s7 + $0x980] sm:$0xf]
    %v3069 = vld [vmem:[%s7 + $0x984] sm:$0xff]
    %v3070 = vld [vmem:[%s7 + $0x98c] sm:$0xff]
    %v3071 = vld [vmem:[%s7 + $0x994] sm:$0xff]
    %v3072 = vld [vmem:[%s7 + $0x99c] sm:$0xf]
    %v3073 = vld [vmem:[%s7 + $0x9a0] sm:$0xff]
    %v3074 = vld [vmem:[%s7 + $0x9a8] sm:$0xff]
    %v3075 = vld [vmem:[%s7 + $0x9b0] sm:$0xff]
    %v3076 = vld [vmem:[%s7 + $0x9b8] sm:$0xf]
    %v3077 = vld [vmem:[%s7 + $0x9bc] sm:$0xff]
    %v3078 = vld [vmem:[%s7 + $0x9c4] sm:$0xff]
    %v3079 = vld [vmem:[%s7 + $0x9cc] sm:$0xff]
    %v3080 = vld [vmem:[%s7 + $0x9d4] sm:$0xf]
    %v3081 = vld [vmem:[%s7 + $0x9d8] sm:$0xff]
    %v3082 = vld [vmem:[%s7 + $0x9e0] sm:$0xff]
    %v3083 = vld [vmem:[%s7 + $0x9e8] sm:$0xff]
    %v3084 = vld [vmem:[%s7 + $0x9f0] sm:$0xf]
    %v3085 = vld [vmem:[%s7 + $0x9f4] sm:$0xff]
    %v3086 = vld [vmem:[%s7 + $0x9fc] sm:$0xff]
    %v3087 = vld [vmem:[%s7 + $0xa04] sm:$0xff]
    %v3088 = vld [vmem:[%s7 + $0xa0c] sm:$0xf]
    %v3089 = vld [vmem:[%s7 + $0xa10] sm:$0xff]
    %v3090 = vld [vmem:[%s7 + $0xa18] sm:$0xff]
    %v3091 = vld [vmem:[%s7 + $0xa20] sm:$0xff]
    %v3092 = vld [vmem:[%s7 + $0xa28] sm:$0xf]
    %v3093 = vld [vmem:[%s7 + $0xa2c] sm:$0xff]
    %v3094 = vld [vmem:[%s7 + $0xa34] sm:$0xff]
    %v3095 = vld [vmem:[%s7 + $0xa3c] sm:$0xff]
    %v3096 = vld [vmem:[%s7 + $0xa44] sm:$0xf]
    %v3097 = vld [vmem:[%s7 + $0xa48] sm:$0xff]
    %v3098 = vld [vmem:[%s7 + $0xa50] sm:$0xff]
    %v3099 = vld [vmem:[%s7 + $0xa58] sm:$0xff]
    %v3100 = vld [vmem:[%s7 + $0xa60] sm:$0xf]
    %v3101 = vld [vmem:[%s7 + $0xa64] sm:$0xff]
    %v3102 = vld [vmem:[%s7 + $0xa6c] sm:$0xff]
    %v3103 = vld [vmem:[%s7 + $0xa74] sm:$0xff]
    %v3104 = vld [vmem:[%s7 + $0xa7c] sm:$0xf]
    %v3105 = vld [vmem:[%s7 + $0xa80] sm:$0xff]
    %v3106 = vld [vmem:[%s7 + $0xa88] sm:$0xff]
    %v3107 = vld [vmem:[%s7 + $0xa90] sm:$0xff]
    %v3108 = vld [vmem:[%s7 + $0xa98] sm:$0xf]
    %v3109 = vld [vmem:[%s7 + $0xa9c] sm:$0xff]
    %v3110 = vld [vmem:[%s7 + $0xaa4] sm:$0xff]
    %v3111 = vld [vmem:[%s7 + $0xaac] sm:$0xff]
    %v3112 = vld [vmem:[%s7 + $0xab4] sm:$0xf]
    %v3113 = vld [vmem:[%s7 + $0xab8] sm:$0xff]
    %v3114 = vld [vmem:[%s7 + $0xac0] sm:$0xff]
    %v3115 = vld [vmem:[%s7 + $0xac8] sm:$0xff]
    %v3116 = vld [vmem:[%s7 + $0xad0] sm:$0xf]
    %v3117 = vld [vmem:[%s7 + $0xad4] sm:$0xff]
    %v3118 = vld [vmem:[%s7 + $0xadc] sm:$0xff]
    %v3119 = vld [vmem:[%s7 + $0xae4] sm:$0xff]
    %v3120 = vld [vmem:[%s7 + $0xaec] sm:$0xf]
    %v3121 = vld [vmem:[%s7 + $0xaf0] sm:$0xff]
    %v3122 = vld [vmem:[%s7 + $0xaf8] sm:$0xff]
    %v3123 = vld [vmem:[%s7 + $0xb00] sm:$0xff]
    %v3124 = vld [vmem:[%s7 + $0xb08] sm:$0xf]
    %v3125 = vld [vmem:[%s7 + $0xb0c] sm:$0xff]
    %v3126 = vld [vmem:[%s7 + $0xb14] sm:$0xff]
    %v3127 = vld [vmem:[%s7 + $0xb1c] sm:$0xff]
    %v3128 = vld [vmem:[%s7 + $0xb24] sm:$0xf]
    %v3129 = vld [vmem:[%s7 + $0xb28] sm:$0xff]
    %v3130 = vld [vmem:[%s7 + $0xb30] sm:$0xff]
    %v3131 = vld [vmem:[%s7 + $0xb38] sm:$0xff]
    %v3132 = vld [vmem:[%s7 + $0xb40] sm:$0xf]
    %v3133 = vld [vmem:[%s7 + $0xb44] sm:$0xff]
    %v3134 = vld [vmem:[%s7 + $0xb4c] sm:$0xff]
    %v3135 = vld [vmem:[%s7 + $0xb54] sm:$0xff]
    %v3136 = vld [vmem:[%s7 + $0xb5c] sm:$0xf]
    %v3137 = vld [vmem:[%s7 + $0xb60] sm:$0xff]
    %v3138 = vld [vmem:[%s7 + $0xb68] sm:$0xff]
    %v3139 = vld [vmem:[%s7 + $0xb70] sm:$0xff]
    %v3140 = vld [vmem:[%s7 + $0xb78] sm:$0xf]
    %v3141 = vld [vmem:[%s7 + $0xb7c] sm:$0xff]
    %v3142 = vld [vmem:[%s7 + $0xb84] sm:$0xff]
    %v3143 = vld [vmem:[%s7 + $0xb8c] sm:$0xff]
    %v3144 = vld [vmem:[%s7 + $0xb94] sm:$0xf]
    %v3145 = vld [vmem:[%s7 + $0xb98] sm:$0xff]
    %v3146 = vld [vmem:[%s7 + $0xba0] sm:$0xff]
    %v3147 = vld [vmem:[%s7 + $0xba8] sm:$0xff]
    %v3148 = vld [vmem:[%s7 + $0xbb0] sm:$0xf]
    %v3149 = vld [vmem:[%s7 + $0xbb4] sm:$0xff]
    %v3150 = vld [vmem:[%s7 + $0xbbc] sm:$0xff]
    %v3151 = vld [vmem:[%s7 + $0xbc4] sm:$0xff]
    %v3152 = vld [vmem:[%s7 + $0xbcc] sm:$0xf]
    %v3153 = vld [vmem:[%s7 + $0xbd0] sm:$0xff]
    %v3154 = vld [vmem:[%s7 + $0xbd8] sm:$0xff]
    %v3155 = vld [vmem:[%s7 + $0xbe0] sm:$0xff]
    %v3156 = vld [vmem:[%s7 + $0xbe8] sm:$0xf]
    %v3157 = vld [vmem:[%s7 + $0xbec] sm:$0xff]
    %v3158 = vld [vmem:[%s7 + $0xbf4] sm:$0xff]
    %v3159 = vld [vmem:[%s7 + $0xbfc] sm:$0xff]
    %v3160 = vld [vmem:[%s7 + $0xc04] sm:$0xf]
    %v3161 = vld [vmem:[%s7 + $0xc08] sm:$0xff]
    %v3162 = vld [vmem:[%s7 + $0xc10] sm:$0xff]
    %v3163 = vld [vmem:[%s7 + $0xc18] sm:$0xff]
    %v3164 = vld [vmem:[%s7 + $0xc20] sm:$0xf]
    %v3165 = vld [vmem:[%s7 + $0xc24] sm:$0xff]
    %v3166 = vld [vmem:[%s7 + $0xc2c] sm:$0xff]
    %v3167 = vld [vmem:[%s7 + $0xc34] sm:$0xff]
    %v3168 = vld [vmem:[%s7 + $0xc3c] sm:$0xf]
    %v3169 = vld [vmem:[%s7 + $0xc40] sm:$0xff]
    %v3170 = vld [vmem:[%s7 + $0xc48] sm:$0xff]
    %v3171 = vld [vmem:[%s7 + $0xc50] sm:$0xff]
    %v3172 = vld [vmem:[%s7 + $0xc58] sm:$0xf]
    %v3173 = vld [vmem:[%s7 + $0xc5c] sm:$0xff]
    %v3174 = vld [vmem:[%s7 + $0xc64] sm:$0xff]
    %v3175 = vld [vmem:[%s7 + $0xc6c] sm:$0xff]
    %v3176 = vld [vmem:[%s7 + $0xc74] sm:$0xf]
    %v3177 = vld [vmem:[%s7 + $0xc78] sm:$0xff]
    %v3178 = vld [vmem:[%s7 + $0xc80] sm:$0xff]
    %v3179 = vld [vmem:[%s7 + $0xc88] sm:$0xff]
    %v3180 = vld [vmem:[%s7 + $0xc90] sm:$0xf]
    %v3181 = vld [vmem:[%s7 + $0xc94] sm:$0xff]
    %v3182 = vld [vmem:[%s7 + $0xc9c] sm:$0xff]
    %v3183 = vld [vmem:[%s7 + $0xca4] sm:$0xff]
    %v3184 = vld [vmem:[%s7 + $0xcac] sm:$0xf]
    %v3185 = vld [vmem:[%s7 + $0xcb0] sm:$0xff]
    %v3186 = vld [vmem:[%s7 + $0xcb8] sm:$0xff]
    %v3187 = vld [vmem:[%s7 + $0xcc0] sm:$0xff]
    %v3188 = vld [vmem:[%s7 + $0xcc8] sm:$0xf]
    %v3189 = vld [vmem:[%s7 + $0xccc] sm:$0xff]
    %v3190 = vld [vmem:[%s7 + $0xcd4] sm:$0xff]
    %v3191 = vld [vmem:[%s7 + $0xcdc] sm:$0xff]
    %v3192 = vld [vmem:[%s7 + $0xce4] sm:$0xf]
    %v3193 = vld [vmem:[%s7 + $0xce8] sm:$0xff]
    %v3194 = vld [vmem:[%s7 + $0xcf0] sm:$0xff]
    %v3195 = vld [vmem:[%s7 + $0xcf8] sm:$0xff]
    %v3196 = vld [vmem:[%s7 + $0xd00] sm:$0xf]
    %v3197 = vld [vmem:[%s7 + $0xd04] sm:$0xff]
    %v3198 = vld [vmem:[%s7 + $0xd0c] sm:$0xff]
    %v3199 = vld [vmem:[%s7 + $0xd14] sm:$0xff]
    %v3200 = vld [vmem:[%s7 + $0xd1c] sm:$0xf]
    %v3201 = vld [vmem:[%s7 + $0xd20] sm:$0xff]
    %v3202 = vld [vmem:[%s7 + $0xd28] sm:$0xff]
    %v3203 = vld [vmem:[%s7 + $0xd30] sm:$0xff]
    %v3204 = vld [vmem:[%s7 + $0xd38] sm:$0xf]
    %v3205 = vld [vmem:[%s7 + $0xd3c] sm:$0xff]
    %v3206 = vld [vmem:[%s7 + $0xd44] sm:$0xff]
    %v3207 = vld [vmem:[%s7 + $0xd4c] sm:$0xff]
    %v3208 = vld [vmem:[%s7 + $0xd54] sm:$0xf]
    %v3209 = vld [vmem:[%s7 + $0xd58] sm:$0xff]
    %v3210 = vld [vmem:[%s7 + $0xd60] sm:$0xff]
    %v3211 = vld [vmem:[%s7 + $0xd68] sm:$0xff]
    %v3212 = vld [vmem:[%s7 + $0xd70] sm:$0xf]
    %v3213 = vld [vmem:[%s7 + $0xd74] sm:$0xff]
    %v3214 = vld [vmem:[%s7 + $0xd7c] sm:$0xff]
    %v3215 = vld [vmem:[%s7 + $0xd84] sm:$0xff]
    %v3216 = vld [vmem:[%s7 + $0xd8c] sm:$0xf]
    %v3217 = vld [vmem:[%s7 + $0xd90] sm:$0xff]
    %v3218 = vld [vmem:[%s7 + $0xd98] sm:$0xff]
    %v3219 = vld [vmem:[%s7 + $0xda0] sm:$0xff]
    %v3220 = vld [vmem:[%s7 + $0xda8] sm:$0xf]
    %v3221 = vld [vmem:[%s7 + $0xdac] sm:$0xff]
    %v3222 = vld [vmem:[%s7 + $0xdb4] sm:$0xff]
    %v3223 = vld [vmem:[%s7 + $0xdbc] sm:$0xff]
    %v3224 = vld [vmem:[%s7 + $0xdc4] sm:$0xf]
    %v3225 = vld [vmem:[%s7 + $0xdc8] sm:$0xff]
    %v3226 = vld [vmem:[%s7 + $0xdd0] sm:$0xff]
    %v3227 = vld [vmem:[%s7 + $0xdd8] sm:$0xff]
    %v3228 = vld [vmem:[%s7 + $0xde0] sm:$0xf]
    %v3229 = vld [vmem:[%s7 + $0xde4] sm:$0xff]
    %v3230 = vld [vmem:[%s7 + $0xdec] sm:$0xff]
    %v3231 = vld [vmem:[%s7 + $0xdf4] sm:$0xff]
    %v3232 = vld [vmem:[%s7 + $0xdfc] sm:$0xf]
    %v3233 = vld [vmem:[%s8] sm:$0x7f]
    %v3235 = vperm.slane %v3233, 0
    %v3236 = vperm.slane %v3233, 1
    %v3237 = vperm.slane %v3233, 2
    %v3238 = vperm.slane %v3233, 3
    %v3239 = vperm.slane %v3233, 4
    %v3240 = vperm.slane %v3233, 5
    %v3241 = vperm.slane %v3233, 6
    %v3761 = vunpack.c.l.b16 %v2721
    %v3762 = vunpack.c.h.b16 %v2721
    %v3763 = vunpack.c.l.b16 %v2722
    %v3764 = vunpack.c.h.b16 %v2722
    %v3765 = vunpack.c.l.b16 %v2723
    %v3766 = vunpack.c.h.b16 %v2723
    %v3767 = vunpack.c.l.b16 %v2724
    %v3768 = vunpack.c.l.b16 %v2725
    %v3769 = vunpack.c.h.b16 %v2725
    %v3770 = vunpack.c.l.b16 %v2726
    %v3771 = vunpack.c.h.b16 %v2726
    %v3772 = vunpack.c.l.b16 %v2727
    %v3773 = vunpack.c.h.b16 %v2727
    %v3774 = vunpack.c.l.b16 %v2728
    %v3775 = vunpack.c.l.b16 %v2729
    %v3776 = vunpack.c.h.b16 %v2729
    %v3777 = vunpack.c.l.b16 %v2730
    %v3778 = vunpack.c.h.b16 %v2730
    %v3779 = vunpack.c.l.b16 %v2731
    %v3780 = vunpack.c.h.b16 %v2731
    %v3781 = vunpack.c.l.b16 %v2732
    %v3782 = vunpack.c.l.b16 %v2733
    %v3783 = vunpack.c.h.b16 %v2733
    %v3784 = vunpack.c.l.b16 %v2734
    %v3785 = vunpack.c.h.b16 %v2734
    %v3786 = vunpack.c.l.b16 %v2735
    %v3787 = vunpack.c.h.b16 %v2735
    %v3788 = vunpack.c.l.b16 %v2736
    %v3789 = vunpack.c.l.b16 %v2737
    %v3790 = vunpack.c.h.b16 %v2737
    %v3791 = vunpack.c.l.b16 %v2738
    %v3792 = vunpack.c.h.b16 %v2738
    %v3793 = vunpack.c.l.b16 %v2739
    %v3794 = vunpack.c.h.b16 %v2739
    %v3795 = vunpack.c.l.b16 %v2740
    %v3796 = vunpack.c.l.b16 %v2741
    %v3797 = vunpack.c.h.b16 %v2741
    %v3798 = vunpack.c.l.b16 %v2742
    %v3799 = vunpack.c.h.b16 %v2742
    %v3800 = vunpack.c.l.b16 %v2743
    %v3801 = vunpack.c.h.b16 %v2743
    %v3802 = vunpack.c.l.b16 %v2744
    %v3803 = vunpack.c.l.b16 %v2745
    %v3804 = vunpack.c.h.b16 %v2745
    %v3805 = vunpack.c.l.b16 %v2746
    %v3806 = vunpack.c.h.b16 %v2746
    %v3807 = vunpack.c.l.b16 %v2747
    %v3808 = vunpack.c.h.b16 %v2747
    %v3809 = vunpack.c.l.b16 %v2748
    %v3810 = vunpack.c.l.b16 %v2749
    %v3811 = vunpack.c.h.b16 %v2749
    %v3812 = vunpack.c.l.b16 %v2750
    %v3813 = vunpack.c.h.b16 %v2750
    %v3814 = vunpack.c.l.b16 %v2751
    %v3815 = vunpack.c.h.b16 %v2751
    %v3816 = vunpack.c.l.b16 %v2752
    %v3817 = vunpack.c.l.b16 %v2753
    %v3818 = vunpack.c.h.b16 %v2753
    %v3819 = vunpack.c.l.b16 %v2754
    %v3820 = vunpack.c.h.b16 %v2754
    %v3821 = vunpack.c.l.b16 %v2755
    %v3822 = vunpack.c.h.b16 %v2755
    %v3823 = vunpack.c.l.b16 %v2756
    %v3824 = vunpack.c.l.b16 %v2757
    %v3825 = vunpack.c.h.b16 %v2757
    %v3826 = vunpack.c.l.b16 %v2758
    %v3827 = vunpack.c.h.b16 %v2758
    %v3828 = vunpack.c.l.b16 %v2759
    %v3829 = vunpack.c.h.b16 %v2759
    %v3830 = vunpack.c.l.b16 %v2760
    %v3831 = vunpack.c.l.b16 %v2761
    %v3832 = vunpack.c.h.b16 %v2761
    %v3833 = vunpack.c.l.b16 %v2762
    %v3834 = vunpack.c.h.b16 %v2762
    %v3835 = vunpack.c.l.b16 %v2763
    %v3836 = vunpack.c.h.b16 %v2763
    %v3837 = vunpack.c.l.b16 %v2764
    %v3838 = vunpack.c.l.b16 %v2765
    %v3839 = vunpack.c.h.b16 %v2765
    %v3840 = vunpack.c.l.b16 %v2766
    %v3841 = vunpack.c.h.b16 %v2766
    %v3842 = vunpack.c.l.b16 %v2767
    %v3843 = vunpack.c.h.b16 %v2767
    %v3844 = vunpack.c.l.b16 %v2768
    %v3845 = vunpack.c.l.b16 %v2769
    %v3846 = vunpack.c.h.b16 %v2769
    %v3847 = vunpack.c.l.b16 %v2770
    %v3848 = vunpack.c.h.b16 %v2770
    %v3849 = vunpack.c.l.b16 %v2771
    %v3850 = vunpack.c.h.b16 %v2771
    %v3851 = vunpack.c.l.b16 %v2772
    %v3852 = vunpack.c.l.b16 %v2773
    %v3853 = vunpack.c.h.b16 %v2773
    %v3854 = vunpack.c.l.b16 %v2774
    %v3855 = vunpack.c.h.b16 %v2774
    %v3856 = vunpack.c.l.b16 %v2775
    %v3857 = vunpack.c.h.b16 %v2775
    %v3858 = vunpack.c.l.b16 %v2776
    %v3859 = vunpack.c.l.b16 %v2777
    %v3860 = vunpack.c.h.b16 %v2777
    %v3861 = vunpack.c.l.b16 %v2778
    %v3862 = vunpack.c.h.b16 %v2778
    %v3863 = vunpack.c.l.b16 %v2779
    %v3864 = vunpack.c.h.b16 %v2779
    %v3865 = vunpack.c.l.b16 %v2780
    %v3866 = vunpack.c.l.b16 %v2781
    %v3867 = vunpack.c.h.b16 %v2781
    %v3868 = vunpack.c.l.b16 %v2782
    %v3869 = vunpack.c.h.b16 %v2782
    %v3870 = vunpack.c.l.b16 %v2783
    %v3871 = vunpack.c.h.b16 %v2783
    %v3872 = vunpack.c.l.b16 %v2784
    %v3873 = vunpack.c.l.b16 %v2785
    %v3874 = vunpack.c.h.b16 %v2785
    %v3875 = vunpack.c.l.b16 %v2786
    %v3876 = vunpack.c.h.b16 %v2786
    %v3877 = vunpack.c.l.b16 %v2787
    %v3878 = vunpack.c.h.b16 %v2787
    %v3879 = vunpack.c.l.b16 %v2788
    %v3880 = vunpack.c.l.b16 %v2789
    %v3881 = vunpack.c.h.b16 %v2789
    %v3882 = vunpack.c.l.b16 %v2790
    %v3883 = vunpack.c.h.b16 %v2790
    %v3884 = vunpack.c.l.b16 %v2791
    %v3885 = vunpack.c.h.b16 %v2791
    %v3886 = vunpack.c.l.b16 %v2792
    %v3887 = vunpack.c.l.b16 %v2793
    %v3888 = vunpack.c.h.b16 %v2793
    %v3889 = vunpack.c.l.b16 %v2794
    %v3890 = vunpack.c.h.b16 %v2794
    %v3891 = vunpack.c.l.b16 %v2795
    %v3892 = vunpack.c.h.b16 %v2795
    %v3893 = vunpack.c.l.b16 %v2796
    %v3894 = vunpack.c.l.b16 %v2797
    %v3895 = vunpack.c.h.b16 %v2797
    %v3896 = vunpack.c.l.b16 %v2798
    %v3897 = vunpack.c.h.b16 %v2798
    %v3898 = vunpack.c.l.b16 %v2799
    %v3899 = vunpack.c.h.b16 %v2799
    %v3900 = vunpack.c.l.b16 %v2800
    %v3901 = vunpack.c.l.b16 %v2801
    %v3902 = vunpack.c.h.b16 %v2801
    %v3903 = vunpack.c.l.b16 %v2802
    %v3904 = vunpack.c.h.b16 %v2802
    %v3905 = vunpack.c.l.b16 %v2803
    %v3906 = vunpack.c.h.b16 %v2803
    %v3907 = vunpack.c.l.b16 %v2804
    %v3908 = vunpack.c.l.b16 %v2805
    %v3909 = vunpack.c.h.b16 %v2805
    %v3910 = vunpack.c.l.b16 %v2806
    %v3911 = vunpack.c.h.b16 %v2806
    %v3912 = vunpack.c.l.b16 %v2807
    %v3913 = vunpack.c.h.b16 %v2807
    %v3914 = vunpack.c.l.b16 %v2808
    %v3915 = vunpack.c.l.b16 %v2809
    %v3916 = vunpack.c.h.b16 %v2809
    %v3917 = vunpack.c.l.b16 %v2810
    %v3918 = vunpack.c.h.b16 %v2810
    %v3919 = vunpack.c.l.b16 %v2811
    %v3920 = vunpack.c.h.b16 %v2811
    %v3921 = vunpack.c.l.b16 %v2812
    %v3922 = vunpack.c.l.b16 %v2813
    %v3923 = vunpack.c.h.b16 %v2813
    %v3924 = vunpack.c.l.b16 %v2814
    %v3925 = vunpack.c.h.b16 %v2814
    %v3926 = vunpack.c.l.b16 %v2815
    %v3927 = vunpack.c.h.b16 %v2815
    %v3928 = vunpack.c.l.b16 %v2816
    %v3929 = vunpack.c.l.b16 %v2817
    %v3930 = vunpack.c.h.b16 %v2817
    %v3931 = vunpack.c.l.b16 %v2818
    %v3932 = vunpack.c.h.b16 %v2818
    %v3933 = vunpack.c.l.b16 %v2819
    %v3934 = vunpack.c.h.b16 %v2819
    %v3935 = vunpack.c.l.b16 %v2820
    %v3936 = vunpack.c.l.b16 %v2821
    %v3937 = vunpack.c.h.b16 %v2821
    %v3938 = vunpack.c.l.b16 %v2822
    %v3939 = vunpack.c.h.b16 %v2822
    %v3940 = vunpack.c.l.b16 %v2823
    %v3941 = vunpack.c.h.b16 %v2823
    %v3942 = vunpack.c.l.b16 %v2824
    %v3943 = vunpack.c.l.b16 %v2825
    %v3944 = vunpack.c.h.b16 %v2825
    %v3945 = vunpack.c.l.b16 %v2826
    %v3946 = vunpack.c.h.b16 %v2826
    %v3947 = vunpack.c.l.b16 %v2827
    %v3948 = vunpack.c.h.b16 %v2827
    %v3949 = vunpack.c.l.b16 %v2828
    %v3950 = vunpack.c.l.b16 %v2829
    %v3951 = vunpack.c.h.b16 %v2829
    %v3952 = vunpack.c.l.b16 %v2830
    %v3953 = vunpack.c.h.b16 %v2830
    %v3954 = vunpack.c.l.b16 %v2831
    %v3955 = vunpack.c.h.b16 %v2831
    %v3956 = vunpack.c.l.b16 %v2832
    %v3957 = vunpack.c.l.b16 %v2833
    %v3958 = vunpack.c.h.b16 %v2833
    %v3959 = vunpack.c.l.b16 %v2834
    %v3960 = vunpack.c.h.b16 %v2834
    %v3961 = vunpack.c.l.b16 %v2835
    %v3962 = vunpack.c.h.b16 %v2835
    %v3963 = vunpack.c.l.b16 %v2836
    %v3964 = vunpack.c.l.b16 %v2837
    %v3965 = vunpack.c.h.b16 %v2837
    %v3966 = vunpack.c.l.b16 %v2838
    %v3967 = vunpack.c.h.b16 %v2838
    %v3968 = vunpack.c.l.b16 %v2839
    %v3969 = vunpack.c.h.b16 %v2839
    %v3970 = vunpack.c.l.b16 %v2840
    %v3971 = vunpack.c.l.b16 %v2841
    %v3972 = vunpack.c.h.b16 %v2841
    %v3973 = vunpack.c.l.b16 %v2842
    %v3974 = vunpack.c.h.b16 %v2842
    %v3975 = vunpack.c.l.b16 %v2843
    %v3976 = vunpack.c.h.b16 %v2843
    %v3977 = vunpack.c.l.b16 %v2844
    %v3978 = vunpack.c.l.b16 %v2845
    %v3979 = vunpack.c.h.b16 %v2845
    %v3980 = vunpack.c.l.b16 %v2846
    %v3981 = vunpack.c.h.b16 %v2846
    %v3982 = vunpack.c.l.b16 %v2847
    %v3983 = vunpack.c.h.b16 %v2847
    %v3984 = vunpack.c.l.b16 %v2848
    %v3985 = vunpack.c.l.b16 %v2849
    %v3986 = vunpack.c.h.b16 %v2849
    %v3987 = vunpack.c.l.b16 %v2850
    %v3988 = vunpack.c.h.b16 %v2850
    %v3989 = vunpack.c.l.b16 %v2851
    %v3990 = vunpack.c.h.b16 %v2851
    %v3991 = vunpack.c.l.b16 %v2852
    %v3992 = vunpack.c.l.b16 %v2853
    %v3993 = vunpack.c.h.b16 %v2853
    %v3994 = vunpack.c.l.b16 %v2854
    %v3995 = vunpack.c.h.b16 %v2854
    %v3996 = vunpack.c.l.b16 %v2855
    %v3997 = vunpack.c.h.b16 %v2855
    %v3998 = vunpack.c.l.b16 %v2856
    %v3999 = vunpack.c.l.b16 %v2857
    %v4000 = vunpack.c.h.b16 %v2857
    %v4001 = vunpack.c.l.b16 %v2858
    %v4002 = vunpack.c.h.b16 %v2858
    %v4003 = vunpack.c.l.b16 %v2859
    %v4004 = vunpack.c.h.b16 %v2859
    %v4005 = vunpack.c.l.b16 %v2860
    %v4006 = vunpack.c.l.b16 %v2861
    %v4007 = vunpack.c.h.b16 %v2861
    %v4008 = vunpack.c.l.b16 %v2862
    %v4009 = vunpack.c.h.b16 %v2862
    %v4010 = vunpack.c.l.b16 %v2863
    %v4011 = vunpack.c.h.b16 %v2863
    %v4012 = vunpack.c.l.b16 %v2864
    %v4013 = vunpack.c.l.b16 %v2865
    %v4014 = vunpack.c.h.b16 %v2865
    %v4015 = vunpack.c.l.b16 %v2866
    %v4016 = vunpack.c.h.b16 %v2866
    %v4017 = vunpack.c.l.b16 %v2867
    %v4018 = vunpack.c.h.b16 %v2867
    %v4019 = vunpack.c.l.b16 %v2868
    %v4020 = vunpack.c.l.b16 %v2869
    %v4021 = vunpack.c.h.b16 %v2869
    %v4022 = vunpack.c.l.b16 %v2870
    %v4023 = vunpack.c.h.b16 %v2870
    %v4024 = vunpack.c.l.b16 %v2871
    %v4025 = vunpack.c.h.b16 %v2871
    %v4026 = vunpack.c.l.b16 %v2872
    %v4027 = vunpack.c.l.b16 %v2873
    %v4028 = vunpack.c.h.b16 %v2873
    %v4029 = vunpack.c.l.b16 %v2874
    %v4030 = vunpack.c.h.b16 %v2874
    %v4031 = vunpack.c.l.b16 %v2875
    %v4032 = vunpack.c.h.b16 %v2875
    %v4033 = vunpack.c.l.b16 %v2876
    %v4034 = vunpack.c.l.b16 %v2877
    %v4035 = vunpack.c.h.b16 %v2877
    %v4036 = vunpack.c.l.b16 %v2878
    %v4037 = vunpack.c.h.b16 %v2878
    %v4038 = vunpack.c.l.b16 %v2879
    %v4039 = vunpack.c.h.b16 %v2879
    %v4040 = vunpack.c.l.b16 %v2880
    %v4041 = vunpack.c.l.b16 %v2881
    %v4042 = vunpack.c.h.b16 %v2881
    %v4043 = vunpack.c.l.b16 %v2882
    %v4044 = vunpack.c.h.b16 %v2882
    %v4045 = vunpack.c.l.b16 %v2883
    %v4046 = vunpack.c.h.b16 %v2883
    %v4047 = vunpack.c.l.b16 %v2884
    %v4048 = vunpack.c.l.b16 %v2885
    %v4049 = vunpack.c.h.b16 %v2885
    %v4050 = vunpack.c.l.b16 %v2886
    %v4051 = vunpack.c.h.b16 %v2886
    %v4052 = vunpack.c.l.b16 %v2887
    %v4053 = vunpack.c.h.b16 %v2887
    %v4054 = vunpack.c.l.b16 %v2888
    %v4055 = vunpack.c.l.b16 %v2889
    %v4056 = vunpack.c.h.b16 %v2889
    %v4057 = vunpack.c.l.b16 %v2890
    %v4058 = vunpack.c.h.b16 %v2890
    %v4059 = vunpack.c.l.b16 %v2891
    %v4060 = vunpack.c.h.b16 %v2891
    %v4061 = vunpack.c.l.b16 %v2892
    %v4062 = vunpack.c.l.b16 %v2893
    %v4063 = vunpack.c.h.b16 %v2893
    %v4064 = vunpack.c.l.b16 %v2894
    %v4065 = vunpack.c.h.b16 %v2894
    %v4066 = vunpack.c.l.b16 %v2895
    %v4067 = vunpack.c.h.b16 %v2895
    %v4068 = vunpack.c.l.b16 %v2896
    %v4069 = vunpack.c.l.b16 %v2897
    %v4070 = vunpack.c.h.b16 %v2897
    %v4071 = vunpack.c.l.b16 %v2898
    %v4072 = vunpack.c.h.b16 %v2898
    %v4073 = vunpack.c.l.b16 %v2899
    %v4074 = vunpack.c.h.b16 %v2899
    %v4075 = vunpack.c.l.b16 %v2900
    %v4076 = vunpack.c.l.b16 %v2901
    %v4077 = vunpack.c.h.b16 %v2901
    %v4078 = vunpack.c.l.b16 %v2902
    %v4079 = vunpack.c.h.b16 %v2902
    %v4080 = vunpack.c.l.b16 %v2903
    %v4081 = vunpack.c.h.b16 %v2903
    %v4082 = vunpack.c.l.b16 %v2904
    %v4083 = vunpack.c.l.b16 %v2905
    %v4084 = vunpack.c.h.b16 %v2905
    %v4085 = vunpack.c.l.b16 %v2906
    %v4086 = vunpack.c.h.b16 %v2906
    %v4087 = vunpack.c.l.b16 %v2907
    %v4088 = vunpack.c.h.b16 %v2907
    %v4089 = vunpack.c.l.b16 %v2908
    %v4090 = vunpack.c.l.b16 %v2909
    %v4091 = vunpack.c.h.b16 %v2909
    %v4092 = vunpack.c.l.b16 %v2910
    %v4093 = vunpack.c.h.b16 %v2910
    %v4094 = vunpack.c.l.b16 %v2911
    %v4095 = vunpack.c.h.b16 %v2911
    %v4096 = vunpack.c.l.b16 %v2912
    %v4097 = vunpack.c.l.b16 %v2913
    %v4098 = vunpack.c.h.b16 %v2913
    %v4099 = vunpack.c.l.b16 %v2914
    %v4100 = vunpack.c.h.b16 %v2914
    %v4101 = vunpack.c.l.b16 %v2915
    %v4102 = vunpack.c.h.b16 %v2915
    %v4103 = vunpack.c.l.b16 %v2916
    %v4104 = vunpack.c.l.b16 %v2917
    %v4105 = vunpack.c.h.b16 %v2917
    %v4106 = vunpack.c.l.b16 %v2918
    %v4107 = vunpack.c.h.b16 %v2918
    %v4108 = vunpack.c.l.b16 %v2919
    %v4109 = vunpack.c.h.b16 %v2919
    %v4110 = vunpack.c.l.b16 %v2920
    %v4111 = vunpack.c.l.b16 %v2921
    %v4112 = vunpack.c.h.b16 %v2921
    %v4113 = vunpack.c.l.b16 %v2922
    %v4114 = vunpack.c.h.b16 %v2922
    %v4115 = vunpack.c.l.b16 %v2923
    %v4116 = vunpack.c.h.b16 %v2923
    %v4117 = vunpack.c.l.b16 %v2924
    %v4118 = vunpack.c.l.b16 %v2925
    %v4119 = vunpack.c.h.b16 %v2925
    %v4120 = vunpack.c.l.b16 %v2926
    %v4121 = vunpack.c.h.b16 %v2926
    %v4122 = vunpack.c.l.b16 %v2927
    %v4123 = vunpack.c.h.b16 %v2927
    %v4124 = vunpack.c.l.b16 %v2928
    %v4125 = vunpack.c.l.b16 %v2929
    %v4126 = vunpack.c.h.b16 %v2929
    %v4127 = vunpack.c.l.b16 %v2930
    %v4128 = vunpack.c.h.b16 %v2930
    %v4129 = vunpack.c.l.b16 %v2931
    %v4130 = vunpack.c.h.b16 %v2931
    %v4131 = vunpack.c.l.b16 %v2932
    %v4132 = vunpack.c.l.b16 %v2933
    %v4133 = vunpack.c.h.b16 %v2933
    %v4134 = vunpack.c.l.b16 %v2934
    %v4135 = vunpack.c.h.b16 %v2934
    %v4136 = vunpack.c.l.b16 %v2935
    %v4137 = vunpack.c.h.b16 %v2935
    %v4138 = vunpack.c.l.b16 %v2936
    %v4139 = vunpack.c.l.b16 %v2937
    %v4140 = vunpack.c.h.b16 %v2937
    %v4141 = vunpack.c.l.b16 %v2938
    %v4142 = vunpack.c.h.b16 %v2938
    %v4143 = vunpack.c.l.b16 %v2939
    %v4144 = vunpack.c.h.b16 %v2939
    %v4145 = vunpack.c.l.b16 %v2940
    %v4146 = vunpack.c.l.b16 %v2941
    %v4147 = vunpack.c.h.b16 %v2941
    %v4148 = vunpack.c.l.b16 %v2942
    %v4149 = vunpack.c.h.b16 %v2942
    %v4150 = vunpack.c.l.b16 %v2943
    %v4151 = vunpack.c.h.b16 %v2943
    %v4152 = vunpack.c.l.b16 %v2944
    %v4153 = vunpack.c.l.b16 %v2945
    %v4154 = vunpack.c.h.b16 %v2945
    %v4155 = vunpack.c.l.b16 %v2946
    %v4156 = vunpack.c.h.b16 %v2946
    %v4157 = vunpack.c.l.b16 %v2947
    %v4158 = vunpack.c.h.b16 %v2947
    %v4159 = vunpack.c.l.b16 %v2948
    %v4160 = vunpack.c.l.b16 %v2949
    %v4161 = vunpack.c.h.b16 %v2949
    %v4162 = vunpack.c.l.b16 %v2950
    %v4163 = vunpack.c.h.b16 %v2950
    %v4164 = vunpack.c.l.b16 %v2951
    %v4165 = vunpack.c.h.b16 %v2951
    %v4166 = vunpack.c.l.b16 %v2952
    %v4167 = vunpack.c.l.b16 %v2953
    %v4168 = vunpack.c.h.b16 %v2953
    %v4169 = vunpack.c.l.b16 %v2954
    %v4170 = vunpack.c.h.b16 %v2954
    %v4171 = vunpack.c.l.b16 %v2955
    %v4172 = vunpack.c.h.b16 %v2955
    %v4173 = vunpack.c.l.b16 %v2956
    %v4174 = vunpack.c.l.b16 %v2957
    %v4175 = vunpack.c.h.b16 %v2957
    %v4176 = vunpack.c.l.b16 %v2958
    %v4177 = vunpack.c.h.b16 %v2958
    %v4178 = vunpack.c.l.b16 %v2959
    %v4179 = vunpack.c.h.b16 %v2959
    %v4180 = vunpack.c.l.b16 %v2960
    %v4181 = vunpack.c.l.b16 %v2961
    %v4182 = vunpack.c.h.b16 %v2961
    %v4183 = vunpack.c.l.b16 %v2962
    %v4184 = vunpack.c.h.b16 %v2962
    %v4185 = vunpack.c.l.b16 %v2963
    %v4186 = vunpack.c.h.b16 %v2963
    %v4187 = vunpack.c.l.b16 %v2964
    %v4188 = vunpack.c.l.b16 %v2965
    %v4189 = vunpack.c.h.b16 %v2965
    %v4190 = vunpack.c.l.b16 %v2966
    %v4191 = vunpack.c.h.b16 %v2966
    %v4192 = vunpack.c.l.b16 %v2967
    %v4193 = vunpack.c.h.b16 %v2967
    %v4194 = vunpack.c.l.b16 %v2968
    %v4195 = vunpack.c.l.b16 %v2969
    %v4196 = vunpack.c.h.b16 %v2969
    %v4197 = vunpack.c.l.b16 %v2970
    %v4198 = vunpack.c.h.b16 %v2970
    %v4199 = vunpack.c.l.b16 %v2971
    %v4200 = vunpack.c.h.b16 %v2971
    %v4201 = vunpack.c.l.b16 %v2972
    %v4202 = vunpack.c.l.b16 %v2973
    %v4203 = vunpack.c.h.b16 %v2973
    %v4204 = vunpack.c.l.b16 %v2974
    %v4205 = vunpack.c.h.b16 %v2974
    %v4206 = vunpack.c.l.b16 %v2975
    %v4207 = vunpack.c.h.b16 %v2975
    %v4208 = vunpack.c.l.b16 %v2976
    %v4209 = vunpack.c.l.b16 %v2977
    %v4210 = vunpack.c.h.b16 %v2977
    %v4211 = vunpack.c.l.b16 %v2978
    %v4212 = vunpack.c.h.b16 %v2978
    %v4213 = vunpack.c.l.b16 %v2979
    %v4214 = vunpack.c.h.b16 %v2979
    %v4215 = vunpack.c.l.b16 %v2980
    %v4216 = vunpack.c.l.b16 %v2981
    %v4217 = vunpack.c.h.b16 %v2981
    %v4218 = vunpack.c.l.b16 %v2982
    %v4219 = vunpack.c.h.b16 %v2982
    %v4220 = vunpack.c.l.b16 %v2983
    %v4221 = vunpack.c.h.b16 %v2983
    %v4222 = vunpack.c.l.b16 %v2984
    %v4223 = vunpack.c.l.b16 %v2985
    %v4224 = vunpack.c.h.b16 %v2985
    %v4225 = vunpack.c.l.b16 %v2986
    %v4226 = vunpack.c.h.b16 %v2986
    %v4227 = vunpack.c.l.b16 %v2987
    %v4228 = vunpack.c.h.b16 %v2987
    %v4229 = vunpack.c.l.b16 %v2988
    %v4230 = vunpack.c.l.b16 %v2989
    %v4231 = vunpack.c.h.b16 %v2989
    %v4232 = vunpack.c.l.b16 %v2990
    %v4233 = vunpack.c.h.b16 %v2990
    %v4234 = vunpack.c.l.b16 %v2991
    %v4235 = vunpack.c.h.b16 %v2991
    %v4236 = vunpack.c.l.b16 %v2992
    %v4237 = vunpack.c.l.b16 %v2993
    %v4238 = vunpack.c.h.b16 %v2993
    %v4239 = vunpack.c.l.b16 %v2994
    %v4240 = vunpack.c.h.b16 %v2994
    %v4241 = vunpack.c.l.b16 %v2995
    %v4242 = vunpack.c.h.b16 %v2995
    %v4243 = vunpack.c.l.b16 %v2996
    %v4244 = vunpack.c.l.b16 %v2997
    %v4245 = vunpack.c.h.b16 %v2997
    %v4246 = vunpack.c.l.b16 %v2998
    %v4247 = vunpack.c.h.b16 %v2998
    %v4248 = vunpack.c.l.b16 %v2999
    %v4249 = vunpack.c.h.b16 %v2999
    %v4250 = vunpack.c.l.b16 %v3000
    %v4251 = vunpack.c.l.b16 %v3001
    %v4252 = vunpack.c.h.b16 %v3001
    %v4253 = vunpack.c.l.b16 %v3002
    %v4254 = vunpack.c.h.b16 %v3002
    %v4255 = vunpack.c.l.b16 %v3003
    %v4256 = vunpack.c.h.b16 %v3003
    %v4257 = vunpack.c.l.b16 %v3004
    %v4258 = vunpack.c.l.b16 %v3005
    %v4259 = vunpack.c.h.b16 %v3005
    %v4260 = vunpack.c.l.b16 %v3006
    %v4261 = vunpack.c.h.b16 %v3006
    %v4262 = vunpack.c.l.b16 %v3007
    %v4263 = vunpack.c.h.b16 %v3007
    %v4264 = vunpack.c.l.b16 %v3008
    %v4265 = vunpack.c.l.b16 %v3009
    %v4266 = vunpack.c.h.b16 %v3009
    %v4267 = vunpack.c.l.b16 %v3010
    %v4268 = vunpack.c.h.b16 %v3010
    %v4269 = vunpack.c.l.b16 %v3011
    %v4270 = vunpack.c.h.b16 %v3011
    %v4271 = vunpack.c.l.b16 %v3012
    %v4272 = vunpack.c.l.b16 %v3013
    %v4273 = vunpack.c.h.b16 %v3013
    %v4274 = vunpack.c.l.b16 %v3014
    %v4275 = vunpack.c.h.b16 %v3014
    %v4276 = vunpack.c.l.b16 %v3015
    %v4277 = vunpack.c.h.b16 %v3015
    %v4278 = vunpack.c.l.b16 %v3016
    %v4279 = vunpack.c.l.b16 %v3017
    %v4280 = vunpack.c.h.b16 %v3017
    %v4281 = vunpack.c.l.b16 %v3018
    %v4282 = vunpack.c.h.b16 %v3018
    %v4283 = vunpack.c.l.b16 %v3019
    %v4284 = vunpack.c.h.b16 %v3019
    %v4285 = vunpack.c.l.b16 %v3020
    %v4286 = vunpack.c.l.b16 %v3021
    %v4287 = vunpack.c.h.b16 %v3021
    %v4288 = vunpack.c.l.b16 %v3022
    %v4289 = vunpack.c.h.b16 %v3022
    %v4290 = vunpack.c.l.b16 %v3023
    %v4291 = vunpack.c.h.b16 %v3023
    %v4292 = vunpack.c.l.b16 %v3024
    %v4293 = vunpack.c.l.b16 %v3025
    %v4294 = vunpack.c.h.b16 %v3025
    %v4295 = vunpack.c.l.b16 %v3026
    %v4296 = vunpack.c.h.b16 %v3026
    %v4297 = vunpack.c.l.b16 %v3027
    %v4298 = vunpack.c.h.b16 %v3027
    %v4299 = vunpack.c.l.b16 %v3028
    %v4300 = vunpack.c.l.b16 %v3029
    %v4301 = vunpack.c.h.b16 %v3029
    %v4302 = vunpack.c.l.b16 %v3030
    %v4303 = vunpack.c.h.b16 %v3030
    %v4304 = vunpack.c.l.b16 %v3031
    %v4305 = vunpack.c.h.b16 %v3031
    %v4306 = vunpack.c.l.b16 %v3032
    %v4307 = vunpack.c.l.b16 %v3033
    %v4308 = vunpack.c.h.b16 %v3033
    %v4309 = vunpack.c.l.b16 %v3034
    %v4310 = vunpack.c.h.b16 %v3034
    %v4311 = vunpack.c.l.b16 %v3035
    %v4312 = vunpack.c.h.b16 %v3035
    %v4313 = vunpack.c.l.b16 %v3036
    %v4314 = vunpack.c.l.b16 %v3037
    %v4315 = vunpack.c.h.b16 %v3037
    %v4316 = vunpack.c.l.b16 %v3038
    %v4317 = vunpack.c.h.b16 %v3038
    %v4318 = vunpack.c.l.b16 %v3039
    %v4319 = vunpack.c.h.b16 %v3039
    %v4320 = vunpack.c.l.b16 %v3040
    %v4321 = vunpack.c.l.b16 %v3041
    %v4322 = vunpack.c.h.b16 %v3041
    %v4323 = vunpack.c.l.b16 %v3042
    %v4324 = vunpack.c.h.b16 %v3042
    %v4325 = vunpack.c.l.b16 %v3043
    %v4326 = vunpack.c.h.b16 %v3043
    %v4327 = vunpack.c.l.b16 %v3044
    %v4328 = vunpack.c.l.b16 %v3045
    %v4329 = vunpack.c.h.b16 %v3045
    %v4330 = vunpack.c.l.b16 %v3046
    %v4331 = vunpack.c.h.b16 %v3046
    %v4332 = vunpack.c.l.b16 %v3047
    %v4333 = vunpack.c.h.b16 %v3047
    %v4334 = vunpack.c.l.b16 %v3048
    %v4335 = vunpack.c.l.b16 %v3049
    %v4336 = vunpack.c.h.b16 %v3049
    %v4337 = vunpack.c.l.b16 %v3050
    %v4338 = vunpack.c.h.b16 %v3050
    %v4339 = vunpack.c.l.b16 %v3051
    %v4340 = vunpack.c.h.b16 %v3051
    %v4341 = vunpack.c.l.b16 %v3052
    %v4342 = vunpack.c.l.b16 %v3053
    %v4343 = vunpack.c.h.b16 %v3053
    %v4344 = vunpack.c.l.b16 %v3054
    %v4345 = vunpack.c.h.b16 %v3054
    %v4346 = vunpack.c.l.b16 %v3055
    %v4347 = vunpack.c.h.b16 %v3055
    %v4348 = vunpack.c.l.b16 %v3056
    %v4349 = vunpack.c.l.b16 %v3057
    %v4350 = vunpack.c.h.b16 %v3057
    %v4351 = vunpack.c.l.b16 %v3058
    %v4352 = vunpack.c.h.b16 %v3058
    %v4353 = vunpack.c.l.b16 %v3059
    %v4354 = vunpack.c.h.b16 %v3059
    %v4355 = vunpack.c.l.b16 %v3060
    %v4356 = vunpack.c.l.b16 %v3061
    %v4357 = vunpack.c.h.b16 %v3061
    %v4358 = vunpack.c.l.b16 %v3062
    %v4359 = vunpack.c.h.b16 %v3062
    %v4360 = vunpack.c.l.b16 %v3063
    %v4361 = vunpack.c.h.b16 %v3063
    %v4362 = vunpack.c.l.b16 %v3064
    %v4363 = vunpack.c.l.b16 %v3065
    %v4364 = vunpack.c.h.b16 %v3065
    %v4365 = vunpack.c.l.b16 %v3066
    %v4366 = vunpack.c.h.b16 %v3066
    %v4367 = vunpack.c.l.b16 %v3067
    %v4368 = vunpack.c.h.b16 %v3067
    %v4369 = vunpack.c.l.b16 %v3068
    %v4370 = vunpack.c.l.b16 %v3069
    %v4371 = vunpack.c.h.b16 %v3069
    %v4372 = vunpack.c.l.b16 %v3070
    %v4373 = vunpack.c.h.b16 %v3070
    %v4374 = vunpack.c.l.b16 %v3071
    %v4375 = vunpack.c.h.b16 %v3071
    %v4376 = vunpack.c.l.b16 %v3072
    %v4377 = vunpack.c.l.b16 %v3073
    %v4378 = vunpack.c.h.b16 %v3073
    %v4379 = vunpack.c.l.b16 %v3074
    %v4380 = vunpack.c.h.b16 %v3074
    %v4381 = vunpack.c.l.b16 %v3075
    %v4382 = vunpack.c.h.b16 %v3075
    %v4383 = vunpack.c.l.b16 %v3076
    %v4384 = vunpack.c.l.b16 %v3077
    %v4385 = vunpack.c.h.b16 %v3077
    %v4386 = vunpack.c.l.b16 %v3078
    %v4387 = vunpack.c.h.b16 %v3078
    %v4388 = vunpack.c.l.b16 %v3079
    %v4389 = vunpack.c.h.b16 %v3079
    %v4390 = vunpack.c.l.b16 %v3080
    %v4391 = vunpack.c.l.b16 %v3081
    %v4392 = vunpack.c.h.b16 %v3081
    %v4393 = vunpack.c.l.b16 %v3082
    %v4394 = vunpack.c.h.b16 %v3082
    %v4395 = vunpack.c.l.b16 %v3083
    %v4396 = vunpack.c.h.b16 %v3083
    %v4397 = vunpack.c.l.b16 %v3084
    %v4398 = vunpack.c.l.b16 %v3085
    %v4399 = vunpack.c.h.b16 %v3085
    %v4400 = vunpack.c.l.b16 %v3086
    %v4401 = vunpack.c.h.b16 %v3086
    %v4402 = vunpack.c.l.b16 %v3087
    %v4403 = vunpack.c.h.b16 %v3087
    %v4404 = vunpack.c.l.b16 %v3088
    %v4405 = vunpack.c.l.b16 %v3089
    %v4406 = vunpack.c.h.b16 %v3089
    %v4407 = vunpack.c.l.b16 %v3090
    %v4408 = vunpack.c.h.b16 %v3090
    %v4409 = vunpack.c.l.b16 %v3091
    %v4410 = vunpack.c.h.b16 %v3091
    %v4411 = vunpack.c.l.b16 %v3092
    %v4412 = vunpack.c.l.b16 %v3093
    %v4413 = vunpack.c.h.b16 %v3093
    %v4414 = vunpack.c.l.b16 %v3094
    %v4415 = vunpack.c.h.b16 %v3094
    %v4416 = vunpack.c.l.b16 %v3095
    %v4417 = vunpack.c.h.b16 %v3095
    %v4418 = vunpack.c.l.b16 %v3096
    %v4419 = vunpack.c.l.b16 %v3097
    %v4420 = vunpack.c.h.b16 %v3097
    %v4421 = vunpack.c.l.b16 %v3098
    %v4422 = vunpack.c.h.b16 %v3098
    %v4423 = vunpack.c.l.b16 %v3099
    %v4424 = vunpack.c.h.b16 %v3099
    %v4425 = vunpack.c.l.b16 %v3100
    %v4426 = vunpack.c.l.b16 %v3101
    %v4427 = vunpack.c.h.b16 %v3101
    %v4428 = vunpack.c.l.b16 %v3102
    %v4429 = vunpack.c.h.b16 %v3102
    %v4430 = vunpack.c.l.b16 %v3103
    %v4431 = vunpack.c.h.b16 %v3103
    %v4432 = vunpack.c.l.b16 %v3104
    %v4433 = vunpack.c.l.b16 %v3105
    %v4434 = vunpack.c.h.b16 %v3105
    %v4435 = vunpack.c.l.b16 %v3106
    %v4436 = vunpack.c.h.b16 %v3106
    %v4437 = vunpack.c.l.b16 %v3107
    %v4438 = vunpack.c.h.b16 %v3107
    %v4439 = vunpack.c.l.b16 %v3108
    %v4440 = vunpack.c.l.b16 %v3109
    %v4441 = vunpack.c.h.b16 %v3109
    %v4442 = vunpack.c.l.b16 %v3110
    %v4443 = vunpack.c.h.b16 %v3110
    %v4444 = vunpack.c.l.b16 %v3111
    %v4445 = vunpack.c.h.b16 %v3111
    %v4446 = vunpack.c.l.b16 %v3112
    %v4447 = vunpack.c.l.b16 %v3113
    %v4448 = vunpack.c.h.b16 %v3113
    %v4449 = vunpack.c.l.b16 %v3114
    %v4450 = vunpack.c.h.b16 %v3114
    %v4451 = vunpack.c.l.b16 %v3115
    %v4452 = vunpack.c.h.b16 %v3115
    %v4453 = vunpack.c.l.b16 %v3116
    %v4454 = vunpack.c.l.b16 %v3117
    %v4455 = vunpack.c.h.b16 %v3117
    %v4456 = vunpack.c.l.b16 %v3118
    %v4457 = vunpack.c.h.b16 %v3118
    %v4458 = vunpack.c.l.b16 %v3119
    %v4459 = vunpack.c.h.b16 %v3119
    %v4460 = vunpack.c.l.b16 %v3120
    %v4461 = vunpack.c.l.b16 %v3121
    %v4462 = vunpack.c.h.b16 %v3121
    %v4463 = vunpack.c.l.b16 %v3122
    %v4464 = vunpack.c.h.b16 %v3122
    %v4465 = vunpack.c.l.b16 %v3123
    %v4466 = vunpack.c.h.b16 %v3123
    %v4467 = vunpack.c.l.b16 %v3124
    %v4468 = vunpack.c.l.b16 %v3125
    %v4469 = vunpack.c.h.b16 %v3125
    %v4470 = vunpack.c.l.b16 %v3126
    %v4471 = vunpack.c.h.b16 %v3126
    %v4472 = vunpack.c.l.b16 %v3127
    %v4473 = vunpack.c.h.b16 %v3127
    %v4474 = vunpack.c.l.b16 %v3128
    %v4475 = vunpack.c.l.b16 %v3129
    %v4476 = vunpack.c.h.b16 %v3129
    %v4477 = vunpack.c.l.b16 %v3130
    %v4478 = vunpack.c.h.b16 %v3130
    %v4479 = vunpack.c.l.b16 %v3131
    %v4480 = vunpack.c.h.b16 %v3131
    %v4481 = vunpack.c.l.b16 %v3132
    %v4482 = vunpack.c.l.b16 %v3133
    %v4483 = vunpack.c.h.b16 %v3133
    %v4484 = vunpack.c.l.b16 %v3134
    %v4485 = vunpack.c.h.b16 %v3134
    %v4486 = vunpack.c.l.b16 %v3135
    %v4487 = vunpack.c.h.b16 %v3135
    %v4488 = vunpack.c.l.b16 %v3136
    %v4489 = vunpack.c.l.b16 %v3137
    %v4490 = vunpack.c.h.b16 %v3137
    %v4491 = vunpack.c.l.b16 %v3138
    %v4492 = vunpack.c.h.b16 %v3138
    %v4493 = vunpack.c.l.b16 %v3139
    %v4494 = vunpack.c.h.b16 %v3139
    %v4495 = vunpack.c.l.b16 %v3140
    %v4496 = vunpack.c.l.b16 %v3141
    %v4497 = vunpack.c.h.b16 %v3141
    %v4498 = vunpack.c.l.b16 %v3142
    %v4499 = vunpack.c.h.b16 %v3142
    %v4500 = vunpack.c.l.b16 %v3143
    %v4501 = vunpack.c.h.b16 %v3143
    %v4502 = vunpack.c.l.b16 %v3144
    %v4503 = vunpack.c.l.b16 %v3145
    %v4504 = vunpack.c.h.b16 %v3145
    %v4505 = vunpack.c.l.b16 %v3146
    %v4506 = vunpack.c.h.b16 %v3146
    %v4507 = vunpack.c.l.b16 %v3147
    %v4508 = vunpack.c.h.b16 %v3147
    %v4509 = vunpack.c.l.b16 %v3148
    %v4510 = vunpack.c.l.b16 %v3149
    %v4511 = vunpack.c.h.b16 %v3149
    %v4512 = vunpack.c.l.b16 %v3150
    %v4513 = vunpack.c.h.b16 %v3150
    %v4514 = vunpack.c.l.b16 %v3151
    %v4515 = vunpack.c.h.b16 %v3151
    %v4516 = vunpack.c.l.b16 %v3152
    %v4517 = vunpack.c.l.b16 %v3153
    %v4518 = vunpack.c.h.b16 %v3153
    %v4519 = vunpack.c.l.b16 %v3154
    %v4520 = vunpack.c.h.b16 %v3154
    %v4521 = vunpack.c.l.b16 %v3155
    %v4522 = vunpack.c.h.b16 %v3155
    %v4523 = vunpack.c.l.b16 %v3156
    %v4524 = vunpack.c.l.b16 %v3157
    %v4525 = vunpack.c.h.b16 %v3157
    %v4526 = vunpack.c.l.b16 %v3158
    %v4527 = vunpack.c.h.b16 %v3158
    %v4528 = vunpack.c.l.b16 %v3159
    %v4529 = vunpack.c.h.b16 %v3159
    %v4530 = vunpack.c.l.b16 %v3160
    %v4531 = vunpack.c.l.b16 %v3161
    %v4532 = vunpack.c.h.b16 %v3161
    %v4533 = vunpack.c.l.b16 %v3162
    %v4534 = vunpack.c.h.b16 %v3162
    %v4535 = vunpack.c.l.b16 %v3163
    %v4536 = vunpack.c.h.b16 %v3163
    %v4537 = vunpack.c.l.b16 %v3164
    %v4538 = vunpack.c.l.b16 %v3165
    %v4539 = vunpack.c.h.b16 %v3165
    %v4540 = vunpack.c.l.b16 %v3166
    %v4541 = vunpack.c.h.b16 %v3166
    %v4542 = vunpack.c.l.b16 %v3167
    %v4543 = vunpack.c.h.b16 %v3167
    %v4544 = vunpack.c.l.b16 %v3168
    %v4545 = vunpack.c.l.b16 %v3169
    %v4546 = vunpack.c.h.b16 %v3169
    %v4547 = vunpack.c.l.b16 %v3170
    %v4548 = vunpack.c.h.b16 %v3170
    %v4549 = vunpack.c.l.b16 %v3171
    %v4550 = vunpack.c.h.b16 %v3171
    %v4551 = vunpack.c.l.b16 %v3172
    %v4552 = vunpack.c.l.b16 %v3173
    %v4553 = vunpack.c.h.b16 %v3173
    %v4554 = vunpack.c.l.b16 %v3174
    %v4555 = vunpack.c.h.b16 %v3174
    %v4556 = vunpack.c.l.b16 %v3175
    %v4557 = vunpack.c.h.b16 %v3175
    %v4558 = vunpack.c.l.b16 %v3176
    %v4559 = vunpack.c.l.b16 %v3177
    %v4560 = vunpack.c.h.b16 %v3177
    %v4561 = vunpack.c.l.b16 %v3178
    %v4562 = vunpack.c.h.b16 %v3178
    %v4563 = vunpack.c.l.b16 %v3179
    %v4564 = vunpack.c.h.b16 %v3179
    %v4565 = vunpack.c.l.b16 %v3180
    %v4566 = vunpack.c.l.b16 %v3181
    %v4567 = vunpack.c.h.b16 %v3181
    %v4568 = vunpack.c.l.b16 %v3182
    %v4569 = vunpack.c.h.b16 %v3182
    %v4570 = vunpack.c.l.b16 %v3183
    %v4571 = vunpack.c.h.b16 %v3183
    %v4572 = vunpack.c.l.b16 %v3184
    %v4573 = vunpack.c.l.b16 %v3185
    %v4574 = vunpack.c.h.b16 %v3185
    %v4575 = vunpack.c.l.b16 %v3186
    %v4576 = vunpack.c.h.b16 %v3186
    %v4577 = vunpack.c.l.b16 %v3187
    %v4578 = vunpack.c.h.b16 %v3187
    %v4579 = vunpack.c.l.b16 %v3188
    %v4580 = vunpack.c.l.b16 %v3189
    %v4581 = vunpack.c.h.b16 %v3189
    %v4582 = vunpack.c.l.b16 %v3190
    %v4583 = vunpack.c.h.b16 %v3190
    %v4584 = vunpack.c.l.b16 %v3191
    %v4585 = vunpack.c.h.b16 %v3191
    %v4586 = vunpack.c.l.b16 %v3192
    %v4587 = vunpack.c.l.b16 %v3193
    %v4588 = vunpack.c.h.b16 %v3193
    %v4589 = vunpack.c.l.b16 %v3194
    %v4590 = vunpack.c.h.b16 %v3194
    %v4591 = vunpack.c.l.b16 %v3195
    %v4592 = vunpack.c.h.b16 %v3195
    %v4593 = vunpack.c.l.b16 %v3196
    %v4594 = vunpack.c.l.b16 %v3197
    %v4595 = vunpack.c.h.b16 %v3197
    %v4596 = vunpack.c.l.b16 %v3198
    %v4597 = vunpack.c.h.b16 %v3198
    %v4598 = vunpack.c.l.b16 %v3199
    %v4599 = vunpack.c.h.b16 %v3199
    %v4600 = vunpack.c.l.b16 %v3200
    %v4601 = vunpack.c.l.b16 %v3201
    %v4602 = vunpack.c.h.b16 %v3201
    %v4603 = vunpack.c.l.b16 %v3202
    %v4604 = vunpack.c.h.b16 %v3202
    %v4605 = vunpack.c.l.b16 %v3203
    %v4606 = vunpack.c.h.b16 %v3203
    %v4607 = vunpack.c.l.b16 %v3204
    %v4608 = vunpack.c.l.b16 %v3205
    %v4609 = vunpack.c.h.b16 %v3205
    %v4610 = vunpack.c.l.b16 %v3206
    %v4611 = vunpack.c.h.b16 %v3206
    %v4612 = vunpack.c.l.b16 %v3207
    %v4613 = vunpack.c.h.b16 %v3207
    %v4614 = vunpack.c.l.b16 %v3208
    %v4615 = vunpack.c.l.b16 %v3209
    %v4616 = vunpack.c.h.b16 %v3209
    %v4617 = vunpack.c.l.b16 %v3210
    %v4618 = vunpack.c.h.b16 %v3210
    %v4619 = vunpack.c.l.b16 %v3211
    %v4620 = vunpack.c.h.b16 %v3211
    %v4621 = vunpack.c.l.b16 %v3212
    %v4622 = vunpack.c.l.b16 %v3213
    %v4623 = vunpack.c.h.b16 %v3213
    %v4624 = vunpack.c.l.b16 %v3214
    %v4625 = vunpack.c.h.b16 %v3214
    %v4626 = vunpack.c.l.b16 %v3215
    %v4627 = vunpack.c.h.b16 %v3215
    %v4628 = vunpack.c.l.b16 %v3216
    %v4629 = vunpack.c.l.b16 %v3217
    %v4630 = vunpack.c.h.b16 %v3217
    %v4631 = vunpack.c.l.b16 %v3218
    %v4632 = vunpack.c.h.b16 %v3218
    %v4633 = vunpack.c.l.b16 %v3219
    %v4634 = vunpack.c.h.b16 %v3219
    %v4635 = vunpack.c.l.b16 %v3220
    %v4636 = vunpack.c.l.b16 %v3221
    %v4637 = vunpack.c.h.b16 %v3221
    %v4638 = vunpack.c.l.b16 %v3222
    %v4639 = vunpack.c.h.b16 %v3222
    %v4640 = vunpack.c.l.b16 %v3223
    %v4641 = vunpack.c.h.b16 %v3223
    %v4642 = vunpack.c.l.b16 %v3224
    %v4643 = vunpack.c.l.b16 %v3225
    %v4644 = vunpack.c.h.b16 %v3225
    %v4645 = vunpack.c.l.b16 %v3226
    %v4646 = vunpack.c.h.b16 %v3226
    %v4647 = vunpack.c.l.b16 %v3227
    %v4648 = vunpack.c.h.b16 %v3227
    %v4649 = vunpack.c.l.b16 %v3228
    %v4650 = vunpack.c.l.b16 %v3229
    %v4651 = vunpack.c.h.b16 %v3229
    %v4652 = vunpack.c.l.b16 %v3230
    %v4653 = vunpack.c.h.b16 %v3230
    %v4654 = vunpack.c.l.b16 %v3231
    %v4655 = vunpack.c.h.b16 %v3231
    %v4656 = vunpack.c.l.b16 %v3232
    %v4657 = vpack.c.b16 %v3768, %v3761
    %v4658 = vpack.c.b16 %v3769, %v3762
    %v4659 = vpack.c.b16 %v3770, %v3763
    %v4660 = vpack.c.b16 %v3771, %v3764
    %v4661 = vpack.c.b16 %v3772, %v3765
    %v4662 = vpack.c.b16 %v3773, %v3766
    %v4663 = vpack.c.b16 %v3774, %v3767
    %v4664 = vpack.c.b16 %v3782, %v3775
    %v4665 = vpack.c.b16 %v3783, %v3776
    %v4666 = vpack.c.b16 %v3784, %v3777
    %v4667 = vpack.c.b16 %v3785, %v3778
    %v4668 = vpack.c.b16 %v3786, %v3779
    %v4669 = vpack.c.b16 %v3787, %v3780
    %v4670 = vpack.c.b16 %v3788, %v3781
    %v4671 = vpack.c.b16 %v3796, %v3789
    %v4672 = vpack.c.b16 %v3797, %v3790
    %v4673 = vpack.c.b16 %v3798, %v3791
    %v4674 = vpack.c.b16 %v3799, %v3792
    %v4675 = vpack.c.b16 %v3800, %v3793
    %v4676 = vpack.c.b16 %v3801, %v3794
    %v4677 = vpack.c.b16 %v3802, %v3795
    %v4678 = vpack.c.b16 %v3810, %v3803
    %v4679 = vpack.c.b16 %v3811, %v3804
    %v4680 = vpack.c.b16 %v3812, %v3805
    %v4681 = vpack.c.b16 %v3813, %v3806
    %v4682 = vpack.c.b16 %v3814, %v3807
    %v4683 = vpack.c.b16 %v3815, %v3808
    %v4684 = vpack.c.b16 %v3816, %v3809
    %v4685 = vpack.c.b16 %v3824, %v3817
    %v4686 = vpack.c.b16 %v3825, %v3818
    %v4687 = vpack.c.b16 %v3826, %v3819
    %v4688 = vpack.c.b16 %v3827, %v3820
    %v4689 = vpack.c.b16 %v3828, %v3821
    %v4690 = vpack.c.b16 %v3829, %v3822
    %v4691 = vpack.c.b16 %v3830, %v3823
    %v4692 = vpack.c.b16 %v3838, %v3831
    %v4693 = vpack.c.b16 %v3839, %v3832
    %v4694 = vpack.c.b16 %v3840, %v3833
    %v4695 = vpack.c.b16 %v3841, %v3834
    %v4696 = vpack.c.b16 %v3842, %v3835
    %v4697 = vpack.c.b16 %v3843, %v3836
    %v4698 = vpack.c.b16 %v3844, %v3837
    %v4699 = vpack.c.b16 %v3852, %v3845
    %v4700 = vpack.c.b16 %v3853, %v3846
    %v4701 = vpack.c.b16 %v3854, %v3847
    %v4702 = vpack.c.b16 %v3855, %v3848
    %v4703 = vpack.c.b16 %v3856, %v3849
    %v4704 = vpack.c.b16 %v3857, %v3850
    %v4705 = vpack.c.b16 %v3858, %v3851
    %v4706 = vpack.c.b16 %v3866, %v3859
    %v4707 = vpack.c.b16 %v3867, %v3860
    %v4708 = vpack.c.b16 %v3868, %v3861
    %v4709 = vpack.c.b16 %v3869, %v3862
    %v4710 = vpack.c.b16 %v3870, %v3863
    %v4711 = vpack.c.b16 %v3871, %v3864
    %v4712 = vpack.c.b16 %v3872, %v3865
    %v4713 = vpack.c.b16 %v3880, %v3873
    %v4714 = vpack.c.b16 %v3881, %v3874
    %v4715 = vpack.c.b16 %v3882, %v3875
    %v4716 = vpack.c.b16 %v3883, %v3876
    %v4717 = vpack.c.b16 %v3884, %v3877
    %v4718 = vpack.c.b16 %v3885, %v3878
    %v4719 = vpack.c.b16 %v3886, %v3879
    %v4720 = vpack.c.b16 %v3894, %v3887
    %v4721 = vpack.c.b16 %v3895, %v3888
    %v4722 = vpack.c.b16 %v3896, %v3889
    %v4723 = vpack.c.b16 %v3897, %v3890
    %v4724 = vpack.c.b16 %v3898, %v3891
    %v4725 = vpack.c.b16 %v3899, %v3892
    %v4726 = vpack.c.b16 %v3900, %v3893
    %v4727 = vpack.c.b16 %v3908, %v3901
    %v4728 = vpack.c.b16 %v3909, %v3902
    %v4729 = vpack.c.b16 %v3910, %v3903
    %v4730 = vpack.c.b16 %v3911, %v3904
    %v4731 = vpack.c.b16 %v3912, %v3905
    %v4732 = vpack.c.b16 %v3913, %v3906
    %v4733 = vpack.c.b16 %v3914, %v3907
    %v4734 = vpack.c.b16 %v3922, %v3915
    %v4735 = vpack.c.b16 %v3923, %v3916
    %v4736 = vpack.c.b16 %v3924, %v3917
    %v4737 = vpack.c.b16 %v3925, %v3918
    %v4738 = vpack.c.b16 %v3926, %v3919
    %v4739 = vpack.c.b16 %v3927, %v3920
    %v4740 = vpack.c.b16 %v3928, %v3921
    %v4741 = vpack.c.b16 %v3936, %v3929
    %v4742 = vpack.c.b16 %v3937, %v3930
    %v4743 = vpack.c.b16 %v3938, %v3931
    %v4744 = vpack.c.b16 %v3939, %v3932
    %v4745 = vpack.c.b16 %v3940, %v3933
    %v4746 = vpack.c.b16 %v3941, %v3934
    %v4747 = vpack.c.b16 %v3942, %v3935
    %v4748 = vpack.c.b16 %v3950, %v3943
    %v4749 = vpack.c.b16 %v3951, %v3944
    %v4750 = vpack.c.b16 %v3952, %v3945
    %v4751 = vpack.c.b16 %v3953, %v3946
    %v4752 = vpack.c.b16 %v3954, %v3947
    %v4753 = vpack.c.b16 %v3955, %v3948
    %v4754 = vpack.c.b16 %v3956, %v3949
    %v4755 = vpack.c.b16 %v3964, %v3957
    %v4756 = vpack.c.b16 %v3965, %v3958
    %v4757 = vpack.c.b16 %v3966, %v3959
    %v4758 = vpack.c.b16 %v3967, %v3960
    %v4759 = vpack.c.b16 %v3968, %v3961
    %v4760 = vpack.c.b16 %v3969, %v3962
    %v4761 = vpack.c.b16 %v3970, %v3963
    %v4762 = vpack.c.b16 %v3978, %v3971
    %v4763 = vpack.c.b16 %v3979, %v3972
    %v4764 = vpack.c.b16 %v3980, %v3973
    %v4765 = vpack.c.b16 %v3981, %v3974
    %v4766 = vpack.c.b16 %v3982, %v3975
    %v4767 = vpack.c.b16 %v3983, %v3976
    %v4768 = vpack.c.b16 %v3984, %v3977
    %v4769 = vpack.c.b16 %v3992, %v3985
    %v4770 = vpack.c.b16 %v3993, %v3986
    %v4771 = vpack.c.b16 %v3994, %v3987
    %v4772 = vpack.c.b16 %v3995, %v3988
    %v4773 = vpack.c.b16 %v3996, %v3989
    %v4774 = vpack.c.b16 %v3997, %v3990
    %v4775 = vpack.c.b16 %v3998, %v3991
    %v4776 = vpack.c.b16 %v4006, %v3999
    %v4777 = vpack.c.b16 %v4007, %v4000
    %v4778 = vpack.c.b16 %v4008, %v4001
    %v4779 = vpack.c.b16 %v4009, %v4002
    %v4780 = vpack.c.b16 %v4010, %v4003
    %v4781 = vpack.c.b16 %v4011, %v4004
    %v4782 = vpack.c.b16 %v4012, %v4005
    %v4783 = vpack.c.b16 %v4020, %v4013
    %v4784 = vpack.c.b16 %v4021, %v4014
    %v4785 = vpack.c.b16 %v4022, %v4015
    %v4786 = vpack.c.b16 %v4023, %v4016
    %v4787 = vpack.c.b16 %v4024, %v4017
    %v4788 = vpack.c.b16 %v4025, %v4018
    %v4789 = vpack.c.b16 %v4026, %v4019
    %v4790 = vpack.c.b16 %v4034, %v4027
    %v4791 = vpack.c.b16 %v4035, %v4028
    %v4792 = vpack.c.b16 %v4036, %v4029
    %v4793 = vpack.c.b16 %v4037, %v4030
    %v4794 = vpack.c.b16 %v4038, %v4031
    %v4795 = vpack.c.b16 %v4039, %v4032
    %v4796 = vpack.c.b16 %v4040, %v4033
    %v4797 = vpack.c.b16 %v4048, %v4041
    %v4798 = vpack.c.b16 %v4049, %v4042
    %v4799 = vpack.c.b16 %v4050, %v4043
    %v4800 = vpack.c.b16 %v4051, %v4044
    %v4801 = vpack.c.b16 %v4052, %v4045
    %v4802 = vpack.c.b16 %v4053, %v4046
    %v4803 = vpack.c.b16 %v4054, %v4047
    %v4804 = vpack.c.b16 %v4062, %v4055
    %v4805 = vpack.c.b16 %v4063, %v4056
    %v4806 = vpack.c.b16 %v4064, %v4057
    %v4807 = vpack.c.b16 %v4065, %v4058
    %v4808 = vpack.c.b16 %v4066, %v4059
    %v4809 = vpack.c.b16 %v4067, %v4060
    %v4810 = vpack.c.b16 %v4068, %v4061
    %v4811 = vpack.c.b16 %v4076, %v4069
    %v4812 = vpack.c.b16 %v4077, %v4070
    %v4813 = vpack.c.b16 %v4078, %v4071
    %v4814 = vpack.c.b16 %v4079, %v4072
    %v4815 = vpack.c.b16 %v4080, %v4073
    %v4816 = vpack.c.b16 %v4081, %v4074
    %v4817 = vpack.c.b16 %v4082, %v4075
    %v4818 = vpack.c.b16 %v4090, %v4083
    %v4819 = vpack.c.b16 %v4091, %v4084
    %v4820 = vpack.c.b16 %v4092, %v4085
    %v4821 = vpack.c.b16 %v4093, %v4086
    %v4822 = vpack.c.b16 %v4094, %v4087
    %v4823 = vpack.c.b16 %v4095, %v4088
    %v4824 = vpack.c.b16 %v4096, %v4089
    %v4825 = vpack.c.b16 %v4104, %v4097
    %v4826 = vpack.c.b16 %v4105, %v4098
    %v4827 = vpack.c.b16 %v4106, %v4099
    %v4828 = vpack.c.b16 %v4107, %v4100
    %v4829 = vpack.c.b16 %v4108, %v4101
    %v4830 = vpack.c.b16 %v4109, %v4102
    %v4831 = vpack.c.b16 %v4110, %v4103
    %v4832 = vpack.c.b16 %v4118, %v4111
    %v4833 = vpack.c.b16 %v4119, %v4112
    %v4834 = vpack.c.b16 %v4120, %v4113
    %v4835 = vpack.c.b16 %v4121, %v4114
    %v4836 = vpack.c.b16 %v4122, %v4115
    %v4837 = vpack.c.b16 %v4123, %v4116
    %v4838 = vpack.c.b16 %v4124, %v4117
    %v4839 = vpack.c.b16 %v4132, %v4125
    %v4840 = vpack.c.b16 %v4133, %v4126
    %v4841 = vpack.c.b16 %v4134, %v4127
    %v4842 = vpack.c.b16 %v4135, %v4128
    %v4843 = vpack.c.b16 %v4136, %v4129
    %v4844 = vpack.c.b16 %v4137, %v4130
    %v4845 = vpack.c.b16 %v4138, %v4131
    %v4846 = vpack.c.b16 %v4146, %v4139
    %v4847 = vpack.c.b16 %v4147, %v4140
    %v4848 = vpack.c.b16 %v4148, %v4141
    %v4849 = vpack.c.b16 %v4149, %v4142
    %v4850 = vpack.c.b16 %v4150, %v4143
    %v4851 = vpack.c.b16 %v4151, %v4144
    %v4852 = vpack.c.b16 %v4152, %v4145
    %v4853 = vpack.c.b16 %v4160, %v4153
    %v4854 = vpack.c.b16 %v4161, %v4154
    %v4855 = vpack.c.b16 %v4162, %v4155
    %v4856 = vpack.c.b16 %v4163, %v4156
    %v4857 = vpack.c.b16 %v4164, %v4157
    %v4858 = vpack.c.b16 %v4165, %v4158
    %v4859 = vpack.c.b16 %v4166, %v4159
    %v4860 = vpack.c.b16 %v4174, %v4167
    %v4861 = vpack.c.b16 %v4175, %v4168
    %v4862 = vpack.c.b16 %v4176, %v4169
    %v4863 = vpack.c.b16 %v4177, %v4170
    %v4864 = vpack.c.b16 %v4178, %v4171
    %v4865 = vpack.c.b16 %v4179, %v4172
    %v4866 = vpack.c.b16 %v4180, %v4173
    %v4867 = vpack.c.b16 %v4188, %v4181
    %v4868 = vpack.c.b16 %v4189, %v4182
    %v4869 = vpack.c.b16 %v4190, %v4183
    %v4870 = vpack.c.b16 %v4191, %v4184
    %v4871 = vpack.c.b16 %v4192, %v4185
    %v4872 = vpack.c.b16 %v4193, %v4186
    %v4873 = vpack.c.b16 %v4194, %v4187
    %v4874 = vpack.c.b16 %v4202, %v4195
    %v4875 = vpack.c.b16 %v4203, %v4196
    %v4876 = vpack.c.b16 %v4204, %v4197
    %v4877 = vpack.c.b16 %v4205, %v4198
    %v4878 = vpack.c.b16 %v4206, %v4199
    %v4879 = vpack.c.b16 %v4207, %v4200
    %v4880 = vpack.c.b16 %v4208, %v4201
    %v4881 = vpack.c.b16 %v4216, %v4209
    %v4882 = vpack.c.b16 %v4217, %v4210
    %v4883 = vpack.c.b16 %v4218, %v4211
    %v4884 = vpack.c.b16 %v4219, %v4212
    %v4885 = vpack.c.b16 %v4220, %v4213
    %v4886 = vpack.c.b16 %v4221, %v4214
    %v4887 = vpack.c.b16 %v4222, %v4215
    %v4888 = vpack.c.b16 %v4230, %v4223
    %v4889 = vpack.c.b16 %v4231, %v4224
    %v4890 = vpack.c.b16 %v4232, %v4225
    %v4891 = vpack.c.b16 %v4233, %v4226
    %v4892 = vpack.c.b16 %v4234, %v4227
    %v4893 = vpack.c.b16 %v4235, %v4228
    %v4894 = vpack.c.b16 %v4236, %v4229
    %v4895 = vpack.c.b16 %v4244, %v4237
    %v4896 = vpack.c.b16 %v4245, %v4238
    %v4897 = vpack.c.b16 %v4246, %v4239
    %v4898 = vpack.c.b16 %v4247, %v4240
    %v4899 = vpack.c.b16 %v4248, %v4241
    %v4900 = vpack.c.b16 %v4249, %v4242
    %v4901 = vpack.c.b16 %v4250, %v4243
    %v4902 = vpack.c.b16 %v4258, %v4251
    %v4903 = vpack.c.b16 %v4259, %v4252
    %v4904 = vpack.c.b16 %v4260, %v4253
    %v4905 = vpack.c.b16 %v4261, %v4254
    %v4906 = vpack.c.b16 %v4262, %v4255
    %v4907 = vpack.c.b16 %v4263, %v4256
    %v4908 = vpack.c.b16 %v4264, %v4257
    %v4909 = vpack.c.b16 %v4272, %v4265
    %v4910 = vpack.c.b16 %v4273, %v4266
    %v4911 = vpack.c.b16 %v4274, %v4267
    %v4912 = vpack.c.b16 %v4275, %v4268
    %v4913 = vpack.c.b16 %v4276, %v4269
    %v4914 = vpack.c.b16 %v4277, %v4270
    %v4915 = vpack.c.b16 %v4278, %v4271
    %v4916 = vpack.c.b16 %v4286, %v4279
    %v4917 = vpack.c.b16 %v4287, %v4280
    %v4918 = vpack.c.b16 %v4288, %v4281
    %v4919 = vpack.c.b16 %v4289, %v4282
    %v4920 = vpack.c.b16 %v4290, %v4283
    %v4921 = vpack.c.b16 %v4291, %v4284
    %v4922 = vpack.c.b16 %v4292, %v4285
    %v4923 = vpack.c.b16 %v4300, %v4293
    %v4924 = vpack.c.b16 %v4301, %v4294
    %v4925 = vpack.c.b16 %v4302, %v4295
    %v4926 = vpack.c.b16 %v4303, %v4296
    %v4927 = vpack.c.b16 %v4304, %v4297
    %v4928 = vpack.c.b16 %v4305, %v4298
    %v4929 = vpack.c.b16 %v4306, %v4299
    %v4930 = vpack.c.b16 %v4314, %v4307
    %v4931 = vpack.c.b16 %v4315, %v4308
    %v4932 = vpack.c.b16 %v4316, %v4309
    %v4933 = vpack.c.b16 %v4317, %v4310
    %v4934 = vpack.c.b16 %v4318, %v4311
    %v4935 = vpack.c.b16 %v4319, %v4312
    %v4936 = vpack.c.b16 %v4320, %v4313
    %v4937 = vpack.c.b16 %v4328, %v4321
    %v4938 = vpack.c.b16 %v4329, %v4322
    %v4939 = vpack.c.b16 %v4330, %v4323
    %v4940 = vpack.c.b16 %v4331, %v4324
    %v4941 = vpack.c.b16 %v4332, %v4325
    %v4942 = vpack.c.b16 %v4333, %v4326
    %v4943 = vpack.c.b16 %v4334, %v4327
    %v4944 = vpack.c.b16 %v4342, %v4335
    %v4945 = vpack.c.b16 %v4343, %v4336
    %v4946 = vpack.c.b16 %v4344, %v4337
    %v4947 = vpack.c.b16 %v4345, %v4338
    %v4948 = vpack.c.b16 %v4346, %v4339
    %v4949 = vpack.c.b16 %v4347, %v4340
    %v4950 = vpack.c.b16 %v4348, %v4341
    %v4951 = vpack.c.b16 %v4356, %v4349
    %v4952 = vpack.c.b16 %v4357, %v4350
    %v4953 = vpack.c.b16 %v4358, %v4351
    %v4954 = vpack.c.b16 %v4359, %v4352
    %v4955 = vpack.c.b16 %v4360, %v4353
    %v4956 = vpack.c.b16 %v4361, %v4354
    %v4957 = vpack.c.b16 %v4362, %v4355
    %v4958 = vpack.c.b16 %v4370, %v4363
    %v4959 = vpack.c.b16 %v4371, %v4364
    %v4960 = vpack.c.b16 %v4372, %v4365
    %v4961 = vpack.c.b16 %v4373, %v4366
    %v4962 = vpack.c.b16 %v4374, %v4367
    %v4963 = vpack.c.b16 %v4375, %v4368
    %v4964 = vpack.c.b16 %v4376, %v4369
    %v4965 = vpack.c.b16 %v4384, %v4377
    %v4966 = vpack.c.b16 %v4385, %v4378
    %v4967 = vpack.c.b16 %v4386, %v4379
    %v4968 = vpack.c.b16 %v4387, %v4380
    %v4969 = vpack.c.b16 %v4388, %v4381
    %v4970 = vpack.c.b16 %v4389, %v4382
    %v4971 = vpack.c.b16 %v4390, %v4383
    %v4972 = vpack.c.b16 %v4398, %v4391
    %v4973 = vpack.c.b16 %v4399, %v4392
    %v4974 = vpack.c.b16 %v4400, %v4393
    %v4975 = vpack.c.b16 %v4401, %v4394
    %v4976 = vpack.c.b16 %v4402, %v4395
    %v4977 = vpack.c.b16 %v4403, %v4396
    %v4978 = vpack.c.b16 %v4404, %v4397
    %v4979 = vpack.c.b16 %v4412, %v4405
    %v4980 = vpack.c.b16 %v4413, %v4406
    %v4981 = vpack.c.b16 %v4414, %v4407
    %v4982 = vpack.c.b16 %v4415, %v4408
    %v4983 = vpack.c.b16 %v4416, %v4409
    %v4984 = vpack.c.b16 %v4417, %v4410
    %v4985 = vpack.c.b16 %v4418, %v4411
    %v4986 = vpack.c.b16 %v4426, %v4419
    %v4987 = vpack.c.b16 %v4427, %v4420
    %v4988 = vpack.c.b16 %v4428, %v4421
    %v4989 = vpack.c.b16 %v4429, %v4422
    %v4990 = vpack.c.b16 %v4430, %v4423
    %v4991 = vpack.c.b16 %v4431, %v4424
    %v4992 = vpack.c.b16 %v4432, %v4425
    %v4993 = vpack.c.b16 %v4440, %v4433
    %v4994 = vpack.c.b16 %v4441, %v4434
    %v4995 = vpack.c.b16 %v4442, %v4435
    %v4996 = vpack.c.b16 %v4443, %v4436
    %v4997 = vpack.c.b16 %v4444, %v4437
    %v4998 = vpack.c.b16 %v4445, %v4438
    %v4999 = vpack.c.b16 %v4446, %v4439
    %v5000 = vpack.c.b16 %v4454, %v4447
    %v5001 = vpack.c.b16 %v4455, %v4448
    %v5002 = vpack.c.b16 %v4456, %v4449
    %v5003 = vpack.c.b16 %v4457, %v4450
    %v5004 = vpack.c.b16 %v4458, %v4451
    %v5005 = vpack.c.b16 %v4459, %v4452
    %v5006 = vpack.c.b16 %v4460, %v4453
    %v5007 = vpack.c.b16 %v4468, %v4461
    %v5008 = vpack.c.b16 %v4469, %v4462
    %v5009 = vpack.c.b16 %v4470, %v4463
    %v5010 = vpack.c.b16 %v4471, %v4464
    %v5011 = vpack.c.b16 %v4472, %v4465
    %v5012 = vpack.c.b16 %v4473, %v4466
    %v5013 = vpack.c.b16 %v4474, %v4467
    %v5014 = vpack.c.b16 %v4482, %v4475
    %v5015 = vpack.c.b16 %v4483, %v4476
    %v5016 = vpack.c.b16 %v4484, %v4477
    %v5017 = vpack.c.b16 %v4485, %v4478
    %v5018 = vpack.c.b16 %v4486, %v4479
    %v5019 = vpack.c.b16 %v4487, %v4480
    %v5020 = vpack.c.b16 %v4488, %v4481
    %v5021 = vpack.c.b16 %v4496, %v4489
    %v5022 = vpack.c.b16 %v4497, %v4490
    %v5023 = vpack.c.b16 %v4498, %v4491
    %v5024 = vpack.c.b16 %v4499, %v4492
    %v5025 = vpack.c.b16 %v4500, %v4493
    %v5026 = vpack.c.b16 %v4501, %v4494
    %v5027 = vpack.c.b16 %v4502, %v4495
    %v5028 = vpack.c.b16 %v4510, %v4503
    %v5029 = vpack.c.b16 %v4511, %v4504
    %v5030 = vpack.c.b16 %v4512, %v4505
    %v5031 = vpack.c.b16 %v4513, %v4506
    %v5032 = vpack.c.b16 %v4514, %v4507
    %v5033 = vpack.c.b16 %v4515, %v4508
    %v5034 = vpack.c.b16 %v4516, %v4509
    %v5035 = vpack.c.b16 %v4524, %v4517
    %v5036 = vpack.c.b16 %v4525, %v4518
    %v5037 = vpack.c.b16 %v4526, %v4519
    %v5038 = vpack.c.b16 %v4527, %v4520
    %v5039 = vpack.c.b16 %v4528, %v4521
    %v5040 = vpack.c.b16 %v4529, %v4522
    %v5041 = vpack.c.b16 %v4530, %v4523
    %v5042 = vpack.c.b16 %v4538, %v4531
    %v5043 = vpack.c.b16 %v4539, %v4532
    %v5044 = vpack.c.b16 %v4540, %v4533
    %v5045 = vpack.c.b16 %v4541, %v4534
    %v5046 = vpack.c.b16 %v4542, %v4535
    %v5047 = vpack.c.b16 %v4543, %v4536
    %v5048 = vpack.c.b16 %v4544, %v4537
    %v5049 = vpack.c.b16 %v4552, %v4545
    %v5050 = vpack.c.b16 %v4553, %v4546
    %v5051 = vpack.c.b16 %v4554, %v4547
    %v5052 = vpack.c.b16 %v4555, %v4548
    %v5053 = vpack.c.b16 %v4556, %v4549
    %v5054 = vpack.c.b16 %v4557, %v4550
    %v5055 = vpack.c.b16 %v4558, %v4551
    %v5056 = vpack.c.b16 %v4566, %v4559
    %v5057 = vpack.c.b16 %v4567, %v4560
    %v5058 = vpack.c.b16 %v4568, %v4561
    %v5059 = vpack.c.b16 %v4569, %v4562
    %v5060 = vpack.c.b16 %v4570, %v4563
    %v5061 = vpack.c.b16 %v4571, %v4564
    %v5062 = vpack.c.b16 %v4572, %v4565
    %v5063 = vpack.c.b16 %v4580, %v4573
    %v5064 = vpack.c.b16 %v4581, %v4574
    %v5065 = vpack.c.b16 %v4582, %v4575
    %v5066 = vpack.c.b16 %v4583, %v4576
    %v5067 = vpack.c.b16 %v4584, %v4577
    %v5068 = vpack.c.b16 %v4585, %v4578
    %v5069 = vpack.c.b16 %v4586, %v4579
    %v5070 = vpack.c.b16 %v4594, %v4587
    %v5071 = vpack.c.b16 %v4595, %v4588
    %v5072 = vpack.c.b16 %v4596, %v4589
    %v5073 = vpack.c.b16 %v4597, %v4590
    %v5074 = vpack.c.b16 %v4598, %v4591
    %v5075 = vpack.c.b16 %v4599, %v4592
    %v5076 = vpack.c.b16 %v4600, %v4593
    %v5077 = vpack.c.b16 %v4608, %v4601
    %v5078 = vpack.c.b16 %v4609, %v4602
    %v5079 = vpack.c.b16 %v4610, %v4603
    %v5080 = vpack.c.b16 %v4611, %v4604
    %v5081 = vpack.c.b16 %v4612, %v4605
    %v5082 = vpack.c.b16 %v4613, %v4606
    %v5083 = vpack.c.b16 %v4614, %v4607
    %v5084 = vpack.c.b16 %v4622, %v4615
    %v5085 = vpack.c.b16 %v4623, %v4616
    %v5086 = vpack.c.b16 %v4624, %v4617
    %v5087 = vpack.c.b16 %v4625, %v4618
    %v5088 = vpack.c.b16 %v4626, %v4619
    %v5089 = vpack.c.b16 %v4627, %v4620
    %v5090 = vpack.c.b16 %v4628, %v4621
    %v5091 = vpack.c.b16 %v4636, %v4629
    %v5092 = vpack.c.b16 %v4637, %v4630
    %v5093 = vpack.c.b16 %v4638, %v4631
    %v5094 = vpack.c.b16 %v4639, %v4632
    %v5095 = vpack.c.b16 %v4640, %v4633
    %v5096 = vpack.c.b16 %v4641, %v4634
    %v5097 = vpack.c.b16 %v4642, %v4635
    %v5098 = vpack.c.b16 %v4650, %v4643
    %v5099 = vpack.c.b16 %v4651, %v4644
    %v5100 = vpack.c.b16 %v4652, %v4645
    %v5101 = vpack.c.b16 %v4653, %v4646
    %v5102 = vpack.c.b16 %v4654, %v4647
    %v5103 = vpack.c.b16 %v4655, %v4648
    %v5104 = vpack.c.b16 %v4656, %v4649
    %5553 = vmatpush.bf16.msra.mxu0 %v4706
    %5554 = vmatpush.bf16.msra.mxu0 %v4699
    %5555 = vmatpush.bf16.msra.mxu0 %v4692
    %5556 = vmatpush.bf16.msra.mxu0 %v4685
    %5557 = vmatpush.bf16.msra.mxu0 %v4678
    %5558 = vmatpush.bf16.msra.mxu0 %v4671
    %5559 = vmatpush.bf16.msra.mxu0 %v4664
    %5560 = vmatpush.bf16.msra.mxu0 %v4657
    %5561 = vmatmul.bf16.gmra.mxu0 %v2713
    %v5562 = vpop.f32.mrf.mxu0
    %v5563 = vadd.f32 %v3235, %v5562
    %v5564 = vpop.f32.mrf.mxu0
    %v5565 = vadd.f32 %v3235, %v5564
    %5566 = vdwg.mxu0
    %5567 = vmatpush.bf16.msra.mxu0 %v4762
    %5568 = vmatpush.bf16.msra.mxu0 %v4755
    %5569 = vmatpush.bf16.msra.mxu0 %v4748
    %5570 = vmatpush.bf16.msra.mxu0 %v4741
    %5571 = vmatpush.bf16.msra.mxu0 %v4734
    %5572 = vmatpush.bf16.msra.mxu0 %v4727
    %5573 = vmatpush.bf16.msra.mxu0 %v4720
    %5574 = vmatpush.bf16.msra.mxu0 %v4713
    %5575 = vmatmul.bf16.gmra.mxu0 %v2714
    %v5576 = vpop.f32.mrf.mxu0
    %v5577 = vadd.f32 %v5563, %v5576
    %v5578 = vpop.f32.mrf.mxu0
    %v5579 = vadd.f32 %v5565, %v5578
    %5580 = vdwg.mxu0
    %5581 = vmatpush.bf16.msra.mxu0 %v4818
    %5582 = vmatpush.bf16.msra.mxu0 %v4811
    %5583 = vmatpush.bf16.msra.mxu0 %v4804
    %5584 = vmatpush.bf16.msra.mxu0 %v4797
    %5585 = vmatpush.bf16.msra.mxu0 %v4790
    %5586 = vmatpush.bf16.msra.mxu0 %v4783
    %5587 = vmatpush.bf16.msra.mxu0 %v4776
    %5588 = vmatpush.bf16.msra.mxu0 %v4769
    %5589 = vmatmul.bf16.gmra.mxu0 %v2715
    %v5590 = vpop.f32.mrf.mxu0
    %v5591 = vadd.f32 %v5577, %v5590
    %v5592 = vpop.f32.mrf.mxu0
    %v5593 = vadd.f32 %v5579, %v5592
    %5594 = vdwg.mxu0
    %5595 = vmatpush.bf16.msra.mxu0 %v4874
    %5596 = vmatpush.bf16.msra.mxu0 %v4867
    %5597 = vmatpush.bf16.msra.mxu0 %v4860
    %5598 = vmatpush.bf16.msra.mxu0 %v4853
    %5599 = vmatpush.bf16.msra.mxu0 %v4846
    %5600 = vmatpush.bf16.msra.mxu0 %v4839
    %5601 = vmatpush.bf16.msra.mxu0 %v4832
    %5602 = vmatpush.bf16.msra.mxu0 %v4825
    %5603 = vmatmul.bf16.gmra.mxu0 %v2716
    %v5604 = vpop.f32.mrf.mxu0
    %v5605 = vadd.f32 %v5591, %v5604
    %v5606 = vpop.f32.mrf.mxu0
    %v5607 = vadd.f32 %v5593, %v5606
    %5608 = vdwg.mxu0
    %5609 = vmatpush.bf16.msra.mxu0 %v4930
    %5610 = vmatpush.bf16.msra.mxu0 %v4923
    %5611 = vmatpush.bf16.msra.mxu0 %v4916
    %5612 = vmatpush.bf16.msra.mxu0 %v4909
    %5613 = vmatpush.bf16.msra.mxu0 %v4902
    %5614 = vmatpush.bf16.msra.mxu0 %v4895
    %5615 = vmatpush.bf16.msra.mxu0 %v4888
    %5616 = vmatpush.bf16.msra.mxu0 %v4881
    %5617 = vmatmul.bf16.gmra.mxu0 %v2717
    %v5618 = vpop.f32.mrf.mxu0
    %v5619 = vadd.f32 %v5605, %v5618
    %v5620 = vpop.f32.mrf.mxu0
    %v5621 = vadd.f32 %v5607, %v5620
    %5622 = vdwg.mxu0
    %5623 = vmatpush.bf16.msra.mxu0 %v4986
    %5624 = vmatpush.bf16.msra.mxu0 %v4979
    %5625 = vmatpush.bf16.msra.mxu0 %v4972
    %5626 = vmatpush.bf16.msra.mxu0 %v4965
    %5627 = vmatpush.bf16.msra.mxu0 %v4958
    %5628 = vmatpush.bf16.msra.mxu0 %v4951
    %5629 = vmatpush.bf16.msra.mxu0 %v4944
    %5630 = vmatpush.bf16.msra.mxu0 %v4937
    %5631 = vmatmul.bf16.gmra.mxu0 %v2718
    %v5632 = vpop.f32.mrf.mxu0
    %v5633 = vadd.f32 %v5619, %v5632
    %v5634 = vpop.f32.mrf.mxu0
    %v5635 = vadd.f32 %v5621, %v5634
    %5636 = vdwg.mxu0
    %5637 = vmatpush.bf16.msra.mxu0 %v5042
    %5638 = vmatpush.bf16.msra.mxu0 %v5035
    %5639 = vmatpush.bf16.msra.mxu0 %v5028
    %5640 = vmatpush.bf16.msra.mxu0 %v5021
    %5641 = vmatpush.bf16.msra.mxu0 %v5014
    %5642 = vmatpush.bf16.msra.mxu0 %v5007
    %5643 = vmatpush.bf16.msra.mxu0 %v5000
    %5644 = vmatpush.bf16.msra.mxu0 %v4993
    %5645 = vmatmul.bf16.gmra.mxu0 %v2719
    %v5646 = vpop.f32.mrf.mxu0
    %v5647 = vadd.f32 %v5633, %v5646
    %v5648 = vpop.f32.mrf.mxu0
    %v5649 = vadd.f32 %v5635, %v5648
    %5650 = vdwg.mxu0
    %5651 = vmatpush.bf16.msra.mxu0 %v5098
    %5652 = vmatpush.bf16.msra.mxu0 %v5091
    %5653 = vmatpush.bf16.msra.mxu0 %v5084
    %5654 = vmatpush.bf16.msra.mxu0 %v5077
    %5655 = vmatpush.bf16.msra.mxu0 %v5070
    %5656 = vmatpush.bf16.msra.mxu0 %v5063
    %5657 = vmatpush.bf16.msra.mxu0 %v5056
    %5658 = vmatpush.bf16.msra.mxu0 %v5049
    %5659 = vmatmul.bf16.gmra.mxu0 %v2720
    %v5660 = vpop.f32.mrf.mxu0
    %v5661 = vadd.f32 %v5647, %v5660
    %v5662 = vpop.f32.mrf.mxu0
    %v5663 = vadd.f32 %v5649, %v5662
    %5664 = vdwg.mxu0
    %5665 = vmatpush.bf16.msra.mxu0 %v4707
    %5666 = vmatpush.bf16.msra.mxu0 %v4700
    %5667 = vmatpush.bf16.msra.mxu0 %v4693
    %5668 = vmatpush.bf16.msra.mxu0 %v4686
    %5669 = vmatpush.bf16.msra.mxu0 %v4679
    %5670 = vmatpush.bf16.msra.mxu0 %v4672
    %5671 = vmatpush.bf16.msra.mxu0 %v4665
    %5672 = vmatpush.bf16.msra.mxu0 %v4658
    %5673 = vmatmul.bf16.gmra.mxu0 %v2713
    %v5674 = vpop.f32.mrf.mxu0
    %v5675 = vadd.f32 %v3236, %v5674
    %v5676 = vpop.f32.mrf.mxu0
    %v5677 = vadd.f32 %v3236, %v5676
    %5678 = vdwg.mxu0
    %5679 = vmatpush.bf16.msra.mxu0 %v4763
    %5680 = vmatpush.bf16.msra.mxu0 %v4756
    %5681 = vmatpush.bf16.msra.mxu0 %v4749
    %5682 = vmatpush.bf16.msra.mxu0 %v4742
    %5683 = vmatpush.bf16.msra.mxu0 %v4735
    %5684 = vmatpush.bf16.msra.mxu0 %v4728
    %5685 = vmatpush.bf16.msra.mxu0 %v4721
    %5686 = vmatpush.bf16.msra.mxu0 %v4714
    %5687 = vmatmul.bf16.gmra.mxu0 %v2714
    %v5688 = vpop.f32.mrf.mxu0
    %v5689 = vadd.f32 %v5675, %v5688
    %v5690 = vpop.f32.mrf.mxu0
    %v5691 = vadd.f32 %v5677, %v5690
    %5692 = vdwg.mxu0
    %5693 = vmatpush.bf16.msra.mxu0 %v4819
    %5694 = vmatpush.bf16.msra.mxu0 %v4812
    %5695 = vmatpush.bf16.msra.mxu0 %v4805
    %5696 = vmatpush.bf16.msra.mxu0 %v4798
    %5697 = vmatpush.bf16.msra.mxu0 %v4791
    %5698 = vmatpush.bf16.msra.mxu0 %v4784
    %5699 = vmatpush.bf16.msra.mxu0 %v4777
    %5700 = vmatpush.bf16.msra.mxu0 %v4770
    %5701 = vmatmul.bf16.gmra.mxu0 %v2715
    %v5702 = vpop.f32.mrf.mxu0
    %v5703 = vadd.f32 %v5689, %v5702
    %v5704 = vpop.f32.mrf.mxu0
    %v5705 = vadd.f32 %v5691, %v5704
    %5706 = vdwg.mxu0
    %5707 = vmatpush.bf16.msra.mxu0 %v4875
    %5708 = vmatpush.bf16.msra.mxu0 %v4868
    %5709 = vmatpush.bf16.msra.mxu0 %v4861
    %5710 = vmatpush.bf16.msra.mxu0 %v4854
    %5711 = vmatpush.bf16.msra.mxu0 %v4847
    %5712 = vmatpush.bf16.msra.mxu0 %v4840
    %5713 = vmatpush.bf16.msra.mxu0 %v4833
    %5714 = vmatpush.bf16.msra.mxu0 %v4826
    %5715 = vmatmul.bf16.gmra.mxu0 %v2716
    %v5716 = vpop.f32.mrf.mxu0
    %v5717 = vadd.f32 %v5703, %v5716
    %v5718 = vpop.f32.mrf.mxu0
    %v5719 = vadd.f32 %v5705, %v5718
    %5720 = vdwg.mxu0
    %5721 = vmatpush.bf16.msra.mxu0 %v4931
    %5722 = vmatpush.bf16.msra.mxu0 %v4924
    %5723 = vmatpush.bf16.msra.mxu0 %v4917
    %5724 = vmatpush.bf16.msra.mxu0 %v4910
    %5725 = vmatpush.bf16.msra.mxu0 %v4903
    %5726 = vmatpush.bf16.msra.mxu0 %v4896
    %5727 = vmatpush.bf16.msra.mxu0 %v4889
    %5728 = vmatpush.bf16.msra.mxu0 %v4882
    %5729 = vmatmul.bf16.gmra.mxu0 %v2717
    %v5730 = vpop.f32.mrf.mxu0
    %v5731 = vadd.f32 %v5717, %v5730
    %v5732 = vpop.f32.mrf.mxu0
    %v5733 = vadd.f32 %v5719, %v5732
    %5734 = vdwg.mxu0
    %5735 = vmatpush.bf16.msra.mxu0 %v4987
    %5736 = vmatpush.bf16.msra.mxu0 %v4980
    %5737 = vmatpush.bf16.msra.mxu0 %v4973
    %5738 = vmatpush.bf16.msra.mxu0 %v4966
    %5739 = vmatpush.bf16.msra.mxu0 %v4959
    %5740 = vmatpush.bf16.msra.mxu0 %v4952
    %5741 = vmatpush.bf16.msra.mxu0 %v4945
    %5742 = vmatpush.bf16.msra.mxu0 %v4938
    %5743 = vmatmul.bf16.gmra.mxu0 %v2718
    %v5744 = vpop.f32.mrf.mxu0
    %v5745 = vadd.f32 %v5731, %v5744
    %v5746 = vpop.f32.mrf.mxu0
    %v5747 = vadd.f32 %v5733, %v5746
    %5748 = vdwg.mxu0
    %5749 = vmatpush.bf16.msra.mxu0 %v5043
    %5750 = vmatpush.bf16.msra.mxu0 %v5036
    %5751 = vmatpush.bf16.msra.mxu0 %v5029
    %5752 = vmatpush.bf16.msra.mxu0 %v5022
    %5753 = vmatpush.bf16.msra.mxu0 %v5015
    %5754 = vmatpush.bf16.msra.mxu0 %v5008
    %5755 = vmatpush.bf16.msra.mxu0 %v5001
    %5756 = vmatpush.bf16.msra.mxu0 %v4994
    %5757 = vmatmul.bf16.gmra.mxu0 %v2719
    %v5758 = vpop.f32.mrf.mxu0
    %v5759 = vadd.f32 %v5745, %v5758
    %v5760 = vpop.f32.mrf.mxu0
    %v5761 = vadd.f32 %v5747, %v5760
    %5762 = vdwg.mxu0
    %5763 = vmatpush.bf16.msra.mxu0 %v5099
    %5764 = vmatpush.bf16.msra.mxu0 %v5092
    %5765 = vmatpush.bf16.msra.mxu0 %v5085
    %5766 = vmatpush.bf16.msra.mxu0 %v5078
    %5767 = vmatpush.bf16.msra.mxu0 %v5071
    %5768 = vmatpush.bf16.msra.mxu0 %v5064
    %5769 = vmatpush.bf16.msra.mxu0 %v5057
    %5770 = vmatpush.bf16.msra.mxu0 %v5050
    %5771 = vmatmul.bf16.gmra.mxu0 %v2720
    %v5772 = vpop.f32.mrf.mxu0
    %v5773 = vadd.f32 %v5759, %v5772
    %v5774 = vpop.f32.mrf.mxu0
    %v5775 = vadd.f32 %v5761, %v5774
    %5776 = vdwg.mxu0
    %5777 = vmatpush.bf16.msra.mxu0 %v4708
    %5778 = vmatpush.bf16.msra.mxu0 %v4701
    %5779 = vmatpush.bf16.msra.mxu0 %v4694
    %5780 = vmatpush.bf16.msra.mxu0 %v4687
    %5781 = vmatpush.bf16.msra.mxu0 %v4680
    %5782 = vmatpush.bf16.msra.mxu0 %v4673
    %5783 = vmatpush.bf16.msra.mxu0 %v4666
    %5784 = vmatpush.bf16.msra.mxu0 %v4659
    %5785 = vmatmul.bf16.gmra.mxu0 %v2713
    %v5786 = vpop.f32.mrf.mxu0
    %v5787 = vadd.f32 %v3237, %v5786
    %v5788 = vpop.f32.mrf.mxu0
    %v5789 = vadd.f32 %v3237, %v5788
    %5790 = vdwg.mxu0
    %5791 = vmatpush.bf16.msra.mxu0 %v4764
    %5792 = vmatpush.bf16.msra.mxu0 %v4757
    %5793 = vmatpush.bf16.msra.mxu0 %v4750
    %5794 = vmatpush.bf16.msra.mxu0 %v4743
    %5795 = vmatpush.bf16.msra.mxu0 %v4736
    %5796 = vmatpush.bf16.msra.mxu0 %v4729
    %5797 = vmatpush.bf16.msra.mxu0 %v4722
    %5798 = vmatpush.bf16.msra.mxu0 %v4715
    %5799 = vmatmul.bf16.gmra.mxu0 %v2714
    %v5800 = vpop.f32.mrf.mxu0
    %v5801 = vadd.f32 %v5787, %v5800
    %v5802 = vpop.f32.mrf.mxu0
    %v5803 = vadd.f32 %v5789, %v5802
    %5804 = vdwg.mxu0
    %5805 = vmatpush.bf16.msra.mxu0 %v4820
    %5806 = vmatpush.bf16.msra.mxu0 %v4813
    %5807 = vmatpush.bf16.msra.mxu0 %v4806
    %5808 = vmatpush.bf16.msra.mxu0 %v4799
    %5809 = vmatpush.bf16.msra.mxu0 %v4792
    %5810 = vmatpush.bf16.msra.mxu0 %v4785
    %5811 = vmatpush.bf16.msra.mxu0 %v4778
    %5812 = vmatpush.bf16.msra.mxu0 %v4771
    %5813 = vmatmul.bf16.gmra.mxu0 %v2715
    %v5814 = vpop.f32.mrf.mxu0
    %v5815 = vadd.f32 %v5801, %v5814
    %v5816 = vpop.f32.mrf.mxu0
    %v5817 = vadd.f32 %v5803, %v5816
    %5818 = vdwg.mxu0
    %5819 = vmatpush.bf16.msra.mxu0 %v4876
    %5820 = vmatpush.bf16.msra.mxu0 %v4869
    %5821 = vmatpush.bf16.msra.mxu0 %v4862
    %5822 = vmatpush.bf16.msra.mxu0 %v4855
    %5823 = vmatpush.bf16.msra.mxu0 %v4848
    %5824 = vmatpush.bf16.msra.mxu0 %v4841
    %5825 = vmatpush.bf16.msra.mxu0 %v4834
    %5826 = vmatpush.bf16.msra.mxu0 %v4827
    %5827 = vmatmul.bf16.gmra.mxu0 %v2716
    %v5828 = vpop.f32.mrf.mxu0
    %v5829 = vadd.f32 %v5815, %v5828
    %v5830 = vpop.f32.mrf.mxu0
    %v5831 = vadd.f32 %v5817, %v5830
    %5832 = vdwg.mxu0
    %5833 = vmatpush.bf16.msra.mxu0 %v4932
    %5834 = vmatpush.bf16.msra.mxu0 %v4925
    %5835 = vmatpush.bf16.msra.mxu0 %v4918
    %5836 = vmatpush.bf16.msra.mxu0 %v4911
    %5837 = vmatpush.bf16.msra.mxu0 %v4904
    %5838 = vmatpush.bf16.msra.mxu0 %v4897
    %5839 = vmatpush.bf16.msra.mxu0 %v4890
    %5840 = vmatpush.bf16.msra.mxu0 %v4883
    %5841 = vmatmul.bf16.gmra.mxu0 %v2717
    %v5842 = vpop.f32.mrf.mxu0
    %v5843 = vadd.f32 %v5829, %v5842
    %v5844 = vpop.f32.mrf.mxu0
    %v5845 = vadd.f32 %v5831, %v5844
    %5846 = vdwg.mxu0
    %5847 = vmatpush.bf16.msra.mxu0 %v4988
    %5848 = vmatpush.bf16.msra.mxu0 %v4981
    %5849 = vmatpush.bf16.msra.mxu0 %v4974
    %5850 = vmatpush.bf16.msra.mxu0 %v4967
    %5851 = vmatpush.bf16.msra.mxu0 %v4960
    %5852 = vmatpush.bf16.msra.mxu0 %v4953
    %5853 = vmatpush.bf16.msra.mxu0 %v4946
    %5854 = vmatpush.bf16.msra.mxu0 %v4939
    %5855 = vmatmul.bf16.gmra.mxu0 %v2718
    %v5856 = vpop.f32.mrf.mxu0
    %v5857 = vadd.f32 %v5843, %v5856
    %v5858 = vpop.f32.mrf.mxu0
    %v5859 = vadd.f32 %v5845, %v5858
    %5860 = vdwg.mxu0
    %5861 = vmatpush.bf16.msra.mxu0 %v5044
    %5862 = vmatpush.bf16.msra.mxu0 %v5037
    %5863 = vmatpush.bf16.msra.mxu0 %v5030
    %5864 = vmatpush.bf16.msra.mxu0 %v5023
    %5865 = vmatpush.bf16.msra.mxu0 %v5016
    %5866 = vmatpush.bf16.msra.mxu0 %v5009
    %5867 = vmatpush.bf16.msra.mxu0 %v5002
    %5868 = vmatpush.bf16.msra.mxu0 %v4995
    %5869 = vmatmul.bf16.gmra.mxu0 %v2719
    %v5870 = vpop.f32.mrf.mxu0
    %v5871 = vadd.f32 %v5857, %v5870
    %v5872 = vpop.f32.mrf.mxu0
    %v5873 = vadd.f32 %v5859, %v5872
    %5874 = vdwg.mxu0
    %5875 = vmatpush.bf16.msra.mxu0 %v5100
    %5876 = vmatpush.bf16.msra.mxu0 %v5093
    %5877 = vmatpush.bf16.msra.mxu0 %v5086
    %5878 = vmatpush.bf16.msra.mxu0 %v5079
    %5879 = vmatpush.bf16.msra.mxu0 %v5072
    %5880 = vmatpush.bf16.msra.mxu0 %v5065
    %5881 = vmatpush.bf16.msra.mxu0 %v5058
    %5882 = vmatpush.bf16.msra.mxu0 %v5051
    %5883 = vmatmul.bf16.gmra.mxu0 %v2720
    %v5884 = vpop.f32.mrf.mxu0
    %v5885 = vadd.f32 %v5871, %v5884
    %v5886 = vpop.f32.mrf.mxu0
    %v5887 = vadd.f32 %v5873, %v5886
    %5888 = vdwg.mxu0
    %5889 = vmatpush.bf16.msra.mxu0 %v4709
    %5890 = vmatpush.bf16.msra.mxu0 %v4702
    %5891 = vmatpush.bf16.msra.mxu0 %v4695
    %5892 = vmatpush.bf16.msra.mxu0 %v4688
    %5893 = vmatpush.bf16.msra.mxu0 %v4681
    %5894 = vmatpush.bf16.msra.mxu0 %v4674
    %5895 = vmatpush.bf16.msra.mxu0 %v4667
    %5896 = vmatpush.bf16.msra.mxu0 %v4660
    %5897 = vmatmul.bf16.gmra.mxu0 %v2713
    %v5898 = vpop.f32.mrf.mxu0
    %v5899 = vadd.f32 %v3238, %v5898
    %v5900 = vpop.f32.mrf.mxu0
    %v5901 = vadd.f32 %v3238, %v5900
    %5902 = vdwg.mxu0
    %5903 = vmatpush.bf16.msra.mxu0 %v4765
    %5904 = vmatpush.bf16.msra.mxu0 %v4758
    %5905 = vmatpush.bf16.msra.mxu0 %v4751
    %5906 = vmatpush.bf16.msra.mxu0 %v4744
    %5907 = vmatpush.bf16.msra.mxu0 %v4737
    %5908 = vmatpush.bf16.msra.mxu0 %v4730
    %5909 = vmatpush.bf16.msra.mxu0 %v4723
    %5910 = vmatpush.bf16.msra.mxu0 %v4716
    %5911 = vmatmul.bf16.gmra.mxu0 %v2714
    %v5912 = vpop.f32.mrf.mxu0
    %v5913 = vadd.f32 %v5899, %v5912
    %v5914 = vpop.f32.mrf.mxu0
    %v5915 = vadd.f32 %v5901, %v5914
    %5916 = vdwg.mxu0
    %5917 = vmatpush.bf16.msra.mxu0 %v4821
    %5918 = vmatpush.bf16.msra.mxu0 %v4814
    %5919 = vmatpush.bf16.msra.mxu0 %v4807
    %5920 = vmatpush.bf16.msra.mxu0 %v4800
    %5921 = vmatpush.bf16.msra.mxu0 %v4793
    %5922 = vmatpush.bf16.msra.mxu0 %v4786
    %5923 = vmatpush.bf16.msra.mxu0 %v4779
    %5924 = vmatpush.bf16.msra.mxu0 %v4772
    %5925 = vmatmul.bf16.gmra.mxu0 %v2715
    %v5926 = vpop.f32.mrf.mxu0
    %v5927 = vadd.f32 %v5913, %v5926
    %v5928 = vpop.f32.mrf.mxu0
    %v5929 = vadd.f32 %v5915, %v5928
    %5930 = vdwg.mxu0
    %5931 = vmatpush.bf16.msra.mxu0 %v4877
    %5932 = vmatpush.bf16.msra.mxu0 %v4870
    %5933 = vmatpush.bf16.msra.mxu0 %v4863
    %5934 = vmatpush.bf16.msra.mxu0 %v4856
    %5935 = vmatpush.bf16.msra.mxu0 %v4849
    %5936 = vmatpush.bf16.msra.mxu0 %v4842
    %5937 = vmatpush.bf16.msra.mxu0 %v4835
    %5938 = vmatpush.bf16.msra.mxu0 %v4828
    %5939 = vmatmul.bf16.gmra.mxu0 %v2716
    %v5940 = vpop.f32.mrf.mxu0
    %v5941 = vadd.f32 %v5927, %v5940
    %v5942 = vpop.f32.mrf.mxu0
    %v5943 = vadd.f32 %v5929, %v5942
    %5944 = vdwg.mxu0
    %5945 = vmatpush.bf16.msra.mxu0 %v4933
    %5946 = vmatpush.bf16.msra.mxu0 %v4926
    %5947 = vmatpush.bf16.msra.mxu0 %v4919
    %5948 = vmatpush.bf16.msra.mxu0 %v4912
    %5949 = vmatpush.bf16.msra.mxu0 %v4905
    %5950 = vmatpush.bf16.msra.mxu0 %v4898
    %5951 = vmatpush.bf16.msra.mxu0 %v4891
    %5952 = vmatpush.bf16.msra.mxu0 %v4884
    %5953 = vmatmul.bf16.gmra.mxu0 %v2717
    %v5954 = vpop.f32.mrf.mxu0
    %v5955 = vadd.f32 %v5941, %v5954
    %v5956 = vpop.f32.mrf.mxu0
    %v5957 = vadd.f32 %v5943, %v5956
    %5958 = vdwg.mxu0
    %5959 = vmatpush.bf16.msra.mxu0 %v4989
    %5960 = vmatpush.bf16.msra.mxu0 %v4982
    %5961 = vmatpush.bf16.msra.mxu0 %v4975
    %5962 = vmatpush.bf16.msra.mxu0 %v4968
    %5963 = vmatpush.bf16.msra.mxu0 %v4961
    %5964 = vmatpush.bf16.msra.mxu0 %v4954
    %5965 = vmatpush.bf16.msra.mxu0 %v4947
    %5966 = vmatpush.bf16.msra.mxu0 %v4940
    %5967 = vmatmul.bf16.gmra.mxu0 %v2718
    %v5968 = vpop.f32.mrf.mxu0
    %v5969 = vadd.f32 %v5955, %v5968
    %v5970 = vpop.f32.mrf.mxu0
    %v5971 = vadd.f32 %v5957, %v5970
    %5972 = vdwg.mxu0
    %5973 = vmatpush.bf16.msra.mxu0 %v5045
    %5974 = vmatpush.bf16.msra.mxu0 %v5038
    %5975 = vmatpush.bf16.msra.mxu0 %v5031
    %5976 = vmatpush.bf16.msra.mxu0 %v5024
    %5977 = vmatpush.bf16.msra.mxu0 %v5017
    %5978 = vmatpush.bf16.msra.mxu0 %v5010
    %5979 = vmatpush.bf16.msra.mxu0 %v5003
    %5980 = vmatpush.bf16.msra.mxu0 %v4996
    %5981 = vmatmul.bf16.gmra.mxu0 %v2719
    %v5982 = vpop.f32.mrf.mxu0
    %v5983 = vadd.f32 %v5969, %v5982
    %v5984 = vpop.f32.mrf.mxu0
    %v5985 = vadd.f32 %v5971, %v5984
    %5986 = vdwg.mxu0
    %5987 = vmatpush.bf16.msra.mxu0 %v5101
    %5988 = vmatpush.bf16.msra.mxu0 %v5094
    %5989 = vmatpush.bf16.msra.mxu0 %v5087
    %5990 = vmatpush.bf16.msra.mxu0 %v5080
    %5991 = vmatpush.bf16.msra.mxu0 %v5073
    %5992 = vmatpush.bf16.msra.mxu0 %v5066
    %5993 = vmatpush.bf16.msra.mxu0 %v5059
    %5994 = vmatpush.bf16.msra.mxu0 %v5052
    %5995 = vmatmul.bf16.gmra.mxu0 %v2720
    %v5996 = vpop.f32.mrf.mxu0
    %v5997 = vadd.f32 %v5983, %v5996
    %v5998 = vpop.f32.mrf.mxu0
    %v5999 = vadd.f32 %v5985, %v5998
    %6000 = vdwg.mxu0
    %6001 = vmatpush.bf16.msra.mxu0 %v4710
    %6002 = vmatpush.bf16.msra.mxu0 %v4703
    %6003 = vmatpush.bf16.msra.mxu0 %v4696
    %6004 = vmatpush.bf16.msra.mxu0 %v4689
    %6005 = vmatpush.bf16.msra.mxu0 %v4682
    %6006 = vmatpush.bf16.msra.mxu0 %v4675
    %6007 = vmatpush.bf16.msra.mxu0 %v4668
    %6008 = vmatpush.bf16.msra.mxu0 %v4661
    %6009 = vmatmul.bf16.gmra.mxu0 %v2713
    %v6010 = vpop.f32.mrf.mxu0
    %v6011 = vadd.f32 %v3239, %v6010
    %v6012 = vpop.f32.mrf.mxu0
    %v6013 = vadd.f32 %v3239, %v6012
    %6014 = vdwg.mxu0
    %6015 = vmatpush.bf16.msra.mxu0 %v4766
    %6016 = vmatpush.bf16.msra.mxu0 %v4759
    %6017 = vmatpush.bf16.msra.mxu0 %v4752
    %6018 = vmatpush.bf16.msra.mxu0 %v4745
    %6019 = vmatpush.bf16.msra.mxu0 %v4738
    %6020 = vmatpush.bf16.msra.mxu0 %v4731
    %6021 = vmatpush.bf16.msra.mxu0 %v4724
    %6022 = vmatpush.bf16.msra.mxu0 %v4717
    %6023 = vmatmul.bf16.gmra.mxu0 %v2714
    %v6024 = vpop.f32.mrf.mxu0
    %v6025 = vadd.f32 %v6011, %v6024
    %v6026 = vpop.f32.mrf.mxu0
    %v6027 = vadd.f32 %v6013, %v6026
    %6028 = vdwg.mxu0
    %6029 = vmatpush.bf16.msra.mxu0 %v4822
    %6030 = vmatpush.bf16.msra.mxu0 %v4815
    %6031 = vmatpush.bf16.msra.mxu0 %v4808
    %6032 = vmatpush.bf16.msra.mxu0 %v4801
    %6033 = vmatpush.bf16.msra.mxu0 %v4794
    %6034 = vmatpush.bf16.msra.mxu0 %v4787
    %6035 = vmatpush.bf16.msra.mxu0 %v4780
    %6036 = vmatpush.bf16.msra.mxu0 %v4773
    %6037 = vmatmul.bf16.gmra.mxu0 %v2715
    %v6038 = vpop.f32.mrf.mxu0
    %v6039 = vadd.f32 %v6025, %v6038
    %v6040 = vpop.f32.mrf.mxu0
    %v6041 = vadd.f32 %v6027, %v6040
    %6042 = vdwg.mxu0
    %6043 = vmatpush.bf16.msra.mxu0 %v4878
    %6044 = vmatpush.bf16.msra.mxu0 %v4871
    %6045 = vmatpush.bf16.msra.mxu0 %v4864
    %6046 = vmatpush.bf16.msra.mxu0 %v4857
    %6047 = vmatpush.bf16.msra.mxu0 %v4850
    %6048 = vmatpush.bf16.msra.mxu0 %v4843
    %6049 = vmatpush.bf16.msra.mxu0 %v4836
    %6050 = vmatpush.bf16.msra.mxu0 %v4829
    %6051 = vmatmul.bf16.gmra.mxu0 %v2716
    %v6052 = vpop.f32.mrf.mxu0
    %v6053 = vadd.f32 %v6039, %v6052
    %v6054 = vpop.f32.mrf.mxu0
    %v6055 = vadd.f32 %v6041, %v6054
    %6056 = vdwg.mxu0
    %6057 = vmatpush.bf16.msra.mxu0 %v4934
    %6058 = vmatpush.bf16.msra.mxu0 %v4927
    %6059 = vmatpush.bf16.msra.mxu0 %v4920
    %6060 = vmatpush.bf16.msra.mxu0 %v4913
    %6061 = vmatpush.bf16.msra.mxu0 %v4906
    %6062 = vmatpush.bf16.msra.mxu0 %v4899
    %6063 = vmatpush.bf16.msra.mxu0 %v4892
    %6064 = vmatpush.bf16.msra.mxu0 %v4885
    %6065 = vmatmul.bf16.gmra.mxu0 %v2717
    %v6066 = vpop.f32.mrf.mxu0
    %v6067 = vadd.f32 %v6053, %v6066
    %v6068 = vpop.f32.mrf.mxu0
    %v6069 = vadd.f32 %v6055, %v6068
    %6070 = vdwg.mxu0
    %6071 = vmatpush.bf16.msra.mxu0 %v4990
    %6072 = vmatpush.bf16.msra.mxu0 %v4983
    %6073 = vmatpush.bf16.msra.mxu0 %v4976
    %6074 = vmatpush.bf16.msra.mxu0 %v4969
    %6075 = vmatpush.bf16.msra.mxu0 %v4962
    %6076 = vmatpush.bf16.msra.mxu0 %v4955
    %6077 = vmatpush.bf16.msra.mxu0 %v4948
    %6078 = vmatpush.bf16.msra.mxu0 %v4941
    %6079 = vmatmul.bf16.gmra.mxu0 %v2718
    %v6080 = vpop.f32.mrf.mxu0
    %v6081 = vadd.f32 %v6067, %v6080
    %v6082 = vpop.f32.mrf.mxu0
    %v6083 = vadd.f32 %v6069, %v6082
    %6084 = vdwg.mxu0
    %6085 = vmatpush.bf16.msra.mxu0 %v5046
    %6086 = vmatpush.bf16.msra.mxu0 %v5039
    %6087 = vmatpush.bf16.msra.mxu0 %v5032
    %6088 = vmatpush.bf16.msra.mxu0 %v5025
    %6089 = vmatpush.bf16.msra.mxu0 %v5018
    %6090 = vmatpush.bf16.msra.mxu0 %v5011
    %6091 = vmatpush.bf16.msra.mxu0 %v5004
    %6092 = vmatpush.bf16.msra.mxu0 %v4997
    %6093 = vmatmul.bf16.gmra.mxu0 %v2719
    %v6094 = vpop.f32.mrf.mxu0
    %v6095 = vadd.f32 %v6081, %v6094
    %v6096 = vpop.f32.mrf.mxu0
    %v6097 = vadd.f32 %v6083, %v6096
    %6098 = vdwg.mxu0
    %6099 = vmatpush.bf16.msra.mxu0 %v5102
    %6100 = vmatpush.bf16.msra.mxu0 %v5095
    %6101 = vmatpush.bf16.msra.mxu0 %v5088
    %6102 = vmatpush.bf16.msra.mxu0 %v5081
    %6103 = vmatpush.bf16.msra.mxu0 %v5074
    %6104 = vmatpush.bf16.msra.mxu0 %v5067
    %6105 = vmatpush.bf16.msra.mxu0 %v5060
    %6106 = vmatpush.bf16.msra.mxu0 %v5053
    %6107 = vmatmul.bf16.gmra.mxu0 %v2720
    %v6108 = vpop.f32.mrf.mxu0
    %v6109 = vadd.f32 %v6095, %v6108
    %v6110 = vpop.f32.mrf.mxu0
    %v6111 = vadd.f32 %v6097, %v6110
    %6112 = vdwg.mxu0
    %6113 = vmatpush.bf16.msra.mxu0 %v4711
    %6114 = vmatpush.bf16.msra.mxu0 %v4704
    %6115 = vmatpush.bf16.msra.mxu0 %v4697
    %6116 = vmatpush.bf16.msra.mxu0 %v4690
    %6117 = vmatpush.bf16.msra.mxu0 %v4683
    %6118 = vmatpush.bf16.msra.mxu0 %v4676
    %6119 = vmatpush.bf16.msra.mxu0 %v4669
    %6120 = vmatpush.bf16.msra.mxu0 %v4662
    %6121 = vmatmul.bf16.gmra.mxu0 %v2713
    %v6122 = vpop.f32.mrf.mxu0
    %v6123 = vadd.f32 %v3240, %v6122
    %v6124 = vpop.f32.mrf.mxu0
    %v6125 = vadd.f32 %v3240, %v6124
    %6126 = vdwg.mxu0
    %6127 = vmatpush.bf16.msra.mxu0 %v4767
    %6128 = vmatpush.bf16.msra.mxu0 %v4760
    %6129 = vmatpush.bf16.msra.mxu0 %v4753
    %6130 = vmatpush.bf16.msra.mxu0 %v4746
    %6131 = vmatpush.bf16.msra.mxu0 %v4739
    %6132 = vmatpush.bf16.msra.mxu0 %v4732
    %6133 = vmatpush.bf16.msra.mxu0 %v4725
    %6134 = vmatpush.bf16.msra.mxu0 %v4718
    %6135 = vmatmul.bf16.gmra.mxu0 %v2714
    %v6136 = vpop.f32.mrf.mxu0
    %v6137 = vadd.f32 %v6123, %v6136
    %v6138 = vpop.f32.mrf.mxu0
    %v6139 = vadd.f32 %v6125, %v6138
    %6140 = vdwg.mxu0
    %6141 = vmatpush.bf16.msra.mxu0 %v4823
    %6142 = vmatpush.bf16.msra.mxu0 %v4816
    %6143 = vmatpush.bf16.msra.mxu0 %v4809
    %6144 = vmatpush.bf16.msra.mxu0 %v4802
    %6145 = vmatpush.bf16.msra.mxu0 %v4795
    %6146 = vmatpush.bf16.msra.mxu0 %v4788
    %6147 = vmatpush.bf16.msra.mxu0 %v4781
    %6148 = vmatpush.bf16.msra.mxu0 %v4774
    %6149 = vmatmul.bf16.gmra.mxu0 %v2715
    %v6150 = vpop.f32.mrf.mxu0
    %v6151 = vadd.f32 %v6137, %v6150
    %v6152 = vpop.f32.mrf.mxu0
    %v6153 = vadd.f32 %v6139, %v6152
    %6154 = vdwg.mxu0
    %6155 = vmatpush.bf16.msra.mxu0 %v4879
    %6156 = vmatpush.bf16.msra.mxu0 %v4872
    %6157 = vmatpush.bf16.msra.mxu0 %v4865
    %6158 = vmatpush.bf16.msra.mxu0 %v4858
    %6159 = vmatpush.bf16.msra.mxu0 %v4851
    %6160 = vmatpush.bf16.msra.mxu0 %v4844
    %6161 = vmatpush.bf16.msra.mxu0 %v4837
    %6162 = vmatpush.bf16.msra.mxu0 %v4830
    %6163 = vmatmul.bf16.gmra.mxu0 %v2716
    %v6164 = vpop.f32.mrf.mxu0
    %v6165 = vadd.f32 %v6151, %v6164
    %v6166 = vpop.f32.mrf.mxu0
    %v6167 = vadd.f32 %v6153, %v6166
    %6168 = vdwg.mxu0
    %6169 = vmatpush.bf16.msra.mxu0 %v4935
    %6170 = vmatpush.bf16.msra.mxu0 %v4928
    %6171 = vmatpush.bf16.msra.mxu0 %v4921
    %6172 = vmatpush.bf16.msra.mxu0 %v4914
    %6173 = vmatpush.bf16.msra.mxu0 %v4907
    %6174 = vmatpush.bf16.msra.mxu0 %v4900
    %6175 = vmatpush.bf16.msra.mxu0 %v4893
    %6176 = vmatpush.bf16.msra.mxu0 %v4886
    %6177 = vmatmul.bf16.gmra.mxu0 %v2717
    %v6178 = vpop.f32.mrf.mxu0
    %v6179 = vadd.f32 %v6165, %v6178
    %v6180 = vpop.f32.mrf.mxu0
    %v6181 = vadd.f32 %v6167, %v6180
    %6182 = vdwg.mxu0
    %6183 = vmatpush.bf16.msra.mxu0 %v4991
    %6184 = vmatpush.bf16.msra.mxu0 %v4984
    %6185 = vmatpush.bf16.msra.mxu0 %v4977
    %6186 = vmatpush.bf16.msra.mxu0 %v4970
    %6187 = vmatpush.bf16.msra.mxu0 %v4963
    %6188 = vmatpush.bf16.msra.mxu0 %v4956
    %6189 = vmatpush.bf16.msra.mxu0 %v4949
    %6190 = vmatpush.bf16.msra.mxu0 %v4942
    %6191 = vmatmul.bf16.gmra.mxu0 %v2718
    %v6192 = vpop.f32.mrf.mxu0
    %v6193 = vadd.f32 %v6179, %v6192
    %v6194 = vpop.f32.mrf.mxu0
    %v6195 = vadd.f32 %v6181, %v6194
    %6196 = vdwg.mxu0
    %6197 = vmatpush.bf16.msra.mxu0 %v5047
    %6198 = vmatpush.bf16.msra.mxu0 %v5040
    %6199 = vmatpush.bf16.msra.mxu0 %v5033
    %6200 = vmatpush.bf16.msra.mxu0 %v5026
    %6201 = vmatpush.bf16.msra.mxu0 %v5019
    %6202 = vmatpush.bf16.msra.mxu0 %v5012
    %6203 = vmatpush.bf16.msra.mxu0 %v5005
    %6204 = vmatpush.bf16.msra.mxu0 %v4998
    %6205 = vmatmul.bf16.gmra.mxu0 %v2719
    %v6206 = vpop.f32.mrf.mxu0
    %v6207 = vadd.f32 %v6193, %v6206
    %v6208 = vpop.f32.mrf.mxu0
    %v6209 = vadd.f32 %v6195, %v6208
    %6210 = vdwg.mxu0
    %6211 = vmatpush.bf16.msra.mxu0 %v5103
    %6212 = vmatpush.bf16.msra.mxu0 %v5096
    %6213 = vmatpush.bf16.msra.mxu0 %v5089
    %6214 = vmatpush.bf16.msra.mxu0 %v5082
    %6215 = vmatpush.bf16.msra.mxu0 %v5075
    %6216 = vmatpush.bf16.msra.mxu0 %v5068
    %6217 = vmatpush.bf16.msra.mxu0 %v5061
    %6218 = vmatpush.bf16.msra.mxu0 %v5054
    %6219 = vmatmul.bf16.gmra.mxu0 %v2720
    %v6220 = vpop.f32.mrf.mxu0
    %v6221 = vadd.f32 %v6207, %v6220
    %v6222 = vpop.f32.mrf.mxu0
    %v6223 = vadd.f32 %v6209, %v6222
    %6224 = vdwg.mxu0
    %6225 = vmatpush.bf16.msra.mxu0 %v4712
    %6226 = vmatpush.bf16.msra.mxu0 %v4705
    %6227 = vmatpush.bf16.msra.mxu0 %v4698
    %6228 = vmatpush.bf16.msra.mxu0 %v4691
    %6229 = vmatpush.bf16.msra.mxu0 %v4684
    %6230 = vmatpush.bf16.msra.mxu0 %v4677
    %6231 = vmatpush.bf16.msra.mxu0 %v4670
    %6232 = vmatpush.bf16.msra.mxu0 %v4663
    %6233 = vmatmul.bf16.gmra.mxu0 %v2713
    %v6234 = vpop.f32.mrf.mxu0
    %v6235 = vadd.f32 %v3241, %v6234
    %v6236 = vpop.f32.mrf.mxu0
    %v6237 = vadd.f32 %v3241, %v6236
    %6238 = vdwg.mxu0
    %6239 = vmatpush.bf16.msra.mxu0 %v4768
    %6240 = vmatpush.bf16.msra.mxu0 %v4761
    %6241 = vmatpush.bf16.msra.mxu0 %v4754
    %6242 = vmatpush.bf16.msra.mxu0 %v4747
    %6243 = vmatpush.bf16.msra.mxu0 %v4740
    %6244 = vmatpush.bf16.msra.mxu0 %v4733
    %6245 = vmatpush.bf16.msra.mxu0 %v4726
    %6246 = vmatpush.bf16.msra.mxu0 %v4719
    %6247 = vmatmul.bf16.gmra.mxu0 %v2714
    %v6248 = vpop.f32.mrf.mxu0
    %v6249 = vadd.f32 %v6235, %v6248
    %v6250 = vpop.f32.mrf.mxu0
    %v6251 = vadd.f32 %v6237, %v6250
    %6252 = vdwg.mxu0
    %6253 = vmatpush.bf16.msra.mxu0 %v4824
    %6254 = vmatpush.bf16.msra.mxu0 %v4817
    %6255 = vmatpush.bf16.msra.mxu0 %v4810
    %6256 = vmatpush.bf16.msra.mxu0 %v4803
    %6257 = vmatpush.bf16.msra.mxu0 %v4796
    %6258 = vmatpush.bf16.msra.mxu0 %v4789
    %6259 = vmatpush.bf16.msra.mxu0 %v4782
    %6260 = vmatpush.bf16.msra.mxu0 %v4775
    %6261 = vmatmul.bf16.gmra.mxu0 %v2715
    %v6262 = vpop.f32.mrf.mxu0
    %v6263 = vadd.f32 %v6249, %v6262
    %v6264 = vpop.f32.mrf.mxu0
    %v6265 = vadd.f32 %v6251, %v6264
    %6266 = vdwg.mxu0
    %6267 = vmatpush.bf16.msra.mxu0 %v4880
    %6268 = vmatpush.bf16.msra.mxu0 %v4873
    %6269 = vmatpush.bf16.msra.mxu0 %v4866
    %6270 = vmatpush.bf16.msra.mxu0 %v4859
    %6271 = vmatpush.bf16.msra.mxu0 %v4852
    %6272 = vmatpush.bf16.msra.mxu0 %v4845
    %6273 = vmatpush.bf16.msra.mxu0 %v4838
    %6274 = vmatpush.bf16.msra.mxu0 %v4831
    %6275 = vmatmul.bf16.gmra.mxu0 %v2716
    %v6276 = vpop.f32.mrf.mxu0
    %v6277 = vadd.f32 %v6263, %v6276
    %v6278 = vpop.f32.mrf.mxu0
    %v6279 = vadd.f32 %v6265, %v6278
    %6280 = vdwg.mxu0
    %6281 = vmatpush.bf16.msra.mxu0 %v4936
    %6282 = vmatpush.bf16.msra.mxu0 %v4929
    %6283 = vmatpush.bf16.msra.mxu0 %v4922
    %6284 = vmatpush.bf16.msra.mxu0 %v4915
    %6285 = vmatpush.bf16.msra.mxu0 %v4908
    %6286 = vmatpush.bf16.msra.mxu0 %v4901
    %6287 = vmatpush.bf16.msra.mxu0 %v4894
    %6288 = vmatpush.bf16.msra.mxu0 %v4887
    %6289 = vmatmul.bf16.gmra.mxu0 %v2717
    %v6290 = vpop.f32.mrf.mxu0
    %v6291 = vadd.f32 %v6277, %v6290
    %v6292 = vpop.f32.mrf.mxu0
    %v6293 = vadd.f32 %v6279, %v6292
    %6294 = vdwg.mxu0
    %6295 = vmatpush.bf16.msra.mxu0 %v4992
    %6296 = vmatpush.bf16.msra.mxu0 %v4985
    %6297 = vmatpush.bf16.msra.mxu0 %v4978
    %6298 = vmatpush.bf16.msra.mxu0 %v4971
    %6299 = vmatpush.bf16.msra.mxu0 %v4964
    %6300 = vmatpush.bf16.msra.mxu0 %v4957
    %6301 = vmatpush.bf16.msra.mxu0 %v4950
    %6302 = vmatpush.bf16.msra.mxu0 %v4943
    %6303 = vmatmul.bf16.gmra.mxu0 %v2718
    %v6304 = vpop.f32.mrf.mxu0
    %v6305 = vadd.f32 %v6291, %v6304
    %v6306 = vpop.f32.mrf.mxu0
    %v6307 = vadd.f32 %v6293, %v6306
    %6308 = vdwg.mxu0
    %6309 = vmatpush.bf16.msra.mxu0 %v5048
    %6310 = vmatpush.bf16.msra.mxu0 %v5041
    %6311 = vmatpush.bf16.msra.mxu0 %v5034
    %6312 = vmatpush.bf16.msra.mxu0 %v5027
    %6313 = vmatpush.bf16.msra.mxu0 %v5020
    %6314 = vmatpush.bf16.msra.mxu0 %v5013
    %6315 = vmatpush.bf16.msra.mxu0 %v5006
    %6316 = vmatpush.bf16.msra.mxu0 %v4999
    %6317 = vmatmul.bf16.gmra.mxu0 %v2719
    %v6318 = vpop.f32.mrf.mxu0
    %v6319 = vadd.f32 %v6305, %v6318
    %v6320 = vpop.f32.mrf.mxu0
    %v6321 = vadd.f32 %v6307, %v6320
    %6322 = vdwg.mxu0
    %6323 = vmatpush.bf16.msra.mxu0 %v5104
    %6324 = vmatpush.bf16.msra.mxu0 %v5097
    %6325 = vmatpush.bf16.msra.mxu0 %v5090
    %6326 = vmatpush.bf16.msra.mxu0 %v5083
    %6327 = vmatpush.bf16.msra.mxu0 %v5076
    %6328 = vmatpush.bf16.msra.mxu0 %v5069
    %6329 = vmatpush.bf16.msra.mxu0 %v5062
    %6330 = vmatpush.bf16.msra.mxu0 %v5055
    %6331 = vmatmul.bf16.gmra.mxu0 %v2720
    %v6332 = vpop.f32.mrf.mxu0
    %v6333 = vadd.f32 %v6319, %v6332
    %v6334 = vpop.f32.mrf.mxu0
    %v6335 = vadd.f32 %v6321, %v6334
    %6336 = vdwg.mxu0
    %v6337 = vtanh.pop %v5661
    %v6338 = vtanh.pop %v5773
    %v6339 = vtanh.pop %v5885
    %v6340 = vtanh.pop %v5997
    %v6341 = vtanh.pop %v6109
    %v6342 = vtanh.pop %v6221
    %v6343 = vtanh.pop %v6333
    %v6344 = vtanh.pop %v5663
    %v6345 = vtanh.pop %v5775
    %v6346 = vtanh.pop %v5887
    %v6347 = vtanh.pop %v5999
    %v6348 = vtanh.pop %v6111
    %v6349 = vtanh.pop %v6223
    %v6350 = vtanh.pop %v6335
    %v6351 = vpack.c.bf16 %v6338, %v6337
    %v6352 = vpack.c.bf16 %v6340, %v6339
    %v6353 = vpack.c.bf16 %v6342, %v6341
    %v6354 = vpack.c.bf16 %v6343, %v6343
    %v6355 = vpack.c.bf16 %v6345, %v6344
    %v6356 = vpack.c.bf16 %v6347, %v6346
    %v6357 = vpack.c.bf16 %v6349, %v6348
    %v6358 = vpack.c.bf16 %v6350, %v6350
    %6359 = vst [vmem:[#allocation2] sm:$0xff] %v6351
    %6360 = vst [vmem:[#allocation2 + $0x8] sm:$0xff] %v6352
    %6361 = vst [vmem:[#allocation2 + $0x10] sm:$0xff] %v6353
    %vm6362 = vcmask 125952
    %6363 = vst.msk [vmem:[#allocation2 + $0x18] sm:$0xf] %vm6362, %v6354
    %6364 = vst [vmem:[#allocation2 + $0x1c] sm:$0xff] %v6355
    %6365 = vst [vmem:[#allocation2 + $0x24] sm:$0xff] %v6356
    %6366 = vst [vmem:[#allocation2 + $0x2c] sm:$0xff] %v6357
    %6367 = vst.msk [vmem:[#allocation2 + $0x34] sm:$0xf] %vm6362, %v6358
    // Predicated region
    $region38: #{tpu_custom_call.1} parent=1 // pred_check
      _
    $region39: #{tpu_custom_call.1} parent=1 // pred_check_branch
      %6369 = sbr.rel (0) target = $region41
    $region40: #{tpu_custom_call.1} parent=1 // pred_region
      %6371 = vsyncadd [#allocation3], 0
      %s6372 = sshll.u32 [#allocation2], 4
      %s6373 = int_to_ptr.vmem [resolvable:$true] %s6372
      %s6374 = sshll.u32 %s9, 4
      %s6375 = int_to_ptr.hbm [resolvable:$true] %s6374
      %6380 = dma.vmem_to_hbm [thread:$0]  %s6373, 896, %s6375, [#allocation3], 448, 448, 28
    $region41: #{tpu_custom_call.1} parent=1 // pred_fallthru
      _
    // Predicated region
    $region42: #{tpu_custom_call.1} parent=1 // pred_check
      _
    $region43: #{tpu_custom_call.1} parent=1 // pred_check_branch
      %6382 = sbr.rel (0) target = $region45
    $region44: #{tpu_custom_call.1} parent=1 // pred_region
      %6384 = dma.done [#allocation3], 896
    $region45: #{tpu_custom_call.1} parent=1 // pred_fallthru
      _
    %6385 = vsyncpa [#allocation3], 1

// kernel: tpu_custom_call.1
$region0: #{tpu_custom_call.1}
  #allocation0 [shape = 'u32[]', space=smem, size = 0x4, offset = 0x4, fixed_abs, tag = 'smem constant byte address 0x4 - core index']
  #allocation1 [shape = 'u32[72,128]{1,0:T(1,128)}', space=vmem, size = 0x9000, scoped, tag = 'internal scratch']
  %s0 = inlined_call_operand.vmem [shape: bf16[16,128], index: 0, kind: input, shape index: {}]
  %s1 = inlined_call_operand.vmem [shape: bf16[128,256], index: 1, kind: input, shape index: {}]
  %s2 = inlined_call_operand.vmem [shape: f32[1,256], index: 2, kind: input, shape index: {}]
  %s3 = inlined_call_operand.vmem [shape: bf16[256,512], index: 3, kind: input, shape index: {}]
  %s4 = inlined_call_operand.vmem [shape: f32[1,512], index: 4, kind: input, shape index: {}]
  %s5 = inlined_call_operand.vmem [shape: bf16[512,1024], index: 5, kind: input, shape index: {}]
  %s6 = inlined_call_operand.vmem [shape: f32[1,1024], index: 6, kind: input, shape index: {}]
  %s7 = inlined_call_operand.vmem [shape: bf16[1024,784], index: 7, kind: input, shape index: {}]
  %s8 = inlined_call_operand.vmem [shape: f32[1,784], index: 8, kind: input, shape index: {}]
  %s9 = inlined_call_operand.hbm [shape: bf16[16,784], index: 9, kind: output, shape index: {}]
  %s10 = sld [smem:[#allocation0]]
  $region46: #{tpu_custom_call.1} parent=0
    _
  %s12 = ssub.s32 1, %s10
  %s13 = scalar_select 0, %s12, %s10
  $region1: #{tpu_custom_call.1} parent=0
    #allocation2 [shape = 'u8[28672]{0}', space=vmem, size = 0x7000, scoped, tag = 'output window, operand 0, single buffered']
    #allocation3 [shape = 's32[1]{0}', space=sflag, size = 0x4, scoped, tag = 'scoped memory for tpu_custom_call.1']
    %14 = vsyncpa [#allocation3], 0
    // Predicated region
    $region2: #{tpu_custom_call.1} parent=1 // pred_check
      _
    $region3: #{tpu_custom_call.1} parent=1 // pred_check_branch
      %16 = sbr.rel (0) target = $region5
    $region4: #{tpu_custom_call.1} parent=1 // pred_region
      _
    $region5: #{tpu_custom_call.1} parent=1 // pred_fallthru
      _
    // Predicated region
    $region6: #{tpu_custom_call.1} parent=1 // pred_check
      _
    $region7: #{tpu_custom_call.1} parent=1 // pred_check_branch
      %18 = sbr.rel (0) target = $region9
    $region8: #{tpu_custom_call.1} parent=1 // pred_region
      _
    $region9: #{tpu_custom_call.1} parent=1 // pred_fallthru
      _
    // Predicated region
    $region10: #{tpu_custom_call.1} parent=1 // pred_check
      _
    $region11: #{tpu_custom_call.1} parent=1 // pred_check_branch
      %20 = sbr.rel (0) target = $region13
    $region12: #{tpu_custom_call.1} parent=1 // pred_region
      _
    $region13: #{tpu_custom_call.1} parent=1 // pred_fallthru
      _
    // Predicated region
    $region14: #{tpu_custom_call.1} parent=1 // pred_check
      _
    $region15: #{tpu_custom_call.1} parent=1 // pred_check_branch
      %22 = sbr.rel (0) target = $region17
    $region16: #{tpu_custom_call.1} parent=1 // pred_region
      _
    $region17: #{tpu_custom_call.1} parent=1 // pred_fallthru
      _
    // Predicated region
    $region18: #{tpu_custom_call.1} parent=1 // pred_check
      _
    $region19: #{tpu_custom_call.1} parent=1 // pred_check_branch
      %24 = sbr.rel (0) target = $region21
    $region20: #{tpu_custom_call.1} parent=1 // pred_region
      _
    $region21: #{tpu_custom_call.1} parent=1 // pred_fallthru
      _
    // Predicated region
    $region22: #{tpu_custom_call.1} parent=1 // pred_check
      _
    $region23: #{tpu_custom_call.1} parent=1 // pred_check_branch
      %26 = sbr.rel (0) target = $region25
    $region24: #{tpu_custom_call.1} parent=1 // pred_region
      _
    $region25: #{tpu_custom_call.1} parent=1 // pred_fallthru
      _
    // Predicated region
    $region26: #{tpu_custom_call.1} parent=1 // pred_check
      _
    $region27: #{tpu_custom_call.1} parent=1 // pred_check_branch
      %28 = sbr.rel (0) target = $region29
    $region28: #{tpu_custom_call.1} parent=1 // pred_region
      _
    $region29: #{tpu_custom_call.1} parent=1 // pred_fallthru
      _
    // Predicated region
    $region30: #{tpu_custom_call.1} parent=1 // pred_check
      _
    $region31: #{tpu_custom_call.1} parent=1 // pred_check_branch
      %30 = sbr.rel (0) target = $region33
    $region32: #{tpu_custom_call.1} parent=1 // pred_region
      _
    $region33: #{tpu_custom_call.1} parent=1 // pred_fallthru
      _
    // Predicated region
    $region34: #{tpu_custom_call.1} parent=1 // pred_check
      _
    $region35: #{tpu_custom_call.1} parent=1 // pred_check_branch
      %32 = sbr.rel (0) target = $region37
    $region36: #{tpu_custom_call.1} parent=1 // pred_region
      _
    $region37: #{tpu_custom_call.1} parent=1 // pred_fallthru
      _
    %v33 = vld [vmem:[%s0] sm:$0xf]
    %v34 = vld [vmem:[%s0 + $0x4] sm:$0xf]
    %v35 = vld [vmem:[%s1] sm:$0xff]
    %v36 = vld [vmem:[%s1 + $0x8] sm:$0xff]
    %v37 = vld [vmem:[%s1 + $0x10] sm:$0xff]
    %v38 = vld [vmem:[%s1 + $0x18] sm:$0xff]
    %v39 = vld [vmem:[%s1 + $0x20] sm:$0xff]
    %v40 = vld [vmem:[%s1 + $0x28] sm:$0xff]
    %v41 = vld [vmem:[%s1 + $0x30] sm:$0xff]
    %v42 = vld [vmem:[%s1 + $0x38] sm:$0xff]
    %v43 = vld [vmem:[%s1 + $0x40] sm:$0xff]
    %v44 = vld [vmem:[%s1 + $0x48] sm:$0xff]
    %v45 = vld [vmem:[%s1 + $0x50] sm:$0xff]
    %v46 = vld [vmem:[%s1 + $0x58] sm:$0xff]
    %v47 = vld [vmem:[%s1 + $0x60] sm:$0xff]
    %v48 = vld [vmem:[%s1 + $0x68] sm:$0xff]
    %v49 = vld [vmem:[%s1 + $0x70] sm:$0xff]
    %v50 = vld [vmem:[%s1 + $0x78] sm:$0xff]
    %v51 = vld [vmem:[%s2] sm:$0x3]
    %v53 = vperm.slane %v51, 0
    %v54 = vperm.slane %v51, 1
    %v59 = vunpack.c.l.b16 %v33
    %v60 = vunpack.c.l.b16 %v34
    %v61 = vpack.c.b16 %v60, %v59
    %v79 = vunpack.c.l.b16 %v35
    %v80 = vunpack.c.h.b16 %v35
    %v81 = vunpack.c.l.b16 %v36
    %v82 = vunpack.c.h.b16 %v36
    %v83 = vunpack.c.l.b16 %v37
    %v84 = vunpack.c.h.b16 %v37
    %v85 = vunpack.c.l.b16 %v38
    %v86 = vunpack.c.h.b16 %v38
    %v87 = vunpack.c.l.b16 %v39
    %v88 = vunpack.c.h.b16 %v39
    %v89 = vunpack.c.l.b16 %v40
    %v90 = vunpack.c.h.b16 %v40
    %v91 = vunpack.c.l.b16 %v41
    %v92 = vunpack.c.h.b16 %v41
    %v93 = vunpack.c.l.b16 %v42
    %v94 = vunpack.c.h.b16 %v42
    %v95 = vunpack.c.l.b16 %v43
    %v96 = vunpack.c.h.b16 %v43
    %v97 = vunpack.c.l.b16 %v44
    %v98 = vunpack.c.h.b16 %v44
    %v99 = vunpack.c.l.b16 %v45
    %v100 = vunpack.c.h.b16 %v45
    %v101 = vunpack.c.l.b16 %v46
    %v102 = vunpack.c.h.b16 %v46
    %v103 = vunpack.c.l.b16 %v47
    %v104 = vunpack.c.h.b16 %v47
    %v105 = vunpack.c.l.b16 %v48
    %v106 = vunpack.c.h.b16 %v48
    %v107 = vunpack.c.l.b16 %v49
    %v108 = vunpack.c.h.b16 %v49
    %v109 = vunpack.c.l.b16 %v50
    %v110 = vunpack.c.h.b16 %v50
    %v111 = vpack.c.b16 %v81, %v79
    %v112 = vpack.c.b16 %v82, %v80
    %v113 = vpack.c.b16 %v85, %v83
    %v114 = vpack.c.b16 %v86, %v84
    %v115 = vpack.c.b16 %v89, %v87
    %v116 = vpack.c.b16 %v90, %v88
    %v117 = vpack.c.b16 %v93, %v91
    %v118 = vpack.c.b16 %v94, %v92
    %v119 = vpack.c.b16 %v97, %v95
    %v120 = vpack.c.b16 %v98, %v96
    %v121 = vpack.c.b16 %v101, %v99
    %v122 = vpack.c.b16 %v102, %v100
    %v123 = vpack.c.b16 %v105, %v103
    %v124 = vpack.c.b16 %v106, %v104
    %v125 = vpack.c.b16 %v109, %v107
    %v126 = vpack.c.b16 %v110, %v108
    %143 = vmatpush.bf16.msra.mxu0 %v125
    %144 = vmatpush.bf16.msra.mxu0 %v123
    %145 = vmatpush.bf16.msra.mxu0 %v121
    %146 = vmatpush.bf16.msra.mxu0 %v119
    %147 = vmatpush.bf16.msra.mxu0 %v117
    %148 = vmatpush.bf16.msra.mxu0 %v115
    %149 = vmatpush.bf16.msra.mxu0 %v113
    %150 = vmatpush.bf16.msra.mxu0 %v111
    %151 = vmatmul.bf16.gmra.mxu0 %v61
    %v152 = vpop.f32.mrf.mxu0
    %v153 = vadd.f32 %v53, %v152
    %v154 = vpop.f32.mrf.mxu0
    %v155 = vadd.f32 %v53, %v154
    %156 = vdwg.mxu0
    %157 = vmatpush.bf16.msra.mxu0 %v126
    %158 = vmatpush.bf16.msra.mxu0 %v124
    %159 = vmatpush.bf16.msra.mxu0 %v122
    %160 = vmatpush.bf16.msra.mxu0 %v120
    %161 = vmatpush.bf16.msra.mxu0 %v118
    %162 = vmatpush.bf16.msra.mxu0 %v116
    %163 = vmatpush.bf16.msra.mxu0 %v114
    %164 = vmatpush.bf16.msra.mxu0 %v112
    %165 = vmatmul.bf16.gmra.mxu0 %v61
    %v166 = vpop.f32.mrf.mxu0
    %v167 = vadd.f32 %v54, %v166
    %v168 = vpop.f32.mrf.mxu0
    %v169 = vadd.f32 %v54, %v168
    %170 = vdwg.mxu0
    %v171 = vmax.f32 %v153, 0.0
    %v172 = vmax.f32 %v167, 0.0
    %v173 = vmax.f32 %v155, 0.0
    %v174 = vmax.f32 %v169, 0.0
    %v175 = vpack.c.bf16 %v173, %v171
    %v176 = vpack.c.bf16 %v174, %v172
    %v177 = vld [vmem:[%s3] sm:$0xff]
    %v178 = vld [vmem:[%s3 + $0x8] sm:$0xff]
    %v179 = vld [vmem:[%s3 + $0x10] sm:$0xff]
    %v180 = vld [vmem:[%s3 + $0x18] sm:$0xff]
    %v181 = vld [vmem:[%s3 + $0x20] sm:$0xff]
    %v182 = vld [vmem:[%s3 + $0x28] sm:$0xff]
    %v183 = vld [vmem:[%s3 + $0x30] sm:$0xff]
    %v184 = vld [vmem:[%s3 + $0x38] sm:$0xff]
    %v185 = vld [vmem:[%s3 + $0x40] sm:$0xff]
    %v186 = vld [vmem:[%s3 + $0x48] sm:$0xff]
    %v187 = vld [vmem:[%s3 + $0x50] sm:$0xff]
    %v188 = vld [vmem:[%s3 + $0x58] sm:$0xff]
    %v189 = vld [vmem:[%s3 + $0x60] sm:$0xff]
    %v190 = vld [vmem:[%s3 + $0x68] sm:$0xff]
    %v191 = vld [vmem:[%s3 + $0x70] sm:$0xff]
    %v192 = vld [vmem:[%s3 + $0x78] sm:$0xff]
    %v193 = vld [vmem:[%s3 + $0x80] sm:$0xff]
    %v194 = vld [vmem:[%s3 + $0x88] sm:$0xff]
    %v195 = vld [vmem:[%s3 + $0x90] sm:$0xff]
    %v196 = vld [vmem:[%s3 + $0x98] sm:$0xff]
    %v197 = vld [vmem:[%s3 + $0xa0] sm:$0xff]
    %v198 = vld [vmem:[%s3 + $0xa8] sm:$0xff]
    %v199 = vld [vmem:[%s3 + $0xb0] sm:$0xff]
    %v200 = vld [vmem:[%s3 + $0xb8] sm:$0xff]
    %v201 = vld [vmem:[%s3 + $0xc0] sm:$0xff]
    %v202 = vld [vmem:[%s3 + $0xc8] sm:$0xff]
    %v203 = vld [vmem:[%s3 + $0xd0] sm:$0xff]
    %v204 = vld [vmem:[%s3 + $0xd8] sm:$0xff]
    %v205 = vld [vmem:[%s3 + $0xe0] sm:$0xff]
    %v206 = vld [vmem:[%s3 + $0xe8] sm:$0xff]
    %v207 = vld [vmem:[%s3 + $0xf0] sm:$0xff]
    %v208 = vld [vmem:[%s3 + $0xf8] sm:$0xff]
    %v209 = vld [vmem:[%s3 + $0x100] sm:$0xff]
    %v210 = vld [vmem:[%s3 + $0x108] sm:$0xff]
    %v211 = vld [vmem:[%s3 + $0x110] sm:$0xff]
    %v212 = vld [vmem:[%s3 + $0x118] sm:$0xff]
    %v213 = vld [vmem:[%s3 + $0x120] sm:$0xff]
    %v214 = vld [vmem:[%s3 + $0x128] sm:$0xff]
    %v215 = vld [vmem:[%s3 + $0x130] sm:$0xff]
    %v216 = vld [vmem:[%s3 + $0x138] sm:$0xff]
    %v217 = vld [vmem:[%s3 + $0x140] sm:$0xff]
    %v218 = vld [vmem:[%s3 + $0x148] sm:$0xff]
    %v219 = vld [vmem:[%s3 + $0x150] sm:$0xff]
    %v220 = vld [vmem:[%s3 + $0x158] sm:$0xff]
    %v221 = vld [vmem:[%s3 + $0x160] sm:$0xff]
    %v222 = vld [vmem:[%s3 + $0x168] sm:$0xff]
    %v223 = vld [vmem:[%s3 + $0x170] sm:$0xff]
    %v224 = vld [vmem:[%s3 + $0x178] sm:$0xff]
    %v225 = vld [vmem:[%s3 + $0x180] sm:$0xff]
    %v226 = vld [vmem:[%s3 + $0x188] sm:$0xff]
    %v227 = vld [vmem:[%s3 + $0x190] sm:$0xff]
    %v228 = vld [vmem:[%s3 + $0x198] sm:$0xff]
    %v229 = vld [vmem:[%s3 + $0x1a0] sm:$0xff]
    %v230 = vld [vmem:[%s3 + $0x1a8] sm:$0xff]
    %v231 = vld [vmem:[%s3 + $0x1b0] sm:$0xff]
    %v232 = vld [vmem:[%s3 + $0x1b8] sm:$0xff]
    %v233 = vld [vmem:[%s3 + $0x1c0] sm:$0xff]
    %v234 = vld [vmem:[%s3 + $0x1c8] sm:$0xff]
    %v235 = vld [vmem:[%s3 + $0x1d0] sm:$0xff]
    %v236 = vld [vmem:[%s3 + $0x1d8] sm:$0xff]
    %v237 = vld [vmem:[%s3 + $0x1e0] sm:$0xff]
    %v238 = vld [vmem:[%s3 + $0x1e8] sm:$0xff]
    %v239 = vld [vmem:[%s3 + $0x1f0] sm:$0xff]
    %v240 = vld [vmem:[%s3 + $0x1f8] sm:$0xff]
    %v241 = vld [vmem:[%s4] sm:$0xf]
    %v243 = vperm.slane %v241, 0
    %v244 = vperm.slane %v241, 1
    %v245 = vperm.slane %v241, 2
    %v246 = vperm.slane %v241, 3
    %v315 = vunpack.c.l.b16 %v177
    %v316 = vunpack.c.h.b16 %v177
    %v317 = vunpack.c.l.b16 %v178
    %v318 = vunpack.c.h.b16 %v178
    %v319 = vunpack.c.l.b16 %v179
    %v320 = vunpack.c.h.b16 %v179
    %v321 = vunpack.c.l.b16 %v180
    %v322 = vunpack.c.h.b16 %v180
    %v323 = vunpack.c.l.b16 %v181
    %v324 = vunpack.c.h.b16 %v181
    %v325 = vunpack.c.l.b16 %v182
    %v326 = vunpack.c.h.b16 %v182
    %v327 = vunpack.c.l.b16 %v183
    %v328 = vunpack.c.h.b16 %v183
    %v329 = vunpack.c.l.b16 %v184
    %v330 = vunpack.c.h.b16 %v184
    %v331 = vunpack.c.l.b16 %v185
    %v332 = vunpack.c.h.b16 %v185
    %v333 = vunpack.c.l.b16 %v186
    %v334 = vunpack.c.h.b16 %v186
    %v335 = vunpack.c.l.b16 %v187
    %v336 = vunpack.c.h.b16 %v187
    %v337 = vunpack.c.l.b16 %v188
    %v338 = vunpack.c.h.b16 %v188
    %v339 = vunpack.c.l.b16 %v189
    %v340 = vunpack.c.h.b16 %v189
    %v341 = vunpack.c.l.b16 %v190
    %v342 = vunpack.c.h.b16 %v190
    %v343 = vunpack.c.l.b16 %v191
    %v344 = vunpack.c.h.b16 %v191
    %v345 = vunpack.c.l.b16 %v192
    %v346 = vunpack.c.h.b16 %v192
    %v347 = vunpack.c.l.b16 %v193
    %v348 = vunpack.c.h.b16 %v193
    %v349 = vunpack.c.l.b16 %v194
    %v350 = vunpack.c.h.b16 %v194
    %v351 = vunpack.c.l.b16 %v195
    %v352 = vunpack.c.h.b16 %v195
    %v353 = vunpack.c.l.b16 %v196
    %v354 = vunpack.c.h.b16 %v196
    %v355 = vunpack.c.l.b16 %v197
    %v356 = vunpack.c.h.b16 %v197
    %v357 = vunpack.c.l.b16 %v198
    %v358 = vunpack.c.h.b16 %v198
    %v359 = vunpack.c.l.b16 %v199
    %v360 = vunpack.c.h.b16 %v199
    %v361 = vunpack.c.l.b16 %v200
    %v362 = vunpack.c.h.b16 %v200
    %v363 = vunpack.c.l.b16 %v201
    %v364 = vunpack.c.h.b16 %v201
    %v365 = vunpack.c.l.b16 %v202
    %v366 = vunpack.c.h.b16 %v202
    %v367 = vunpack.c.l.b16 %v203
    %v368 = vunpack.c.h.b16 %v203
    %v369 = vunpack.c.l.b16 %v204
    %v370 = vunpack.c.h.b16 %v204
    %v371 = vunpack.c.l.b16 %v205
    %v372 = vunpack.c.h.b16 %v205
    %v373 = vunpack.c.l.b16 %v206
    %v374 = vunpack.c.h.b16 %v206
    %v375 = vunpack.c.l.b16 %v207
    %v376 = vunpack.c.h.b16 %v207
    %v377 = vunpack.c.l.b16 %v208
    %v378 = vunpack.c.h.b16 %v208
    %v379 = vunpack.c.l.b16 %v209
    %v380 = vunpack.c.h.b16 %v209
    %v381 = vunpack.c.l.b16 %v210
    %v382 = vunpack.c.h.b16 %v210
    %v383 = vunpack.c.l.b16 %v211
    %v384 = vunpack.c.h.b16 %v211
    %v385 = vunpack.c.l.b16 %v212
    %v386 = vunpack.c.h.b16 %v212
    %v387 = vunpack.c.l.b16 %v213
    %v388 = vunpack.c.h.b16 %v213
    %v389 = vunpack.c.l.b16 %v214
    %v390 = vunpack.c.h.b16 %v214
    %v391 = vunpack.c.l.b16 %v215
    %v392 = vunpack.c.h.b16 %v215
    %v393 = vunpack.c.l.b16 %v216
    %v394 = vunpack.c.h.b16 %v216
    %v395 = vunpack.c.l.b16 %v217
    %v396 = vunpack.c.h.b16 %v217
    %v397 = vunpack.c.l.b16 %v218
    %v398 = vunpack.c.h.b16 %v218
    %v399 = vunpack.c.l.b16 %v219
    %v400 = vunpack.c.h.b16 %v219
    %v401 = vunpack.c.l.b16 %v220
    %v402 = vunpack.c.h.b16 %v220
    %v403 = vunpack.c.l.b16 %v221
    %v404 = vunpack.c.h.b16 %v221
    %v405 = vunpack.c.l.b16 %v222
    %v406 = vunpack.c.h.b16 %v222
    %v407 = vunpack.c.l.b16 %v223
    %v408 = vunpack.c.h.b16 %v223
    %v409 = vunpack.c.l.b16 %v224
    %v410 = vunpack.c.h.b16 %v224
    %v411 = vunpack.c.l.b16 %v225
    %v412 = vunpack.c.h.b16 %v225
    %v413 = vunpack.c.l.b16 %v226
    %v414 = vunpack.c.h.b16 %v226
    %v415 = vunpack.c.l.b16 %v227
    %v416 = vunpack.c.h.b16 %v227
    %v417 = vunpack.c.l.b16 %v228
    %v418 = vunpack.c.h.b16 %v228
    %v419 = vunpack.c.l.b16 %v229
    %v420 = vunpack.c.h.b16 %v229
    %v421 = vunpack.c.l.b16 %v230
    %v422 = vunpack.c.h.b16 %v230
    %v423 = vunpack.c.l.b16 %v231
    %v424 = vunpack.c.h.b16 %v231
    %v425 = vunpack.c.l.b16 %v232
    %v426 = vunpack.c.h.b16 %v232
    %v427 = vunpack.c.l.b16 %v233
    %v428 = vunpack.c.h.b16 %v233
    %v429 = vunpack.c.l.b16 %v234
    %v430 = vunpack.c.h.b16 %v234
    %v431 = vunpack.c.l.b16 %v235
    %v432 = vunpack.c.h.b16 %v235
    %v433 = vunpack.c.l.b16 %v236
    %v434 = vunpack.c.h.b16 %v236
    %v435 = vunpack.c.l.b16 %v237
    %v436 = vunpack.c.h.b16 %v237
    %v437 = vunpack.c.l.b16 %v238
    %v438 = vunpack.c.h.b16 %v238
    %v439 = vunpack.c.l.b16 %v239
    %v440 = vunpack.c.h.b16 %v239
    %v441 = vunpack.c.l.b16 %v240
    %v442 = vunpack.c.h.b16 %v240
    %v443 = vpack.c.b16 %v319, %v315
    %v444 = vpack.c.b16 %v320, %v316
    %v445 = vpack.c.b16 %v321, %v317
    %v446 = vpack.c.b16 %v322, %v318
    %v447 = vpack.c.b16 %v327, %v323
    %v448 = vpack.c.b16 %v328, %v324
    %v449 = vpack.c.b16 %v329, %v325
    %v450 = vpack.c.b16 %v330, %v326
    %v451 = vpack.c.b16 %v335, %v331
    %v452 = vpack.c.b16 %v336, %v332
    %v453 = vpack.c.b16 %v337, %v333
    %v454 = vpack.c.b16 %v338, %v334
    %v455 = vpack.c.b16 %v343, %v339
    %v456 = vpack.c.b16 %v344, %v340
    %v457 = vpack.c.b16 %v345, %v341
    %v458 = vpack.c.b16 %v346, %v342
    %v459 = vpack.c.b16 %v351, %v347
    %v460 = vpack.c.b16 %v352, %v348
    %v461 = vpack.c.b16 %v353, %v349
    %v462 = vpack.c.b16 %v354, %v350
    %v463 = vpack.c.b16 %v359, %v355
    %v464 = vpack.c.b16 %v360, %v356
    %v465 = vpack.c.b16 %v361, %v357
    %v466 = vpack.c.b16 %v362, %v358
    %v467 = vpack.c.b16 %v367, %v363
    %v468 = vpack.c.b16 %v368, %v364
    %v469 = vpack.c.b16 %v369, %v365
    %v470 = vpack.c.b16 %v370, %v366
    %v471 = vpack.c.b16 %v375, %v371
    %v472 = vpack.c.b16 %v376, %v372
    %v473 = vpack.c.b16 %v377, %v373
    %v474 = vpack.c.b16 %v378, %v374
    %v475 = vpack.c.b16 %v383, %v379
    %v476 = vpack.c.b16 %v384, %v380
    %v477 = vpack.c.b16 %v385, %v381
    %v478 = vpack.c.b16 %v386, %v382
    %v479 = vpack.c.b16 %v391, %v387
    %v480 = vpack.c.b16 %v392, %v388
    %v481 = vpack.c.b16 %v393, %v389
    %v482 = vpack.c.b16 %v394, %v390
    %v483 = vpack.c.b16 %v399, %v395
    %v484 = vpack.c.b16 %v400, %v396
    %v485 = vpack.c.b16 %v401, %v397
    %v486 = vpack.c.b16 %v402, %v398
    %v487 = vpack.c.b16 %v407, %v403
    %v488 = vpack.c.b16 %v408, %v404
    %v489 = vpack.c.b16 %v409, %v405
    %v490 = vpack.c.b16 %v410, %v406
    %v491 = vpack.c.b16 %v415, %v411
    %v492 = vpack.c.b16 %v416, %v412
    %v493 = vpack.c.b16 %v417, %v413
    %v494 = vpack.c.b16 %v418, %v414
    %v495 = vpack.c.b16 %v423, %v419
    %v496 = vpack.c.b16 %v424, %v420
    %v497 = vpack.c.b16 %v425, %v421
    %v498 = vpack.c.b16 %v426, %v422
    %v499 = vpack.c.b16 %v431, %v427
    %v500 = vpack.c.b16 %v432, %v428
    %v501 = vpack.c.b16 %v433, %v429
    %v502 = vpack.c.b16 %v434, %v430
    %v503 = vpack.c.b16 %v439, %v435
    %v504 = vpack.c.b16 %v440, %v436
    %v505 = vpack.c.b16 %v441, %v437
    %v506 = vpack.c.b16 %v442, %v438
    %571 = vmatpush.bf16.msra.mxu0 %v471
    %572 = vmatpush.bf16.msra.mxu0 %v467
    %573 = vmatpush.bf16.msra.mxu0 %v463
    %574 = vmatpush.bf16.msra.mxu0 %v459
    %575 = vmatpush.bf16.msra.mxu0 %v455
    %576 = vmatpush.bf16.msra.mxu0 %v451
    %577 = vmatpush.bf16.msra.mxu0 %v447
    %578 = vmatpush.bf16.msra.mxu0 %v443
    %579 = vmatmul.bf16.gmra.mxu0 %v175
    %v580 = vpop.f32.mrf.mxu0
    %v581 = vadd.f32 %v243, %v580
    %v582 = vpop.f32.mrf.mxu0
    %v583 = vadd.f32 %v243, %v582
    %584 = vdwg.mxu0
    %585 = vmatpush.bf16.msra.mxu0 %v503
    %586 = vmatpush.bf16.msra.mxu0 %v499
    %587 = vmatpush.bf16.msra.mxu0 %v495
    %588 = vmatpush.bf16.msra.mxu0 %v491
    %589 = vmatpush.bf16.msra.mxu0 %v487
    %590 = vmatpush.bf16.msra.mxu0 %v483
    %591 = vmatpush.bf16.msra.mxu0 %v479
    %592 = vmatpush.bf16.msra.mxu0 %v475
    %593 = vmatmul.bf16.gmra.mxu0 %v176
    %v594 = vpop.f32.mrf.mxu0
    %v595 = vadd.f32 %v581, %v594
    %v596 = vpop.f32.mrf.mxu0
    %v597 = vadd.f32 %v583, %v596
    %598 = vdwg.mxu0
    %599 = vmatpush.bf16.msra.mxu0 %v472
    %600 = vmatpush.bf16.msra.mxu0 %v468
    %601 = vmatpush.bf16.msra.mxu0 %v464
    %602 = vmatpush.bf16.msra.mxu0 %v460
    %603 = vmatpush.bf16.msra.mxu0 %v456
    %604 = vmatpush.bf16.msra.mxu0 %v452
    %605 = vmatpush.bf16.msra.mxu0 %v448
    %606 = vmatpush.bf16.msra.mxu0 %v444
    %607 = vmatmul.bf16.gmra.mxu0 %v175
    %v608 = vpop.f32.mrf.mxu0
    %v609 = vadd.f32 %v244, %v608
    %v610 = vpop.f32.mrf.mxu0
    %v611 = vadd.f32 %v244, %v610
    %612 = vdwg.mxu0
    %613 = vmatpush.bf16.msra.mxu0 %v504
    %614 = vmatpush.bf16.msra.mxu0 %v500
    %615 = vmatpush.bf16.msra.mxu0 %v496
    %616 = vmatpush.bf16.msra.mxu0 %v492
    %617 = vmatpush.bf16.msra.mxu0 %v488
    %618 = vmatpush.bf16.msra.mxu0 %v484
    %619 = vmatpush.bf16.msra.mxu0 %v480
    %620 = vmatpush.bf16.msra.mxu0 %v476
    %621 = vmatmul.bf16.gmra.mxu0 %v176
    %v622 = vpop.f32.mrf.mxu0
    %v623 = vadd.f32 %v609, %v622
    %v624 = vpop.f32.mrf.mxu0
    %v625 = vadd.f32 %v611, %v624
    %626 = vdwg.mxu0
    %627 = vmatpush.bf16.msra.mxu0 %v473
    %628 = vmatpush.bf16.msra.mxu0 %v469
    %629 = vmatpush.bf16.msra.mxu0 %v465
    %630 = vmatpush.bf16.msra.mxu0 %v461
    %631 = vmatpush.bf16.msra.mxu0 %v457
    %632 = vmatpush.bf16.msra.mxu0 %v453
    %633 = vmatpush.bf16.msra.mxu0 %v449
    %634 = vmatpush.bf16.msra.mxu0 %v445
    %635 = vmatmul.bf16.gmra.mxu0 %v175
    %v636 = vpop.f32.mrf.mxu0
    %v637 = vadd.f32 %v245, %v636
    %v638 = vpop.f32.mrf.mxu0
    %v639 = vadd.f32 %v245, %v638
    %640 = vdwg.mxu0
    %641 = vmatpush.bf16.msra.mxu0 %v505
    %642 = vmatpush.bf16.msra.mxu0 %v501
    %643 = vmatpush.bf16.msra.mxu0 %v497
    %644 = vmatpush.bf16.msra.mxu0 %v493
    %645 = vmatpush.bf16.msra.mxu0 %v489
    %646 = vmatpush.bf16.msra.mxu0 %v485
    %647 = vmatpush.bf16.msra.mxu0 %v481
    %648 = vmatpush.bf16.msra.mxu0 %v477
    %649 = vmatmul.bf16.gmra.mxu0 %v176
    %v650 = vpop.f32.mrf.mxu0
    %v651 = vadd.f32 %v637, %v650
    %v652 = vpop.f32.mrf.mxu0
    %v653 = vadd.f32 %v639, %v652
    %654 = vdwg.mxu0
    %655 = vmatpush.bf16.msra.mxu0 %v474
    %656 = vmatpush.bf16.msra.mxu0 %v470
    %657 = vmatpush.bf16.msra.mxu0 %v466
    %658 = vmatpush.bf16.msra.mxu0 %v462
    %659 = vmatpush.bf16.msra.mxu0 %v458
    %660 = vmatpush.bf16.msra.mxu0 %v454
    %661 = vmatpush.bf16.msra.mxu0 %v450
    %662 = vmatpush.bf16.msra.mxu0 %v446
    %663 = vmatmul.bf16.gmra.mxu0 %v175
    %v664 = vpop.f32.mrf.mxu0
    %v665 = vadd.f32 %v246, %v664
    %v666 = vpop.f32.mrf.mxu0
    %v667 = vadd.f32 %v246, %v666
    %668 = vdwg.mxu0
    %669 = vmatpush.bf16.msra.mxu0 %v506
    %670 = vmatpush.bf16.msra.mxu0 %v502
    %671 = vmatpush.bf16.msra.mxu0 %v498
    %672 = vmatpush.bf16.msra.mxu0 %v494
    %673 = vmatpush.bf16.msra.mxu0 %v490
    %674 = vmatpush.bf16.msra.mxu0 %v486
    %675 = vmatpush.bf16.msra.mxu0 %v482
    %676 = vmatpush.bf16.msra.mxu0 %v478
    %677 = vmatmul.bf16.gmra.mxu0 %v176
    %v678 = vpop.f32.mrf.mxu0
    %v679 = vadd.f32 %v665, %v678
    %v680 = vpop.f32.mrf.mxu0
    %v681 = vadd.f32 %v667, %v680
    %682 = vdwg.mxu0
    %v683 = vmax.f32 %v595, 0.0
    %v684 = vmax.f32 %v623, 0.0
    %v685 = vmax.f32 %v651, 0.0
    %v686 = vmax.f32 %v679, 0.0
    %v687 = vmax.f32 %v597, 0.0
    %v688 = vmax.f32 %v625, 0.0
    %v689 = vmax.f32 %v653, 0.0
    %v690 = vmax.f32 %v681, 0.0
    %v691 = vpack.c.bf16 %v687, %v683
    %v692 = vpack.c.bf16 %v688, %v684
    %v693 = vpack.c.bf16 %v689, %v685
    %v694 = vpack.c.bf16 %v690, %v686
    %v695 = vld [vmem:[%s5] sm:$0xff]
    %v696 = vld [vmem:[%s5 + $0x8] sm:$0xff]
    %v697 = vld [vmem:[%s5 + $0x10] sm:$0xff]
    %v698 = vld [vmem:[%s5 + $0x18] sm:$0xff]
    %v699 = vld [vmem:[%s5 + $0x20] sm:$0xff]
    %v700 = vld [vmem:[%s5 + $0x28] sm:$0xff]
    %v701 = vld [vmem:[%s5 + $0x30] sm:$0xff]
    %v702 = vld [vmem:[%s5 + $0x38] sm:$0xff]
    %v703 = vld [vmem:[%s5 + $0x40] sm:$0xff]
    %v704 = vld [vmem:[%s5 + $0x48] sm:$0xff]
    %v705 = vld [vmem:[%s5 + $0x50] sm:$0xff]
    %v706 = vld [vmem:[%s5 + $0x58] sm:$0xff]
    %v707 = vld [vmem:[%s5 + $0x60] sm:$0xff]
    %v708 = vld [vmem:[%s5 + $0x68] sm:$0xff]
    %v709 = vld [vmem:[%s5 + $0x70] sm:$0xff]
    %v710 = vld [vmem:[%s5 + $0x78] sm:$0xff]
    %v711 = vld [vmem:[%s5 + $0x80] sm:$0xff]
    %v712 = vld [vmem:[%s5 + $0x88] sm:$0xff]
    %v713 = vld [vmem:[%s5 + $0x90] sm:$0xff]
    %v714 = vld [vmem:[%s5 + $0x98] sm:$0xff]
    %v715 = vld [vmem:[%s5 + $0xa0] sm:$0xff]
    %v716 = vld [vmem:[%s5 + $0xa8] sm:$0xff]
    %v717 = vld [vmem:[%s5 + $0xb0] sm:$0xff]
    %v718 = vld [vmem:[%s5 + $0xb8] sm:$0xff]
    %v719 = vld [vmem:[%s5 + $0xc0] sm:$0xff]
    %v720 = vld [vmem:[%s5 + $0xc8] sm:$0xff]
    %v721 = vld [vmem:[%s5 + $0xd0] sm:$0xff]
    %v722 = vld [vmem:[%s5 + $0xd8] sm:$0xff]
    %v723 = vld [vmem:[%s5 + $0xe0] sm:$0xff]
    %v724 = vld [vmem:[%s5 + $0xe8] sm:$0xff]
    %v725 = vld [vmem:[%s5 + $0xf0] sm:$0xff]
    %v726 = vld [vmem:[%s5 + $0xf8] sm:$0xff]
    %v727 = vld [vmem:[%s5 + $0x100] sm:$0xff]
    %v728 = vld [vmem:[%s5 + $0x108] sm:$0xff]
    %v729 = vld [vmem:[%s5 + $0x110] sm:$0xff]
    %v730 = vld [vmem:[%s5 + $0x118] sm:$0xff]
    %v731 = vld [vmem:[%s5 + $0x120] sm:$0xff]
    %v732 = vld [vmem:[%s5 + $0x128] sm:$0xff]
    %v733 = vld [vmem:[%s5 + $0x130] sm:$0xff]
    %v734 = vld [vmem:[%s5 + $0x138] sm:$0xff]
    %v735 = vld [vmem:[%s5 + $0x140] sm:$0xff]
    %v736 = vld [vmem:[%s5 + $0x148] sm:$0xff]
    %v737 = vld [vmem:[%s5 + $0x150] sm:$0xff]
    %v738 = vld [vmem:[%s5 + $0x158] sm:$0xff]
    %v739 = vld [vmem:[%s5 + $0x160] sm:$0xff]
    %v740 = vld [vmem:[%s5 + $0x168] sm:$0xff]
    %v741 = vld [vmem:[%s5 + $0x170] sm:$0xff]
    %v742 = vld [vmem:[%s5 + $0x178] sm:$0xff]
    %v743 = vld [vmem:[%s5 + $0x180] sm:$0xff]
    %v744 = vld [vmem:[%s5 + $0x188] sm:$0xff]
    %v745 = vld [vmem:[%s5 + $0x190] sm:$0xff]
    %v746 = vld [vmem:[%s5 + $0x198] sm:$0xff]
    %v747 = vld [vmem:[%s5 + $0x1a0] sm:$0xff]
    %v748 = vld [vmem:[%s5 + $0x1a8] sm:$0xff]
    %v749 = vld [vmem:[%s5 + $0x1b0] sm:$0xff]
    %v750 = vld [vmem:[%s5 + $0x1b8] sm:$0xff]
    %v751 = vld [vmem:[%s5 + $0x1c0] sm:$0xff]
    %v752 = vld [vmem:[%s5 + $0x1c8] sm:$0xff]
    %v753 = vld [vmem:[%s5 + $0x1d0] sm:$0xff]
    %v754 = vld [vmem:[%s5 + $0x1d8] sm:$0xff]
    %v755 = vld [vmem:[%s5 + $0x1e0] sm:$0xff]
    %v756 = vld [vmem:[%s5 + $0x1e8] sm:$0xff]
    %v757 = vld [vmem:[%s5 + $0x1f0] sm:$0xff]
    %v758 = vld [vmem:[%s5 + $0x1f8] sm:$0xff]
    %v759 = vld [vmem:[%s5 + $0x200] sm:$0xff]
    %v760 = vld [vmem:[%s5 + $0x208] sm:$0xff]
    %v761 = vld [vmem:[%s5 + $0x210] sm:$0xff]
    %v762 = vld [vmem:[%s5 + $0x218] sm:$0xff]
    %v763 = vld [vmem:[%s5 + $0x220] sm:$0xff]
    %v764 = vld [vmem:[%s5 + $0x228] sm:$0xff]
    %v765 = vld [vmem:[%s5 + $0x230] sm:$0xff]
    %v766 = vld [vmem:[%s5 + $0x238] sm:$0xff]
    %v767 = vld [vmem:[%s5 + $0x240] sm:$0xff]
    %v768 = vld [vmem:[%s5 + $0x248] sm:$0xff]
    %v769 = vld [vmem:[%s5 + $0x250] sm:$0xff]
    %v770 = vld [vmem:[%s5 + $0x258] sm:$0xff]
    %v771 = vld [vmem:[%s5 + $0x260] sm:$0xff]
    %v772 = vld [vmem:[%s5 + $0x268] sm:$0xff]
    %v773 = vld [vmem:[%s5 + $0x270] sm:$0xff]
    %v774 = vld [vmem:[%s5 + $0x278] sm:$0xff]
    %v775 = vld [vmem:[%s5 + $0x280] sm:$0xff]
    %v776 = vld [vmem:[%s5 + $0x288] sm:$0xff]
    %v777 = vld [vmem:[%s5 + $0x290] sm:$0xff]
    %v778 = vld [vmem:[%s5 + $0x298] sm:$0xff]
    %v779 = vld [vmem:[%s5 + $0x2a0] sm:$0xff]
    %v780 = vld [vmem:[%s5 + $0x2a8] sm:$0xff]
    %v781 = vld [vmem:[%s5 + $0x2b0] sm:$0xff]
    %v782 = vld [vmem:[%s5 + $0x2b8] sm:$0xff]
    %v783 = vld [vmem:[%s5 + $0x2c0] sm:$0xff]
    %v784 = vld [vmem:[%s5 + $0x2c8] sm:$0xff]
    %v785 = vld [vmem:[%s5 + $0x2d0] sm:$0xff]
    %v786 = vld [vmem:[%s5 + $0x2d8] sm:$0xff]
    %v787 = vld [vmem:[%s5 + $0x2e0] sm:$0xff]
    %v788 = vld [vmem:[%s5 + $0x2e8] sm:$0xff]
    %v789 = vld [vmem:[%s5 + $0x2f0] sm:$0xff]
    %v790 = vld [vmem:[%s5 + $0x2f8] sm:$0xff]
    %v791 = vld [vmem:[%s5 + $0x300] sm:$0xff]
    %v792 = vld [vmem:[%s5 + $0x308] sm:$0xff]
    %v793 = vld [vmem:[%s5 + $0x310] sm:$0xff]
    %v794 = vld [vmem:[%s5 + $0x318] sm:$0xff]
    %v795 = vld [vmem:[%s5 + $0x320] sm:$0xff]
    %v796 = vld [vmem:[%s5 + $0x328] sm:$0xff]
    %v797 = vld [vmem:[%s5 + $0x330] sm:$0xff]
    %v798 = vld [vmem:[%s5 + $0x338] sm:$0xff]
    %v799 = vld [vmem:[%s5 + $0x340] sm:$0xff]
    %v800 = vld [vmem:[%s5 + $0x348] sm:$0xff]
    %v801 = vld [vmem:[%s5 + $0x350] sm:$0xff]
    %v802 = vld [vmem:[%s5 + $0x358] sm:$0xff]
    %v803 = vld [vmem:[%s5 + $0x360] sm:$0xff]
    %v804 = vld [vmem:[%s5 + $0x368] sm:$0xff]
    %v805 = vld [vmem:[%s5 + $0x370] sm:$0xff]
    %v806 = vld [vmem:[%s5 + $0x378] sm:$0xff]
    %v807 = vld [vmem:[%s5 + $0x380] sm:$0xff]
    %v808 = vld [vmem:[%s5 + $0x388] sm:$0xff]
    %v809 = vld [vmem:[%s5 + $0x390] sm:$0xff]
    %v810 = vld [vmem:[%s5 + $0x398] sm:$0xff]
    %v811 = vld [vmem:[%s5 + $0x3a0] sm:$0xff]
    %v812 = vld [vmem:[%s5 + $0x3a8] sm:$0xff]
    %v813 = vld [vmem:[%s5 + $0x3b0] sm:$0xff]
    %v814 = vld [vmem:[%s5 + $0x3b8] sm:$0xff]
    %v815 = vld [vmem:[%s5 + $0x3c0] sm:$0xff]
    %v816 = vld [vmem:[%s5 + $0x3c8] sm:$0xff]
    %v817 = vld [vmem:[%s5 + $0x3d0] sm:$0xff]
    %v818 = vld [vmem:[%s5 + $0x3d8] sm:$0xff]
    %v819 = vld [vmem:[%s5 + $0x3e0] sm:$0xff]
    %v820 = vld [vmem:[%s5 + $0x3e8] sm:$0xff]
    %v821 = vld [vmem:[%s5 + $0x3f0] sm:$0xff]
    %v822 = vld [vmem:[%s5 + $0x3f8] sm:$0xff]
    %v823 = vld [vmem:[%s5 + $0x400] sm:$0xff]
    %v824 = vld [vmem:[%s5 + $0x408] sm:$0xff]
    %v825 = vld [vmem:[%s5 + $0x410] sm:$0xff]
    %v826 = vld [vmem:[%s5 + $0x418] sm:$0xff]
    %v827 = vld [vmem:[%s5 + $0x420] sm:$0xff]
    %v828 = vld [vmem:[%s5 + $0x428] sm:$0xff]
    %v829 = vld [vmem:[%s5 + $0x430] sm:$0xff]
    %v830 = vld [vmem:[%s5 + $0x438] sm:$0xff]
    %v831 = vld [vmem:[%s5 + $0x440] sm:$0xff]
    %v832 = vld [vmem:[%s5 + $0x448] sm:$0xff]
    %v833 = vld [vmem:[%s5 + $0x450] sm:$0xff]
    %v834 = vld [vmem:[%s5 + $0x458] sm:$0xff]
    %v835 = vld [vmem:[%s5 + $0x460] sm:$0xff]
    %v836 = vld [vmem:[%s5 + $0x468] sm:$0xff]
    %v837 = vld [vmem:[%s5 + $0x470] sm:$0xff]
    %v838 = vld [vmem:[%s5 + $0x478] sm:$0xff]
    %v839 = vld [vmem:[%s5 + $0x480] sm:$0xff]
    %v840 = vld [vmem:[%s5 + $0x488] sm:$0xff]
    %v841 = vld [vmem:[%s5 + $0x490] sm:$0xff]
    %v842 = vld [vmem:[%s5 + $0x498] sm:$0xff]
    %v843 = vld [vmem:[%s5 + $0x4a0] sm:$0xff]
    %v844 = vld [vmem:[%s5 + $0x4a8] sm:$0xff]
    %v845 = vld [vmem:[%s5 + $0x4b0] sm:$0xff]
    %v846 = vld [vmem:[%s5 + $0x4b8] sm:$0xff]
    %v847 = vld [vmem:[%s5 + $0x4c0] sm:$0xff]
    %v848 = vld [vmem:[%s5 + $0x4c8] sm:$0xff]
    %v849 = vld [vmem:[%s5 + $0x4d0] sm:$0xff]
    %v850 = vld [vmem:[%s5 + $0x4d8] sm:$0xff]
    %v851 = vld [vmem:[%s5 + $0x4e0] sm:$0xff]
    %v852 = vld [vmem:[%s5 + $0x4e8] sm:$0xff]
    %v853 = vld [vmem:[%s5 + $0x4f0] sm:$0xff]
    %v854 = vld [vmem:[%s5 + $0x4f8] sm:$0xff]
    %v855 = vld [vmem:[%s5 + $0x500] sm:$0xff]
    %v856 = vld [vmem:[%s5 + $0x508] sm:$0xff]
    %v857 = vld [vmem:[%s5 + $0x510] sm:$0xff]
    %v858 = vld [vmem:[%s5 + $0x518] sm:$0xff]
    %v859 = vld [vmem:[%s5 + $0x520] sm:$0xff]
    %v860 = vld [vmem:[%s5 + $0x528] sm:$0xff]
    %v861 = vld [vmem:[%s5 + $0x530] sm:$0xff]
    %v862 = vld [vmem:[%s5 + $0x538] sm:$0xff]
    %v863 = vld [vmem:[%s5 + $0x540] sm:$0xff]
    %v864 = vld [vmem:[%s5 + $0x548] sm:$0xff]
    %v865 = vld [vmem:[%s5 + $0x550] sm:$0xff]
    %v866 = vld [vmem:[%s5 + $0x558] sm:$0xff]
    %v867 = vld [vmem:[%s5 + $0x560] sm:$0xff]
    %v868 = vld [vmem:[%s5 + $0x568] sm:$0xff]
    %v869 = vld [vmem:[%s5 + $0x570] sm:$0xff]
    %v870 = vld [vmem:[%s5 + $0x578] sm:$0xff]
    %v871 = vld [vmem:[%s5 + $0x580] sm:$0xff]
    %v872 = vld [vmem:[%s5 + $0x588] sm:$0xff]
    %v873 = vld [vmem:[%s5 + $0x590] sm:$0xff]
    %v874 = vld [vmem:[%s5 + $0x598] sm:$0xff]
    %v875 = vld [vmem:[%s5 + $0x5a0] sm:$0xff]
    %v876 = vld [vmem:[%s5 + $0x5a8] sm:$0xff]
    %v877 = vld [vmem:[%s5 + $0x5b0] sm:$0xff]
    %v878 = vld [vmem:[%s5 + $0x5b8] sm:$0xff]
    %v879 = vld [vmem:[%s5 + $0x5c0] sm:$0xff]
    %v880 = vld [vmem:[%s5 + $0x5c8] sm:$0xff]
    %v881 = vld [vmem:[%s5 + $0x5d0] sm:$0xff]
    %v882 = vld [vmem:[%s5 + $0x5d8] sm:$0xff]
    %v883 = vld [vmem:[%s5 + $0x5e0] sm:$0xff]
    %v884 = vld [vmem:[%s5 + $0x5e8] sm:$0xff]
    %v885 = vld [vmem:[%s5 + $0x5f0] sm:$0xff]
    %v886 = vld [vmem:[%s5 + $0x5f8] sm:$0xff]
    %v887 = vld [vmem:[%s5 + $0x600] sm:$0xff]
    %v888 = vld [vmem:[%s5 + $0x608] sm:$0xff]
    %v889 = vld [vmem:[%s5 + $0x610] sm:$0xff]
    %v890 = vld [vmem:[%s5 + $0x618] sm:$0xff]
    %v891 = vld [vmem:[%s5 + $0x620] sm:$0xff]
    %v892 = vld [vmem:[%s5 + $0x628] sm:$0xff]
    %v893 = vld [vmem:[%s5 + $0x630] sm:$0xff]
    %v894 = vld [vmem:[%s5 + $0x638] sm:$0xff]
    %v895 = vld [vmem:[%s5 + $0x640] sm:$0xff]
    %v896 = vld [vmem:[%s5 + $0x648] sm:$0xff]
    %v897 = vld [vmem:[%s5 + $0x650] sm:$0xff]
    %v898 = vld [vmem:[%s5 + $0x658] sm:$0xff]
    %v899 = vld [vmem:[%s5 + $0x660] sm:$0xff]
    %v900 = vld [vmem:[%s5 + $0x668] sm:$0xff]
    %v901 = vld [vmem:[%s5 + $0x670] sm:$0xff]
    %v902 = vld [vmem:[%s5 + $0x678] sm:$0xff]
    %v903 = vld [vmem:[%s5 + $0x680] sm:$0xff]
    %v904 = vld [vmem:[%s5 + $0x688] sm:$0xff]
    %v905 = vld [vmem:[%s5 + $0x690] sm:$0xff]
    %v906 = vld [vmem:[%s5 + $0x698] sm:$0xff]
    %v907 = vld [vmem:[%s5 + $0x6a0] sm:$0xff]
    %v908 = vld [vmem:[%s5 + $0x6a8] sm:$0xff]
    %v909 = vld [vmem:[%s5 + $0x6b0] sm:$0xff]
    %v910 = vld [vmem:[%s5 + $0x6b8] sm:$0xff]
    %v911 = vld [vmem:[%s5 + $0x6c0] sm:$0xff]
    %v912 = vld [vmem:[%s5 + $0x6c8] sm:$0xff]
    %v913 = vld [vmem:[%s5 + $0x6d0] sm:$0xff]
    %v914 = vld [vmem:[%s5 + $0x6d8] sm:$0xff]
    %v915 = vld [vmem:[%s5 + $0x6e0] sm:$0xff]
    %v916 = vld [vmem:[%s5 + $0x6e8] sm:$0xff]
    %v917 = vld [vmem:[%s5 + $0x6f0] sm:$0xff]
    %v918 = vld [vmem:[%s5 + $0x6f8] sm:$0xff]
    %v919 = vld [vmem:[%s5 + $0x700] sm:$0xff]
    %v920 = vld [vmem:[%s5 + $0x708] sm:$0xff]
    %v921 = vld [vmem:[%s5 + $0x710] sm:$0xff]
    %v922 = vld [vmem:[%s5 + $0x718] sm:$0xff]
    %v923 = vld [vmem:[%s5 + $0x720] sm:$0xff]
    %v924 = vld [vmem:[%s5 + $0x728] sm:$0xff]
    %v925 = vld [vmem:[%s5 + $0x730] sm:$0xff]
    %v926 = vld [vmem:[%s5 + $0x738] sm:$0xff]
    %v927 = vld [vmem:[%s5 + $0x740] sm:$0xff]
    %v928 = vld [vmem:[%s5 + $0x748] sm:$0xff]
    %v929 = vld [vmem:[%s5 + $0x750] sm:$0xff]
    %v930 = vld [vmem:[%s5 + $0x758] sm:$0xff]
    %v931 = vld [vmem:[%s5 + $0x760] sm:$0xff]
    %v932 = vld [vmem:[%s5 + $0x768] sm:$0xff]
    %v933 = vld [vmem:[%s5 + $0x770] sm:$0xff]
    %v934 = vld [vmem:[%s5 + $0x778] sm:$0xff]
    %v935 = vld [vmem:[%s5 + $0x780] sm:$0xff]
    %v936 = vld [vmem:[%s5 + $0x788] sm:$0xff]
    %v937 = vld [vmem:[%s5 + $0x790] sm:$0xff]
    %v938 = vld [vmem:[%s5 + $0x798] sm:$0xff]
    %v939 = vld [vmem:[%s5 + $0x7a0] sm:$0xff]
    %v940 = vld [vmem:[%s5 + $0x7a8] sm:$0xff]
    %v941 = vld [vmem:[%s5 + $0x7b0] sm:$0xff]
    %v942 = vld [vmem:[%s5 + $0x7b8] sm:$0xff]
    %v943 = vld [vmem:[%s5 + $0x7c0] sm:$0xff]
    %v944 = vld [vmem:[%s5 + $0x7c8] sm:$0xff]
    %v945 = vld [vmem:[%s5 + $0x7d0] sm:$0xff]
    %v946 = vld [vmem:[%s5 + $0x7d8] sm:$0xff]
    %v947 = vld [vmem:[%s5 + $0x7e0] sm:$0xff]
    %v948 = vld [vmem:[%s5 + $0x7e8] sm:$0xff]
    %v949 = vld [vmem:[%s5 + $0x7f0] sm:$0xff]
    %v950 = vld [vmem:[%s5 + $0x7f8] sm:$0xff]
    %v951 = vld [vmem:[%s6] sm:$0xff]
    %v953 = vperm.slane %v951, 0
    %v954 = vperm.slane %v951, 1
    %v955 = vperm.slane %v951, 2
    %v956 = vperm.slane %v951, 3
    %v957 = vperm.slane %v951, 4
    %v958 = vperm.slane %v951, 5
    %v959 = vperm.slane %v951, 6
    %v960 = vperm.slane %v951, 7
    %v1225 = vunpack.c.l.b16 %v695
    %v1226 = vunpack.c.h.b16 %v695
    %v1227 = vunpack.c.l.b16 %v696
    %v1228 = vunpack.c.h.b16 %v696
    %v1229 = vunpack.c.l.b16 %v697
    %v1230 = vunpack.c.h.b16 %v697
    %v1231 = vunpack.c.l.b16 %v698
    %v1232 = vunpack.c.h.b16 %v698
    %v1233 = vunpack.c.l.b16 %v699
    %v1234 = vunpack.c.h.b16 %v699
    %v1235 = vunpack.c.l.b16 %v700
    %v1236 = vunpack.c.h.b16 %v700
    %v1237 = vunpack.c.l.b16 %v701
    %v1238 = vunpack.c.h.b16 %v701
    %v1239 = vunpack.c.l.b16 %v702
    %v1240 = vunpack.c.h.b16 %v702
    %v1241 = vunpack.c.l.b16 %v703
    %v1242 = vunpack.c.h.b16 %v703
    %v1243 = vunpack.c.l.b16 %v704
    %v1244 = vunpack.c.h.b16 %v704
    %v1245 = vunpack.c.l.b16 %v705
    %v1246 = vunpack.c.h.b16 %v705
    %v1247 = vunpack.c.l.b16 %v706
    %v1248 = vunpack.c.h.b16 %v706
    %v1249 = vunpack.c.l.b16 %v707
    %v1250 = vunpack.c.h.b16 %v707
    %v1251 = vunpack.c.l.b16 %v708
    %v1252 = vunpack.c.h.b16 %v708
    %v1253 = vunpack.c.l.b16 %v709
    %v1254 = vunpack.c.h.b16 %v709
    %v1255 = vunpack.c.l.b16 %v710
    %v1256 = vunpack.c.h.b16 %v710
    %v1257 = vunpack.c.l.b16 %v711
    %v1258 = vunpack.c.h.b16 %v711
    %v1259 = vunpack.c.l.b16 %v712
    %v1260 = vunpack.c.h.b16 %v712
    %v1261 = vunpack.c.l.b16 %v713
    %v1262 = vunpack.c.h.b16 %v713
    %v1263 = vunpack.c.l.b16 %v714
    %v1264 = vunpack.c.h.b16 %v714
    %v1265 = vunpack.c.l.b16 %v715
    %v1266 = vunpack.c.h.b16 %v715
    %v1267 = vunpack.c.l.b16 %v716
    %v1268 = vunpack.c.h.b16 %v716
    %v1269 = vunpack.c.l.b16 %v717
    %v1270 = vunpack.c.h.b16 %v717
    %v1271 = vunpack.c.l.b16 %v718
    %v1272 = vunpack.c.h.b16 %v718
    %v1273 = vunpack.c.l.b16 %v719
    %v1274 = vunpack.c.h.b16 %v719
    %v1275 = vunpack.c.l.b16 %v720
    %v1276 = vunpack.c.h.b16 %v720
    %v1277 = vunpack.c.l.b16 %v721
    %v1278 = vunpack.c.h.b16 %v721
    %v1279 = vunpack.c.l.b16 %v722
    %v1280 = vunpack.c.h.b16 %v722
    %v1281 = vunpack.c.l.b16 %v723
    %v1282 = vunpack.c.h.b16 %v723
    %v1283 = vunpack.c.l.b16 %v724
    %v1284 = vunpack.c.h.b16 %v724
    %v1285 = vunpack.c.l.b16 %v725
    %v1286 = vunpack.c.h.b16 %v725
    %v1287 = vunpack.c.l.b16 %v726
    %v1288 = vunpack.c.h.b16 %v726
    %v1289 = vunpack.c.l.b16 %v727
    %v1290 = vunpack.c.h.b16 %v727
    %v1291 = vunpack.c.l.b16 %v728
    %v1292 = vunpack.c.h.b16 %v728
    %v1293 = vunpack.c.l.b16 %v729
    %v1294 = vunpack.c.h.b16 %v729
    %v1295 = vunpack.c.l.b16 %v730
    %v1296 = vunpack.c.h.b16 %v730
    %v1297 = vunpack.c.l.b16 %v731
    %v1298 = vunpack.c.h.b16 %v731
    %v1299 = vunpack.c.l.b16 %v732
    %v1300 = vunpack.c.h.b16 %v732
    %v1301 = vunpack.c.l.b16 %v733
    %v1302 = vunpack.c.h.b16 %v733
    %v1303 = vunpack.c.l.b16 %v734
    %v1304 = vunpack.c.h.b16 %v734
    %v1305 = vunpack.c.l.b16 %v735
    %v1306 = vunpack.c.h.b16 %v735
    %v1307 = vunpack.c.l.b16 %v736
    %v1308 = vunpack.c.h.b16 %v736
    %v1309 = vunpack.c.l.b16 %v737
    %v1310 = vunpack.c.h.b16 %v737
    %v1311 = vunpack.c.l.b16 %v738
    %v1312 = vunpack.c.h.b16 %v738
    %v1313 = vunpack.c.l.b16 %v739
    %v1314 = vunpack.c.h.b16 %v739
    %v1315 = vunpack.c.l.b16 %v740
    %v1316 = vunpack.c.h.b16 %v740
    %v1317 = vunpack.c.l.b16 %v741
    %v1318 = vunpack.c.h.b16 %v741
    %v1319 = vunpack.c.l.b16 %v742
    %v1320 = vunpack.c.h.b16 %v742
    %v1321 = vunpack.c.l.b16 %v743
    %v1322 = vunpack.c.h.b16 %v743
    %v1323 = vunpack.c.l.b16 %v744
    %v1324 = vunpack.c.h.b16 %v744
    %v1325 = vunpack.c.l.b16 %v745
    %v1326 = vunpack.c.h.b16 %v745
    %v1327 = vunpack.c.l.b16 %v746
    %v1328 = vunpack.c.h.b16 %v746
    %v1329 = vunpack.c.l.b16 %v747
    %v1330 = vunpack.c.h.b16 %v747
    %v1331 = vunpack.c.l.b16 %v748
    %v1332 = vunpack.c.h.b16 %v748
    %v1333 = vunpack.c.l.b16 %v749
    %v1334 = vunpack.c.h.b16 %v749
    %v1335 = vunpack.c.l.b16 %v750
    %v1336 = vunpack.c.h.b16 %v750
    %v1337 = vunpack.c.l.b16 %v751
    %v1338 = vunpack.c.h.b16 %v751
    %v1339 = vunpack.c.l.b16 %v752
    %v1340 = vunpack.c.h.b16 %v752
    %v1341 = vunpack.c.l.b16 %v753
    %v1342 = vunpack.c.h.b16 %v753
    %v1343 = vunpack.c.l.b16 %v754
    %v1344 = vunpack.c.h.b16 %v754
    %v1345 = vunpack.c.l.b16 %v755
    %v1346 = vunpack.c.h.b16 %v755
    %v1347 = vunpack.c.l.b16 %v756
    %v1348 = vunpack.c.h.b16 %v756
    %v1349 = vunpack.c.l.b16 %v757
    %v1350 = vunpack.c.h.b16 %v757
    %v1351 = vunpack.c.l.b16 %v758
    %v1352 = vunpack.c.h.b16 %v758
    %v1353 = vunpack.c.l.b16 %v759
    %v1354 = vunpack.c.h.b16 %v759
    %v1355 = vunpack.c.l.b16 %v760
    %v1356 = vunpack.c.h.b16 %v760
    %v1357 = vunpack.c.l.b16 %v761
    %v1358 = vunpack.c.h.b16 %v761
    %v1359 = vunpack.c.l.b16 %v762
    %v1360 = vunpack.c.h.b16 %v762
    %v1361 = vunpack.c.l.b16 %v763
    %v1362 = vunpack.c.h.b16 %v763
    %v1363 = vunpack.c.l.b16 %v764
    %v1364 = vunpack.c.h.b16 %v764
    %v1365 = vunpack.c.l.b16 %v765
    %v1366 = vunpack.c.h.b16 %v765
    %v1367 = vunpack.c.l.b16 %v766
    %v1368 = vunpack.c.h.b16 %v766
    %v1369 = vunpack.c.l.b16 %v767
    %v1370 = vunpack.c.h.b16 %v767
    %v1371 = vunpack.c.l.b16 %v768
    %v1372 = vunpack.c.h.b16 %v768
    %v1373 = vunpack.c.l.b16 %v769
    %v1374 = vunpack.c.h.b16 %v769
    %v1375 = vunpack.c.l.b16 %v770
    %v1376 = vunpack.c.h.b16 %v770
    %v1377 = vunpack.c.l.b16 %v771
    %v1378 = vunpack.c.h.b16 %v771
    %v1379 = vunpack.c.l.b16 %v772
    %v1380 = vunpack.c.h.b16 %v772
    %v1381 = vunpack.c.l.b16 %v773
    %v1382 = vunpack.c.h.b16 %v773
    %v1383 = vunpack.c.l.b16 %v774
    %v1384 = vunpack.c.h.b16 %v774
    %v1385 = vunpack.c.l.b16 %v775
    %v1386 = vunpack.c.h.b16 %v775
    %v1387 = vunpack.c.l.b16 %v776
    %v1388 = vunpack.c.h.b16 %v776
    %v1389 = vunpack.c.l.b16 %v777
    %v1390 = vunpack.c.h.b16 %v777
    %v1391 = vunpack.c.l.b16 %v778
    %v1392 = vunpack.c.h.b16 %v778
    %v1393 = vunpack.c.l.b16 %v779
    %v1394 = vunpack.c.h.b16 %v779
    %v1395 = vunpack.c.l.b16 %v780
    %v1396 = vunpack.c.h.b16 %v780
    %v1397 = vunpack.c.l.b16 %v781
    %v1398 = vunpack.c.h.b16 %v781
    %v1399 = vunpack.c.l.b16 %v782
    %v1400 = vunpack.c.h.b16 %v782
    %v1401 = vunpack.c.l.b16 %v783
    %v1402 = vunpack.c.h.b16 %v783
    %v1403 = vunpack.c.l.b16 %v784
    %v1404 = vunpack.c.h.b16 %v784
    %v1405 = vunpack.c.l.b16 %v785
    %v1406 = vunpack.c.h.b16 %v785
    %v1407 = vunpack.c.l.b16 %v786
    %v1408 = vunpack.c.h.b16 %v786
    %v1409 = vunpack.c.l.b16 %v787
    %v1410 = vunpack.c.h.b16 %v787
    %v1411 = vunpack.c.l.b16 %v788
    %v1412 = vunpack.c.h.b16 %v788
    %v1413 = vunpack.c.l.b16 %v789
    %v1414 = vunpack.c.h.b16 %v789
    %v1415 = vunpack.c.l.b16 %v790
    %v1416 = vunpack.c.h.b16 %v790
    %v1417 = vunpack.c.l.b16 %v791
    %v1418 = vunpack.c.h.b16 %v791
    %v1419 = vunpack.c.l.b16 %v792
    %v1420 = vunpack.c.h.b16 %v792
    %v1421 = vunpack.c.l.b16 %v793
    %v1422 = vunpack.c.h.b16 %v793
    %v1423 = vunpack.c.l.b16 %v794
    %v1424 = vunpack.c.h.b16 %v794
    %v1425 = vunpack.c.l.b16 %v795
    %v1426 = vunpack.c.h.b16 %v795
    %v1427 = vunpack.c.l.b16 %v796
    %v1428 = vunpack.c.h.b16 %v796
    %v1429 = vunpack.c.l.b16 %v797
    %v1430 = vunpack.c.h.b16 %v797
    %v1431 = vunpack.c.l.b16 %v798
    %v1432 = vunpack.c.h.b16 %v798
    %v1433 = vunpack.c.l.b16 %v799
    %v1434 = vunpack.c.h.b16 %v799
    %v1435 = vunpack.c.l.b16 %v800
    %v1436 = vunpack.c.h.b16 %v800
    %v1437 = vunpack.c.l.b16 %v801
    %v1438 = vunpack.c.h.b16 %v801
    %v1439 = vunpack.c.l.b16 %v802
    %v1440 = vunpack.c.h.b16 %v802
    %v1441 = vunpack.c.l.b16 %v803
    %v1442 = vunpack.c.h.b16 %v803
    %v1443 = vunpack.c.l.b16 %v804
    %v1444 = vunpack.c.h.b16 %v804
    %v1445 = vunpack.c.l.b16 %v805
    %v1446 = vunpack.c.h.b16 %v805
    %v1447 = vunpack.c.l.b16 %v806
    %v1448 = vunpack.c.h.b16 %v806
    %v1449 = vunpack.c.l.b16 %v807
    %v1450 = vunpack.c.h.b16 %v807
    %v1451 = vunpack.c.l.b16 %v808
    %v1452 = vunpack.c.h.b16 %v808
    %v1453 = vunpack.c.l.b16 %v809
    %v1454 = vunpack.c.h.b16 %v809
    %v1455 = vunpack.c.l.b16 %v810
    %v1456 = vunpack.c.h.b16 %v810
    %v1457 = vunpack.c.l.b16 %v811
    %v1458 = vunpack.c.h.b16 %v811
    %v1459 = vunpack.c.l.b16 %v812
    %v1460 = vunpack.c.h.b16 %v812
    %v1461 = vunpack.c.l.b16 %v813
    %v1462 = vunpack.c.h.b16 %v813
    %v1463 = vunpack.c.l.b16 %v814
    %v1464 = vunpack.c.h.b16 %v814
    %v1465 = vunpack.c.l.b16 %v815
    %v1466 = vunpack.c.h.b16 %v815
    %v1467 = vunpack.c.l.b16 %v816
    %v1468 = vunpack.c.h.b16 %v816
    %v1469 = vunpack.c.l.b16 %v817
    %v1470 = vunpack.c.h.b16 %v817
    %v1471 = vunpack.c.l.b16 %v818
    %v1472 = vunpack.c.h.b16 %v818
    %v1473 = vunpack.c.l.b16 %v819
    %v1474 = vunpack.c.h.b16 %v819
    %v1475 = vunpack.c.l.b16 %v820
    %v1476 = vunpack.c.h.b16 %v820
    %v1477 = vunpack.c.l.b16 %v821
    %v1478 = vunpack.c.h.b16 %v821
    %v1479 = vunpack.c.l.b16 %v822
    %v1480 = vunpack.c.h.b16 %v822
    %v1481 = vunpack.c.l.b16 %v823
    %v1482 = vunpack.c.h.b16 %v823
    %v1483 = vunpack.c.l.b16 %v824
    %v1484 = vunpack.c.h.b16 %v824
    %v1485 = vunpack.c.l.b16 %v825
    %v1486 = vunpack.c.h.b16 %v825
    %v1487 = vunpack.c.l.b16 %v826
    %v1488 = vunpack.c.h.b16 %v826
    %v1489 = vunpack.c.l.b16 %v827
    %v1490 = vunpack.c.h.b16 %v827
    %v1491 = vunpack.c.l.b16 %v828
    %v1492 = vunpack.c.h.b16 %v828
    %v1493 = vunpack.c.l.b16 %v829
    %v1494 = vunpack.c.h.b16 %v829
    %v1495 = vunpack.c.l.b16 %v830
    %v1496 = vunpack.c.h.b16 %v830
    %v1497 = vunpack.c.l.b16 %v831
    %v1498 = vunpack.c.h.b16 %v831
    %v1499 = vunpack.c.l.b16 %v832
    %v1500 = vunpack.c.h.b16 %v832
    %v1501 = vunpack.c.l.b16 %v833
    %v1502 = vunpack.c.h.b16 %v833
    %v1503 = vunpack.c.l.b16 %v834
    %v1504 = vunpack.c.h.b16 %v834
    %v1505 = vunpack.c.l.b16 %v835
    %v1506 = vunpack.c.h.b16 %v835
    %v1507 = vunpack.c.l.b16 %v836
    %v1508 = vunpack.c.h.b16 %v836
    %v1509 = vunpack.c.l.b16 %v837
    %v1510 = vunpack.c.h.b16 %v837
    %v1511 = vunpack.c.l.b16 %v838
    %v1512 = vunpack.c.h.b16 %v838
    %v1513 = vunpack.c.l.b16 %v839
    %v1514 = vunpack.c.h.b16 %v839
    %v1515 = vunpack.c.l.b16 %v840
    %v1516 = vunpack.c.h.b16 %v840
    %v1517 = vunpack.c.l.b16 %v841
    %v1518 = vunpack.c.h.b16 %v841
    %v1519 = vunpack.c.l.b16 %v842
    %v1520 = vunpack.c.h.b16 %v842
    %v1521 = vunpack.c.l.b16 %v843
    %v1522 = vunpack.c.h.b16 %v843
    %v1523 = vunpack.c.l.b16 %v844
    %v1524 = vunpack.c.h.b16 %v844
    %v1525 = vunpack.c.l.b16 %v845
    %v1526 = vunpack.c.h.b16 %v845
    %v1527 = vunpack.c.l.b16 %v846
    %v1528 = vunpack.c.h.b16 %v846
    %v1529 = vunpack.c.l.b16 %v847
    %v1530 = vunpack.c.h.b16 %v847
    %v1531 = vunpack.c.l.b16 %v848
    %v1532 = vunpack.c.h.b16 %v848
    %v1533 = vunpack.c.l.b16 %v849
    %v1534 = vunpack.c.h.b16 %v849
    %v1535 = vunpack.c.l.b16 %v850
    %v1536 = vunpack.c.h.b16 %v850
    %v1537 = vunpack.c.l.b16 %v851
    %v1538 = vunpack.c.h.b16 %v851
    %v1539 = vunpack.c.l.b16 %v852
    %v1540 = vunpack.c.h.b16 %v852
    %v1541 = vunpack.c.l.b16 %v853
    %v1542 = vunpack.c.h.b16 %v853
    %v1543 = vunpack.c.l.b16 %v854
    %v1544 = vunpack.c.h.b16 %v854
    %v1545 = vunpack.c.l.b16 %v855
    %v1546 = vunpack.c.h.b16 %v855
    %v1547 = vunpack.c.l.b16 %v856
    %v1548 = vunpack.c.h.b16 %v856
    %v1549 = vunpack.c.l.b16 %v857
    %v1550 = vunpack.c.h.b16 %v857
    %v1551 = vunpack.c.l.b16 %v858
    %v1552 = vunpack.c.h.b16 %v858
    %v1553 = vunpack.c.l.b16 %v859
    %v1554 = vunpack.c.h.b16 %v859
    %v1555 = vunpack.c.l.b16 %v860
    %v1556 = vunpack.c.h.b16 %v860
    %v1557 = vunpack.c.l.b16 %v861
    %v1558 = vunpack.c.h.b16 %v861
    %v1559 = vunpack.c.l.b16 %v862
    %v1560 = vunpack.c.h.b16 %v862
    %v1561 = vunpack.c.l.b16 %v863
    %v1562 = vunpack.c.h.b16 %v863
    %v1563 = vunpack.c.l.b16 %v864
    %v1564 = vunpack.c.h.b16 %v864
    %v1565 = vunpack.c.l.b16 %v865
    %v1566 = vunpack.c.h.b16 %v865
    %v1567 = vunpack.c.l.b16 %v866
    %v1568 = vunpack.c.h.b16 %v866
    %v1569 = vunpack.c.l.b16 %v867
    %v1570 = vunpack.c.h.b16 %v867
    %v1571 = vunpack.c.l.b16 %v868
    %v1572 = vunpack.c.h.b16 %v868
    %v1573 = vunpack.c.l.b16 %v869
    %v1574 = vunpack.c.h.b16 %v869
    %v1575 = vunpack.c.l.b16 %v870
    %v1576 = vunpack.c.h.b16 %v870
    %v1577 = vunpack.c.l.b16 %v871
    %v1578 = vunpack.c.h.b16 %v871
    %v1579 = vunpack.c.l.b16 %v872
    %v1580 = vunpack.c.h.b16 %v872
    %v1581 = vunpack.c.l.b16 %v873
    %v1582 = vunpack.c.h.b16 %v873
    %v1583 = vunpack.c.l.b16 %v874
    %v1584 = vunpack.c.h.b16 %v874
    %v1585 = vunpack.c.l.b16 %v875
    %v1586 = vunpack.c.h.b16 %v875
    %v1587 = vunpack.c.l.b16 %v876
    %v1588 = vunpack.c.h.b16 %v876
    %v1589 = vunpack.c.l.b16 %v877
    %v1590 = vunpack.c.h.b16 %v877
    %v1591 = vunpack.c.l.b16 %v878
    %v1592 = vunpack.c.h.b16 %v878
    %v1593 = vunpack.c.l.b16 %v879
    %v1594 = vunpack.c.h.b16 %v879
    %v1595 = vunpack.c.l.b16 %v880
    %v1596 = vunpack.c.h.b16 %v880
    %v1597 = vunpack.c.l.b16 %v881
    %v1598 = vunpack.c.h.b16 %v881
    %v1599 = vunpack.c.l.b16 %v882
    %v1600 = vunpack.c.h.b16 %v882
    %v1601 = vunpack.c.l.b16 %v883
    %v1602 = vunpack.c.h.b16 %v883
    %v1603 = vunpack.c.l.b16 %v884
    %v1604 = vunpack.c.h.b16 %v884
    %v1605 = vunpack.c.l.b16 %v885
    %v1606 = vunpack.c.h.b16 %v885
    %v1607 = vunpack.c.l.b16 %v886
    %v1608 = vunpack.c.h.b16 %v886
    %v1609 = vunpack.c.l.b16 %v887
    %v1610 = vunpack.c.h.b16 %v887
    %v1611 = vunpack.c.l.b16 %v888
    %v1612 = vunpack.c.h.b16 %v888
    %v1613 = vunpack.c.l.b16 %v889
    %v1614 = vunpack.c.h.b16 %v889
    %v1615 = vunpack.c.l.b16 %v890
    %v1616 = vunpack.c.h.b16 %v890
    %v1617 = vunpack.c.l.b16 %v891
    %v1618 = vunpack.c.h.b16 %v891
    %v1619 = vunpack.c.l.b16 %v892
    %v1620 = vunpack.c.h.b16 %v892
    %v1621 = vunpack.c.l.b16 %v893
    %v1622 = vunpack.c.h.b16 %v893
    %v1623 = vunpack.c.l.b16 %v894
    %v1624 = vunpack.c.h.b16 %v894
    %v1625 = vunpack.c.l.b16 %v895
    %v1626 = vunpack.c.h.b16 %v895
    %v1627 = vunpack.c.l.b16 %v896
    %v1628 = vunpack.c.h.b16 %v896
    %v1629 = vunpack.c.l.b16 %v897
    %v1630 = vunpack.c.h.b16 %v897
    %v1631 = vunpack.c.l.b16 %v898
    %v1632 = vunpack.c.h.b16 %v898
    %v1633 = vunpack.c.l.b16 %v899
    %v1634 = vunpack.c.h.b16 %v899
    %v1635 = vunpack.c.l.b16 %v900
    %v1636 = vunpack.c.h.b16 %v900
    %v1637 = vunpack.c.l.b16 %v901
    %v1638 = vunpack.c.h.b16 %v901
    %v1639 = vunpack.c.l.b16 %v902
    %v1640 = vunpack.c.h.b16 %v902
    %v1641 = vunpack.c.l.b16 %v903
    %v1642 = vunpack.c.h.b16 %v903
    %v1643 = vunpack.c.l.b16 %v904
    %v1644 = vunpack.c.h.b16 %v904
    %v1645 = vunpack.c.l.b16 %v905
    %v1646 = vunpack.c.h.b16 %v905
    %v1647 = vunpack.c.l.b16 %v906
    %v1648 = vunpack.c.h.b16 %v906
    %v1649 = vunpack.c.l.b16 %v907
    %v1650 = vunpack.c.h.b16 %v907
    %v1651 = vunpack.c.l.b16 %v908
    %v1652 = vunpack.c.h.b16 %v908
    %v1653 = vunpack.c.l.b16 %v909
    %v1654 = vunpack.c.h.b16 %v909
    %v1655 = vunpack.c.l.b16 %v910
    %v1656 = vunpack.c.h.b16 %v910
    %v1657 = vunpack.c.l.b16 %v911
    %v1658 = vunpack.c.h.b16 %v911
    %v1659 = vunpack.c.l.b16 %v912
    %v1660 = vunpack.c.h.b16 %v912
    %v1661 = vunpack.c.l.b16 %v913
    %v1662 = vunpack.c.h.b16 %v913
    %v1663 = vunpack.c.l.b16 %v914
    %v1664 = vunpack.c.h.b16 %v914
    %v1665 = vunpack.c.l.b16 %v915
    %v1666 = vunpack.c.h.b16 %v915
    %v1667 = vunpack.c.l.b16 %v916
    %v1668 = vunpack.c.h.b16 %v916
    %v1669 = vunpack.c.l.b16 %v917
    %v1670 = vunpack.c.h.b16 %v917
    %v1671 = vunpack.c.l.b16 %v918
    %v1672 = vunpack.c.h.b16 %v918
    %v1673 = vunpack.c.l.b16 %v919
    %v1674 = vunpack.c.h.b16 %v919
    %v1675 = vunpack.c.l.b16 %v920
    %v1676 = vunpack.c.h.b16 %v920
    %v1677 = vunpack.c.l.b16 %v921
    %v1678 = vunpack.c.h.b16 %v921
    %v1679 = vunpack.c.l.b16 %v922
    %v1680 = vunpack.c.h.b16 %v922
    %v1681 = vunpack.c.l.b16 %v923
    %v1682 = vunpack.c.h.b16 %v923
    %v1683 = vunpack.c.l.b16 %v924
    %v1684 = vunpack.c.h.b16 %v924
    %v1685 = vunpack.c.l.b16 %v925
    %v1686 = vunpack.c.h.b16 %v925
    %v1687 = vunpack.c.l.b16 %v926
    %v1688 = vunpack.c.h.b16 %v926
    %v1689 = vunpack.c.l.b16 %v927
    %v1690 = vunpack.c.h.b16 %v927
    %v1691 = vunpack.c.l.b16 %v928
    %v1692 = vunpack.c.h.b16 %v928
    %v1693 = vunpack.c.l.b16 %v929
    %v1694 = vunpack.c.h.b16 %v929
    %v1695 = vunpack.c.l.b16 %v930
    %v1696 = vunpack.c.h.b16 %v930
    %v1697 = vunpack.c.l.b16 %v931
    %v1698 = vunpack.c.h.b16 %v931
    %v1699 = vunpack.c.l.b16 %v932
    %v1700 = vunpack.c.h.b16 %v932
    %v1701 = vunpack.c.l.b16 %v933
    %v1702 = vunpack.c.h.b16 %v933
    %v1703 = vunpack.c.l.b16 %v934
    %v1704 = vunpack.c.h.b16 %v934
    %v1705 = vunpack.c.l.b16 %v935
    %v1706 = vunpack.c.h.b16 %v935
    %v1707 = vunpack.c.l.b16 %v936
    %v1708 = vunpack.c.h.b16 %v936
    %v1709 = vunpack.c.l.b16 %v937
    %v1710 = vunpack.c.h.b16 %v937
    %v1711 = vunpack.c.l.b16 %v938
    %v1712 = vunpack.c.h.b16 %v938
    %v1713 = vunpack.c.l.b16 %v939
    %v1714 = vunpack.c.h.b16 %v939
    %v1715 = vunpack.c.l.b16 %v940
    %v1716 = vunpack.c.h.b16 %v940
    %v1717 = vunpack.c.l.b16 %v941
    %v1718 = vunpack.c.h.b16 %v941
    %v1719 = vunpack.c.l.b16 %v942
    %v1720 = vunpack.c.h.b16 %v942
    %v1721 = vunpack.c.l.b16 %v943
    %v1722 = vunpack.c.h.b16 %v943
    %v1723 = vunpack.c.l.b16 %v944
    %v1724 = vunpack.c.h.b16 %v944
    %v1725 = vunpack.c.l.b16 %v945
    %v1726 = vunpack.c.h.b16 %v945
    %v1727 = vunpack.c.l.b16 %v946
    %v1728 = vunpack.c.h.b16 %v946
    %v1729 = vunpack.c.l.b16 %v947
    %v1730 = vunpack.c.h.b16 %v947
    %v1731 = vunpack.c.l.b16 %v948
    %v1732 = vunpack.c.h.b16 %v948
    %v1733 = vunpack.c.l.b16 %v949
    %v1734 = vunpack.c.h.b16 %v949
    %v1735 = vunpack.c.l.b16 %v950
    %v1736 = vunpack.c.h.b16 %v950
    %v1737 = vpack.c.b16 %v1233, %v1225
    %v1738 = vpack.c.b16 %v1234, %v1226
    %v1739 = vpack.c.b16 %v1235, %v1227
    %v1740 = vpack.c.b16 %v1236, %v1228
    %v1741 = vpack.c.b16 %v1237, %v1229
    %v1742 = vpack.c.b16 %v1238, %v1230
    %v1743 = vpack.c.b16 %v1239, %v1231
    %v1744 = vpack.c.b16 %v1240, %v1232
    %v1745 = vpack.c.b16 %v1249, %v1241
    %v1746 = vpack.c.b16 %v1250, %v1242
    %v1747 = vpack.c.b16 %v1251, %v1243
    %v1748 = vpack.c.b16 %v1252, %v1244
    %v1749 = vpack.c.b16 %v1253, %v1245
    %v1750 = vpack.c.b16 %v1254, %v1246
    %v1751 = vpack.c.b16 %v1255, %v1247
    %v1752 = vpack.c.b16 %v1256, %v1248
    %v1753 = vpack.c.b16 %v1265, %v1257
    %v1754 = vpack.c.b16 %v1266, %v1258
    %v1755 = vpack.c.b16 %v1267, %v1259
    %v1756 = vpack.c.b16 %v1268, %v1260
    %v1757 = vpack.c.b16 %v1269, %v1261
    %v1758 = vpack.c.b16 %v1270, %v1262
    %v1759 = vpack.c.b16 %v1271, %v1263
    %v1760 = vpack.c.b16 %v1272, %v1264
    %v1761 = vpack.c.b16 %v1281, %v1273
    %v1762 = vpack.c.b16 %v1282, %v1274
    %v1763 = vpack.c.b16 %v1283, %v1275
    %v1764 = vpack.c.b16 %v1284, %v1276
    %v1765 = vpack.c.b16 %v1285, %v1277
    %v1766 = vpack.c.b16 %v1286, %v1278
    %v1767 = vpack.c.b16 %v1287, %v1279
    %v1768 = vpack.c.b16 %v1288, %v1280
    %v1769 = vpack.c.b16 %v1297, %v1289
    %v1770 = vpack.c.b16 %v1298, %v1290
    %v1771 = vpack.c.b16 %v1299, %v1291
    %v1772 = vpack.c.b16 %v1300, %v1292
    %v1773 = vpack.c.b16 %v1301, %v1293
    %v1774 = vpack.c.b16 %v1302, %v1294
    %v1775 = vpack.c.b16 %v1303, %v1295
    %v1776 = vpack.c.b16 %v1304, %v1296
    %v1777 = vpack.c.b16 %v1313, %v1305
    %v1778 = vpack.c.b16 %v1314, %v1306
    %v1779 = vpack.c.b16 %v1315, %v1307
    %v1780 = vpack.c.b16 %v1316, %v1308
    %v1781 = vpack.c.b16 %v1317, %v1309
    %v1782 = vpack.c.b16 %v1318, %v1310
    %v1783 = vpack.c.b16 %v1319, %v1311
    %v1784 = vpack.c.b16 %v1320, %v1312
    %v1785 = vpack.c.b16 %v1329, %v1321
    %v1786 = vpack.c.b16 %v1330, %v1322
    %v1787 = vpack.c.b16 %v1331, %v1323
    %v1788 = vpack.c.b16 %v1332, %v1324
    %v1789 = vpack.c.b16 %v1333, %v1325
    %v1790 = vpack.c.b16 %v1334, %v1326
    %v1791 = vpack.c.b16 %v1335, %v1327
    %v1792 = vpack.c.b16 %v1336, %v1328
    %v1793 = vpack.c.b16 %v1345, %v1337
    %v1794 = vpack.c.b16 %v1346, %v1338
    %v1795 = vpack.c.b16 %v1347, %v1339
    %v1796 = vpack.c.b16 %v1348, %v1340
    %v1797 = vpack.c.b16 %v1349, %v1341
    %v1798 = vpack.c.b16 %v1350, %v1342
    %v1799 = vpack.c.b16 %v1351, %v1343
    %v1800 = vpack.c.b16 %v1352, %v1344
    %v1801 = vpack.c.b16 %v1361, %v1353
    %v1802 = vpack.c.b16 %v1362, %v1354
    %v1803 = vpack.c.b16 %v1363, %v1355
    %v1804 = vpack.c.b16 %v1364, %v1356
    %v1805 = vpack.c.b16 %v1365, %v1357
    %v1806 = vpack.c.b16 %v1366, %v1358
    %v1807 = vpack.c.b16 %v1367, %v1359
    %v1808 = vpack.c.b16 %v1368, %v1360
    %v1809 = vpack.c.b16 %v1377, %v1369
    %v1810 = vpack.c.b16 %v1378, %v1370
    %v1811 = vpack.c.b16 %v1379, %v1371
    %v1812 = vpack.c.b16 %v1380, %v1372
    %v1813 = vpack.c.b16 %v1381, %v1373
    %v1814 = vpack.c.b16 %v1382, %v1374
    %v1815 = vpack.c.b16 %v1383, %v1375
    %v1816 = vpack.c.b16 %v1384, %v1376
    %v1817 = vpack.c.b16 %v1393, %v1385
    %v1818 = vpack.c.b16 %v1394, %v1386
    %v1819 = vpack.c.b16 %v1395, %v1387
    %v1820 = vpack.c.b16 %v1396, %v1388
    %v1821 = vpack.c.b16 %v1397, %v1389
    %v1822 = vpack.c.b16 %v1398, %v1390
    %v1823 = vpack.c.b16 %v1399, %v1391
    %v1824 = vpack.c.b16 %v1400, %v1392
    %v1825 = vpack.c.b16 %v1409, %v1401
    %v1826 = vpack.c.b16 %v1410, %v1402
    %v1827 = vpack.c.b16 %v1411, %v1403
    %v1828 = vpack.c.b16 %v1412, %v1404
    %v1829 = vpack.c.b16 %v1413, %v1405
    %v1830 = vpack.c.b16 %v1414, %v1406
    %v1831 = vpack.c.b16 %v1415, %v1407
    %v1832 = vpack.c.b16 %v1416, %v1408
    %v1833 = vpack.c.b16 %v1425, %v1417
    %v1834 = vpack.c.b16 %v1426, %v1418
    %v1835 = vpack.c.b16 %v1427, %v1419
    %v1836 = vpack.c.b16 %v1428, %v1420
    %v1837 = vpack.c.b16 %v1429, %v1421
    %v1838 = vpack.c.b16 %v1430, %v1422
    %v1839 = vpack.c.b16 %v1431, %v1423
    %v1840 = vpack.c.b16 %v1432, %v1424
    %v1841 = vpack.c.b16 %v1441, %v1433
    %v1842 = vpack.c.b16 %v1442, %v1434
    %v1843 = vpack.c.b16 %v1443, %v1435
    %v1844 = vpack.c.b16 %v1444, %v1436
    %v1845 = vpack.c.b16 %v1445, %v1437
    %v1846 = vpack.c.b16 %v1446, %v1438
    %v1847 = vpack.c.b16 %v1447, %v1439
    %v1848 = vpack.c.b16 %v1448, %v1440
    %v1849 = vpack.c.b16 %v1457, %v1449
    %v1850 = vpack.c.b16 %v1458, %v1450
    %v1851 = vpack.c.b16 %v1459, %v1451
    %v1852 = vpack.c.b16 %v1460, %v1452
    %v1853 = vpack.c.b16 %v1461, %v1453
    %v1854 = vpack.c.b16 %v1462, %v1454
    %v1855 = vpack.c.b16 %v1463, %v1455
    %v1856 = vpack.c.b16 %v1464, %v1456
    %v1857 = vpack.c.b16 %v1473, %v1465
    %v1858 = vpack.c.b16 %v1474, %v1466
    %v1859 = vpack.c.b16 %v1475, %v1467
    %v1860 = vpack.c.b16 %v1476, %v1468
    %v1861 = vpack.c.b16 %v1477, %v1469
    %v1862 = vpack.c.b16 %v1478, %v1470
    %v1863 = vpack.c.b16 %v1479, %v1471
    %v1864 = vpack.c.b16 %v1480, %v1472
    %v1865 = vpack.c.b16 %v1489, %v1481
    %v1866 = vpack.c.b16 %v1490, %v1482
    %v1867 = vpack.c.b16 %v1491, %v1483
    %v1868 = vpack.c.b16 %v1492, %v1484
    %v1869 = vpack.c.b16 %v1493, %v1485
    %v1870 = vpack.c.b16 %v1494, %v1486
    %v1871 = vpack.c.b16 %v1495, %v1487
    %v1872 = vpack.c.b16 %v1496, %v1488
    %v1873 = vpack.c.b16 %v1505, %v1497
    %v1874 = vpack.c.b16 %v1506, %v1498
    %v1875 = vpack.c.b16 %v1507, %v1499
    %v1876 = vpack.c.b16 %v1508, %v1500
    %v1877 = vpack.c.b16 %v1509, %v1501
    %v1878 = vpack.c.b16 %v1510, %v1502
    %v1879 = vpack.c.b16 %v1511, %v1503
    %v1880 = vpack.c.b16 %v1512, %v1504
    %v1881 = vpack.c.b16 %v1521, %v1513
    %v1882 = vpack.c.b16 %v1522, %v1514
    %v1883 = vpack.c.b16 %v1523, %v1515
    %v1884 = vpack.c.b16 %v1524, %v1516
    %v1885 = vpack.c.b16 %v1525, %v1517
    %v1886 = vpack.c.b16 %v1526, %v1518
    %v1887 = vpack.c.b16 %v1527, %v1519
    %v1888 = vpack.c.b16 %v1528, %v1520
    %v1889 = vpack.c.b16 %v1537, %v1529
    %v1890 = vpack.c.b16 %v1538, %v1530
    %v1891 = vpack.c.b16 %v1539, %v1531
    %v1892 = vpack.c.b16 %v1540, %v1532
    %v1893 = vpack.c.b16 %v1541, %v1533
    %v1894 = vpack.c.b16 %v1542, %v1534
    %v1895 = vpack.c.b16 %v1543, %v1535
    %v1896 = vpack.c.b16 %v1544, %v1536
    %v1897 = vpack.c.b16 %v1553, %v1545
    %v1898 = vpack.c.b16 %v1554, %v1546
    %v1899 = vpack.c.b16 %v1555, %v1547
    %v1900 = vpack.c.b16 %v1556, %v1548
    %v1901 = vpack.c.b16 %v1557, %v1549
    %v1902 = vpack.c.b16 %v1558, %v1550
    %v1903 = vpack.c.b16 %v1559, %v1551
    %v1904 = vpack.c.b16 %v1560, %v1552
    %v1905 = vpack.c.b16 %v1569, %v1561
    %v1906 = vpack.c.b16 %v1570, %v1562
    %v1907 = vpack.c.b16 %v1571, %v1563
    %v1908 = vpack.c.b16 %v1572, %v1564
    %v1909 = vpack.c.b16 %v1573, %v1565
    %v1910 = vpack.c.b16 %v1574, %v1566
    %v1911 = vpack.c.b16 %v1575, %v1567
    %v1912 = vpack.c.b16 %v1576, %v1568
    %v1913 = vpack.c.b16 %v1585, %v1577
    %v1914 = vpack.c.b16 %v1586, %v1578
    %v1915 = vpack.c.b16 %v1587, %v1579
    %v1916 = vpack.c.b16 %v1588, %v1580
    %v1917 = vpack.c.b16 %v1589, %v1581
    %v1918 = vpack.c.b16 %v1590, %v1582
    %v1919 = vpack.c.b16 %v1591, %v1583
    %v1920 = vpack.c.b16 %v1592, %v1584
    %v1921 = vpack.c.b16 %v1601, %v1593
    %v1922 = vpack.c.b16 %v1602, %v1594
    %v1923 = vpack.c.b16 %v1603, %v1595
    %v1924 = vpack.c.b16 %v1604, %v1596
    %v1925 = vpack.c.b16 %v1605, %v1597
    %v1926 = vpack.c.b16 %v1606, %v1598
    %v1927 = vpack.c.b16 %v1607, %v1599
    %v1928 = vpack.c.b16 %v1608, %v1600
    %v1929 = vpack.c.b16 %v1617, %v1609
    %v1930 = vpack.c.b16 %v1618, %v1610
    %v1931 = vpack.c.b16 %v1619, %v1611
    %v1932 = vpack.c.b16 %v1620, %v1612
    %v1933 = vpack.c.b16 %v1621, %v1613
    %v1934 = vpack.c.b16 %v1622, %v1614
    %v1935 = vpack.c.b16 %v1623, %v1615
    %v1936 = vpack.c.b16 %v1624, %v1616
    %v1937 = vpack.c.b16 %v1633, %v1625
    %v1938 = vpack.c.b16 %v1634, %v1626
    %v1939 = vpack.c.b16 %v1635, %v1627
    %v1940 = vpack.c.b16 %v1636, %v1628
    %v1941 = vpack.c.b16 %v1637, %v1629
    %v1942 = vpack.c.b16 %v1638, %v1630
    %v1943 = vpack.c.b16 %v1639, %v1631
    %v1944 = vpack.c.b16 %v1640, %v1632
    %v1945 = vpack.c.b16 %v1649, %v1641
    %v1946 = vpack.c.b16 %v1650, %v1642
    %v1947 = vpack.c.b16 %v1651, %v1643
    %v1948 = vpack.c.b16 %v1652, %v1644
    %v1949 = vpack.c.b16 %v1653, %v1645
    %v1950 = vpack.c.b16 %v1654, %v1646
    %v1951 = vpack.c.b16 %v1655, %v1647
    %v1952 = vpack.c.b16 %v1656, %v1648
    %v1953 = vpack.c.b16 %v1665, %v1657
    %v1954 = vpack.c.b16 %v1666, %v1658
    %v1955 = vpack.c.b16 %v1667, %v1659
    %v1956 = vpack.c.b16 %v1668, %v1660
    %v1957 = vpack.c.b16 %v1669, %v1661
    %v1958 = vpack.c.b16 %v1670, %v1662
    %v1959 = vpack.c.b16 %v1671, %v1663
    %v1960 = vpack.c.b16 %v1672, %v1664
    %v1961 = vpack.c.b16 %v1681, %v1673
    %v1962 = vpack.c.b16 %v1682, %v1674
    %v1963 = vpack.c.b16 %v1683, %v1675
    %v1964 = vpack.c.b16 %v1684, %v1676
    %v1965 = vpack.c.b16 %v1685, %v1677
    %v1966 = vpack.c.b16 %v1686, %v1678
    %v1967 = vpack.c.b16 %v1687, %v1679
    %v1968 = vpack.c.b16 %v1688, %v1680
    %v1969 = vpack.c.b16 %v1697, %v1689
    %v1970 = vpack.c.b16 %v1698, %v1690
    %v1971 = vpack.c.b16 %v1699, %v1691
    %v1972 = vpack.c.b16 %v1700, %v1692
    %v1973 = vpack.c.b16 %v1701, %v1693
    %v1974 = vpack.c.b16 %v1702, %v1694
    %v1975 = vpack.c.b16 %v1703, %v1695
    %v1976 = vpack.c.b16 %v1704, %v1696
    %v1977 = vpack.c.b16 %v1713, %v1705
    %v1978 = vpack.c.b16 %v1714, %v1706
    %v1979 = vpack.c.b16 %v1715, %v1707
    %v1980 = vpack.c.b16 %v1716, %v1708
    %v1981 = vpack.c.b16 %v1717, %v1709
    %v1982 = vpack.c.b16 %v1718, %v1710
    %v1983 = vpack.c.b16 %v1719, %v1711
    %v1984 = vpack.c.b16 %v1720, %v1712
    %v1985 = vpack.c.b16 %v1729, %v1721
    %v1986 = vpack.c.b16 %v1730, %v1722
    %v1987 = vpack.c.b16 %v1731, %v1723
    %v1988 = vpack.c.b16 %v1732, %v1724
    %v1989 = vpack.c.b16 %v1733, %v1725
    %v1990 = vpack.c.b16 %v1734, %v1726
    %v1991 = vpack.c.b16 %v1735, %v1727
    %v1992 = vpack.c.b16 %v1736, %v1728
    %2249 = vmatpush.bf16.msra.mxu0 %v1793
    %2250 = vmatpush.bf16.msra.mxu0 %v1785
    %2251 = vmatpush.bf16.msra.mxu0 %v1777
    %2252 = vmatpush.bf16.msra.mxu0 %v1769
    %2253 = vmatpush.bf16.msra.mxu0 %v1761
    %2254 = vmatpush.bf16.msra.mxu0 %v1753
    %2255 = vmatpush.bf16.msra.mxu0 %v1745
    %2256 = vmatpush.bf16.msra.mxu0 %v1737
    %2257 = vmatmul.bf16.gmra.mxu0 %v691
    %v2258 = vpop.f32.mrf.mxu0
    %v2259 = vadd.f32 %v953, %v2258
    %v2260 = vpop.f32.mrf.mxu0
    %v2261 = vadd.f32 %v953, %v2260
    %2262 = vdwg.mxu0
    %2263 = vmatpush.bf16.msra.mxu0 %v1857
    %2264 = vmatpush.bf16.msra.mxu0 %v1849
    %2265 = vmatpush.bf16.msra.mxu0 %v1841
    %2266 = vmatpush.bf16.msra.mxu0 %v1833
    %2267 = vmatpush.bf16.msra.mxu0 %v1825
    %2268 = vmatpush.bf16.msra.mxu0 %v1817
    %2269 = vmatpush.bf16.msra.mxu0 %v1809
    %2270 = vmatpush.bf16.msra.mxu0 %v1801
    %2271 = vmatmul.bf16.gmra.mxu0 %v692
    %v2272 = vpop.f32.mrf.mxu0
    %v2273 = vadd.f32 %v2259, %v2272
    %v2274 = vpop.f32.mrf.mxu0
    %v2275 = vadd.f32 %v2261, %v2274
    %2276 = vdwg.mxu0
    %2277 = vmatpush.bf16.msra.mxu0 %v1921
    %2278 = vmatpush.bf16.msra.mxu0 %v1913
    %2279 = vmatpush.bf16.msra.mxu0 %v1905
    %2280 = vmatpush.bf16.msra.mxu0 %v1897
    %2281 = vmatpush.bf16.msra.mxu0 %v1889
    %2282 = vmatpush.bf16.msra.mxu0 %v1881
    %2283 = vmatpush.bf16.msra.mxu0 %v1873
    %2284 = vmatpush.bf16.msra.mxu0 %v1865
    %2285 = vmatmul.bf16.gmra.mxu0 %v693
    %v2286 = vpop.f32.mrf.mxu0
    %v2287 = vadd.f32 %v2273, %v2286
    %v2288 = vpop.f32.mrf.mxu0
    %v2289 = vadd.f32 %v2275, %v2288
    %2290 = vdwg.mxu0
    %2291 = vmatpush.bf16.msra.mxu0 %v1985
    %2292 = vmatpush.bf16.msra.mxu0 %v1977
    %2293 = vmatpush.bf16.msra.mxu0 %v1969
    %2294 = vmatpush.bf16.msra.mxu0 %v1961
    %2295 = vmatpush.bf16.msra.mxu0 %v1953
    %2296 = vmatpush.bf16.msra.mxu0 %v1945
    %2297 = vmatpush.bf16.msra.mxu0 %v1937
    %2298 = vmatpush.bf16.msra.mxu0 %v1929
    %2299 = vmatmul.bf16.gmra.mxu0 %v694
    %v2300 = vpop.f32.mrf.mxu0
    %v2301 = vadd.f32 %v2287, %v2300
    %v2302 = vpop.f32.mrf.mxu0
    %v2303 = vadd.f32 %v2289, %v2302
    %2304 = vdwg.mxu0
    %2305 = vmatpush.bf16.msra.mxu0 %v1794
    %2306 = vmatpush.bf16.msra.mxu0 %v1786
    %2307 = vmatpush.bf16.msra.mxu0 %v1778
    %2308 = vmatpush.bf16.msra.mxu0 %v1770
    %2309 = vmatpush.bf16.msra.mxu0 %v1762
    %2310 = vmatpush.bf16.msra.mxu0 %v1754
    %2311 = vmatpush.bf16.msra.mxu0 %v1746
    %2312 = vmatpush.bf16.msra.mxu0 %v1738
    %2313 = vmatmul.bf16.gmra.mxu0 %v691
    %v2314 = vpop.f32.mrf.mxu0
    %v2315 = vadd.f32 %v954, %v2314
    %v2316 = vpop.f32.mrf.mxu0
    %v2317 = vadd.f32 %v954, %v2316
    %2318 = vdwg.mxu0
    %2319 = vmatpush.bf16.msra.mxu0 %v1858
    %2320 = vmatpush.bf16.msra.mxu0 %v1850
    %2321 = vmatpush.bf16.msra.mxu0 %v1842
    %2322 = vmatpush.bf16.msra.mxu0 %v1834
    %2323 = vmatpush.bf16.msra.mxu0 %v1826
    %2324 = vmatpush.bf16.msra.mxu0 %v1818
    %2325 = vmatpush.bf16.msra.mxu0 %v1810
    %2326 = vmatpush.bf16.msra.mxu0 %v1802
    %2327 = vmatmul.bf16.gmra.mxu0 %v692
    %v2328 = vpop.f32.mrf.mxu0
    %v2329 = vadd.f32 %v2315, %v2328
    %v2330 = vpop.f32.mrf.mxu0
    %v2331 = vadd.f32 %v2317, %v2330
    %2332 = vdwg.mxu0
    %2333 = vmatpush.bf16.msra.mxu0 %v1922
    %2334 = vmatpush.bf16.msra.mxu0 %v1914
    %2335 = vmatpush.bf16.msra.mxu0 %v1906
    %2336 = vmatpush.bf16.msra.mxu0 %v1898
    %2337 = vmatpush.bf16.msra.mxu0 %v1890
    %2338 = vmatpush.bf16.msra.mxu0 %v1882
    %2339 = vmatpush.bf16.msra.mxu0 %v1874
    %2340 = vmatpush.bf16.msra.mxu0 %v1866
    %2341 = vmatmul.bf16.gmra.mxu0 %v693
    %v2342 = vpop.f32.mrf.mxu0
    %v2343 = vadd.f32 %v2329, %v2342
    %v2344 = vpop.f32.mrf.mxu0
    %v2345 = vadd.f32 %v2331, %v2344
    %2346 = vdwg.mxu0
    %2347 = vmatpush.bf16.msra.mxu0 %v1986
    %2348 = vmatpush.bf16.msra.mxu0 %v1978
    %2349 = vmatpush.bf16.msra.mxu0 %v1970
    %2350 = vmatpush.bf16.msra.mxu0 %v1962
    %2351 = vmatpush.bf16.msra.mxu0 %v1954
    %2352 = vmatpush.bf16.msra.mxu0 %v1946
    %2353 = vmatpush.bf16.msra.mxu0 %v1938
    %2354 = vmatpush.bf16.msra.mxu0 %v1930
    %2355 = vmatmul.bf16.gmra.mxu0 %v694
    %v2356 = vpop.f32.mrf.mxu0
    %v2357 = vadd.f32 %v2343, %v2356
    %v2358 = vpop.f32.mrf.mxu0
    %v2359 = vadd.f32 %v2345, %v2358
    %2360 = vdwg.mxu0
    %2361 = vmatpush.bf16.msra.mxu0 %v1795
    %2362 = vmatpush.bf16.msra.mxu0 %v1787
    %2363 = vmatpush.bf16.msra.mxu0 %v1779
    %2364 = vmatpush.bf16.msra.mxu0 %v1771
    %2365 = vmatpush.bf16.msra.mxu0 %v1763
    %2366 = vmatpush.bf16.msra.mxu0 %v1755
    %2367 = vmatpush.bf16.msra.mxu0 %v1747
    %2368 = vmatpush.bf16.msra.mxu0 %v1739
    %2369 = vmatmul.bf16.gmra.mxu0 %v691
    %v2370 = vpop.f32.mrf.mxu0
    %v2371 = vadd.f32 %v955, %v2370
    %v2372 = vpop.f32.mrf.mxu0
    %v2373 = vadd.f32 %v955, %v2372
    %2374 = vdwg.mxu0
    %2375 = vmatpush.bf16.msra.mxu0 %v1859
    %2376 = vmatpush.bf16.msra.mxu0 %v1851
    %2377 = vmatpush.bf16.msra.mxu0 %v1843
    %2378 = vmatpush.bf16.msra.mxu0 %v1835
    %2379 = vmatpush.bf16.msra.mxu0 %v1827
    %2380 = vmatpush.bf16.msra.mxu0 %v1819
    %2381 = vmatpush.bf16.msra.mxu0 %v1811
    %2382 = vmatpush.bf16.msra.mxu0 %v1803
    %2383 = vmatmul.bf16.gmra.mxu0 %v692
    %v2384 = vpop.f32.mrf.mxu0
    %v2385 = vadd.f32 %v2371, %v2384
    %v2386 = vpop.f32.mrf.mxu0
    %v2387 = vadd.f32 %v2373, %v2386
    %2388 = vdwg.mxu0
    %2389 = vmatpush.bf16.msra.mxu0 %v1923
    %2390 = vmatpush.bf16.msra.mxu0 %v1915
    %2391 = vmatpush.bf16.msra.mxu0 %v1907
    %2392 = vmatpush.bf16.msra.mxu0 %v1899
    %2393 = vmatpush.bf16.msra.mxu0 %v1891
    %2394 = vmatpush.bf16.msra.mxu0 %v1883
    %2395 = vmatpush.bf16.msra.mxu0 %v1875
    %2396 = vmatpush.bf16.msra.mxu0 %v1867
    %2397 = vmatmul.bf16.gmra.mxu0 %v693
    %v2398 = vpop.f32.mrf.mxu0
    %v2399 = vadd.f32 %v2385, %v2398
    %v2400 = vpop.f32.mrf.mxu0
    %v2401 = vadd.f32 %v2387, %v2400
    %2402 = vdwg.mxu0
    %2403 = vmatpush.bf16.msra.mxu0 %v1987
    %2404 = vmatpush.bf16.msra.mxu0 %v1979
    %2405 = vmatpush.bf16.msra.mxu0 %v1971
    %2406 = vmatpush.bf16.msra.mxu0 %v1963
    %2407 = vmatpush.bf16.msra.mxu0 %v1955
    %2408 = vmatpush.bf16.msra.mxu0 %v1947
    %2409 = vmatpush.bf16.msra.mxu0 %v1939
    %2410 = vmatpush.bf16.msra.mxu0 %v1931
    %2411 = vmatmul.bf16.gmra.mxu0 %v694
    %v2412 = vpop.f32.mrf.mxu0
    %v2413 = vadd.f32 %v2399, %v2412
    %v2414 = vpop.f32.mrf.mxu0
    %v2415 = vadd.f32 %v2401, %v2414
    %2416 = vdwg.mxu0
    %2417 = vmatpush.bf16.msra.mxu0 %v1796
    %2418 = vmatpush.bf16.msra.mxu0 %v1788
    %2419 = vmatpush.bf16.msra.mxu0 %v1780
    %2420 = vmatpush.bf16.msra.mxu0 %v1772
    %2421 = vmatpush.bf16.msra.mxu0 %v1764
    %2422 = vmatpush.bf16.msra.mxu0 %v1756
    %2423 = vmatpush.bf16.msra.mxu0 %v1748
    %2424 = vmatpush.bf16.msra.mxu0 %v1740
    %2425 = vmatmul.bf16.gmra.mxu0 %v691
    %v2426 = vpop.f32.mrf.mxu0
    %v2427 = vadd.f32 %v956, %v2426
    %v2428 = vpop.f32.mrf.mxu0
    %v2429 = vadd.f32 %v956, %v2428
    %2430 = vdwg.mxu0
    %2431 = vmatpush.bf16.msra.mxu0 %v1860
    %2432 = vmatpush.bf16.msra.mxu0 %v1852
    %2433 = vmatpush.bf16.msra.mxu0 %v1844
    %2434 = vmatpush.bf16.msra.mxu0 %v1836
    %2435 = vmatpush.bf16.msra.mxu0 %v1828
    %2436 = vmatpush.bf16.msra.mxu0 %v1820
    %2437 = vmatpush.bf16.msra.mxu0 %v1812
    %2438 = vmatpush.bf16.msra.mxu0 %v1804
    %2439 = vmatmul.bf16.gmra.mxu0 %v692
    %v2440 = vpop.f32.mrf.mxu0
    %v2441 = vadd.f32 %v2427, %v2440
    %v2442 = vpop.f32.mrf.mxu0
    %v2443 = vadd.f32 %v2429, %v2442
    %2444 = vdwg.mxu0
    %2445 = vmatpush.bf16.msra.mxu0 %v1924
    %2446 = vmatpush.bf16.msra.mxu0 %v1916
    %2447 = vmatpush.bf16.msra.mxu0 %v1908
    %2448 = vmatpush.bf16.msra.mxu0 %v1900
    %2449 = vmatpush.bf16.msra.mxu0 %v1892
    %2450 = vmatpush.bf16.msra.mxu0 %v1884
    %2451 = vmatpush.bf16.msra.mxu0 %v1876
    %2452 = vmatpush.bf16.msra.mxu0 %v1868
    %2453 = vmatmul.bf16.gmra.mxu0 %v693
    %v2454 = vpop.f32.mrf.mxu0
    %v2455 = vadd.f32 %v2441, %v2454
    %v2456 = vpop.f32.mrf.mxu0
    %v2457 = vadd.f32 %v2443, %v2456
    %2458 = vdwg.mxu0
    %2459 = vmatpush.bf16.msra.mxu0 %v1988
    %2460 = vmatpush.bf16.msra.mxu0 %v1980
    %2461 = vmatpush.bf16.msra.mxu0 %v1972
    %2462 = vmatpush.bf16.msra.mxu0 %v1964
    %2463 = vmatpush.bf16.msra.mxu0 %v1956
    %2464 = vmatpush.bf16.msra.mxu0 %v1948
    %2465 = vmatpush.bf16.msra.mxu0 %v1940
    %2466 = vmatpush.bf16.msra.mxu0 %v1932
    %2467 = vmatmul.bf16.gmra.mxu0 %v694
    %v2468 = vpop.f32.mrf.mxu0
    %v2469 = vadd.f32 %v2455, %v2468
    %v2470 = vpop.f32.mrf.mxu0
    %v2471 = vadd.f32 %v2457, %v2470
    %2472 = vdwg.mxu0
    %2473 = vmatpush.bf16.msra.mxu0 %v1797
    %2474 = vmatpush.bf16.msra.mxu0 %v1789
    %2475 = vmatpush.bf16.msra.mxu0 %v1781
    %2476 = vmatpush.bf16.msra.mxu0 %v1773
    %2477 = vmatpush.bf16.msra.mxu0 %v1765
    %2478 = vmatpush.bf16.msra.mxu0 %v1757
    %2479 = vmatpush.bf16.msra.mxu0 %v1749
    %2480 = vmatpush.bf16.msra.mxu0 %v1741
    %2481 = vmatmul.bf16.gmra.mxu0 %v691
    %v2482 = vpop.f32.mrf.mxu0
    %v2483 = vadd.f32 %v957, %v2482
    %v2484 = vpop.f32.mrf.mxu0
    %v2485 = vadd.f32 %v957, %v2484
    %2486 = vdwg.mxu0
    %2487 = vmatpush.bf16.msra.mxu0 %v1861
    %2488 = vmatpush.bf16.msra.mxu0 %v1853
    %2489 = vmatpush.bf16.msra.mxu0 %v1845
    %2490 = vmatpush.bf16.msra.mxu0 %v1837
    %2491 = vmatpush.bf16.msra.mxu0 %v1829
    %2492 = vmatpush.bf16.msra.mxu0 %v1821
    %2493 = vmatpush.bf16.msra.mxu0 %v1813
    %2494 = vmatpush.bf16.msra.mxu0 %v1805
    %2495 = vmatmul.bf16.gmra.mxu0 %v692
    %v2496 = vpop.f32.mrf.mxu0
    %v2497 = vadd.f32 %v2483, %v2496
    %v2498 = vpop.f32.mrf.mxu0
    %v2499 = vadd.f32 %v2485, %v2498
    %2500 = vdwg.mxu0
    %2501 = vmatpush.bf16.msra.mxu0 %v1925
    %2502 = vmatpush.bf16.msra.mxu0 %v1917
    %2503 = vmatpush.bf16.msra.mxu0 %v1909
    %2504 = vmatpush.bf16.msra.mxu0 %v1901
    %2505 = vmatpush.bf16.msra.mxu0 %v1893
    %2506 = vmatpush.bf16.msra.mxu0 %v1885
    %2507 = vmatpush.bf16.msra.mxu0 %v1877
    %2508 = vmatpush.bf16.msra.mxu0 %v1869
    %2509 = vmatmul.bf16.gmra.mxu0 %v693
    %v2510 = vpop.f32.mrf.mxu0
    %v2511 = vadd.f32 %v2497, %v2510
    %v2512 = vpop.f32.mrf.mxu0
    %v2513 = vadd.f32 %v2499, %v2512
    %2514 = vdwg.mxu0
    %2515 = vmatpush.bf16.msra.mxu0 %v1989
    %2516 = vmatpush.bf16.msra.mxu0 %v1981
    %2517 = vmatpush.bf16.msra.mxu0 %v1973
    %2518 = vmatpush.bf16.msra.mxu0 %v1965
    %2519 = vmatpush.bf16.msra.mxu0 %v1957
    %2520 = vmatpush.bf16.msra.mxu0 %v1949
    %2521 = vmatpush.bf16.msra.mxu0 %v1941
    %2522 = vmatpush.bf16.msra.mxu0 %v1933
    %2523 = vmatmul.bf16.gmra.mxu0 %v694
    %v2524 = vpop.f32.mrf.mxu0
    %v2525 = vadd.f32 %v2511, %v2524
    %v2526 = vpop.f32.mrf.mxu0
    %v2527 = vadd.f32 %v2513, %v2526
    %2528 = vdwg.mxu0
    %2529 = vmatpush.bf16.msra.mxu0 %v1798
    %2530 = vmatpush.bf16.msra.mxu0 %v1790
    %2531 = vmatpush.bf16.msra.mxu0 %v1782
    %2532 = vmatpush.bf16.msra.mxu0 %v1774
    %2533 = vmatpush.bf16.msra.mxu0 %v1766
    %2534 = vmatpush.bf16.msra.mxu0 %v1758
    %2535 = vmatpush.bf16.msra.mxu0 %v1750
    %2536 = vmatpush.bf16.msra.mxu0 %v1742
    %2537 = vmatmul.bf16.gmra.mxu0 %v691
    %v2538 = vpop.f32.mrf.mxu0
    %v2539 = vadd.f32 %v958, %v2538
    %v2540 = vpop.f32.mrf.mxu0
    %v2541 = vadd.f32 %v958, %v2540
    %2542 = vdwg.mxu0
    %2543 = vmatpush.bf16.msra.mxu0 %v1862
    %2544 = vmatpush.bf16.msra.mxu0 %v1854
    %2545 = vmatpush.bf16.msra.mxu0 %v1846
    %2546 = vmatpush.bf16.msra.mxu0 %v1838
    %2547 = vmatpush.bf16.msra.mxu0 %v1830
    %2548 = vmatpush.bf16.msra.mxu0 %v1822
    %2549 = vmatpush.bf16.msra.mxu0 %v1814
    %2550 = vmatpush.bf16.msra.mxu0 %v1806
    %2551 = vmatmul.bf16.gmra.mxu0 %v692
    %v2552 = vpop.f32.mrf.mxu0
    %v2553 = vadd.f32 %v2539, %v2552
    %v2554 = vpop.f32.mrf.mxu0
    %v2555 = vadd.f32 %v2541, %v2554
    %2556 = vdwg.mxu0
    %2557 = vmatpush.bf16.msra.mxu0 %v1926
    %2558 = vmatpush.bf16.msra.mxu0 %v1918
    %2559 = vmatpush.bf16.msra.mxu0 %v1910
    %2560 = vmatpush.bf16.msra.mxu0 %v1902
    %2561 = vmatpush.bf16.msra.mxu0 %v1894
    %2562 = vmatpush.bf16.msra.mxu0 %v1886
    %2563 = vmatpush.bf16.msra.mxu0 %v1878
    %2564 = vmatpush.bf16.msra.mxu0 %v1870
    %2565 = vmatmul.bf16.gmra.mxu0 %v693
    %v2566 = vpop.f32.mrf.mxu0
    %v2567 = vadd.f32 %v2553, %v2566
    %v2568 = vpop.f32.mrf.mxu0
    %v2569 = vadd.f32 %v2555, %v2568
    %2570 = vdwg.mxu0
    %2571 = vmatpush.bf16.msra.mxu0 %v1990
    %2572 = vmatpush.bf16.msra.mxu0 %v1982
    %2573 = vmatpush.bf16.msra.mxu0 %v1974
    %2574 = vmatpush.bf16.msra.mxu0 %v1966
    %2575 = vmatpush.bf16.msra.mxu0 %v1958
    %2576 = vmatpush.bf16.msra.mxu0 %v1950
    %2577 = vmatpush.bf16.msra.mxu0 %v1942
    %2578 = vmatpush.bf16.msra.mxu0 %v1934
    %2579 = vmatmul.bf16.gmra.mxu0 %v694
    %v2580 = vpop.f32.mrf.mxu0
    %v2581 = vadd.f32 %v2567, %v2580
    %v2582 = vpop.f32.mrf.mxu0
    %v2583 = vadd.f32 %v2569, %v2582
    %2584 = vdwg.mxu0
    %2585 = vmatpush.bf16.msra.mxu0 %v1799
    %2586 = vmatpush.bf16.msra.mxu0 %v1791
    %2587 = vmatpush.bf16.msra.mxu0 %v1783
    %2588 = vmatpush.bf16.msra.mxu0 %v1775
    %2589 = vmatpush.bf16.msra.mxu0 %v1767
    %2590 = vmatpush.bf16.msra.mxu0 %v1759
    %2591 = vmatpush.bf16.msra.mxu0 %v1751
    %2592 = vmatpush.bf16.msra.mxu0 %v1743
    %2593 = vmatmul.bf16.gmra.mxu0 %v691
    %v2594 = vpop.f32.mrf.mxu0
    %v2595 = vadd.f32 %v959, %v2594
    %v2596 = vpop.f32.mrf.mxu0
    %v2597 = vadd.f32 %v959, %v2596
    %2598 = vdwg.mxu0
    %2599 = vmatpush.bf16.msra.mxu0 %v1863
    %2600 = vmatpush.bf16.msra.mxu0 %v1855
    %2601 = vmatpush.bf16.msra.mxu0 %v1847
    %2602 = vmatpush.bf16.msra.mxu0 %v1839
    %2603 = vmatpush.bf16.msra.mxu0 %v1831
    %2604 = vmatpush.bf16.msra.mxu0 %v1823
    %2605 = vmatpush.bf16.msra.mxu0 %v1815
    %2606 = vmatpush.bf16.msra.mxu0 %v1807
    %2607 = vmatmul.bf16.gmra.mxu0 %v692
    %v2608 = vpop.f32.mrf.mxu0
    %v2609 = vadd.f32 %v2595, %v2608
    %v2610 = vpop.f32.mrf.mxu0
    %v2611 = vadd.f32 %v2597, %v2610
    %2612 = vdwg.mxu0
    %2613 = vmatpush.bf16.msra.mxu0 %v1927
    %2614 = vmatpush.bf16.msra.mxu0 %v1919
    %2615 = vmatpush.bf16.msra.mxu0 %v1911
    %2616 = vmatpush.bf16.msra.mxu0 %v1903
    %2617 = vmatpush.bf16.msra.mxu0 %v1895
    %2618 = vmatpush.bf16.msra.mxu0 %v1887
    %2619 = vmatpush.bf16.msra.mxu0 %v1879
    %2620 = vmatpush.bf16.msra.mxu0 %v1871
    %2621 = vmatmul.bf16.gmra.mxu0 %v693
    %v2622 = vpop.f32.mrf.mxu0
    %v2623 = vadd.f32 %v2609, %v2622
    %v2624 = vpop.f32.mrf.mxu0
    %v2625 = vadd.f32 %v2611, %v2624
    %2626 = vdwg.mxu0
    %2627 = vmatpush.bf16.msra.mxu0 %v1991
    %2628 = vmatpush.bf16.msra.mxu0 %v1983
    %2629 = vmatpush.bf16.msra.mxu0 %v1975
    %2630 = vmatpush.bf16.msra.mxu0 %v1967
    %2631 = vmatpush.bf16.msra.mxu0 %v1959
    %2632 = vmatpush.bf16.msra.mxu0 %v1951
    %2633 = vmatpush.bf16.msra.mxu0 %v1943
    %2634 = vmatpush.bf16.msra.mxu0 %v1935
    %2635 = vmatmul.bf16.gmra.mxu0 %v694
    %v2636 = vpop.f32.mrf.mxu0
    %v2637 = vadd.f32 %v2623, %v2636
    %v2638 = vpop.f32.mrf.mxu0
    %v2639 = vadd.f32 %v2625, %v2638
    %2640 = vdwg.mxu0
    %2641 = vmatpush.bf16.msra.mxu0 %v1800
    %2642 = vmatpush.bf16.msra.mxu0 %v1792
    %2643 = vmatpush.bf16.msra.mxu0 %v1784
    %2644 = vmatpush.bf16.msra.mxu0 %v1776
    %2645 = vmatpush.bf16.msra.mxu0 %v1768
    %2646 = vmatpush.bf16.msra.mxu0 %v1760
    %2647 = vmatpush.bf16.msra.mxu0 %v1752
    %2648 = vmatpush.bf16.msra.mxu0 %v1744
    %2649 = vmatmul.bf16.gmra.mxu0 %v691
    %v2650 = vpop.f32.mrf.mxu0
    %v2651 = vadd.f32 %v960, %v2650
    %v2652 = vpop.f32.mrf.mxu0
    %v2653 = vadd.f32 %v960, %v2652
    %2654 = vdwg.mxu0
    %2655 = vmatpush.bf16.msra.mxu0 %v1864
    %2656 = vmatpush.bf16.msra.mxu0 %v1856
    %2657 = vmatpush.bf16.msra.mxu0 %v1848
    %2658 = vmatpush.bf16.msra.mxu0 %v1840
    %2659 = vmatpush.bf16.msra.mxu0 %v1832
    %2660 = vmatpush.bf16.msra.mxu0 %v1824
    %2661 = vmatpush.bf16.msra.mxu0 %v1816
    %2662 = vmatpush.bf16.msra.mxu0 %v1808
    %2663 = vmatmul.bf16.gmra.mxu0 %v692
    %v2664 = vpop.f32.mrf.mxu0
    %v2665 = vadd.f32 %v2651, %v2664
    %v2666 = vpop.f32.mrf.mxu0
    %v2667 = vadd.f32 %v2653, %v2666
    %2668 = vdwg.mxu0
    %2669 = vmatpush.bf16.msra.mxu0 %v1928
    %2670 = vmatpush.bf16.msra.mxu0 %v1920
    %2671 = vmatpush.bf16.msra.mxu0 %v1912
    %2672 = vmatpush.bf16.msra.mxu0 %v1904
    %2673 = vmatpush.bf16.msra.mxu0 %v1896
    %2674 = vmatpush.bf16.msra.mxu0 %v1888
    %2675 = vmatpush.bf16.msra.mxu0 %v1880
    %2676 = vmatpush.bf16.msra.mxu0 %v1872
    %2677 = vmatmul.bf16.gmra.mxu0 %v693
    %v2678 = vpop.f32.mrf.mxu0
    %v2679 = vadd.f32 %v2665, %v2678
    %v2680 = vpop.f32.mrf.mxu0
    %v2681 = vadd.f32 %v2667, %v2680
    %2682 = vdwg.mxu0
    %2683 = vmatpush.bf16.msra.mxu0 %v1992
    %2684 = vmatpush.bf16.msra.mxu0 %v1984
    %2685 = vmatpush.bf16.msra.mxu0 %v1976
    %2686 = vmatpush.bf16.msra.mxu0 %v1968
    %2687 = vmatpush.bf16.msra.mxu0 %v1960
    %2688 = vmatpush.bf16.msra.mxu0 %v1952
    %2689 = vmatpush.bf16.msra.mxu0 %v1944
    %2690 = vmatpush.bf16.msra.mxu0 %v1936
    %2691 = vmatmul.bf16.gmra.mxu0 %v694
    %v2692 = vpop.f32.mrf.mxu0
    %v2693 = vadd.f32 %v2679, %v2692
    %v2694 = vpop.f32.mrf.mxu0
    %v2695 = vadd.f32 %v2681, %v2694
    %2696 = vdwg.mxu0
    %v2697 = vmax.f32 %v2301, 0.0
    %v2698 = vmax.f32 %v2357, 0.0
    %v2699 = vmax.f32 %v2413, 0.0
    %v2700 = vmax.f32 %v2469, 0.0
    %v2701 = vmax.f32 %v2525, 0.0
    %v2702 = vmax.f32 %v2581, 0.0
    %v2703 = vmax.f32 %v2637, 0.0
    %v2704 = vmax.f32 %v2693, 0.0
    %v2705 = vmax.f32 %v2303, 0.0
    %v2706 = vmax.f32 %v2359, 0.0
    %v2707 = vmax.f32 %v2415, 0.0
    %v2708 = vmax.f32 %v2471, 0.0
    %v2709 = vmax.f32 %v2527, 0.0
    %v2710 = vmax.f32 %v2583, 0.0
    %v2711 = vmax.f32 %v2639, 0.0
    %v2712 = vmax.f32 %v2695, 0.0
    %v2713 = vpack.c.bf16 %v2705, %v2697
    %v2714 = vpack.c.bf16 %v2706, %v2698
    %v2715 = vpack.c.bf16 %v2707, %v2699
    %v2716 = vpack.c.bf16 %v2708, %v2700
    %v2717 = vpack.c.bf16 %v2709, %v2701
    %v2718 = vpack.c.bf16 %v2710, %v2702
    %v2719 = vpack.c.bf16 %v2711, %v2703
    %v2720 = vpack.c.bf16 %v2712, %v2704
    %v2721 = vld [vmem:[%s7] sm:$0xff]
    %v2722 = vld [vmem:[%s7 + $0x8] sm:$0xff]
    %v2723 = vld [vmem:[%s7 + $0x10] sm:$0xff]
    %v2724 = vld [vmem:[%s7 + $0x18] sm:$0xf]
    %v2725 = vld [vmem:[%s7 + $0x1c] sm:$0xff]
    %v2726 = vld [vmem:[%s7 + $0x24] sm:$0xff]
    %v2727 = vld [vmem:[%s7 + $0x2c] sm:$0xff]
    %v2728 = vld [vmem:[%s7 + $0x34] sm:$0xf]
    %v2729 = vld [vmem:[%s7 + $0x38] sm:$0xff]
    %v2730 = vld [vmem:[%s7 + $0x40] sm:$0xff]
    %v2731 = vld [vmem:[%s7 + $0x48] sm:$0xff]
    %v2732 = vld [vmem:[%s7 + $0x50] sm:$0xf]
    %v2733 = vld [vmem:[%s7 + $0x54] sm:$0xff]
    %v2734 = vld [vmem:[%s7 + $0x5c] sm:$0xff]
    %v2735 = vld [vmem:[%s7 + $0x64] sm:$0xff]
    %v2736 = vld [vmem:[%s7 + $0x6c] sm:$0xf]
    %v2737 = vld [vmem:[%s7 + $0x70] sm:$0xff]
    %v2738 = vld [vmem:[%s7 + $0x78] sm:$0xff]
    %v2739 = vld [vmem:[%s7 + $0x80] sm:$0xff]
    %v2740 = vld [vmem:[%s7 + $0x88] sm:$0xf]
    %v2741 = vld [vmem:[%s7 + $0x8c] sm:$0xff]
    %v2742 = vld [vmem:[%s7 + $0x94] sm:$0xff]
    %v2743 = vld [vmem:[%s7 + $0x9c] sm:$0xff]
    %v2744 = vld [vmem:[%s7 + $0xa4] sm:$0xf]
    %v2745 = vld [vmem:[%s7 + $0xa8] sm:$0xff]
    %v2746 = vld [vmem:[%s7 + $0xb0] sm:$0xff]
    %v2747 = vld [vmem:[%s7 + $0xb8] sm:$0xff]
    %v2748 = vld [vmem:[%s7 + $0xc0] sm:$0xf]
    %v2749 = vld [vmem:[%s7 + $0xc4] sm:$0xff]
    %v2750 = vld [vmem:[%s7 + $0xcc] sm:$0xff]
    %v2751 = vld [vmem:[%s7 + $0xd4] sm:$0xff]
    %v2752 = vld [vmem:[%s7 + $0xdc] sm:$0xf]
    %v2753 = vld [vmem:[%s7 + $0xe0] sm:$0xff]
    %v2754 = vld [vmem:[%s7 + $0xe8] sm:$0xff]
    %v2755 = vld [vmem:[%s7 + $0xf0] sm:$0xff]
    %v2756 = vld [vmem:[%s7 + $0xf8] sm:$0xf]
    %v2757 = vld [vmem:[%s7 + $0xfc] sm:$0xff]
    %v2758 = vld [vmem:[%s7 + $0x104] sm:$0xff]
    %v2759 = vld [vmem:[%s7 + $0x10c] sm:$0xff]
    %v2760 = vld [vmem:[%s7 + $0x114] sm:$0xf]
    %v2761 = vld [vmem:[%s7 + $0x118] sm:$0xff]
    %v2762 = vld [vmem:[%s7 + $0x120] sm:$0xff]
    %v2763 = vld [vmem:[%s7 + $0x128] sm:$0xff]
    %v2764 = vld [vmem:[%s7 + $0x130] sm:$0xf]
    %v2765 = vld [vmem:[%s7 + $0x134] sm:$0xff]
    %v2766 = vld [vmem:[%s7 + $0x13c] sm:$0xff]
    %v2767 = vld [vmem:[%s7 + $0x144] sm:$0xff]
    %v2768 = vld [vmem:[%s7 + $0x14c] sm:$0xf]
    %v2769 = vld [vmem:[%s7 + $0x150] sm:$0xff]
    %v2770 = vld [vmem:[%s7 + $0x158] sm:$0xff]
    %v2771 = vld [vmem:[%s7 + $0x160] sm:$0xff]
    %v2772 = vld [vmem:[%s7 + $0x168] sm:$0xf]
    %v2773 = vld [vmem:[%s7 + $0x16c] sm:$0xff]
    %v2774 = vld [vmem:[%s7 + $0x174] sm:$0xff]
    %v2775 = vld [vmem:[%s7 + $0x17c] sm:$0xff]
    %v2776 = vld [vmem:[%s7 + $0x184] sm:$0xf]
    %v2777 = vld [vmem:[%s7 + $0x188] sm:$0xff]
    %v2778 = vld [vmem:[%s7 + $0x190] sm:$0xff]
    %v2779 = vld [vmem:[%s7 + $0x198] sm:$0xff]
    %v2780 = vld [vmem:[%s7 + $0x1a0] sm:$0xf]
    %v2781 = vld [vmem:[%s7 + $0x1a4] sm:$0xff]
    %v2782 = vld [vmem:[%s7 + $0x1ac] sm:$0xff]
    %v2783 = vld [vmem:[%s7 + $0x1b4] sm:$0xff]
    %v2784 = vld [vmem:[%s7 + $0x1bc] sm:$0xf]
    %v2785 = vld [vmem:[%s7 + $0x1c0] sm:$0xff]
    %v2786 = vld [vmem:[%s7 + $0x1c8] sm:$0xff]
    %v2787 = vld [vmem:[%s7 + $0x1d0] sm:$0xff]
    %v2788 = vld [vmem:[%s7 + $0x1d8] sm:$0xf]
    %v2789 = vld [vmem:[%s7 + $0x1dc] sm:$0xff]
    %v2790 = vld [vmem:[%s7 + $0x1e4] sm:$0xff]
    %v2791 = vld [vmem:[%s7 + $0x1ec] sm:$0xff]
    %v2792 = vld [vmem:[%s7 + $0x1f4] sm:$0xf]
    %v2793 = vld [vmem:[%s7 + $0x1f8] sm:$0xff]
    %v2794 = vld [vmem:[%s7 + $0x200] sm:$0xff]
    %v2795 = vld [vmem:[%s7 + $0x208] sm:$0xff]
    %v2796 = vld [vmem:[%s7 + $0x210] sm:$0xf]
    %v2797 = vld [vmem:[%s7 + $0x214] sm:$0xff]
    %v2798 = vld [vmem:[%s7 + $0x21c] sm:$0xff]
    %v2799 = vld [vmem:[%s7 + $0x224] sm:$0xff]
    %v2800 = vld [vmem:[%s7 + $0x22c] sm:$0xf]
    %v2801 = vld [vmem:[%s7 + $0x230] sm:$0xff]
    %v2802 = vld [vmem:[%s7 + $0x238] sm:$0xff]
    %v2803 = vld [vmem:[%s7 + $0x240] sm:$0xff]
    %v2804 = vld [vmem:[%s7 + $0x248] sm:$0xf]
    %v2805 = vld [vmem:[%s7 + $0x24c] sm:$0xff]
    %v2806 = vld [vmem:[%s7 + $0x254] sm:$0xff]
    %v2807 = vld [vmem:[%s7 + $0x25c] sm:$0xff]
    %v2808 = vld [vmem:[%s7 + $0x264] sm:$0xf]
    %v2809 = vld [vmem:[%s7 + $0x268] sm:$0xff]
    %v2810 = vld [vmem:[%s7 + $0x270] sm:$0xff]
    %v2811 = vld [vmem:[%s7 + $0x278] sm:$0xff]
    %v2812 = vld [vmem:[%s7 + $0x280] sm:$0xf]
    %v2813 = vld [vmem:[%s7 + $0x284] sm:$0xff]
    %v2814 = vld [vmem:[%s7 + $0x28c] sm:$0xff]
    %v2815 = vld [vmem:[%s7 + $0x294] sm:$0xff]
    %v2816 = vld [vmem:[%s7 + $0x29c] sm:$0xf]
    %v2817 = vld [vmem:[%s7 + $0x2a0] sm:$0xff]
    %v2818 = vld [vmem:[%s7 + $0x2a8] sm:$0xff]
    %v2819 = vld [vmem:[%s7 + $0x2b0] sm:$0xff]
    %v2820 = vld [vmem:[%s7 + $0x2b8] sm:$0xf]
    %v2821 = vld [vmem:[%s7 + $0x2bc] sm:$0xff]
    %v2822 = vld [vmem:[%s7 + $0x2c4] sm:$0xff]
    %v2823 = vld [vmem:[%s7 + $0x2cc] sm:$0xff]
    %v2824 = vld [vmem:[%s7 + $0x2d4] sm:$0xf]
    %v2825 = vld [vmem:[%s7 + $0x2d8] sm:$0xff]
    %v2826 = vld [vmem:[%s7 + $0x2e0] sm:$0xff]
    %v2827 = vld [vmem:[%s7 + $0x2e8] sm:$0xff]
    %v2828 = vld [vmem:[%s7 + $0x2f0] sm:$0xf]
    %v2829 = vld [vmem:[%s7 + $0x2f4] sm:$0xff]
    %v2830 = vld [vmem:[%s7 + $0x2fc] sm:$0xff]
    %v2831 = vld [vmem:[%s7 + $0x304] sm:$0xff]
    %v2832 = vld [vmem:[%s7 + $0x30c] sm:$0xf]
    %v2833 = vld [vmem:[%s7 + $0x310] sm:$0xff]
    %v2834 = vld [vmem:[%s7 + $0x318] sm:$0xff]
    %v2835 = vld [vmem:[%s7 + $0x320] sm:$0xff]
    %v2836 = vld [vmem:[%s7 + $0x328] sm:$0xf]
    %v2837 = vld [vmem:[%s7 + $0x32c] sm:$0xff]
    %v2838 = vld [vmem:[%s7 + $0x334] sm:$0xff]
    %v2839 = vld [vmem:[%s7 + $0x33c] sm:$0xff]
    %v2840 = vld [vmem:[%s7 + $0x344] sm:$0xf]
    %v2841 = vld [vmem:[%s7 + $0x348] sm:$0xff]
    %v2842 = vld [vmem:[%s7 + $0x350] sm:$0xff]
    %v2843 = vld [vmem:[%s7 + $0x358] sm:$0xff]
    %v2844 = vld [vmem:[%s7 + $0x360] sm:$0xf]
    %v2845 = vld [vmem:[%s7 + $0x364] sm:$0xff]
    %v2846 = vld [vmem:[%s7 + $0x36c] sm:$0xff]
    %v2847 = vld [vmem:[%s7 + $0x374] sm:$0xff]
    %v2848 = vld [vmem:[%s7 + $0x37c] sm:$0xf]
    %v2849 = vld [vmem:[%s7 + $0x380] sm:$0xff]
    %v2850 = vld [vmem:[%s7 + $0x388] sm:$0xff]
    %v2851 = vld [vmem:[%s7 + $0x390] sm:$0xff]
    %v2852 = vld [vmem:[%s7 + $0x398] sm:$0xf]
    %v2853 = vld [vmem:[%s7 + $0x39c] sm:$0xff]
    %v2854 = vld [vmem:[%s7 + $0x3a4] sm:$0xff]
    %v2855 = vld [vmem:[%s7 + $0x3ac] sm:$0xff]
    %v2856 = vld [vmem:[%s7 + $0x3b4] sm:$0xf]
    %v2857 = vld [vmem:[%s7 + $0x3b8] sm:$0xff]
    %v2858 = vld [vmem:[%s7 + $0x3c0] sm:$0xff]
    %v2859 = vld [vmem:[%s7 + $0x3c8] sm:$0xff]
    %v2860 = vld [vmem:[%s7 + $0x3d0] sm:$0xf]
    %v2861 = vld [vmem:[%s7 + $0x3d4] sm:$0xff]
    %v2862 = vld [vmem:[%s7 + $0x3dc] sm:$0xff]
    %v2863 = vld [vmem:[%s7 + $0x3e4] sm:$0xff]
    %v2864 = vld [vmem:[%s7 + $0x3ec] sm:$0xf]
    %v2865 = vld [vmem:[%s7 + $0x3f0] sm:$0xff]
    %v2866 = vld [vmem:[%s7 + $0x3f8] sm:$0xff]
    %v2867 = vld [vmem:[%s7 + $0x400] sm:$0xff]
    %v2868 = vld [vmem:[%s7 + $0x408] sm:$0xf]
    %v2869 = vld [vmem:[%s7 + $0x40c] sm:$0xff]
    %v2870 = vld [vmem:[%s7 + $0x414] sm:$0xff]
    %v2871 = vld [vmem:[%s7 + $0x41c] sm:$0xff]
    %v2872 = vld [vmem:[%s7 + $0x424] sm:$0xf]
    %v2873 = vld [vmem:[%s7 + $0x428] sm:$0xff]
    %v2874 = vld [vmem:[%s7 + $0x430] sm:$0xff]
    %v2875 = vld [vmem:[%s7 + $0x438] sm:$0xff]
    %v2876 = vld [vmem:[%s7 + $0x440] sm:$0xf]
    %v2877 = vld [vmem:[%s7 + $0x444] sm:$0xff]
    %v2878 = vld [vmem:[%s7 + $0x44c] sm:$0xff]
    %v2879 = vld [vmem:[%s7 + $0x454] sm:$0xff]
    %v2880 = vld [vmem:[%s7 + $0x45c] sm:$0xf]
    %v2881 = vld [vmem:[%s7 + $0x460] sm:$0xff]
    %v2882 = vld [vmem:[%s7 + $0x468] sm:$0xff]
    %v2883 = vld [vmem:[%s7 + $0x470] sm:$0xff]
    %v2884 = vld [vmem:[%s7 + $0x478] sm:$0xf]
    %v2885 = vld [vmem:[%s7 + $0x47c] sm:$0xff]
    %v2886 = vld [vmem:[%s7 + $0x484] sm:$0xff]
    %v2887 = vld [vmem:[%s7 + $0x48c] sm:$0xff]
    %v2888 = vld [vmem:[%s7 + $0x494] sm:$0xf]
    %v2889 = vld [vmem:[%s7 + $0x498] sm:$0xff]
    %v2890 = vld [vmem:[%s7 + $0x4a0] sm:$0xff]
    %v2891 = vld [vmem:[%s7 + $0x4a8] sm:$0xff]
    %v2892 = vld [vmem:[%s7 + $0x4b0] sm:$0xf]
    %v2893 = vld [vmem:[%s7 + $0x4b4] sm:$0xff]
    %v2894 = vld [vmem:[%s7 + $0x4bc] sm:$0xff]
    %v2895 = vld [vmem:[%s7 + $0x4c4] sm:$0xff]
    %v2896 = vld [vmem:[%s7 + $0x4cc] sm:$0xf]
    %v2897 = vld [vmem:[%s7 + $0x4d0] sm:$0xff]
    %v2898 = vld [vmem:[%s7 + $0x4d8] sm:$0xff]
    %v2899 = vld [vmem:[%s7 + $0x4e0] sm:$0xff]
    %v2900 = vld [vmem:[%s7 + $0x4e8] sm:$0xf]
    %v2901 = vld [vmem:[%s7 + $0x4ec] sm:$0xff]
    %v2902 = vld [vmem:[%s7 + $0x4f4] sm:$0xff]
    %v2903 = vld [vmem:[%s7 + $0x4fc] sm:$0xff]
    %v2904 = vld [vmem:[%s7 + $0x504] sm:$0xf]
    %v2905 = vld [vmem:[%s7 + $0x508] sm:$0xff]
    %v2906 = vld [vmem:[%s7 + $0x510] sm:$0xff]
    %v2907 = vld [vmem:[%s7 + $0x518] sm:$0xff]
    %v2908 = vld [vmem:[%s7 + $0x520] sm:$0xf]
    %v2909 = vld [vmem:[%s7 + $0x524] sm:$0xff]
    %v2910 = vld [vmem:[%s7 + $0x52c] sm:$0xff]
    %v2911 = vld [vmem:[%s7 + $0x534] sm:$0xff]
    %v2912 = vld [vmem:[%s7 + $0x53c] sm:$0xf]
    %v2913 = vld [vmem:[%s7 + $0x540] sm:$0xff]
    %v2914 = vld [vmem:[%s7 + $0x548] sm:$0xff]
    %v2915 = vld [vmem:[%s7 + $0x550] sm:$0xff]
    %v2916 = vld [vmem:[%s7 + $0x558] sm:$0xf]
    %v2917 = vld [vmem:[%s7 + $0x55c] sm:$0xff]
    %v2918 = vld [vmem:[%s7 + $0x564] sm:$0xff]
    %v2919 = vld [vmem:[%s7 + $0x56c] sm:$0xff]
    %v2920 = vld [vmem:[%s7 + $0x574] sm:$0xf]
    %v2921 = vld [vmem:[%s7 + $0x578] sm:$0xff]
    %v2922 = vld [vmem:[%s7 + $0x580] sm:$0xff]
    %v2923 = vld [vmem:[%s7 + $0x588] sm:$0xff]
    %v2924 = vld [vmem:[%s7 + $0x590] sm:$0xf]
    %v2925 = vld [vmem:[%s7 + $0x594] sm:$0xff]
    %v2926 = vld [vmem:[%s7 + $0x59c] sm:$0xff]
    %v2927 = vld [vmem:[%s7 + $0x5a4] sm:$0xff]
    %v2928 = vld [vmem:[%s7 + $0x5ac] sm:$0xf]
    %v2929 = vld [vmem:[%s7 + $0x5b0] sm:$0xff]
    %v2930 = vld [vmem:[%s7 + $0x5b8] sm:$0xff]
    %v2931 = vld [vmem:[%s7 + $0x5c0] sm:$0xff]
    %v2932 = vld [vmem:[%s7 + $0x5c8] sm:$0xf]
    %v2933 = vld [vmem:[%s7 + $0x5cc] sm:$0xff]
    %v2934 = vld [vmem:[%s7 + $0x5d4] sm:$0xff]
    %v2935 = vld [vmem:[%s7 + $0x5dc] sm:$0xff]
    %v2936 = vld [vmem:[%s7 + $0x5e4] sm:$0xf]
    %v2937 = vld [vmem:[%s7 + $0x5e8] sm:$0xff]
    %v2938 = vld [vmem:[%s7 + $0x5f0] sm:$0xff]
    %v2939 = vld [vmem:[%s7 + $0x5f8] sm:$0xff]
    %v2940 = vld [vmem:[%s7 + $0x600] sm:$0xf]
    %v2941 = vld [vmem:[%s7 + $0x604] sm:$0xff]
    %v2942 = vld [vmem:[%s7 + $0x60c] sm:$0xff]
    %v2943 = vld [vmem:[%s7 + $0x614] sm:$0xff]
    %v2944 = vld [vmem:[%s7 + $0x61c] sm:$0xf]
    %v2945 = vld [vmem:[%s7 + $0x620] sm:$0xff]
    %v2946 = vld [vmem:[%s7 + $0x628] sm:$0xff]
    %v2947 = vld [vmem:[%s7 + $0x630] sm:$0xff]
    %v2948 = vld [vmem:[%s7 + $0x638] sm:$0xf]
    %v2949 = vld [vmem:[%s7 + $0x63c] sm:$0xff]
    %v2950 = vld [vmem:[%s7 + $0x644] sm:$0xff]
    %v2951 = vld [vmem:[%s7 + $0x64c] sm:$0xff]
    %v2952 = vld [vmem:[%s7 + $0x654] sm:$0xf]
    %v2953 = vld [vmem:[%s7 + $0x658] sm:$0xff]
    %v2954 = vld [vmem:[%s7 + $0x660] sm:$0xff]
    %v2955 = vld [vmem:[%s7 + $0x668] sm:$0xff]
    %v2956 = vld [vmem:[%s7 + $0x670] sm:$0xf]
    %v2957 = vld [vmem:[%s7 + $0x674] sm:$0xff]
    %v2958 = vld [vmem:[%s7 + $0x67c] sm:$0xff]
    %v2959 = vld [vmem:[%s7 + $0x684] sm:$0xff]
    %v2960 = vld [vmem:[%s7 + $0x68c] sm:$0xf]
    %v2961 = vld [vmem:[%s7 + $0x690] sm:$0xff]
    %v2962 = vld [vmem:[%s7 + $0x698] sm:$0xff]
    %v2963 = vld [vmem:[%s7 + $0x6a0] sm:$0xff]
    %v2964 = vld [vmem:[%s7 + $0x6a8] sm:$0xf]
    %v2965 = vld [vmem:[%s7 + $0x6ac] sm:$0xff]
    %v2966 = vld [vmem:[%s7 + $0x6b4] sm:$0xff]
    %v2967 = vld [vmem:[%s7 + $0x6bc] sm:$0xff]
    %v2968 = vld [vmem:[%s7 + $0x6c4] sm:$0xf]
    %v2969 = vld [vmem:[%s7 + $0x6c8] sm:$0xff]
    %v2970 = vld [vmem:[%s7 + $0x6d0] sm:$0xff]
    %v2971 = vld [vmem:[%s7 + $0x6d8] sm:$0xff]
    %v2972 = vld [vmem:[%s7 + $0x6e0] sm:$0xf]
    %v2973 = vld [vmem:[%s7 + $0x6e4] sm:$0xff]
    %v2974 = vld [vmem:[%s7 + $0x6ec] sm:$0xff]
    %v2975 = vld [vmem:[%s7 + $0x6f4] sm:$0xff]
    %v2976 = vld [vmem:[%s7 + $0x6fc] sm:$0xf]
    %v2977 = vld [vmem:[%s7 + $0x700] sm:$0xff]
    %v2978 = vld [vmem:[%s7 + $0x708] sm:$0xff]
    %v2979 = vld [vmem:[%s7 + $0x710] sm:$0xff]
    %v2980 = vld [vmem:[%s7 + $0x718] sm:$0xf]
    %v2981 = vld [vmem:[%s7 + $0x71c] sm:$0xff]
    %v2982 = vld [vmem:[%s7 + $0x724] sm:$0xff]
    %v2983 = vld [vmem:[%s7 + $0x72c] sm:$0xff]
    %v2984 = vld [vmem:[%s7 + $0x734] sm:$0xf]
    %v2985 = vld [vmem:[%s7 + $0x738] sm:$0xff]
    %v2986 = vld [vmem:[%s7 + $0x740] sm:$0xff]
    %v2987 = vld [vmem:[%s7 + $0x748] sm:$0xff]
    %v2988 = vld [vmem:[%s7 + $0x750] sm:$0xf]
    %v2989 = vld [vmem:[%s7 + $0x754] sm:$0xff]
    %v2990 = vld [vmem:[%s7 + $0x75c] sm:$0xff]
    %v2991 = vld [vmem:[%s7 + $0x764] sm:$0xff]
    %v2992 = vld [vmem:[%s7 + $0x76c] sm:$0xf]
    %v2993 = vld [vmem:[%s7 + $0x770] sm:$0xff]
    %v2994 = vld [vmem:[%s7 + $0x778] sm:$0xff]
    %v2995 = vld [vmem:[%s7 + $0x780] sm:$0xff]
    %v2996 = vld [vmem:[%s7 + $0x788] sm:$0xf]
    %v2997 = vld [vmem:[%s7 + $0x78c] sm:$0xff]
    %v2998 = vld [vmem:[%s7 + $0x794] sm:$0xff]
    %v2999 = vld [vmem:[%s7 + $0x79c] sm:$0xff]
    %v3000 = vld [vmem:[%s7 + $0x7a4] sm:$0xf]
    %v3001 = vld [vmem:[%s7 + $0x7a8] sm:$0xff]
    %v3002 = vld [vmem:[%s7 + $0x7b0] sm:$0xff]
    %v3003 = vld [vmem:[%s7 + $0x7b8] sm:$0xff]
    %v3004 = vld [vmem:[%s7 + $0x7c0] sm:$0xf]
    %v3005 = vld [vmem:[%s7 + $0x7c4] sm:$0xff]
    %v3006 = vld [vmem:[%s7 + $0x7cc] sm:$0xff]
    %v3007 = vld [vmem:[%s7 + $0x7d4] sm:$0xff]
    %v3008 = vld [vmem:[%s7 + $0x7dc] sm:$0xf]
    %v3009 = vld [vmem:[%s7 + $0x7e0] sm:$0xff]
    %v3010 = vld [vmem:[%s7 + $0x7e8] sm:$0xff]
    %v3011 = vld [vmem:[%s7 + $0x7f0] sm:$0xff]
    %v3012 = vld [vmem:[%s7 + $0x7f8] sm:$0xf]
    %v3013 = vld [vmem:[%s7 + $0x7fc] sm:$0xff]
    %v3014 = vld [vmem:[%s7 + $0x804] sm:$0xff]
    %v3015 = vld [vmem:[%s7 + $0x80c] sm:$0xff]
    %v3016 = vld [vmem:[%s7 + $0x814] sm:$0xf]
    %v3017 = vld [vmem:[%s7 + $0x818] sm:$0xff]
    %v3018 = vld [vmem:[%s7 + $0x820] sm:$0xff]
    %v3019 = vld [vmem:[%s7 + $0x828] sm:$0xff]
    %v3020 = vld [vmem:[%s7 + $0x830] sm:$0xf]
    %v3021 = vld [vmem:[%s7 + $0x834] sm:$0xff]
    %v3022 = vld [vmem:[%s7 + $0x83c] sm:$0xff]
    %v3023 = vld [vmem:[%s7 + $0x844] sm:$0xff]
    %v3024 = vld [vmem:[%s7 + $0x84c] sm:$0xf]
    %v3025 = vld [vmem:[%s7 + $0x850] sm:$0xff]
    %v3026 = vld [vmem:[%s7 + $0x858] sm:$0xff]
    %v3027 = vld [vmem:[%s7 + $0x860] sm:$0xff]
    %v3028 = vld [vmem:[%s7 + $0x868] sm:$0xf]
    %v3029 = vld [vmem:[%s7 + $0x86c] sm:$0xff]
    %v3030 = vld [vmem:[%s7 + $0x874] sm:$0xff]
    %v3031 = vld [vmem:[%s7 + $0x87c] sm:$0xff]
    %v3032 = vld [vmem:[%s7 + $0x884] sm:$0xf]
    %v3033 = vld [vmem:[%s7 + $0x888] sm:$0xff]
    %v3034 = vld [vmem:[%s7 + $0x890] sm:$0xff]
    %v3035 = vld [vmem:[%s7 + $0x898] sm:$0xff]
    %v3036 = vld [vmem:[%s7 + $0x8a0] sm:$0xf]
    %v3037 = vld [vmem:[%s7 + $0x8a4] sm:$0xff]
    %v3038 = vld [vmem:[%s7 + $0x8ac] sm:$0xff]
    %v3039 = vld [vmem:[%s7 + $0x8b4] sm:$0xff]
    %v3040 = vld [vmem:[%s7 + $0x8bc] sm:$0xf]
    %v3041 = vld [vmem:[%s7 + $0x8c0] sm:$0xff]
    %v3042 = vld [vmem:[%s7 + $0x8c8] sm:$0xff]
    %v3043 = vld [vmem:[%s7 + $0x8d0] sm:$0xff]
    %v3044 = vld [vmem:[%s7 + $0x8d8] sm:$0xf]
    %v3045 = vld [vmem:[%s7 + $0x8dc] sm:$0xff]
    %v3046 = vld [vmem:[%s7 + $0x8e4] sm:$0xff]
    %v3047 = vld [vmem:[%s7 + $0x8ec] sm:$0xff]
    %v3048 = vld [vmem:[%s7 + $0x8f4] sm:$0xf]
    %v3049 = vld [vmem:[%s7 + $0x8f8] sm:$0xff]
    %v3050 = vld [vmem:[%s7 + $0x900] sm:$0xff]
    %v3051 = vld [vmem:[%s7 + $0x908] sm:$0xff]
    %v3052 = vld [vmem:[%s7 + $0x910] sm:$0xf]
    %v3053 = vld [vmem:[%s7 + $0x914] sm:$0xff]
    %v3054 = vld [vmem:[%s7 + $0x91c] sm:$0xff]
    %v3055 = vld [vmem:[%s7 + $0x924] sm:$0xff]
    %v3056 = vld [vmem:[%s7 + $0x92c] sm:$0xf]
    %v3057 = vld [vmem:[%s7 + $0x930] sm:$0xff]
    %v3058 = vld [vmem:[%s7 + $0x938] sm:$0xff]
    %v3059 = vld [vmem:[%s7 + $0x940] sm:$0xff]
    %v3060 = vld [vmem:[%s7 + $0x948] sm:$0xf]
    %v3061 = vld [vmem:[%s7 + $0x94c] sm:$0xff]
    %v3062 = vld [vmem:[%s7 + $0x954] sm:$0xff]
    %v3063 = vld [vmem:[%s7 + $0x95c] sm:$0xff]
    %v3064 = vld [vmem:[%s7 + $0x964] sm:$0xf]
    %v3065 = vld [vmem:[%s7 + $0x968] sm:$0xff]
    %v3066 = vld [vmem:[%s7 + $0x970] sm:$0xff]
    %v3067 = vld [vmem:[%s7 + $0x978] sm:$0xff]
    %v3068 = vld [vmem:[%s7 + $0x980] sm:$0xf]
    %v3069 = vld [vmem:[%s7 + $0x984] sm:$0xff]
    %v3070 = vld [vmem:[%s7 + $0x98c] sm:$0xff]
    %v3071 = vld [vmem:[%s7 + $0x994] sm:$0xff]
    %v3072 = vld [vmem:[%s7 + $0x99c] sm:$0xf]
    %v3073 = vld [vmem:[%s7 + $0x9a0] sm:$0xff]
    %v3074 = vld [vmem:[%s7 + $0x9a8] sm:$0xff]
    %v3075 = vld [vmem:[%s7 + $0x9b0] sm:$0xff]
    %v3076 = vld [vmem:[%s7 + $0x9b8] sm:$0xf]
    %v3077 = vld [vmem:[%s7 + $0x9bc] sm:$0xff]
    %v3078 = vld [vmem:[%s7 + $0x9c4] sm:$0xff]
    %v3079 = vld [vmem:[%s7 + $0x9cc] sm:$0xff]
    %v3080 = vld [vmem:[%s7 + $0x9d4] sm:$0xf]
    %v3081 = vld [vmem:[%s7 + $0x9d8] sm:$0xff]
    %v3082 = vld [vmem:[%s7 + $0x9e0] sm:$0xff]
    %v3083 = vld [vmem:[%s7 + $0x9e8] sm:$0xff]
    %v3084 = vld [vmem:[%s7 + $0x9f0] sm:$0xf]
    %v3085 = vld [vmem:[%s7 + $0x9f4] sm:$0xff]
    %v3086 = vld [vmem:[%s7 + $0x9fc] sm:$0xff]
    %v3087 = vld [vmem:[%s7 + $0xa04] sm:$0xff]
    %v3088 = vld [vmem:[%s7 + $0xa0c] sm:$0xf]
    %v3089 = vld [vmem:[%s7 + $0xa10] sm:$0xff]
    %v3090 = vld [vmem:[%s7 + $0xa18] sm:$0xff]
    %v3091 = vld [vmem:[%s7 + $0xa20] sm:$0xff]
    %v3092 = vld [vmem:[%s7 + $0xa28] sm:$0xf]
    %v3093 = vld [vmem:[%s7 + $0xa2c] sm:$0xff]
    %v3094 = vld [vmem:[%s7 + $0xa34] sm:$0xff]
    %v3095 = vld [vmem:[%s7 + $0xa3c] sm:$0xff]
    %v3096 = vld [vmem:[%s7 + $0xa44] sm:$0xf]
    %v3097 = vld [vmem:[%s7 + $0xa48] sm:$0xff]
    %v3098 = vld [vmem:[%s7 + $0xa50] sm:$0xff]
    %v3099 = vld [vmem:[%s7 + $0xa58] sm:$0xff]
    %v3100 = vld [vmem:[%s7 + $0xa60] sm:$0xf]
    %v3101 = vld [vmem:[%s7 + $0xa64] sm:$0xff]
    %v3102 = vld [vmem:[%s7 + $0xa6c] sm:$0xff]
    %v3103 = vld [vmem:[%s7 + $0xa74] sm:$0xff]
    %v3104 = vld [vmem:[%s7 + $0xa7c] sm:$0xf]
    %v3105 = vld [vmem:[%s7 + $0xa80] sm:$0xff]
    %v3106 = vld [vmem:[%s7 + $0xa88] sm:$0xff]
    %v3107 = vld [vmem:[%s7 + $0xa90] sm:$0xff]
    %v3108 = vld [vmem:[%s7 + $0xa98] sm:$0xf]
    %v3109 = vld [vmem:[%s7 + $0xa9c] sm:$0xff]
    %v3110 = vld [vmem:[%s7 + $0xaa4] sm:$0xff]
    %v3111 = vld [vmem:[%s7 + $0xaac] sm:$0xff]
    %v3112 = vld [vmem:[%s7 + $0xab4] sm:$0xf]
    %v3113 = vld [vmem:[%s7 + $0xab8] sm:$0xff]
    %v3114 = vld [vmem:[%s7 + $0xac0] sm:$0xff]
    %v3115 = vld [vmem:[%s7 + $0xac8] sm:$0xff]
    %v3116 = vld [vmem:[%s7 + $0xad0] sm:$0xf]
    %v3117 = vld [vmem:[%s7 + $0xad4] sm:$0xff]
    %v3118 = vld [vmem:[%s7 + $0xadc] sm:$0xff]
    %v3119 = vld [vmem:[%s7 + $0xae4] sm:$0xff]
    %v3120 = vld [vmem:[%s7 + $0xaec] sm:$0xf]
    %v3121 = vld [vmem:[%s7 + $0xaf0] sm:$0xff]
    %v3122 = vld [vmem:[%s7 + $0xaf8] sm:$0xff]
    %v3123 = vld [vmem:[%s7 + $0xb00] sm:$0xff]
    %v3124 = vld [vmem:[%s7 + $0xb08] sm:$0xf]
    %v3125 = vld [vmem:[%s7 + $0xb0c] sm:$0xff]
    %v3126 = vld [vmem:[%s7 + $0xb14] sm:$0xff]
    %v3127 = vld [vmem:[%s7 + $0xb1c] sm:$0xff]
    %v3128 = vld [vmem:[%s7 + $0xb24] sm:$0xf]
    %v3129 = vld [vmem:[%s7 + $0xb28] sm:$0xff]
    %v3130 = vld [vmem:[%s7 + $0xb30] sm:$0xff]
    %v3131 = vld [vmem:[%s7 + $0xb38] sm:$0xff]
    %v3132 = vld [vmem:[%s7 + $0xb40] sm:$0xf]
    %v3133 = vld [vmem:[%s7 + $0xb44] sm:$0xff]
    %v3134 = vld [vmem:[%s7 + $0xb4c] sm:$0xff]
    %v3135 = vld [vmem:[%s7 + $0xb54] sm:$0xff]
    %v3136 = vld [vmem:[%s7 + $0xb5c] sm:$0xf]
    %v3137 = vld [vmem:[%s7 + $0xb60] sm:$0xff]
    %v3138 = vld [vmem:[%s7 + $0xb68] sm:$0xff]
    %v3139 = vld [vmem:[%s7 + $0xb70] sm:$0xff]
    %v3140 = vld [vmem:[%s7 + $0xb78] sm:$0xf]
    %v3141 = vld [vmem:[%s7 + $0xb7c] sm:$0xff]
    %v3142 = vld [vmem:[%s7 + $0xb84] sm:$0xff]
    %v3143 = vld [vmem:[%s7 + $0xb8c] sm:$0xff]
    %v3144 = vld [vmem:[%s7 + $0xb94] sm:$0xf]
    %v3145 = vld [vmem:[%s7 + $0xb98] sm:$0xff]
    %v3146 = vld [vmem:[%s7 + $0xba0] sm:$0xff]
    %v3147 = vld [vmem:[%s7 + $0xba8] sm:$0xff]
    %v3148 = vld [vmem:[%s7 + $0xbb0] sm:$0xf]
    %v3149 = vld [vmem:[%s7 + $0xbb4] sm:$0xff]
    %v3150 = vld [vmem:[%s7 + $0xbbc] sm:$0xff]
    %v3151 = vld [vmem:[%s7 + $0xbc4] sm:$0xff]
    %v3152 = vld [vmem:[%s7 + $0xbcc] sm:$0xf]
    %v3153 = vld [vmem:[%s7 + $0xbd0] sm:$0xff]
    %v3154 = vld [vmem:[%s7 + $0xbd8] sm:$0xff]
    %v3155 = vld [vmem:[%s7 + $0xbe0] sm:$0xff]
    %v3156 = vld [vmem:[%s7 + $0xbe8] sm:$0xf]
    %v3157 = vld [vmem:[%s7 + $0xbec] sm:$0xff]
    %v3158 = vld [vmem:[%s7 + $0xbf4] sm:$0xff]
    %v3159 = vld [vmem:[%s7 + $0xbfc] sm:$0xff]
    %v3160 = vld [vmem:[%s7 + $0xc04] sm:$0xf]
    %v3161 = vld [vmem:[%s7 + $0xc08] sm:$0xff]
    %v3162 = vld [vmem:[%s7 + $0xc10] sm:$0xff]
    %v3163 = vld [vmem:[%s7 + $0xc18] sm:$0xff]
    %v3164 = vld [vmem:[%s7 + $0xc20] sm:$0xf]
    %v3165 = vld [vmem:[%s7 + $0xc24] sm:$0xff]
    %v3166 = vld [vmem:[%s7 + $0xc2c] sm:$0xff]
    %v3167 = vld [vmem:[%s7 + $0xc34] sm:$0xff]
    %v3168 = vld [vmem:[%s7 + $0xc3c] sm:$0xf]
    %v3169 = vld [vmem:[%s7 + $0xc40] sm:$0xff]
    %v3170 = vld [vmem:[%s7 + $0xc48] sm:$0xff]
    %v3171 = vld [vmem:[%s7 + $0xc50] sm:$0xff]
    %v3172 = vld [vmem:[%s7 + $0xc58] sm:$0xf]
    %v3173 = vld [vmem:[%s7 + $0xc5c] sm:$0xff]
    %v3174 = vld [vmem:[%s7 + $0xc64] sm:$0xff]
    %v3175 = vld [vmem:[%s7 + $0xc6c] sm:$0xff]
    %v3176 = vld [vmem:[%s7 + $0xc74] sm:$0xf]
    %v3177 = vld [vmem:[%s7 + $0xc78] sm:$0xff]
    %v3178 = vld [vmem:[%s7 + $0xc80] sm:$0xff]
    %v3179 = vld [vmem:[%s7 + $0xc88] sm:$0xff]
    %v3180 = vld [vmem:[%s7 + $0xc90] sm:$0xf]
    %v3181 = vld [vmem:[%s7 + $0xc94] sm:$0xff]
    %v3182 = vld [vmem:[%s7 + $0xc9c] sm:$0xff]
    %v3183 = vld [vmem:[%s7 + $0xca4] sm:$0xff]
    %v3184 = vld [vmem:[%s7 + $0xcac] sm:$0xf]
    %v3185 = vld [vmem:[%s7 + $0xcb0] sm:$0xff]
    %v3186 = vld [vmem:[%s7 + $0xcb8] sm:$0xff]
    %v3187 = vld [vmem:[%s7 + $0xcc0] sm:$0xff]
    %v3188 = vld [vmem:[%s7 + $0xcc8] sm:$0xf]
    %v3189 = vld [vmem:[%s7 + $0xccc] sm:$0xff]
    %v3190 = vld [vmem:[%s7 + $0xcd4] sm:$0xff]
    %v3191 = vld [vmem:[%s7 + $0xcdc] sm:$0xff]
    %v3192 = vld [vmem:[%s7 + $0xce4] sm:$0xf]
    %v3193 = vld [vmem:[%s7 + $0xce8] sm:$0xff]
    %v3194 = vld [vmem:[%s7 + $0xcf0] sm:$0xff]
    %v3195 = vld [vmem:[%s7 + $0xcf8] sm:$0xff]
    %v3196 = vld [vmem:[%s7 + $0xd00] sm:$0xf]
    %v3197 = vld [vmem:[%s7 + $0xd04] sm:$0xff]
    %v3198 = vld [vmem:[%s7 + $0xd0c] sm:$0xff]
    %v3199 = vld [vmem:[%s7 + $0xd14] sm:$0xff]
    %v3200 = vld [vmem:[%s7 + $0xd1c] sm:$0xf]
    %v3201 = vld [vmem:[%s7 + $0xd20] sm:$0xff]
    %v3202 = vld [vmem:[%s7 + $0xd28] sm:$0xff]
    %v3203 = vld [vmem:[%s7 + $0xd30] sm:$0xff]
    %v3204 = vld [vmem:[%s7 + $0xd38] sm:$0xf]
    %v3205 = vld [vmem:[%s7 + $0xd3c] sm:$0xff]
    %v3206 = vld [vmem:[%s7 + $0xd44] sm:$0xff]
    %v3207 = vld [vmem:[%s7 + $0xd4c] sm:$0xff]
    %v3208 = vld [vmem:[%s7 + $0xd54] sm:$0xf]
    %v3209 = vld [vmem:[%s7 + $0xd58] sm:$0xff]
    %v3210 = vld [vmem:[%s7 + $0xd60] sm:$0xff]
    %v3211 = vld [vmem:[%s7 + $0xd68] sm:$0xff]
    %v3212 = vld [vmem:[%s7 + $0xd70] sm:$0xf]
    %v3213 = vld [vmem:[%s7 + $0xd74] sm:$0xff]
    %v3214 = vld [vmem:[%s7 + $0xd7c] sm:$0xff]
    %v3215 = vld [vmem:[%s7 + $0xd84] sm:$0xff]
    %v3216 = vld [vmem:[%s7 + $0xd8c] sm:$0xf]
    %v3217 = vld [vmem:[%s7 + $0xd90] sm:$0xff]
    %v3218 = vld [vmem:[%s7 + $0xd98] sm:$0xff]
    %v3219 = vld [vmem:[%s7 + $0xda0] sm:$0xff]
    %v3220 = vld [vmem:[%s7 + $0xda8] sm:$0xf]
    %v3221 = vld [vmem:[%s7 + $0xdac] sm:$0xff]
    %v3222 = vld [vmem:[%s7 + $0xdb4] sm:$0xff]
    %v3223 = vld [vmem:[%s7 + $0xdbc] sm:$0xff]
    %v3224 = vld [vmem:[%s7 + $0xdc4] sm:$0xf]
    %v3225 = vld [vmem:[%s7 + $0xdc8] sm:$0xff]
    %v3226 = vld [vmem:[%s7 + $0xdd0] sm:$0xff]
    %v3227 = vld [vmem:[%s7 + $0xdd8] sm:$0xff]
    %v3228 = vld [vmem:[%s7 + $0xde0] sm:$0xf]
    %v3229 = vld [vmem:[%s7 + $0xde4] sm:$0xff]
    %v3230 = vld [vmem:[%s7 + $0xdec] sm:$0xff]
    %v3231 = vld [vmem:[%s7 + $0xdf4] sm:$0xff]
    %v3232 = vld [vmem:[%s7 + $0xdfc] sm:$0xf]
    %v3233 = vld [vmem:[%s8] sm:$0x7f]
    %v3235 = vperm.slane %v3233, 0
    %v3236 = vperm.slane %v3233, 1
    %v3237 = vperm.slane %v3233, 2
    %v3238 = vperm.slane %v3233, 3
    %v3239 = vperm.slane %v3233, 4
    %v3240 = vperm.slane %v3233, 5
    %v3241 = vperm.slane %v3233, 6
    %v3761 = vunpack.c.l.b16 %v2721
    %v3762 = vunpack.c.h.b16 %v2721
    %v3763 = vunpack.c.l.b16 %v2722
    %v3764 = vunpack.c.h.b16 %v2722
    %v3765 = vunpack.c.l.b16 %v2723
    %v3766 = vunpack.c.h.b16 %v2723
    %v3767 = vunpack.c.l.b16 %v2724
    %v3768 = vunpack.c.l.b16 %v2725
    %v3769 = vunpack.c.h.b16 %v2725
    %v3770 = vunpack.c.l.b16 %v2726
    %v3771 = vunpack.c.h.b16 %v2726
    %v3772 = vunpack.c.l.b16 %v2727
    %v3773 = vunpack.c.h.b16 %v2727
    %v3774 = vunpack.c.l.b16 %v2728
    %v3775 = vunpack.c.l.b16 %v2729
    %v3776 = vunpack.c.h.b16 %v2729
    %v3777 = vunpack.c.l.b16 %v2730
    %v3778 = vunpack.c.h.b16 %v2730
    %v3779 = vunpack.c.l.b16 %v2731
    %v3780 = vunpack.c.h.b16 %v2731
    %v3781 = vunpack.c.l.b16 %v2732
    %v3782 = vunpack.c.l.b16 %v2733
    %v3783 = vunpack.c.h.b16 %v2733
    %v3784 = vunpack.c.l.b16 %v2734
    %v3785 = vunpack.c.h.b16 %v2734
    %v3786 = vunpack.c.l.b16 %v2735
    %v3787 = vunpack.c.h.b16 %v2735
    %v3788 = vunpack.c.l.b16 %v2736
    %v3789 = vunpack.c.l.b16 %v2737
    %v3790 = vunpack.c.h.b16 %v2737
    %v3791 = vunpack.c.l.b16 %v2738
    %v3792 = vunpack.c.h.b16 %v2738
    %v3793 = vunpack.c.l.b16 %v2739
    %v3794 = vunpack.c.h.b16 %v2739
    %v3795 = vunpack.c.l.b16 %v2740
    %v3796 = vunpack.c.l.b16 %v2741
    %v3797 = vunpack.c.h.b16 %v2741
    %v3798 = vunpack.c.l.b16 %v2742
    %v3799 = vunpack.c.h.b16 %v2742
    %v3800 = vunpack.c.l.b16 %v2743
    %v3801 = vunpack.c.h.b16 %v2743
    %v3802 = vunpack.c.l.b16 %v2744
    %v3803 = vunpack.c.l.b16 %v2745
    %v3804 = vunpack.c.h.b16 %v2745
    %v3805 = vunpack.c.l.b16 %v2746
    %v3806 = vunpack.c.h.b16 %v2746
    %v3807 = vunpack.c.l.b16 %v2747
    %v3808 = vunpack.c.h.b16 %v2747
    %v3809 = vunpack.c.l.b16 %v2748
    %v3810 = vunpack.c.l.b16 %v2749
    %v3811 = vunpack.c.h.b16 %v2749
    %v3812 = vunpack.c.l.b16 %v2750
    %v3813 = vunpack.c.h.b16 %v2750
    %v3814 = vunpack.c.l.b16 %v2751
    %v3815 = vunpack.c.h.b16 %v2751
    %v3816 = vunpack.c.l.b16 %v2752
    %v3817 = vunpack.c.l.b16 %v2753
    %v3818 = vunpack.c.h.b16 %v2753
    %v3819 = vunpack.c.l.b16 %v2754
    %v3820 = vunpack.c.h.b16 %v2754
    %v3821 = vunpack.c.l.b16 %v2755
    %v3822 = vunpack.c.h.b16 %v2755
    %v3823 = vunpack.c.l.b16 %v2756
    %v3824 = vunpack.c.l.b16 %v2757
    %v3825 = vunpack.c.h.b16 %v2757
    %v3826 = vunpack.c.l.b16 %v2758
    %v3827 = vunpack.c.h.b16 %v2758
    %v3828 = vunpack.c.l.b16 %v2759
    %v3829 = vunpack.c.h.b16 %v2759
    %v3830 = vunpack.c.l.b16 %v2760
    %v3831 = vunpack.c.l.b16 %v2761
    %v3832 = vunpack.c.h.b16 %v2761
    %v3833 = vunpack.c.l.b16 %v2762
    %v3834 = vunpack.c.h.b16 %v2762
    %v3835 = vunpack.c.l.b16 %v2763
    %v3836 = vunpack.c.h.b16 %v2763
    %v3837 = vunpack.c.l.b16 %v2764
    %v3838 = vunpack.c.l.b16 %v2765
    %v3839 = vunpack.c.h.b16 %v2765
    %v3840 = vunpack.c.l.b16 %v2766
    %v3841 = vunpack.c.h.b16 %v2766
    %v3842 = vunpack.c.l.b16 %v2767
    %v3843 = vunpack.c.h.b16 %v2767
    %v3844 = vunpack.c.l.b16 %v2768
    %v3845 = vunpack.c.l.b16 %v2769
    %v3846 = vunpack.c.h.b16 %v2769
    %v3847 = vunpack.c.l.b16 %v2770
    %v3848 = vunpack.c.h.b16 %v2770
    %v3849 = vunpack.c.l.b16 %v2771
    %v3850 = vunpack.c.h.b16 %v2771
    %v3851 = vunpack.c.l.b16 %v2772
    %v3852 = vunpack.c.l.b16 %v2773
    %v3853 = vunpack.c.h.b16 %v2773
    %v3854 = vunpack.c.l.b16 %v2774
    %v3855 = vunpack.c.h.b16 %v2774
    %v3856 = vunpack.c.l.b16 %v2775
    %v3857 = vunpack.c.h.b16 %v2775
    %v3858 = vunpack.c.l.b16 %v2776
    %v3859 = vunpack.c.l.b16 %v2777
    %v3860 = vunpack.c.h.b16 %v2777
    %v3861 = vunpack.c.l.b16 %v2778
    %v3862 = vunpack.c.h.b16 %v2778
    %v3863 = vunpack.c.l.b16 %v2779
    %v3864 = vunpack.c.h.b16 %v2779
    %v3865 = vunpack.c.l.b16 %v2780
    %v3866 = vunpack.c.l.b16 %v2781
    %v3867 = vunpack.c.h.b16 %v2781
    %v3868 = vunpack.c.l.b16 %v2782
    %v3869 = vunpack.c.h.b16 %v2782
    %v3870 = vunpack.c.l.b16 %v2783
    %v3871 = vunpack.c.h.b16 %v2783
    %v3872 = vunpack.c.l.b16 %v2784
    %v3873 = vunpack.c.l.b16 %v2785
    %v3874 = vunpack.c.h.b16 %v2785
    %v3875 = vunpack.c.l.b16 %v2786
    %v3876 = vunpack.c.h.b16 %v2786
    %v3877 = vunpack.c.l.b16 %v2787
    %v3878 = vunpack.c.h.b16 %v2787
    %v3879 = vunpack.c.l.b16 %v2788
    %v3880 = vunpack.c.l.b16 %v2789
    %v3881 = vunpack.c.h.b16 %v2789
    %v3882 = vunpack.c.l.b16 %v2790
    %v3883 = vunpack.c.h.b16 %v2790
    %v3884 = vunpack.c.l.b16 %v2791
    %v3885 = vunpack.c.h.b16 %v2791
    %v3886 = vunpack.c.l.b16 %v2792
    %v3887 = vunpack.c.l.b16 %v2793
    %v3888 = vunpack.c.h.b16 %v2793
    %v3889 = vunpack.c.l.b16 %v2794
    %v3890 = vunpack.c.h.b16 %v2794
    %v3891 = vunpack.c.l.b16 %v2795
    %v3892 = vunpack.c.h.b16 %v2795
    %v3893 = vunpack.c.l.b16 %v2796
    %v3894 = vunpack.c.l.b16 %v2797
    %v3895 = vunpack.c.h.b16 %v2797
    %v3896 = vunpack.c.l.b16 %v2798
    %v3897 = vunpack.c.h.b16 %v2798
    %v3898 = vunpack.c.l.b16 %v2799
    %v3899 = vunpack.c.h.b16 %v2799
    %v3900 = vunpack.c.l.b16 %v2800
    %v3901 = vunpack.c.l.b16 %v2801
    %v3902 = vunpack.c.h.b16 %v2801
    %v3903 = vunpack.c.l.b16 %v2802
    %v3904 = vunpack.c.h.b16 %v2802
    %v3905 = vunpack.c.l.b16 %v2803
    %v3906 = vunpack.c.h.b16 %v2803
    %v3907 = vunpack.c.l.b16 %v2804
    %v3908 = vunpack.c.l.b16 %v2805
    %v3909 = vunpack.c.h.b16 %v2805
    %v3910 = vunpack.c.l.b16 %v2806
    %v3911 = vunpack.c.h.b16 %v2806
    %v3912 = vunpack.c.l.b16 %v2807
    %v3913 = vunpack.c.h.b16 %v2807
    %v3914 = vunpack.c.l.b16 %v2808
    %v3915 = vunpack.c.l.b16 %v2809
    %v3916 = vunpack.c.h.b16 %v2809
    %v3917 = vunpack.c.l.b16 %v2810
    %v3918 = vunpack.c.h.b16 %v2810
    %v3919 = vunpack.c.l.b16 %v2811
    %v3920 = vunpack.c.h.b16 %v2811
    %v3921 = vunpack.c.l.b16 %v2812
    %v3922 = vunpack.c.l.b16 %v2813
    %v3923 = vunpack.c.h.b16 %v2813
    %v3924 = vunpack.c.l.b16 %v2814
    %v3925 = vunpack.c.h.b16 %v2814
    %v3926 = vunpack.c.l.b16 %v2815
    %v3927 = vunpack.c.h.b16 %v2815
    %v3928 = vunpack.c.l.b16 %v2816
    %v3929 = vunpack.c.l.b16 %v2817
    %v3930 = vunpack.c.h.b16 %v2817
    %v3931 = vunpack.c.l.b16 %v2818
    %v3932 = vunpack.c.h.b16 %v2818
    %v3933 = vunpack.c.l.b16 %v2819
    %v3934 = vunpack.c.h.b16 %v2819
    %v3935 = vunpack.c.l.b16 %v2820
    %v3936 = vunpack.c.l.b16 %v2821
    %v3937 = vunpack.c.h.b16 %v2821
    %v3938 = vunpack.c.l.b16 %v2822
    %v3939 = vunpack.c.h.b16 %v2822
    %v3940 = vunpack.c.l.b16 %v2823
    %v3941 = vunpack.c.h.b16 %v2823
    %v3942 = vunpack.c.l.b16 %v2824
    %v3943 = vunpack.c.l.b16 %v2825
    %v3944 = vunpack.c.h.b16 %v2825
    %v3945 = vunpack.c.l.b16 %v2826
    %v3946 = vunpack.c.h.b16 %v2826
    %v3947 = vunpack.c.l.b16 %v2827
    %v3948 = vunpack.c.h.b16 %v2827
    %v3949 = vunpack.c.l.b16 %v2828
    %v3950 = vunpack.c.l.b16 %v2829
    %v3951 = vunpack.c.h.b16 %v2829
    %v3952 = vunpack.c.l.b16 %v2830
    %v3953 = vunpack.c.h.b16 %v2830
    %v3954 = vunpack.c.l.b16 %v2831
    %v3955 = vunpack.c.h.b16 %v2831
    %v3956 = vunpack.c.l.b16 %v2832
    %v3957 = vunpack.c.l.b16 %v2833
    %v3958 = vunpack.c.h.b16 %v2833
    %v3959 = vunpack.c.l.b16 %v2834
    %v3960 = vunpack.c.h.b16 %v2834
    %v3961 = vunpack.c.l.b16 %v2835
    %v3962 = vunpack.c.h.b16 %v2835
    %v3963 = vunpack.c.l.b16 %v2836
    %v3964 = vunpack.c.l.b16 %v2837
    %v3965 = vunpack.c.h.b16 %v2837
    %v3966 = vunpack.c.l.b16 %v2838
    %v3967 = vunpack.c.h.b16 %v2838
    %v3968 = vunpack.c.l.b16 %v2839
    %v3969 = vunpack.c.h.b16 %v2839
    %v3970 = vunpack.c.l.b16 %v2840
    %v3971 = vunpack.c.l.b16 %v2841
    %v3972 = vunpack.c.h.b16 %v2841
    %v3973 = vunpack.c.l.b16 %v2842
    %v3974 = vunpack.c.h.b16 %v2842
    %v3975 = vunpack.c.l.b16 %v2843
    %v3976 = vunpack.c.h.b16 %v2843
    %v3977 = vunpack.c.l.b16 %v2844
    %v3978 = vunpack.c.l.b16 %v2845
    %v3979 = vunpack.c.h.b16 %v2845
    %v3980 = vunpack.c.l.b16 %v2846
    %v3981 = vunpack.c.h.b16 %v2846
    %v3982 = vunpack.c.l.b16 %v2847
    %v3983 = vunpack.c.h.b16 %v2847
    %v3984 = vunpack.c.l.b16 %v2848
    %v3985 = vunpack.c.l.b16 %v2849
    %v3986 = vunpack.c.h.b16 %v2849
    %v3987 = vunpack.c.l.b16 %v2850
    %v3988 = vunpack.c.h.b16 %v2850
    %v3989 = vunpack.c.l.b16 %v2851
    %v3990 = vunpack.c.h.b16 %v2851
    %v3991 = vunpack.c.l.b16 %v2852
    %v3992 = vunpack.c.l.b16 %v2853
    %v3993 = vunpack.c.h.b16 %v2853
    %v3994 = vunpack.c.l.b16 %v2854
    %v3995 = vunpack.c.h.b16 %v2854
    %v3996 = vunpack.c.l.b16 %v2855
    %v3997 = vunpack.c.h.b16 %v2855
    %v3998 = vunpack.c.l.b16 %v2856
    %v3999 = vunpack.c.l.b16 %v2857
    %v4000 = vunpack.c.h.b16 %v2857
    %v4001 = vunpack.c.l.b16 %v2858
    %v4002 = vunpack.c.h.b16 %v2858
    %v4003 = vunpack.c.l.b16 %v2859
    %v4004 = vunpack.c.h.b16 %v2859
    %v4005 = vunpack.c.l.b16 %v2860
    %v4006 = vunpack.c.l.b16 %v2861
    %v4007 = vunpack.c.h.b16 %v2861
    %v4008 = vunpack.c.l.b16 %v2862
    %v4009 = vunpack.c.h.b16 %v2862
    %v4010 = vunpack.c.l.b16 %v2863
    %v4011 = vunpack.c.h.b16 %v2863
    %v4012 = vunpack.c.l.b16 %v2864
    %v4013 = vunpack.c.l.b16 %v2865
    %v4014 = vunpack.c.h.b16 %v2865
    %v4015 = vunpack.c.l.b16 %v2866
    %v4016 = vunpack.c.h.b16 %v2866
    %v4017 = vunpack.c.l.b16 %v2867
    %v4018 = vunpack.c.h.b16 %v2867
    %v4019 = vunpack.c.l.b16 %v2868
    %v4020 = vunpack.c.l.b16 %v2869
    %v4021 = vunpack.c.h.b16 %v2869
    %v4022 = vunpack.c.l.b16 %v2870
    %v4023 = vunpack.c.h.b16 %v2870
    %v4024 = vunpack.c.l.b16 %v2871
    %v4025 = vunpack.c.h.b16 %v2871
    %v4026 = vunpack.c.l.b16 %v2872
    %v4027 = vunpack.c.l.b16 %v2873
    %v4028 = vunpack.c.h.b16 %v2873
    %v4029 = vunpack.c.l.b16 %v2874
    %v4030 = vunpack.c.h.b16 %v2874
    %v4031 = vunpack.c.l.b16 %v2875
    %v4032 = vunpack.c.h.b16 %v2875
    %v4033 = vunpack.c.l.b16 %v2876
    %v4034 = vunpack.c.l.b16 %v2877
    %v4035 = vunpack.c.h.b16 %v2877
    %v4036 = vunpack.c.l.b16 %v2878
    %v4037 = vunpack.c.h.b16 %v2878
    %v4038 = vunpack.c.l.b16 %v2879
    %v4039 = vunpack.c.h.b16 %v2879
    %v4040 = vunpack.c.l.b16 %v2880
    %v4041 = vunpack.c.l.b16 %v2881
    %v4042 = vunpack.c.h.b16 %v2881
    %v4043 = vunpack.c.l.b16 %v2882
    %v4044 = vunpack.c.h.b16 %v2882
    %v4045 = vunpack.c.l.b16 %v2883
    %v4046 = vunpack.c.h.b16 %v2883
    %v4047 = vunpack.c.l.b16 %v2884
    %v4048 = vunpack.c.l.b16 %v2885
    %v4049 = vunpack.c.h.b16 %v2885
    %v4050 = vunpack.c.l.b16 %v2886
    %v4051 = vunpack.c.h.b16 %v2886
    %v4052 = vunpack.c.l.b16 %v2887
    %v4053 = vunpack.c.h.b16 %v2887
    %v4054 = vunpack.c.l.b16 %v2888
    %v4055 = vunpack.c.l.b16 %v2889
    %v4056 = vunpack.c.h.b16 %v2889
    %v4057 = vunpack.c.l.b16 %v2890
    %v4058 = vunpack.c.h.b16 %v2890
    %v4059 = vunpack.c.l.b16 %v2891
    %v4060 = vunpack.c.h.b16 %v2891
    %v4061 = vunpack.c.l.b16 %v2892
    %v4062 = vunpack.c.l.b16 %v2893
    %v4063 = vunpack.c.h.b16 %v2893
    %v4064 = vunpack.c.l.b16 %v2894
    %v4065 = vunpack.c.h.b16 %v2894
    %v4066 = vunpack.c.l.b16 %v2895
    %v4067 = vunpack.c.h.b16 %v2895
    %v4068 = vunpack.c.l.b16 %v2896
    %v4069 = vunpack.c.l.b16 %v2897
    %v4070 = vunpack.c.h.b16 %v2897
    %v4071 = vunpack.c.l.b16 %v2898
    %v4072 = vunpack.c.h.b16 %v2898
    %v4073 = vunpack.c.l.b16 %v2899
    %v4074 = vunpack.c.h.b16 %v2899
    %v4075 = vunpack.c.l.b16 %v2900
    %v4076 = vunpack.c.l.b16 %v2901
    %v4077 = vunpack.c.h.b16 %v2901
    %v4078 = vunpack.c.l.b16 %v2902
    %v4079 = vunpack.c.h.b16 %v2902
    %v4080 = vunpack.c.l.b16 %v2903
    %v4081 = vunpack.c.h.b16 %v2903
    %v4082 = vunpack.c.l.b16 %v2904
    %v4083 = vunpack.c.l.b16 %v2905
    %v4084 = vunpack.c.h.b16 %v2905
    %v4085 = vunpack.c.l.b16 %v2906
    %v4086 = vunpack.c.h.b16 %v2906
    %v4087 = vunpack.c.l.b16 %v2907
    %v4088 = vunpack.c.h.b16 %v2907
    %v4089 = vunpack.c.l.b16 %v2908
    %v4090 = vunpack.c.l.b16 %v2909
    %v4091 = vunpack.c.h.b16 %v2909
    %v4092 = vunpack.c.l.b16 %v2910
    %v4093 = vunpack.c.h.b16 %v2910
    %v4094 = vunpack.c.l.b16 %v2911
    %v4095 = vunpack.c.h.b16 %v2911
    %v4096 = vunpack.c.l.b16 %v2912
    %v4097 = vunpack.c.l.b16 %v2913
    %v4098 = vunpack.c.h.b16 %v2913
    %v4099 = vunpack.c.l.b16 %v2914
    %v4100 = vunpack.c.h.b16 %v2914
    %v4101 = vunpack.c.l.b16 %v2915
    %v4102 = vunpack.c.h.b16 %v2915
    %v4103 = vunpack.c.l.b16 %v2916
    %v4104 = vunpack.c.l.b16 %v2917
    %v4105 = vunpack.c.h.b16 %v2917
    %v4106 = vunpack.c.l.b16 %v2918
    %v4107 = vunpack.c.h.b16 %v2918
    %v4108 = vunpack.c.l.b16 %v2919
    %v4109 = vunpack.c.h.b16 %v2919
    %v4110 = vunpack.c.l.b16 %v2920
    %v4111 = vunpack.c.l.b16 %v2921
    %v4112 = vunpack.c.h.b16 %v2921
    %v4113 = vunpack.c.l.b16 %v2922
    %v4114 = vunpack.c.h.b16 %v2922
    %v4115 = vunpack.c.l.b16 %v2923
    %v4116 = vunpack.c.h.b16 %v2923
    %v4117 = vunpack.c.l.b16 %v2924
    %v4118 = vunpack.c.l.b16 %v2925
    %v4119 = vunpack.c.h.b16 %v2925
    %v4120 = vunpack.c.l.b16 %v2926
    %v4121 = vunpack.c.h.b16 %v2926
    %v4122 = vunpack.c.l.b16 %v2927
    %v4123 = vunpack.c.h.b16 %v2927
    %v4124 = vunpack.c.l.b16 %v2928
    %v4125 = vunpack.c.l.b16 %v2929
    %v4126 = vunpack.c.h.b16 %v2929
    %v4127 = vunpack.c.l.b16 %v2930
    %v4128 = vunpack.c.h.b16 %v2930
    %v4129 = vunpack.c.l.b16 %v2931
    %v4130 = vunpack.c.h.b16 %v2931
    %v4131 = vunpack.c.l.b16 %v2932
    %v4132 = vunpack.c.l.b16 %v2933
    %v4133 = vunpack.c.h.b16 %v2933
    %v4134 = vunpack.c.l.b16 %v2934
    %v4135 = vunpack.c.h.b16 %v2934
    %v4136 = vunpack.c.l.b16 %v2935
    %v4137 = vunpack.c.h.b16 %v2935
    %v4138 = vunpack.c.l.b16 %v2936
    %v4139 = vunpack.c.l.b16 %v2937
    %v4140 = vunpack.c.h.b16 %v2937
    %v4141 = vunpack.c.l.b16 %v2938
    %v4142 = vunpack.c.h.b16 %v2938
    %v4143 = vunpack.c.l.b16 %v2939
    %v4144 = vunpack.c.h.b16 %v2939
    %v4145 = vunpack.c.l.b16 %v2940
    %v4146 = vunpack.c.l.b16 %v2941
    %v4147 = vunpack.c.h.b16 %v2941
    %v4148 = vunpack.c.l.b16 %v2942
    %v4149 = vunpack.c.h.b16 %v2942
    %v4150 = vunpack.c.l.b16 %v2943
    %v4151 = vunpack.c.h.b16 %v2943
    %v4152 = vunpack.c.l.b16 %v2944
    %v4153 = vunpack.c.l.b16 %v2945
    %v4154 = vunpack.c.h.b16 %v2945
    %v4155 = vunpack.c.l.b16 %v2946
    %v4156 = vunpack.c.h.b16 %v2946
    %v4157 = vunpack.c.l.b16 %v2947
    %v4158 = vunpack.c.h.b16 %v2947
    %v4159 = vunpack.c.l.b16 %v2948
    %v4160 = vunpack.c.l.b16 %v2949
    %v4161 = vunpack.c.h.b16 %v2949
    %v4162 = vunpack.c.l.b16 %v2950
    %v4163 = vunpack.c.h.b16 %v2950
    %v4164 = vunpack.c.l.b16 %v2951
    %v4165 = vunpack.c.h.b16 %v2951
    %v4166 = vunpack.c.l.b16 %v2952
    %v4167 = vunpack.c.l.b16 %v2953
    %v4168 = vunpack.c.h.b16 %v2953
    %v4169 = vunpack.c.l.b16 %v2954
    %v4170 = vunpack.c.h.b16 %v2954
    %v4171 = vunpack.c.l.b16 %v2955
    %v4172 = vunpack.c.h.b16 %v2955
    %v4173 = vunpack.c.l.b16 %v2956
    %v4174 = vunpack.c.l.b16 %v2957
    %v4175 = vunpack.c.h.b16 %v2957
    %v4176 = vunpack.c.l.b16 %v2958
    %v4177 = vunpack.c.h.b16 %v2958
    %v4178 = vunpack.c.l.b16 %v2959
    %v4179 = vunpack.c.h.b16 %v2959
    %v4180 = vunpack.c.l.b16 %v2960
    %v4181 = vunpack.c.l.b16 %v2961
    %v4182 = vunpack.c.h.b16 %v2961
    %v4183 = vunpack.c.l.b16 %v2962
    %v4184 = vunpack.c.h.b16 %v2962
    %v4185 = vunpack.c.l.b16 %v2963
    %v4186 = vunpack.c.h.b16 %v2963
    %v4187 = vunpack.c.l.b16 %v2964
    %v4188 = vunpack.c.l.b16 %v2965
    %v4189 = vunpack.c.h.b16 %v2965
    %v4190 = vunpack.c.l.b16 %v2966
    %v4191 = vunpack.c.h.b16 %v2966
    %v4192 = vunpack.c.l.b16 %v2967
    %v4193 = vunpack.c.h.b16 %v2967
    %v4194 = vunpack.c.l.b16 %v2968
    %v4195 = vunpack.c.l.b16 %v2969
    %v4196 = vunpack.c.h.b16 %v2969
    %v4197 = vunpack.c.l.b16 %v2970
    %v4198 = vunpack.c.h.b16 %v2970
    %v4199 = vunpack.c.l.b16 %v2971
    %v4200 = vunpack.c.h.b16 %v2971
    %v4201 = vunpack.c.l.b16 %v2972
    %v4202 = vunpack.c.l.b16 %v2973
    %v4203 = vunpack.c.h.b16 %v2973
    %v4204 = vunpack.c.l.b16 %v2974
    %v4205 = vunpack.c.h.b16 %v2974
    %v4206 = vunpack.c.l.b16 %v2975
    %v4207 = vunpack.c.h.b16 %v2975
    %v4208 = vunpack.c.l.b16 %v2976
    %v4209 = vunpack.c.l.b16 %v2977
    %v4210 = vunpack.c.h.b16 %v2977
    %v4211 = vunpack.c.l.b16 %v2978
    %v4212 = vunpack.c.h.b16 %v2978
    %v4213 = vunpack.c.l.b16 %v2979
    %v4214 = vunpack.c.h.b16 %v2979
    %v4215 = vunpack.c.l.b16 %v2980
    %v4216 = vunpack.c.l.b16 %v2981
    %v4217 = vunpack.c.h.b16 %v2981
    %v4218 = vunpack.c.l.b16 %v2982
    %v4219 = vunpack.c.h.b16 %v2982
    %v4220 = vunpack.c.l.b16 %v2983
    %v4221 = vunpack.c.h.b16 %v2983
    %v4222 = vunpack.c.l.b16 %v2984
    %v4223 = vunpack.c.l.b16 %v2985
    %v4224 = vunpack.c.h.b16 %v2985
    %v4225 = vunpack.c.l.b16 %v2986
    %v4226 = vunpack.c.h.b16 %v2986
    %v4227 = vunpack.c.l.b16 %v2987
    %v4228 = vunpack.c.h.b16 %v2987
    %v4229 = vunpack.c.l.b16 %v2988
    %v4230 = vunpack.c.l.b16 %v2989
    %v4231 = vunpack.c.h.b16 %v2989
    %v4232 = vunpack.c.l.b16 %v2990
    %v4233 = vunpack.c.h.b16 %v2990
    %v4234 = vunpack.c.l.b16 %v2991
    %v4235 = vunpack.c.h.b16 %v2991
    %v4236 = vunpack.c.l.b16 %v2992
    %v4237 = vunpack.c.l.b16 %v2993
    %v4238 = vunpack.c.h.b16 %v2993
    %v4239 = vunpack.c.l.b16 %v2994
    %v4240 = vunpack.c.h.b16 %v2994
    %v4241 = vunpack.c.l.b16 %v2995
    %v4242 = vunpack.c.h.b16 %v2995
    %v4243 = vunpack.c.l.b16 %v2996
    %v4244 = vunpack.c.l.b16 %v2997
    %v4245 = vunpack.c.h.b16 %v2997
    %v4246 = vunpack.c.l.b16 %v2998
    %v4247 = vunpack.c.h.b16 %v2998
    %v4248 = vunpack.c.l.b16 %v2999
    %v4249 = vunpack.c.h.b16 %v2999
    %v4250 = vunpack.c.l.b16 %v3000
    %v4251 = vunpack.c.l.b16 %v3001
    %v4252 = vunpack.c.h.b16 %v3001
    %v4253 = vunpack.c.l.b16 %v3002
    %v4254 = vunpack.c.h.b16 %v3002
    %v4255 = vunpack.c.l.b16 %v3003
    %v4256 = vunpack.c.h.b16 %v3003
    %v4257 = vunpack.c.l.b16 %v3004
    %v4258 = vunpack.c.l.b16 %v3005
    %v4259 = vunpack.c.h.b16 %v3005
    %v4260 = vunpack.c.l.b16 %v3006
    %v4261 = vunpack.c.h.b16 %v3006
    %v4262 = vunpack.c.l.b16 %v3007
    %v4263 = vunpack.c.h.b16 %v3007
    %v4264 = vunpack.c.l.b16 %v3008
    %v4265 = vunpack.c.l.b16 %v3009
    %v4266 = vunpack.c.h.b16 %v3009
    %v4267 = vunpack.c.l.b16 %v3010
    %v4268 = vunpack.c.h.b16 %v3010
    %v4269 = vunpack.c.l.b16 %v3011
    %v4270 = vunpack.c.h.b16 %v3011
    %v4271 = vunpack.c.l.b16 %v3012
    %v4272 = vunpack.c.l.b16 %v3013
    %v4273 = vunpack.c.h.b16 %v3013
    %v4274 = vunpack.c.l.b16 %v3014
    %v4275 = vunpack.c.h.b16 %v3014
    %v4276 = vunpack.c.l.b16 %v3015
    %v4277 = vunpack.c.h.b16 %v3015
    %v4278 = vunpack.c.l.b16 %v3016
    %v4279 = vunpack.c.l.b16 %v3017
    %v4280 = vunpack.c.h.b16 %v3017
    %v4281 = vunpack.c.l.b16 %v3018
    %v4282 = vunpack.c.h.b16 %v3018
    %v4283 = vunpack.c.l.b16 %v3019
    %v4284 = vunpack.c.h.b16 %v3019
    %v4285 = vunpack.c.l.b16 %v3020
    %v4286 = vunpack.c.l.b16 %v3021
    %v4287 = vunpack.c.h.b16 %v3021
    %v4288 = vunpack.c.l.b16 %v3022
    %v4289 = vunpack.c.h.b16 %v3022
    %v4290 = vunpack.c.l.b16 %v3023
    %v4291 = vunpack.c.h.b16 %v3023
    %v4292 = vunpack.c.l.b16 %v3024
    %v4293 = vunpack.c.l.b16 %v3025
    %v4294 = vunpack.c.h.b16 %v3025
    %v4295 = vunpack.c.l.b16 %v3026
    %v4296 = vunpack.c.h.b16 %v3026
    %v4297 = vunpack.c.l.b16 %v3027
    %v4298 = vunpack.c.h.b16 %v3027
    %v4299 = vunpack.c.l.b16 %v3028
    %v4300 = vunpack.c.l.b16 %v3029
    %v4301 = vunpack.c.h.b16 %v3029
    %v4302 = vunpack.c.l.b16 %v3030
    %v4303 = vunpack.c.h.b16 %v3030
    %v4304 = vunpack.c.l.b16 %v3031
    %v4305 = vunpack.c.h.b16 %v3031
    %v4306 = vunpack.c.l.b16 %v3032
    %v4307 = vunpack.c.l.b16 %v3033
    %v4308 = vunpack.c.h.b16 %v3033
    %v4309 = vunpack.c.l.b16 %v3034
    %v4310 = vunpack.c.h.b16 %v3034
    %v4311 = vunpack.c.l.b16 %v3035
    %v4312 = vunpack.c.h.b16 %v3035
    %v4313 = vunpack.c.l.b16 %v3036
    %v4314 = vunpack.c.l.b16 %v3037
    %v4315 = vunpack.c.h.b16 %v3037
    %v4316 = vunpack.c.l.b16 %v3038
    %v4317 = vunpack.c.h.b16 %v3038
    %v4318 = vunpack.c.l.b16 %v3039
    %v4319 = vunpack.c.h.b16 %v3039
    %v4320 = vunpack.c.l.b16 %v3040
    %v4321 = vunpack.c.l.b16 %v3041
    %v4322 = vunpack.c.h.b16 %v3041
    %v4323 = vunpack.c.l.b16 %v3042
    %v4324 = vunpack.c.h.b16 %v3042
    %v4325 = vunpack.c.l.b16 %v3043
    %v4326 = vunpack.c.h.b16 %v3043
    %v4327 = vunpack.c.l.b16 %v3044
    %v4328 = vunpack.c.l.b16 %v3045
    %v4329 = vunpack.c.h.b16 %v3045
    %v4330 = vunpack.c.l.b16 %v3046
    %v4331 = vunpack.c.h.b16 %v3046
    %v4332 = vunpack.c.l.b16 %v3047
    %v4333 = vunpack.c.h.b16 %v3047
    %v4334 = vunpack.c.l.b16 %v3048
    %v4335 = vunpack.c.l.b16 %v3049
    %v4336 = vunpack.c.h.b16 %v3049
    %v4337 = vunpack.c.l.b16 %v3050
    %v4338 = vunpack.c.h.b16 %v3050
    %v4339 = vunpack.c.l.b16 %v3051
    %v4340 = vunpack.c.h.b16 %v3051
    %v4341 = vunpack.c.l.b16 %v3052
    %v4342 = vunpack.c.l.b16 %v3053
    %v4343 = vunpack.c.h.b16 %v3053
    %v4344 = vunpack.c.l.b16 %v3054
    %v4345 = vunpack.c.h.b16 %v3054
    %v4346 = vunpack.c.l.b16 %v3055
    %v4347 = vunpack.c.h.b16 %v3055
    %v4348 = vunpack.c.l.b16 %v3056
    %v4349 = vunpack.c.l.b16 %v3057
    %v4350 = vunpack.c.h.b16 %v3057
    %v4351 = vunpack.c.l.b16 %v3058
    %v4352 = vunpack.c.h.b16 %v3058
    %v4353 = vunpack.c.l.b16 %v3059
    %v4354 = vunpack.c.h.b16 %v3059
    %v4355 = vunpack.c.l.b16 %v3060
    %v4356 = vunpack.c.l.b16 %v3061
    %v4357 = vunpack.c.h.b16 %v3061
    %v4358 = vunpack.c.l.b16 %v3062
    %v4359 = vunpack.c.h.b16 %v3062
    %v4360 = vunpack.c.l.b16 %v3063
    %v4361 = vunpack.c.h.b16 %v3063
    %v4362 = vunpack.c.l.b16 %v3064
    %v4363 = vunpack.c.l.b16 %v3065
    %v4364 = vunpack.c.h.b16 %v3065
    %v4365 = vunpack.c.l.b16 %v3066
    %v4366 = vunpack.c.h.b16 %v3066
    %v4367 = vunpack.c.l.b16 %v3067
    %v4368 = vunpack.c.h.b16 %v3067
    %v4369 = vunpack.c.l.b16 %v3068
    %v4370 = vunpack.c.l.b16 %v3069
    %v4371 = vunpack.c.h.b16 %v3069
    %v4372 = vunpack.c.l.b16 %v3070
    %v4373 = vunpack.c.h.b16 %v3070
    %v4374 = vunpack.c.l.b16 %v3071
    %v4375 = vunpack.c.h.b16 %v3071
    %v4376 = vunpack.c.l.b16 %v3072
    %v4377 = vunpack.c.l.b16 %v3073
    %v4378 = vunpack.c.h.b16 %v3073
    %v4379 = vunpack.c.l.b16 %v3074
    %v4380 = vunpack.c.h.b16 %v3074
    %v4381 = vunpack.c.l.b16 %v3075
    %v4382 = vunpack.c.h.b16 %v3075
    %v4383 = vunpack.c.l.b16 %v3076
    %v4384 = vunpack.c.l.b16 %v3077
    %v4385 = vunpack.c.h.b16 %v3077
    %v4386 = vunpack.c.l.b16 %v3078
    %v4387 = vunpack.c.h.b16 %v3078
    %v4388 = vunpack.c.l.b16 %v3079
    %v4389 = vunpack.c.h.b16 %v3079
    %v4390 = vunpack.c.l.b16 %v3080
    %v4391 = vunpack.c.l.b16 %v3081
    %v4392 = vunpack.c.h.b16 %v3081
    %v4393 = vunpack.c.l.b16 %v3082
    %v4394 = vunpack.c.h.b16 %v3082
    %v4395 = vunpack.c.l.b16 %v3083
    %v4396 = vunpack.c.h.b16 %v3083
    %v4397 = vunpack.c.l.b16 %v3084
    %v4398 = vunpack.c.l.b16 %v3085
    %v4399 = vunpack.c.h.b16 %v3085
    %v4400 = vunpack.c.l.b16 %v3086
    %v4401 = vunpack.c.h.b16 %v3086
    %v4402 = vunpack.c.l.b16 %v3087
    %v4403 = vunpack.c.h.b16 %v3087
    %v4404 = vunpack.c.l.b16 %v3088
    %v4405 = vunpack.c.l.b16 %v3089
    %v4406 = vunpack.c.h.b16 %v3089
    %v4407 = vunpack.c.l.b16 %v3090
    %v4408 = vunpack.c.h.b16 %v3090
    %v4409 = vunpack.c.l.b16 %v3091
    %v4410 = vunpack.c.h.b16 %v3091
    %v4411 = vunpack.c.l.b16 %v3092
    %v4412 = vunpack.c.l.b16 %v3093
    %v4413 = vunpack.c.h.b16 %v3093
    %v4414 = vunpack.c.l.b16 %v3094
    %v4415 = vunpack.c.h.b16 %v3094
    %v4416 = vunpack.c.l.b16 %v3095
    %v4417 = vunpack.c.h.b16 %v3095
    %v4418 = vunpack.c.l.b16 %v3096
    %v4419 = vunpack.c.l.b16 %v3097
    %v4420 = vunpack.c.h.b16 %v3097
    %v4421 = vunpack.c.l.b16 %v3098
    %v4422 = vunpack.c.h.b16 %v3098
    %v4423 = vunpack.c.l.b16 %v3099
    %v4424 = vunpack.c.h.b16 %v3099
    %v4425 = vunpack.c.l.b16 %v3100
    %v4426 = vunpack.c.l.b16 %v3101
    %v4427 = vunpack.c.h.b16 %v3101
    %v4428 = vunpack.c.l.b16 %v3102
    %v4429 = vunpack.c.h.b16 %v3102
    %v4430 = vunpack.c.l.b16 %v3103
    %v4431 = vunpack.c.h.b16 %v3103
    %v4432 = vunpack.c.l.b16 %v3104
    %v4433 = vunpack.c.l.b16 %v3105
    %v4434 = vunpack.c.h.b16 %v3105
    %v4435 = vunpack.c.l.b16 %v3106
    %v4436 = vunpack.c.h.b16 %v3106
    %v4437 = vunpack.c.l.b16 %v3107
    %v4438 = vunpack.c.h.b16 %v3107
    %v4439 = vunpack.c.l.b16 %v3108
    %v4440 = vunpack.c.l.b16 %v3109
    %v4441 = vunpack.c.h.b16 %v3109
    %v4442 = vunpack.c.l.b16 %v3110
    %v4443 = vunpack.c.h.b16 %v3110
    %v4444 = vunpack.c.l.b16 %v3111
    %v4445 = vunpack.c.h.b16 %v3111
    %v4446 = vunpack.c.l.b16 %v3112
    %v4447 = vunpack.c.l.b16 %v3113
    %v4448 = vunpack.c.h.b16 %v3113
    %v4449 = vunpack.c.l.b16 %v3114
    %v4450 = vunpack.c.h.b16 %v3114
    %v4451 = vunpack.c.l.b16 %v3115
    %v4452 = vunpack.c.h.b16 %v3115
    %v4453 = vunpack.c.l.b16 %v3116
    %v4454 = vunpack.c.l.b16 %v3117
    %v4455 = vunpack.c.h.b16 %v3117
    %v4456 = vunpack.c.l.b16 %v3118
    %v4457 = vunpack.c.h.b16 %v3118
    %v4458 = vunpack.c.l.b16 %v3119
    %v4459 = vunpack.c.h.b16 %v3119
    %v4460 = vunpack.c.l.b16 %v3120
    %v4461 = vunpack.c.l.b16 %v3121
    %v4462 = vunpack.c.h.b16 %v3121
    %v4463 = vunpack.c.l.b16 %v3122
    %v4464 = vunpack.c.h.b16 %v3122
    %v4465 = vunpack.c.l.b16 %v3123
    %v4466 = vunpack.c.h.b16 %v3123
    %v4467 = vunpack.c.l.b16 %v3124
    %v4468 = vunpack.c.l.b16 %v3125
    %v4469 = vunpack.c.h.b16 %v3125
    %v4470 = vunpack.c.l.b16 %v3126
    %v4471 = vunpack.c.h.b16 %v3126
    %v4472 = vunpack.c.l.b16 %v3127
    %v4473 = vunpack.c.h.b16 %v3127
    %v4474 = vunpack.c.l.b16 %v3128
    %v4475 = vunpack.c.l.b16 %v3129
    %v4476 = vunpack.c.h.b16 %v3129
    %v4477 = vunpack.c.l.b16 %v3130
    %v4478 = vunpack.c.h.b16 %v3130
    %v4479 = vunpack.c.l.b16 %v3131
    %v4480 = vunpack.c.h.b16 %v3131
    %v4481 = vunpack.c.l.b16 %v3132
    %v4482 = vunpack.c.l.b16 %v3133
    %v4483 = vunpack.c.h.b16 %v3133
    %v4484 = vunpack.c.l.b16 %v3134
    %v4485 = vunpack.c.h.b16 %v3134
    %v4486 = vunpack.c.l.b16 %v3135
    %v4487 = vunpack.c.h.b16 %v3135
    %v4488 = vunpack.c.l.b16 %v3136
    %v4489 = vunpack.c.l.b16 %v3137
    %v4490 = vunpack.c.h.b16 %v3137
    %v4491 = vunpack.c.l.b16 %v3138
    %v4492 = vunpack.c.h.b16 %v3138
    %v4493 = vunpack.c.l.b16 %v3139
    %v4494 = vunpack.c.h.b16 %v3139
    %v4495 = vunpack.c.l.b16 %v3140
    %v4496 = vunpack.c.l.b16 %v3141
    %v4497 = vunpack.c.h.b16 %v3141
    %v4498 = vunpack.c.l.b16 %v3142
    %v4499 = vunpack.c.h.b16 %v3142
    %v4500 = vunpack.c.l.b16 %v3143
    %v4501 = vunpack.c.h.b16 %v3143
    %v4502 = vunpack.c.l.b16 %v3144
    %v4503 = vunpack.c.l.b16 %v3145
    %v4504 = vunpack.c.h.b16 %v3145
    %v4505 = vunpack.c.l.b16 %v3146
    %v4506 = vunpack.c.h.b16 %v3146
    %v4507 = vunpack.c.l.b16 %v3147
    %v4508 = vunpack.c.h.b16 %v3147
    %v4509 = vunpack.c.l.b16 %v3148
    %v4510 = vunpack.c.l.b16 %v3149
    %v4511 = vunpack.c.h.b16 %v3149
    %v4512 = vunpack.c.l.b16 %v3150
    %v4513 = vunpack.c.h.b16 %v3150
    %v4514 = vunpack.c.l.b16 %v3151
    %v4515 = vunpack.c.h.b16 %v3151
    %v4516 = vunpack.c.l.b16 %v3152
    %v4517 = vunpack.c.l.b16 %v3153
    %v4518 = vunpack.c.h.b16 %v3153
    %v4519 = vunpack.c.l.b16 %v3154
    %v4520 = vunpack.c.h.b16 %v3154
    %v4521 = vunpack.c.l.b16 %v3155
    %v4522 = vunpack.c.h.b16 %v3155
    %v4523 = vunpack.c.l.b16 %v3156
    %v4524 = vunpack.c.l.b16 %v3157
    %v4525 = vunpack.c.h.b16 %v3157
    %v4526 = vunpack.c.l.b16 %v3158
    %v4527 = vunpack.c.h.b16 %v3158
    %v4528 = vunpack.c.l.b16 %v3159
    %v4529 = vunpack.c.h.b16 %v3159
    %v4530 = vunpack.c.l.b16 %v3160
    %v4531 = vunpack.c.l.b16 %v3161
    %v4532 = vunpack.c.h.b16 %v3161
    %v4533 = vunpack.c.l.b16 %v3162
    %v4534 = vunpack.c.h.b16 %v3162
    %v4535 = vunpack.c.l.b16 %v3163
    %v4536 = vunpack.c.h.b16 %v3163
    %v4537 = vunpack.c.l.b16 %v3164
    %v4538 = vunpack.c.l.b16 %v3165
    %v4539 = vunpack.c.h.b16 %v3165
    %v4540 = vunpack.c.l.b16 %v3166
    %v4541 = vunpack.c.h.b16 %v3166
    %v4542 = vunpack.c.l.b16 %v3167
    %v4543 = vunpack.c.h.b16 %v3167
    %v4544 = vunpack.c.l.b16 %v3168
    %v4545 = vunpack.c.l.b16 %v3169
    %v4546 = vunpack.c.h.b16 %v3169
    %v4547 = vunpack.c.l.b16 %v3170
    %v4548 = vunpack.c.h.b16 %v3170
    %v4549 = vunpack.c.l.b16 %v3171
    %v4550 = vunpack.c.h.b16 %v3171
    %v4551 = vunpack.c.l.b16 %v3172
    %v4552 = vunpack.c.l.b16 %v3173
    %v4553 = vunpack.c.h.b16 %v3173
    %v4554 = vunpack.c.l.b16 %v3174
    %v4555 = vunpack.c.h.b16 %v3174
    %v4556 = vunpack.c.l.b16 %v3175
    %v4557 = vunpack.c.h.b16 %v3175
    %v4558 = vunpack.c.l.b16 %v3176
    %v4559 = vunpack.c.l.b16 %v3177
    %v4560 = vunpack.c.h.b16 %v3177
    %v4561 = vunpack.c.l.b16 %v3178
    %v4562 = vunpack.c.h.b16 %v3178
    %v4563 = vunpack.c.l.b16 %v3179
    %v4564 = vunpack.c.h.b16 %v3179
    %v4565 = vunpack.c.l.b16 %v3180
    %v4566 = vunpack.c.l.b16 %v3181
    %v4567 = vunpack.c.h.b16 %v3181
    %v4568 = vunpack.c.l.b16 %v3182
    %v4569 = vunpack.c.h.b16 %v3182
    %v4570 = vunpack.c.l.b16 %v3183
    %v4571 = vunpack.c.h.b16 %v3183
    %v4572 = vunpack.c.l.b16 %v3184
    %v4573 = vunpack.c.l.b16 %v3185
    %v4574 = vunpack.c.h.b16 %v3185
    %v4575 = vunpack.c.l.b16 %v3186
    %v4576 = vunpack.c.h.b16 %v3186
    %v4577 = vunpack.c.l.b16 %v3187
    %v4578 = vunpack.c.h.b16 %v3187
    %v4579 = vunpack.c.l.b16 %v3188
    %v4580 = vunpack.c.l.b16 %v3189
    %v4581 = vunpack.c.h.b16 %v3189
    %v4582 = vunpack.c.l.b16 %v3190
    %v4583 = vunpack.c.h.b16 %v3190
    %v4584 = vunpack.c.l.b16 %v3191
    %v4585 = vunpack.c.h.b16 %v3191
    %v4586 = vunpack.c.l.b16 %v3192
    %v4587 = vunpack.c.l.b16 %v3193
    %v4588 = vunpack.c.h.b16 %v3193
    %v4589 = vunpack.c.l.b16 %v3194
    %v4590 = vunpack.c.h.b16 %v3194
    %v4591 = vunpack.c.l.b16 %v3195
    %v4592 = vunpack.c.h.b16 %v3195
    %v4593 = vunpack.c.l.b16 %v3196
    %v4594 = vunpack.c.l.b16 %v3197
    %v4595 = vunpack.c.h.b16 %v3197
    %v4596 = vunpack.c.l.b16 %v3198
    %v4597 = vunpack.c.h.b16 %v3198
    %v4598 = vunpack.c.l.b16 %v3199
    %v4599 = vunpack.c.h.b16 %v3199
    %v4600 = vunpack.c.l.b16 %v3200
    %v4601 = vunpack.c.l.b16 %v3201
    %v4602 = vunpack.c.h.b16 %v3201
    %v4603 = vunpack.c.l.b16 %v3202
    %v4604 = vunpack.c.h.b16 %v3202
    %v4605 = vunpack.c.l.b16 %v3203
    %v4606 = vunpack.c.h.b16 %v3203
    %v4607 = vunpack.c.l.b16 %v3204
    %v4608 = vunpack.c.l.b16 %v3205
    %v4609 = vunpack.c.h.b16 %v3205
    %v4610 = vunpack.c.l.b16 %v3206
    %v4611 = vunpack.c.h.b16 %v3206
    %v4612 = vunpack.c.l.b16 %v3207
    %v4613 = vunpack.c.h.b16 %v3207
    %v4614 = vunpack.c.l.b16 %v3208
    %v4615 = vunpack.c.l.b16 %v3209
    %v4616 = vunpack.c.h.b16 %v3209
    %v4617 = vunpack.c.l.b16 %v3210
    %v4618 = vunpack.c.h.b16 %v3210
    %v4619 = vunpack.c.l.b16 %v3211
    %v4620 = vunpack.c.h.b16 %v3211
    %v4621 = vunpack.c.l.b16 %v3212
    %v4622 = vunpack.c.l.b16 %v3213
    %v4623 = vunpack.c.h.b16 %v3213
    %v4624 = vunpack.c.l.b16 %v3214
    %v4625 = vunpack.c.h.b16 %v3214
    %v4626 = vunpack.c.l.b16 %v3215
    %v4627 = vunpack.c.h.b16 %v3215
    %v4628 = vunpack.c.l.b16 %v3216
    %v4629 = vunpack.c.l.b16 %v3217
    %v4630 = vunpack.c.h.b16 %v3217
    %v4631 = vunpack.c.l.b16 %v3218
    %v4632 = vunpack.c.h.b16 %v3218
    %v4633 = vunpack.c.l.b16 %v3219
    %v4634 = vunpack.c.h.b16 %v3219
    %v4635 = vunpack.c.l.b16 %v3220
    %v4636 = vunpack.c.l.b16 %v3221
    %v4637 = vunpack.c.h.b16 %v3221
    %v4638 = vunpack.c.l.b16 %v3222
    %v4639 = vunpack.c.h.b16 %v3222
    %v4640 = vunpack.c.l.b16 %v3223
    %v4641 = vunpack.c.h.b16 %v3223
    %v4642 = vunpack.c.l.b16 %v3224
    %v4643 = vunpack.c.l.b16 %v3225
    %v4644 = vunpack.c.h.b16 %v3225
    %v4645 = vunpack.c.l.b16 %v3226
    %v4646 = vunpack.c.h.b16 %v3226
    %v4647 = vunpack.c.l.b16 %v3227
    %v4648 = vunpack.c.h.b16 %v3227
    %v4649 = vunpack.c.l.b16 %v3228
    %v4650 = vunpack.c.l.b16 %v3229
    %v4651 = vunpack.c.h.b16 %v3229
    %v4652 = vunpack.c.l.b16 %v3230
    %v4653 = vunpack.c.h.b16 %v3230
    %v4654 = vunpack.c.l.b16 %v3231
    %v4655 = vunpack.c.h.b16 %v3231
    %v4656 = vunpack.c.l.b16 %v3232
    %v4657 = vpack.c.b16 %v3768, %v3761
    %v4658 = vpack.c.b16 %v3769, %v3762
    %v4659 = vpack.c.b16 %v3770, %v3763
    %v4660 = vpack.c.b16 %v3771, %v3764
    %v4661 = vpack.c.b16 %v3772, %v3765
    %v4662 = vpack.c.b16 %v3773, %v3766
    %v4663 = vpack.c.b16 %v3774, %v3767
    %v4664 = vpack.c.b16 %v3782, %v3775
    %v4665 = vpack.c.b16 %v3783, %v3776
    %v4666 = vpack.c.b16 %v3784, %v3777
    %v4667 = vpack.c.b16 %v3785, %v3778
    %v4668 = vpack.c.b16 %v3786, %v3779
    %v4669 = vpack.c.b16 %v3787, %v3780
    %v4670 = vpack.c.b16 %v3788, %v3781
    %v4671 = vpack.c.b16 %v3796, %v3789
    %v4672 = vpack.c.b16 %v3797, %v3790
    %v4673 = vpack.c.b16 %v3798, %v3791
    %v4674 = vpack.c.b16 %v3799, %v3792
    %v4675 = vpack.c.b16 %v3800, %v3793
    %v4676 = vpack.c.b16 %v3801, %v3794
    %v4677 = vpack.c.b16 %v3802, %v3795
    %v4678 = vpack.c.b16 %v3810, %v3803
    %v4679 = vpack.c.b16 %v3811, %v3804
    %v4680 = vpack.c.b16 %v3812, %v3805
    %v4681 = vpack.c.b16 %v3813, %v3806
    %v4682 = vpack.c.b16 %v3814, %v3807
    %v4683 = vpack.c.b16 %v3815, %v3808
    %v4684 = vpack.c.b16 %v3816, %v3809
    %v4685 = vpack.c.b16 %v3824, %v3817
    %v4686 = vpack.c.b16 %v3825, %v3818
    %v4687 = vpack.c.b16 %v3826, %v3819
    %v4688 = vpack.c.b16 %v3827, %v3820
    %v4689 = vpack.c.b16 %v3828, %v3821
    %v4690 = vpack.c.b16 %v3829, %v3822
    %v4691 = vpack.c.b16 %v3830, %v3823
    %v4692 = vpack.c.b16 %v3838, %v3831
    %v4693 = vpack.c.b16 %v3839, %v3832
    %v4694 = vpack.c.b16 %v3840, %v3833
    %v4695 = vpack.c.b16 %v3841, %v3834
    %v4696 = vpack.c.b16 %v3842, %v3835
    %v4697 = vpack.c.b16 %v3843, %v3836
    %v4698 = vpack.c.b16 %v3844, %v3837
    %v4699 = vpack.c.b16 %v3852, %v3845
    %v4700 = vpack.c.b16 %v3853, %v3846
    %v4701 = vpack.c.b16 %v3854, %v3847
    %v4702 = vpack.c.b16 %v3855, %v3848
    %v4703 = vpack.c.b16 %v3856, %v3849
    %v4704 = vpack.c.b16 %v3857, %v3850
    %v4705 = vpack.c.b16 %v3858, %v3851
    %v4706 = vpack.c.b16 %v3866, %v3859
    %v4707 = vpack.c.b16 %v3867, %v3860
    %v4708 = vpack.c.b16 %v3868, %v3861
    %v4709 = vpack.c.b16 %v3869, %v3862
    %v4710 = vpack.c.b16 %v3870, %v3863
    %v4711 = vpack.c.b16 %v3871, %v3864
    %v4712 = vpack.c.b16 %v3872, %v3865
    %v4713 = vpack.c.b16 %v3880, %v3873
    %v4714 = vpack.c.b16 %v3881, %v3874
    %v4715 = vpack.c.b16 %v3882, %v3875
    %v4716 = vpack.c.b16 %v3883, %v3876
    %v4717 = vpack.c.b16 %v3884, %v3877
    %v4718 = vpack.c.b16 %v3885, %v3878
    %v4719 = vpack.c.b16 %v3886, %v3879
    %v4720 = vpack.c.b16 %v3894, %v3887
    %v4721 = vpack.c.b16 %v3895, %v3888
    %v4722 = vpack.c.b16 %v3896, %v3889
    %v4723 = vpack.c.b16 %v3897, %v3890
    %v4724 = vpack.c.b16 %v3898, %v3891
    %v4725 = vpack.c.b16 %v3899, %v3892
    %v4726 = vpack.c.b16 %v3900, %v3893
    %v4727 = vpack.c.b16 %v3908, %v3901
    %v4728 = vpack.c.b16 %v3909, %v3902
    %v4729 = vpack.c.b16 %v3910, %v3903
    %v4730 = vpack.c.b16 %v3911, %v3904
    %v4731 = vpack.c.b16 %v3912, %v3905
    %v4732 = vpack.c.b16 %v3913, %v3906
    %v4733 = vpack.c.b16 %v3914, %v3907
    %v4734 = vpack.c.b16 %v3922, %v3915
    %v4735 = vpack.c.b16 %v3923, %v3916
    %v4736 = vpack.c.b16 %v3924, %v3917
    %v4737 = vpack.c.b16 %v3925, %v3918
    %v4738 = vpack.c.b16 %v3926, %v3919
    %v4739 = vpack.c.b16 %v3927, %v3920
    %v4740 = vpack.c.b16 %v3928, %v3921
    %v4741 = vpack.c.b16 %v3936, %v3929
    %v4742 = vpack.c.b16 %v3937, %v3930
    %v4743 = vpack.c.b16 %v3938, %v3931
    %v4744 = vpack.c.b16 %v3939, %v3932
    %v4745 = vpack.c.b16 %v3940, %v3933
    %v4746 = vpack.c.b16 %v3941, %v3934
    %v4747 = vpack.c.b16 %v3942, %v3935
    %v4748 = vpack.c.b16 %v3950, %v3943
    %v4749 = vpack.c.b16 %v3951, %v3944
    %v4750 = vpack.c.b16 %v3952, %v3945
    %v4751 = vpack.c.b16 %v3953, %v3946
    %v4752 = vpack.c.b16 %v3954, %v3947
    %v4753 = vpack.c.b16 %v3955, %v3948
    %v4754 = vpack.c.b16 %v3956, %v3949
    %v4755 = vpack.c.b16 %v3964, %v3957
    %v4756 = vpack.c.b16 %v3965, %v3958
    %v4757 = vpack.c.b16 %v3966, %v3959
    %v4758 = vpack.c.b16 %v3967, %v3960
    %v4759 = vpack.c.b16 %v3968, %v3961
    %v4760 = vpack.c.b16 %v3969, %v3962
    %v4761 = vpack.c.b16 %v3970, %v3963
    %v4762 = vpack.c.b16 %v3978, %v3971
    %v4763 = vpack.c.b16 %v3979, %v3972
    %v4764 = vpack.c.b16 %v3980, %v3973
    %v4765 = vpack.c.b16 %v3981, %v3974
    %v4766 = vpack.c.b16 %v3982, %v3975
    %v4767 = vpack.c.b16 %v3983, %v3976
    %v4768 = vpack.c.b16 %v3984, %v3977
    %v4769 = vpack.c.b16 %v3992, %v3985
    %v4770 = vpack.c.b16 %v3993, %v3986
    %v4771 = vpack.c.b16 %v3994, %v3987
    %v4772 = vpack.c.b16 %v3995, %v3988
    %v4773 = vpack.c.b16 %v3996, %v3989
    %v4774 = vpack.c.b16 %v3997, %v3990
    %v4775 = vpack.c.b16 %v3998, %v3991
    %v4776 = vpack.c.b16 %v4006, %v3999
    %v4777 = vpack.c.b16 %v4007, %v4000
    %v4778 = vpack.c.b16 %v4008, %v4001
    %v4779 = vpack.c.b16 %v4009, %v4002
    %v4780 = vpack.c.b16 %v4010, %v4003
    %v4781 = vpack.c.b16 %v4011, %v4004
    %v4782 = vpack.c.b16 %v4012, %v4005
    %v4783 = vpack.c.b16 %v4020, %v4013
    %v4784 = vpack.c.b16 %v4021, %v4014
    %v4785 = vpack.c.b16 %v4022, %v4015
    %v4786 = vpack.c.b16 %v4023, %v4016
    %v4787 = vpack.c.b16 %v4024, %v4017
    %v4788 = vpack.c.b16 %v4025, %v4018
    %v4789 = vpack.c.b16 %v4026, %v4019
    %v4790 = vpack.c.b16 %v4034, %v4027
    %v4791 = vpack.c.b16 %v4035, %v4028
    %v4792 = vpack.c.b16 %v4036, %v4029
    %v4793 = vpack.c.b16 %v4037, %v4030
    %v4794 = vpack.c.b16 %v4038, %v4031
    %v4795 = vpack.c.b16 %v4039, %v4032
    %v4796 = vpack.c.b16 %v4040, %v4033
    %v4797 = vpack.c.b16 %v4048, %v4041
    %v4798 = vpack.c.b16 %v4049, %v4042
    %v4799 = vpack.c.b16 %v4050, %v4043
    %v4800 = vpack.c.b16 %v4051, %v4044
    %v4801 = vpack.c.b16 %v4052, %v4045
    %v4802 = vpack.c.b16 %v4053, %v4046
    %v4803 = vpack.c.b16 %v4054, %v4047
    %v4804 = vpack.c.b16 %v4062, %v4055
    %v4805 = vpack.c.b16 %v4063, %v4056
    %v4806 = vpack.c.b16 %v4064, %v4057
    %v4807 = vpack.c.b16 %v4065, %v4058
    %v4808 = vpack.c.b16 %v4066, %v4059
    %v4809 = vpack.c.b16 %v4067, %v4060
    %v4810 = vpack.c.b16 %v4068, %v4061
    %v4811 = vpack.c.b16 %v4076, %v4069
    %v4812 = vpack.c.b16 %v4077, %v4070
    %v4813 = vpack.c.b16 %v4078, %v4071
    %v4814 = vpack.c.b16 %v4079, %v4072
    %v4815 = vpack.c.b16 %v4080, %v4073
    %v4816 = vpack.c.b16 %v4081, %v4074
    %v4817 = vpack.c.b16 %v4082, %v4075
    %v4818 = vpack.c.b16 %v4090, %v4083
    %v4819 = vpack.c.b16 %v4091, %v4084
    %v4820 = vpack.c.b16 %v4092, %v4085
    %v4821 = vpack.c.b16 %v4093, %v4086
    %v4822 = vpack.c.b16 %v4094, %v4087
    %v4823 = vpack.c.b16 %v4095, %v4088
    %v4824 = vpack.c.b16 %v4096, %v4089
    %v4825 = vpack.c.b16 %v4104, %v4097
    %v4826 = vpack.c.b16 %v4105, %v4098
    %v4827 = vpack.c.b16 %v4106, %v4099
    %v4828 = vpack.c.b16 %v4107, %v4100
    %v4829 = vpack.c.b16 %v4108, %v4101
    %v4830 = vpack.c.b16 %v4109, %v4102
    %v4831 = vpack.c.b16 %v4110, %v4103
    %v4832 = vpack.c.b16 %v4118, %v4111
    %v4833 = vpack.c.b16 %v4119, %v4112
    %v4834 = vpack.c.b16 %v4120, %v4113
    %v4835 = vpack.c.b16 %v4121, %v4114
    %v4836 = vpack.c.b16 %v4122, %v4115
    %v4837 = vpack.c.b16 %v4123, %v4116
    %v4838 = vpack.c.b16 %v4124, %v4117
    %v4839 = vpack.c.b16 %v4132, %v4125
    %v4840 = vpack.c.b16 %v4133, %v4126
    %v4841 = vpack.c.b16 %v4134, %v4127
    %v4842 = vpack.c.b16 %v4135, %v4128
    %v4843 = vpack.c.b16 %v4136, %v4129
    %v4844 = vpack.c.b16 %v4137, %v4130
    %v4845 = vpack.c.b16 %v4138, %v4131
    %v4846 = vpack.c.b16 %v4146, %v4139
    %v4847 = vpack.c.b16 %v4147, %v4140
    %v4848 = vpack.c.b16 %v4148, %v4141
    %v4849 = vpack.c.b16 %v4149, %v4142
    %v4850 = vpack.c.b16 %v4150, %v4143
    %v4851 = vpack.c.b16 %v4151, %v4144
    %v4852 = vpack.c.b16 %v4152, %v4145
    %v4853 = vpack.c.b16 %v4160, %v4153
    %v4854 = vpack.c.b16 %v4161, %v4154
    %v4855 = vpack.c.b16 %v4162, %v4155
    %v4856 = vpack.c.b16 %v4163, %v4156
    %v4857 = vpack.c.b16 %v4164, %v4157
    %v4858 = vpack.c.b16 %v4165, %v4158
    %v4859 = vpack.c.b16 %v4166, %v4159
    %v4860 = vpack.c.b16 %v4174, %v4167
    %v4861 = vpack.c.b16 %v4175, %v4168
    %v4862 = vpack.c.b16 %v4176, %v4169
    %v4863 = vpack.c.b16 %v4177, %v4170
    %v4864 = vpack.c.b16 %v4178, %v4171
    %v4865 = vpack.c.b16 %v4179, %v4172
    %v4866 = vpack.c.b16 %v4180, %v4173
    %v4867 = vpack.c.b16 %v4188, %v4181
    %v4868 = vpack.c.b16 %v4189, %v4182
    %v4869 = vpack.c.b16 %v4190, %v4183
    %v4870 = vpack.c.b16 %v4191, %v4184
    %v4871 = vpack.c.b16 %v4192, %v4185
    %v4872 = vpack.c.b16 %v4193, %v4186
    %v4873 = vpack.c.b16 %v4194, %v4187
    %v4874 = vpack.c.b16 %v4202, %v4195
    %v4875 = vpack.c.b16 %v4203, %v4196
    %v4876 = vpack.c.b16 %v4204, %v4197
    %v4877 = vpack.c.b16 %v4205, %v4198
    %v4878 = vpack.c.b16 %v4206, %v4199
    %v4879 = vpack.c.b16 %v4207, %v4200
    %v4880 = vpack.c.b16 %v4208, %v4201
    %v4881 = vpack.c.b16 %v4216, %v4209
    %v4882 = vpack.c.b16 %v4217, %v4210
    %v4883 = vpack.c.b16 %v4218, %v4211
    %v4884 = vpack.c.b16 %v4219, %v4212
    %v4885 = vpack.c.b16 %v4220, %v4213
    %v4886 = vpack.c.b16 %v4221, %v4214
    %v4887 = vpack.c.b16 %v4222, %v4215
    %v4888 = vpack.c.b16 %v4230, %v4223
    %v4889 = vpack.c.b16 %v4231, %v4224
    %v4890 = vpack.c.b16 %v4232, %v4225
    %v4891 = vpack.c.b16 %v4233, %v4226
    %v4892 = vpack.c.b16 %v4234, %v4227
    %v4893 = vpack.c.b16 %v4235, %v4228
    %v4894 = vpack.c.b16 %v4236, %v4229
    %v4895 = vpack.c.b16 %v4244, %v4237
    %v4896 = vpack.c.b16 %v4245, %v4238
    %v4897 = vpack.c.b16 %v4246, %v4239
    %v4898 = vpack.c.b16 %v4247, %v4240
    %v4899 = vpack.c.b16 %v4248, %v4241
    %v4900 = vpack.c.b16 %v4249, %v4242
    %v4901 = vpack.c.b16 %v4250, %v4243
    %v4902 = vpack.c.b16 %v4258, %v4251
    %v4903 = vpack.c.b16 %v4259, %v4252
    %v4904 = vpack.c.b16 %v4260, %v4253
    %v4905 = vpack.c.b16 %v4261, %v4254
    %v4906 = vpack.c.b16 %v4262, %v4255
    %v4907 = vpack.c.b16 %v4263, %v4256
    %v4908 = vpack.c.b16 %v4264, %v4257
    %v4909 = vpack.c.b16 %v4272, %v4265
    %v4910 = vpack.c.b16 %v4273, %v4266
    %v4911 = vpack.c.b16 %v4274, %v4267
    %v4912 = vpack.c.b16 %v4275, %v4268
    %v4913 = vpack.c.b16 %v4276, %v4269
    %v4914 = vpack.c.b16 %v4277, %v4270
    %v4915 = vpack.c.b16 %v4278, %v4271
    %v4916 = vpack.c.b16 %v4286, %v4279
    %v4917 = vpack.c.b16 %v4287, %v4280
    %v4918 = vpack.c.b16 %v4288, %v4281
    %v4919 = vpack.c.b16 %v4289, %v4282
    %v4920 = vpack.c.b16 %v4290, %v4283
    %v4921 = vpack.c.b16 %v4291, %v4284
    %v4922 = vpack.c.b16 %v4292, %v4285
    %v4923 = vpack.c.b16 %v4300, %v4293
    %v4924 = vpack.c.b16 %v4301, %v4294
    %v4925 = vpack.c.b16 %v4302, %v4295
    %v4926 = vpack.c.b16 %v4303, %v4296
    %v4927 = vpack.c.b16 %v4304, %v4297
    %v4928 = vpack.c.b16 %v4305, %v4298
    %v4929 = vpack.c.b16 %v4306, %v4299
    %v4930 = vpack.c.b16 %v4314, %v4307
    %v4931 = vpack.c.b16 %v4315, %v4308
    %v4932 = vpack.c.b16 %v4316, %v4309
    %v4933 = vpack.c.b16 %v4317, %v4310
    %v4934 = vpack.c.b16 %v4318, %v4311
    %v4935 = vpack.c.b16 %v4319, %v4312
    %v4936 = vpack.c.b16 %v4320, %v4313
    %v4937 = vpack.c.b16 %v4328, %v4321
    %v4938 = vpack.c.b16 %v4329, %v4322
    %v4939 = vpack.c.b16 %v4330, %v4323
    %v4940 = vpack.c.b16 %v4331, %v4324
    %v4941 = vpack.c.b16 %v4332, %v4325
    %v4942 = vpack.c.b16 %v4333, %v4326
    %v4943 = vpack.c.b16 %v4334, %v4327
    %v4944 = vpack.c.b16 %v4342, %v4335
    %v4945 = vpack.c.b16 %v4343, %v4336
    %v4946 = vpack.c.b16 %v4344, %v4337
    %v4947 = vpack.c.b16 %v4345, %v4338
    %v4948 = vpack.c.b16 %v4346, %v4339
    %v4949 = vpack.c.b16 %v4347, %v4340
    %v4950 = vpack.c.b16 %v4348, %v4341
    %v4951 = vpack.c.b16 %v4356, %v4349
    %v4952 = vpack.c.b16 %v4357, %v4350
    %v4953 = vpack.c.b16 %v4358, %v4351
    %v4954 = vpack.c.b16 %v4359, %v4352
    %v4955 = vpack.c.b16 %v4360, %v4353
    %v4956 = vpack.c.b16 %v4361, %v4354
    %v4957 = vpack.c.b16 %v4362, %v4355
    %v4958 = vpack.c.b16 %v4370, %v4363
    %v4959 = vpack.c.b16 %v4371, %v4364
    %v4960 = vpack.c.b16 %v4372, %v4365
    %v4961 = vpack.c.b16 %v4373, %v4366
    %v4962 = vpack.c.b16 %v4374, %v4367
    %v4963 = vpack.c.b16 %v4375, %v4368
    %v4964 = vpack.c.b16 %v4376, %v4369
    %v4965 = vpack.c.b16 %v4384, %v4377
    %v4966 = vpack.c.b16 %v4385, %v4378
    %v4967 = vpack.c.b16 %v4386, %v4379
    %v4968 = vpack.c.b16 %v4387, %v4380
    %v4969 = vpack.c.b16 %v4388, %v4381
    %v4970 = vpack.c.b16 %v4389, %v4382
    %v4971 = vpack.c.b16 %v4390, %v4383
    %v4972 = vpack.c.b16 %v4398, %v4391
    %v4973 = vpack.c.b16 %v4399, %v4392
    %v4974 = vpack.c.b16 %v4400, %v4393
    %v4975 = vpack.c.b16 %v4401, %v4394
    %v4976 = vpack.c.b16 %v4402, %v4395
    %v4977 = vpack.c.b16 %v4403, %v4396
    %v4978 = vpack.c.b16 %v4404, %v4397
    %v4979 = vpack.c.b16 %v4412, %v4405
    %v4980 = vpack.c.b16 %v4413, %v4406
    %v4981 = vpack.c.b16 %v4414, %v4407
    %v4982 = vpack.c.b16 %v4415, %v4408
    %v4983 = vpack.c.b16 %v4416, %v4409
    %v4984 = vpack.c.b16 %v4417, %v4410
    %v4985 = vpack.c.b16 %v4418, %v4411
    %v4986 = vpack.c.b16 %v4426, %v4419
    %v4987 = vpack.c.b16 %v4427, %v4420
    %v4988 = vpack.c.b16 %v4428, %v4421
    %v4989 = vpack.c.b16 %v4429, %v4422
    %v4990 = vpack.c.b16 %v4430, %v4423
    %v4991 = vpack.c.b16 %v4431, %v4424
    %v4992 = vpack.c.b16 %v4432, %v4425
    %v4993 = vpack.c.b16 %v4440, %v4433
    %v4994 = vpack.c.b16 %v4441, %v4434
    %v4995 = vpack.c.b16 %v4442, %v4435
    %v4996 = vpack.c.b16 %v4443, %v4436
    %v4997 = vpack.c.b16 %v4444, %v4437
    %v4998 = vpack.c.b16 %v4445, %v4438
    %v4999 = vpack.c.b16 %v4446, %v4439
    %v5000 = vpack.c.b16 %v4454, %v4447
    %v5001 = vpack.c.b16 %v4455, %v4448
    %v5002 = vpack.c.b16 %v4456, %v4449
    %v5003 = vpack.c.b16 %v4457, %v4450
    %v5004 = vpack.c.b16 %v4458, %v4451
    %v5005 = vpack.c.b16 %v4459, %v4452
    %v5006 = vpack.c.b16 %v4460, %v4453
    %v5007 = vpack.c.b16 %v4468, %v4461
    %v5008 = vpack.c.b16 %v4469, %v4462
    %v5009 = vpack.c.b16 %v4470, %v4463
    %v5010 = vpack.c.b16 %v4471, %v4464
    %v5011 = vpack.c.b16 %v4472, %v4465
    %v5012 = vpack.c.b16 %v4473, %v4466
    %v5013 = vpack.c.b16 %v4474, %v4467
    %v5014 = vpack.c.b16 %v4482, %v4475
    %v5015 = vpack.c.b16 %v4483, %v4476
    %v5016 = vpack.c.b16 %v4484, %v4477
    %v5017 = vpack.c.b16 %v4485, %v4478
    %v5018 = vpack.c.b16 %v4486, %v4479
    %v5019 = vpack.c.b16 %v4487, %v4480
    %v5020 = vpack.c.b16 %v4488, %v4481
    %v5021 = vpack.c.b16 %v4496, %v4489
    %v5022 = vpack.c.b16 %v4497, %v4490
    %v5023 = vpack.c.b16 %v4498, %v4491
    %v5024 = vpack.c.b16 %v4499, %v4492
    %v5025 = vpack.c.b16 %v4500, %v4493
    %v5026 = vpack.c.b16 %v4501, %v4494
    %v5027 = vpack.c.b16 %v4502, %v4495
    %v5028 = vpack.c.b16 %v4510, %v4503
    %v5029 = vpack.c.b16 %v4511, %v4504
    %v5030 = vpack.c.b16 %v4512, %v4505
    %v5031 = vpack.c.b16 %v4513, %v4506
    %v5032 = vpack.c.b16 %v4514, %v4507
    %v5033 = vpack.c.b16 %v4515, %v4508
    %v5034 = vpack.c.b16 %v4516, %v4509
    %v5035 = vpack.c.b16 %v4524, %v4517
    %v5036 = vpack.c.b16 %v4525, %v4518
    %v5037 = vpack.c.b16 %v4526, %v4519
    %v5038 = vpack.c.b16 %v4527, %v4520
    %v5039 = vpack.c.b16 %v4528, %v4521
    %v5040 = vpack.c.b16 %v4529, %v4522
    %v5041 = vpack.c.b16 %v4530, %v4523
    %v5042 = vpack.c.b16 %v4538, %v4531
    %v5043 = vpack.c.b16 %v4539, %v4532
    %v5044 = vpack.c.b16 %v4540, %v4533
    %v5045 = vpack.c.b16 %v4541, %v4534
    %v5046 = vpack.c.b16 %v4542, %v4535
    %v5047 = vpack.c.b16 %v4543, %v4536
    %v5048 = vpack.c.b16 %v4544, %v4537
    %v5049 = vpack.c.b16 %v4552, %v4545
    %v5050 = vpack.c.b16 %v4553, %v4546
    %v5051 = vpack.c.b16 %v4554, %v4547
    %v5052 = vpack.c.b16 %v4555, %v4548
    %v5053 = vpack.c.b16 %v4556, %v4549
    %v5054 = vpack.c.b16 %v4557, %v4550
    %v5055 = vpack.c.b16 %v4558, %v4551
    %v5056 = vpack.c.b16 %v4566, %v4559
    %v5057 = vpack.c.b16 %v4567, %v4560
    %v5058 = vpack.c.b16 %v4568, %v4561
    %v5059 = vpack.c.b16 %v4569, %v4562
    %v5060 = vpack.c.b16 %v4570, %v4563
    %v5061 = vpack.c.b16 %v4571, %v4564
    %v5062 = vpack.c.b16 %v4572, %v4565
    %v5063 = vpack.c.b16 %v4580, %v4573
    %v5064 = vpack.c.b16 %v4581, %v4574
    %v5065 = vpack.c.b16 %v4582, %v4575
    %v5066 = vpack.c.b16 %v4583, %v4576
    %v5067 = vpack.c.b16 %v4584, %v4577
    %v5068 = vpack.c.b16 %v4585, %v4578
    %v5069 = vpack.c.b16 %v4586, %v4579
    %v5070 = vpack.c.b16 %v4594, %v4587
    %v5071 = vpack.c.b16 %v4595, %v4588
    %v5072 = vpack.c.b16 %v4596, %v4589
    %v5073 = vpack.c.b16 %v4597, %v4590
    %v5074 = vpack.c.b16 %v4598, %v4591
    %v5075 = vpack.c.b16 %v4599, %v4592
    %v5076 = vpack.c.b16 %v4600, %v4593
    %v5077 = vpack.c.b16 %v4608, %v4601
    %v5078 = vpack.c.b16 %v4609, %v4602
    %v5079 = vpack.c.b16 %v4610, %v4603
    %v5080 = vpack.c.b16 %v4611, %v4604
    %v5081 = vpack.c.b16 %v4612, %v4605
    %v5082 = vpack.c.b16 %v4613, %v4606
    %v5083 = vpack.c.b16 %v4614, %v4607
    %v5084 = vpack.c.b16 %v4622, %v4615
    %v5085 = vpack.c.b16 %v4623, %v4616
    %v5086 = vpack.c.b16 %v4624, %v4617
    %v5087 = vpack.c.b16 %v4625, %v4618
    %v5088 = vpack.c.b16 %v4626, %v4619
    %v5089 = vpack.c.b16 %v4627, %v4620
    %v5090 = vpack.c.b16 %v4628, %v4621
    %v5091 = vpack.c.b16 %v4636, %v4629
    %v5092 = vpack.c.b16 %v4637, %v4630
    %v5093 = vpack.c.b16 %v4638, %v4631
    %v5094 = vpack.c.b16 %v4639, %v4632
    %v5095 = vpack.c.b16 %v4640, %v4633
    %v5096 = vpack.c.b16 %v4641, %v4634
    %v5097 = vpack.c.b16 %v4642, %v4635
    %v5098 = vpack.c.b16 %v4650, %v4643
    %v5099 = vpack.c.b16 %v4651, %v4644
    %v5100 = vpack.c.b16 %v4652, %v4645
    %v5101 = vpack.c.b16 %v4653, %v4646
    %v5102 = vpack.c.b16 %v4654, %v4647
    %v5103 = vpack.c.b16 %v4655, %v4648
    %v5104 = vpack.c.b16 %v4656, %v4649
    %5553 = vmatpush.bf16.msra.mxu0 %v4706
    %5554 = vmatpush.bf16.msra.mxu0 %v4699
    %5555 = vmatpush.bf16.msra.mxu0 %v4692
    %5556 = vmatpush.bf16.msra.mxu0 %v4685
    %5557 = vmatpush.bf16.msra.mxu0 %v4678
    %5558 = vmatpush.bf16.msra.mxu0 %v4671
    %5559 = vmatpush.bf16.msra.mxu0 %v4664
    %5560 = vmatpush.bf16.msra.mxu0 %v4657
    %5561 = vmatmul.bf16.gmra.mxu0 %v2713
    %v5562 = vpop.f32.mrf.mxu0
    %v5563 = vadd.f32 %v3235, %v5562
    %v5564 = vpop.f32.mrf.mxu0
    %v5565 = vadd.f32 %v3235, %v5564
    %5566 = vdwg.mxu0
    %5567 = vmatpush.bf16.msra.mxu0 %v4762
    %5568 = vmatpush.bf16.msra.mxu0 %v4755
    %5569 = vmatpush.bf16.msra.mxu0 %v4748
    %5570 = vmatpush.bf16.msra.mxu0 %v4741
    %5571 = vmatpush.bf16.msra.mxu0 %v4734
    %5572 = vmatpush.bf16.msra.mxu0 %v4727
    %5573 = vmatpush.bf16.msra.mxu0 %v4720
    %5574 = vmatpush.bf16.msra.mxu0 %v4713
    %5575 = vmatmul.bf16.gmra.mxu0 %v2714
    %v5576 = vpop.f32.mrf.mxu0
    %v5577 = vadd.f32 %v5563, %v5576
    %v5578 = vpop.f32.mrf.mxu0
    %v5579 = vadd.f32 %v5565, %v5578
    %5580 = vdwg.mxu0
    %5581 = vmatpush.bf16.msra.mxu0 %v4818
    %5582 = vmatpush.bf16.msra.mxu0 %v4811
    %5583 = vmatpush.bf16.msra.mxu0 %v4804
    %5584 = vmatpush.bf16.msra.mxu0 %v4797
    %5585 = vmatpush.bf16.msra.mxu0 %v4790
    %5586 = vmatpush.bf16.msra.mxu0 %v4783
    %5587 = vmatpush.bf16.msra.mxu0 %v4776
    %5588 = vmatpush.bf16.msra.mxu0 %v4769
    %5589 = vmatmul.bf16.gmra.mxu0 %v2715
    %v5590 = vpop.f32.mrf.mxu0
    %v5591 = vadd.f32 %v5577, %v5590
    %v5592 = vpop.f32.mrf.mxu0
    %v5593 = vadd.f32 %v5579, %v5592
    %5594 = vdwg.mxu0
    %5595 = vmatpush.bf16.msra.mxu0 %v4874
    %5596 = vmatpush.bf16.msra.mxu0 %v4867
    %5597 = vmatpush.bf16.msra.mxu0 %v4860
    %5598 = vmatpush.bf16.msra.mxu0 %v4853
    %5599 = vmatpush.bf16.msra.mxu0 %v4846
    %5600 = vmatpush.bf16.msra.mxu0 %v4839
    %5601 = vmatpush.bf16.msra.mxu0 %v4832
    %5602 = vmatpush.bf16.msra.mxu0 %v4825
    %5603 = vmatmul.bf16.gmra.mxu0 %v2716
    %v5604 = vpop.f32.mrf.mxu0
    %v5605 = vadd.f32 %v5591, %v5604
    %v5606 = vpop.f32.mrf.mxu0
    %v5607 = vadd.f32 %v5593, %v5606
    %5608 = vdwg.mxu0
    %5609 = vmatpush.bf16.msra.mxu0 %v4930
    %5610 = vmatpush.bf16.msra.mxu0 %v4923
    %5611 = vmatpush.bf16.msra.mxu0 %v4916
    %5612 = vmatpush.bf16.msra.mxu0 %v4909
    %5613 = vmatpush.bf16.msra.mxu0 %v4902
    %5614 = vmatpush.bf16.msra.mxu0 %v4895
    %5615 = vmatpush.bf16.msra.mxu0 %v4888
    %5616 = vmatpush.bf16.msra.mxu0 %v4881
    %5617 = vmatmul.bf16.gmra.mxu0 %v2717
    %v5618 = vpop.f32.mrf.mxu0
    %v5619 = vadd.f32 %v5605, %v5618
    %v5620 = vpop.f32.mrf.mxu0
    %v5621 = vadd.f32 %v5607, %v5620
    %5622 = vdwg.mxu0
    %5623 = vmatpush.bf16.msra.mxu0 %v4986
    %5624 = vmatpush.bf16.msra.mxu0 %v4979
    %5625 = vmatpush.bf16.msra.mxu0 %v4972
    %5626 = vmatpush.bf16.msra.mxu0 %v4965
    %5627 = vmatpush.bf16.msra.mxu0 %v4958
    %5628 = vmatpush.bf16.msra.mxu0 %v4951
    %5629 = vmatpush.bf16.msra.mxu0 %v4944
    %5630 = vmatpush.bf16.msra.mxu0 %v4937
    %5631 = vmatmul.bf16.gmra.mxu0 %v2718
    %v5632 = vpop.f32.mrf.mxu0
    %v5633 = vadd.f32 %v5619, %v5632
    %v5634 = vpop.f32.mrf.mxu0
    %v5635 = vadd.f32 %v5621, %v5634
    %5636 = vdwg.mxu0
    %5637 = vmatpush.bf16.msra.mxu0 %v5042
    %5638 = vmatpush.bf16.msra.mxu0 %v5035
    %5639 = vmatpush.bf16.msra.mxu0 %v5028
    %5640 = vmatpush.bf16.msra.mxu0 %v5021
    %5641 = vmatpush.bf16.msra.mxu0 %v5014
    %5642 = vmatpush.bf16.msra.mxu0 %v5007
    %5643 = vmatpush.bf16.msra.mxu0 %v5000
    %5644 = vmatpush.bf16.msra.mxu0 %v4993
    %5645 = vmatmul.bf16.gmra.mxu0 %v2719
    %v5646 = vpop.f32.mrf.mxu0
    %v5647 = vadd.f32 %v5633, %v5646
    %v5648 = vpop.f32.mrf.mxu0
    %v5649 = vadd.f32 %v5635, %v5648
    %5650 = vdwg.mxu0
    %5651 = vmatpush.bf16.msra.mxu0 %v5098
    %5652 = vmatpush.bf16.msra.mxu0 %v5091
    %5653 = vmatpush.bf16.msra.mxu0 %v5084
    %5654 = vmatpush.bf16.msra.mxu0 %v5077
    %5655 = vmatpush.bf16.msra.mxu0 %v5070
    %5656 = vmatpush.bf16.msra.mxu0 %v5063
    %5657 = vmatpush.bf16.msra.mxu0 %v5056
    %5658 = vmatpush.bf16.msra.mxu0 %v5049
    %5659 = vmatmul.bf16.gmra.mxu0 %v2720
    %v5660 = vpop.f32.mrf.mxu0
    %v5661 = vadd.f32 %v5647, %v5660
    %v5662 = vpop.f32.mrf.mxu0
    %v5663 = vadd.f32 %v5649, %v5662
    %5664 = vdwg.mxu0
    %5665 = vmatpush.bf16.msra.mxu0 %v4707
    %5666 = vmatpush.bf16.msra.mxu0 %v4700
    %5667 = vmatpush.bf16.msra.mxu0 %v4693
    %5668 = vmatpush.bf16.msra.mxu0 %v4686
    %5669 = vmatpush.bf16.msra.mxu0 %v4679
    %5670 = vmatpush.bf16.msra.mxu0 %v4672
    %5671 = vmatpush.bf16.msra.mxu0 %v4665
    %5672 = vmatpush.bf16.msra.mxu0 %v4658
    %5673 = vmatmul.bf16.gmra.mxu0 %v2713
    %v5674 = vpop.f32.mrf.mxu0
    %v5675 = vadd.f32 %v3236, %v5674
    %v5676 = vpop.f32.mrf.mxu0
    %v5677 = vadd.f32 %v3236, %v5676
    %5678 = vdwg.mxu0
    %5679 = vmatpush.bf16.msra.mxu0 %v4763
    %5680 = vmatpush.bf16.msra.mxu0 %v4756
    %5681 = vmatpush.bf16.msra.mxu0 %v4749
    %5682 = vmatpush.bf16.msra.mxu0 %v4742
    %5683 = vmatpush.bf16.msra.mxu0 %v4735
    %5684 = vmatpush.bf16.msra.mxu0 %v4728
    %5685 = vmatpush.bf16.msra.mxu0 %v4721
    %5686 = vmatpush.bf16.msra.mxu0 %v4714
    %5687 = vmatmul.bf16.gmra.mxu0 %v2714
    %v5688 = vpop.f32.mrf.mxu0
    %v5689 = vadd.f32 %v5675, %v5688
    %v5690 = vpop.f32.mrf.mxu0
    %v5691 = vadd.f32 %v5677, %v5690
    %5692 = vdwg.mxu0
    %5693 = vmatpush.bf16.msra.mxu0 %v4819
    %5694 = vmatpush.bf16.msra.mxu0 %v4812
    %5695 = vmatpush.bf16.msra.mxu0 %v4805
    %5696 = vmatpush.bf16.msra.mxu0 %v4798
    %5697 = vmatpush.bf16.msra.mxu0 %v4791
    %5698 = vmatpush.bf16.msra.mxu0 %v4784
    %5699 = vmatpush.bf16.msra.mxu0 %v4777
    %5700 = vmatpush.bf16.msra.mxu0 %v4770
    %5701 = vmatmul.bf16.gmra.mxu0 %v2715
    %v5702 = vpop.f32.mrf.mxu0
    %v5703 = vadd.f32 %v5689, %v5702
    %v5704 = vpop.f32.mrf.mxu0
    %v5705 = vadd.f32 %v5691, %v5704
    %5706 = vdwg.mxu0
    %5707 = vmatpush.bf16.msra.mxu0 %v4875
    %5708 = vmatpush.bf16.msra.mxu0 %v4868
    %5709 = vmatpush.bf16.msra.mxu0 %v4861
    %5710 = vmatpush.bf16.msra.mxu0 %v4854
    %5711 = vmatpush.bf16.msra.mxu0 %v4847
    %5712 = vmatpush.bf16.msra.mxu0 %v4840
    %5713 = vmatpush.bf16.msra.mxu0 %v4833
    %5714 = vmatpush.bf16.msra.mxu0 %v4826
    %5715 = vmatmul.bf16.gmra.mxu0 %v2716
    %v5716 = vpop.f32.mrf.mxu0
    %v5717 = vadd.f32 %v5703, %v5716
    %v5718 = vpop.f32.mrf.mxu0
    %v5719 = vadd.f32 %v5705, %v5718
    %5720 = vdwg.mxu0
    %5721 = vmatpush.bf16.msra.mxu0 %v4931
    %5722 = vmatpush.bf16.msra.mxu0 %v4924
    %5723 = vmatpush.bf16.msra.mxu0 %v4917
    %5724 = vmatpush.bf16.msra.mxu0 %v4910
    %5725 = vmatpush.bf16.msra.mxu0 %v4903
    %5726 = vmatpush.bf16.msra.mxu0 %v4896
    %5727 = vmatpush.bf16.msra.mxu0 %v4889
    %5728 = vmatpush.bf16.msra.mxu0 %v4882
    %5729 = vmatmul.bf16.gmra.mxu0 %v2717
    %v5730 = vpop.f32.mrf.mxu0
    %v5731 = vadd.f32 %v5717, %v5730
    %v5732 = vpop.f32.mrf.mxu0
    %v5733 = vadd.f32 %v5719, %v5732
    %5734 = vdwg.mxu0
    %5735 = vmatpush.bf16.msra.mxu0 %v4987
    %5736 = vmatpush.bf16.msra.mxu0 %v4980
    %5737 = vmatpush.bf16.msra.mxu0 %v4973
    %5738 = vmatpush.bf16.msra.mxu0 %v4966
    %5739 = vmatpush.bf16.msra.mxu0 %v4959
    %5740 = vmatpush.bf16.msra.mxu0 %v4952
    %5741 = vmatpush.bf16.msra.mxu0 %v4945
    %5742 = vmatpush.bf16.msra.mxu0 %v4938
    %5743 = vmatmul.bf16.gmra.mxu0 %v2718
    %v5744 = vpop.f32.mrf.mxu0
    %v5745 = vadd.f32 %v5731, %v5744
    %v5746 = vpop.f32.mrf.mxu0
    %v5747 = vadd.f32 %v5733, %v5746
    %5748 = vdwg.mxu0
    %5749 = vmatpush.bf16.msra.mxu0 %v5043
    %5750 = vmatpush.bf16.msra.mxu0 %v5036
    %5751 = vmatpush.bf16.msra.mxu0 %v5029
    %5752 = vmatpush.bf16.msra.mxu0 %v5022
    %5753 = vmatpush.bf16.msra.mxu0 %v5015
    %5754 = vmatpush.bf16.msra.mxu0 %v5008
    %5755 = vmatpush.bf16.msra.mxu0 %v5001
    %5756 = vmatpush.bf16.msra.mxu0 %v4994
    %5757 = vmatmul.bf16.gmra.mxu0 %v2719
    %v5758 = vpop.f32.mrf.mxu0
    %v5759 = vadd.f32 %v5745, %v5758
    %v5760 = vpop.f32.mrf.mxu0
    %v5761 = vadd.f32 %v5747, %v5760
    %5762 = vdwg.mxu0
    %5763 = vmatpush.bf16.msra.mxu0 %v5099
    %5764 = vmatpush.bf16.msra.mxu0 %v5092
    %5765 = vmatpush.bf16.msra.mxu0 %v5085
    %5766 = vmatpush.bf16.msra.mxu0 %v5078
    %5767 = vmatpush.bf16.msra.mxu0 %v5071
    %5768 = vmatpush.bf16.msra.mxu0 %v5064
    %5769 = vmatpush.bf16.msra.mxu0 %v5057
    %5770 = vmatpush.bf16.msra.mxu0 %v5050
    %5771 = vmatmul.bf16.gmra.mxu0 %v2720
    %v5772 = vpop.f32.mrf.mxu0
    %v5773 = vadd.f32 %v5759, %v5772
    %v5774 = vpop.f32.mrf.mxu0
    %v5775 = vadd.f32 %v5761, %v5774
    %5776 = vdwg.mxu0
    %5777 = vmatpush.bf16.msra.mxu0 %v4708
    %5778 = vmatpush.bf16.msra.mxu0 %v4701
    %5779 = vmatpush.bf16.msra.mxu0 %v4694
    %5780 = vmatpush.bf16.msra.mxu0 %v4687
    %5781 = vmatpush.bf16.msra.mxu0 %v4680
    %5782 = vmatpush.bf16.msra.mxu0 %v4673
    %5783 = vmatpush.bf16.msra.mxu0 %v4666
    %5784 = vmatpush.bf16.msra.mxu0 %v4659
    %5785 = vmatmul.bf16.gmra.mxu0 %v2713
    %v5786 = vpop.f32.mrf.mxu0
    %v5787 = vadd.f32 %v3237, %v5786
    %v5788 = vpop.f32.mrf.mxu0
    %v5789 = vadd.f32 %v3237, %v5788
    %5790 = vdwg.mxu0
    %5791 = vmatpush.bf16.msra.mxu0 %v4764
    %5792 = vmatpush.bf16.msra.mxu0 %v4757
    %5793 = vmatpush.bf16.msra.mxu0 %v4750
    %5794 = vmatpush.bf16.msra.mxu0 %v4743
    %5795 = vmatpush.bf16.msra.mxu0 %v4736
    %5796 = vmatpush.bf16.msra.mxu0 %v4729
    %5797 = vmatpush.bf16.msra.mxu0 %v4722
    %5798 = vmatpush.bf16.msra.mxu0 %v4715
    %5799 = vmatmul.bf16.gmra.mxu0 %v2714
    %v5800 = vpop.f32.mrf.mxu0
    %v5801 = vadd.f32 %v5787, %v5800
    %v5802 = vpop.f32.mrf.mxu0
    %v5803 = vadd.f32 %v5789, %v5802
    %5804 = vdwg.mxu0
    %5805 = vmatpush.bf16.msra.mxu0 %v4820
    %5806 = vmatpush.bf16.msra.mxu0 %v4813
    %5807 = vmatpush.bf16.msra.mxu0 %v4806
    %5808 = vmatpush.bf16.msra.mxu0 %v4799
    %5809 = vmatpush.bf16.msra.mxu0 %v4792
    %5810 = vmatpush.bf16.msra.mxu0 %v4785
    %5811 = vmatpush.bf16.msra.mxu0 %v4778
    %5812 = vmatpush.bf16.msra.mxu0 %v4771
    %5813 = vmatmul.bf16.gmra.mxu0 %v2715
    %v5814 = vpop.f32.mrf.mxu0
    %v5815 = vadd.f32 %v5801, %v5814
    %v5816 = vpop.f32.mrf.mxu0
    %v5817 = vadd.f32 %v5803, %v5816
    %5818 = vdwg.mxu0
    %5819 = vmatpush.bf16.msra.mxu0 %v4876
    %5820 = vmatpush.bf16.msra.mxu0 %v4869
    %5821 = vmatpush.bf16.msra.mxu0 %v4862
    %5822 = vmatpush.bf16.msra.mxu0 %v4855
    %5823 = vmatpush.bf16.msra.mxu0 %v4848
    %5824 = vmatpush.bf16.msra.mxu0 %v4841
    %5825 = vmatpush.bf16.msra.mxu0 %v4834
    %5826 = vmatpush.bf16.msra.mxu0 %v4827
    %5827 = vmatmul.bf16.gmra.mxu0 %v2716
    %v5828 = vpop.f32.mrf.mxu0
    %v5829 = vadd.f32 %v5815, %v5828
    %v5830 = vpop.f32.mrf.mxu0
    %v5831 = vadd.f32 %v5817, %v5830
    %5832 = vdwg.mxu0
    %5833 = vmatpush.bf16.msra.mxu0 %v4932
    %5834 = vmatpush.bf16.msra.mxu0 %v4925
    %5835 = vmatpush.bf16.msra.mxu0 %v4918
    %5836 = vmatpush.bf16.msra.mxu0 %v4911
    %5837 = vmatpush.bf16.msra.mxu0 %v4904
    %5838 = vmatpush.bf16.msra.mxu0 %v4897
    %5839 = vmatpush.bf16.msra.mxu0 %v4890
    %5840 = vmatpush.bf16.msra.mxu0 %v4883
    %5841 = vmatmul.bf16.gmra.mxu0 %v2717
    %v5842 = vpop.f32.mrf.mxu0
    %v5843 = vadd.f32 %v5829, %v5842
    %v5844 = vpop.f32.mrf.mxu0
    %v5845 = vadd.f32 %v5831, %v5844
    %5846 = vdwg.mxu0
    %5847 = vmatpush.bf16.msra.mxu0 %v4988
    %5848 = vmatpush.bf16.msra.mxu0 %v4981
    %5849 = vmatpush.bf16.msra.mxu0 %v4974
    %5850 = vmatpush.bf16.msra.mxu0 %v4967
    %5851 = vmatpush.bf16.msra.mxu0 %v4960
    %5852 = vmatpush.bf16.msra.mxu0 %v4953
    %5853 = vmatpush.bf16.msra.mxu0 %v4946
    %5854 = vmatpush.bf16.msra.mxu0 %v4939
    %5855 = vmatmul.bf16.gmra.mxu0 %v2718
    %v5856 = vpop.f32.mrf.mxu0
    %v5857 = vadd.f32 %v5843, %v5856
    %v5858 = vpop.f32.mrf.mxu0
    %v5859 = vadd.f32 %v5845, %v5858
    %5860 = vdwg.mxu0
    %5861 = vmatpush.bf16.msra.mxu0 %v5044
    %5862 = vmatpush.bf16.msra.mxu0 %v5037
    %5863 = vmatpush.bf16.msra.mxu0 %v5030
    %5864 = vmatpush.bf16.msra.mxu0 %v5023
    %5865 = vmatpush.bf16.msra.mxu0 %v5016
    %5866 = vmatpush.bf16.msra.mxu0 %v5009
    %5867 = vmatpush.bf16.msra.mxu0 %v5002
    %5868 = vmatpush.bf16.msra.mxu0 %v4995
    %5869 = vmatmul.bf16.gmra.mxu0 %v2719
    %v5870 = vpop.f32.mrf.mxu0
    %v5871 = vadd.f32 %v5857, %v5870
    %v5872 = vpop.f32.mrf.mxu0
    %v5873 = vadd.f32 %v5859, %v5872
    %5874 = vdwg.mxu0
    %5875 = vmatpush.bf16.msra.mxu0 %v5100
    %5876 = vmatpush.bf16.msra.mxu0 %v5093
    %5877 = vmatpush.bf16.msra.mxu0 %v5086
    %5878 = vmatpush.bf16.msra.mxu0 %v5079
    %5879 = vmatpush.bf16.msra.mxu0 %v5072
    %5880 = vmatpush.bf16.msra.mxu0 %v5065
    %5881 = vmatpush.bf16.msra.mxu0 %v5058
    %5882 = vmatpush.bf16.msra.mxu0 %v5051
    %5883 = vmatmul.bf16.gmra.mxu0 %v2720
    %v5884 = vpop.f32.mrf.mxu0
    %v5885 = vadd.f32 %v5871, %v5884
    %v5886 = vpop.f32.mrf.mxu0
    %v5887 = vadd.f32 %v5873, %v5886
    %5888 = vdwg.mxu0
    %5889 = vmatpush.bf16.msra.mxu0 %v4709
    %5890 = vmatpush.bf16.msra.mxu0 %v4702
    %5891 = vmatpush.bf16.msra.mxu0 %v4695
    %5892 = vmatpush.bf16.msra.mxu0 %v4688
    %5893 = vmatpush.bf16.msra.mxu0 %v4681
    %5894 = vmatpush.bf16.msra.mxu0 %v4674
    %5895 = vmatpush.bf16.msra.mxu0 %v4667
    %5896 = vmatpush.bf16.msra.mxu0 %v4660
    %5897 = vmatmul.bf16.gmra.mxu0 %v2713
    %v5898 = vpop.f32.mrf.mxu0
    %v5899 = vadd.f32 %v3238, %v5898
    %v5900 = vpop.f32.mrf.mxu0
    %v5901 = vadd.f32 %v3238, %v5900
    %5902 = vdwg.mxu0
    %5903 = vmatpush.bf16.msra.mxu0 %v4765
    %5904 = vmatpush.bf16.msra.mxu0 %v4758
    %5905 = vmatpush.bf16.msra.mxu0 %v4751
    %5906 = vmatpush.bf16.msra.mxu0 %v4744
    %5907 = vmatpush.bf16.msra.mxu0 %v4737
    %5908 = vmatpush.bf16.msra.mxu0 %v4730
    %5909 = vmatpush.bf16.msra.mxu0 %v4723
    %5910 = vmatpush.bf16.msra.mxu0 %v4716
    %5911 = vmatmul.bf16.gmra.mxu0 %v2714
    %v5912 = vpop.f32.mrf.mxu0
    %v5913 = vadd.f32 %v5899, %v5912
    %v5914 = vpop.f32.mrf.mxu0
    %v5915 = vadd.f32 %v5901, %v5914
    %5916 = vdwg.mxu0
    %5917 = vmatpush.bf16.msra.mxu0 %v4821
    %5918 = vmatpush.bf16.msra.mxu0 %v4814
    %5919 = vmatpush.bf16.msra.mxu0 %v4807
    %5920 = vmatpush.bf16.msra.mxu0 %v4800
    %5921 = vmatpush.bf16.msra.mxu0 %v4793
    %5922 = vmatpush.bf16.msra.mxu0 %v4786
    %5923 = vmatpush.bf16.msra.mxu0 %v4779
    %5924 = vmatpush.bf16.msra.mxu0 %v4772
    %5925 = vmatmul.bf16.gmra.mxu0 %v2715
    %v5926 = vpop.f32.mrf.mxu0
    %v5927 = vadd.f32 %v5913, %v5926
    %v5928 = vpop.f32.mrf.mxu0
    %v5929 = vadd.f32 %v5915, %v5928
    %5930 = vdwg.mxu0
    %5931 = vmatpush.bf16.msra.mxu0 %v4877
    %5932 = vmatpush.bf16.msra.mxu0 %v4870
    %5933 = vmatpush.bf16.msra.mxu0 %v4863
    %5934 = vmatpush.bf16.msra.mxu0 %v4856
    %5935 = vmatpush.bf16.msra.mxu0 %v4849
    %5936 = vmatpush.bf16.msra.mxu0 %v4842
    %5937 = vmatpush.bf16.msra.mxu0 %v4835
    %5938 = vmatpush.bf16.msra.mxu0 %v4828
    %5939 = vmatmul.bf16.gmra.mxu0 %v2716
    %v5940 = vpop.f32.mrf.mxu0
    %v5941 = vadd.f32 %v5927, %v5940
    %v5942 = vpop.f32.mrf.mxu0
    %v5943 = vadd.f32 %v5929, %v5942
    %5944 = vdwg.mxu0
    %5945 = vmatpush.bf16.msra.mxu0 %v4933
    %5946 = vmatpush.bf16.msra.mxu0 %v4926
    %5947 = vmatpush.bf16.msra.mxu0 %v4919
    %5948 = vmatpush.bf16.msra.mxu0 %v4912
    %5949 = vmatpush.bf16.msra.mxu0 %v4905
    %5950 = vmatpush.bf16.msra.mxu0 %v4898
    %5951 = vmatpush.bf16.msra.mxu0 %v4891
    %5952 = vmatpush.bf16.msra.mxu0 %v4884
    %5953 = vmatmul.bf16.gmra.mxu0 %v2717
    %v5954 = vpop.f32.mrf.mxu0
    %v5955 = vadd.f32 %v5941, %v5954
    %v5956 = vpop.f32.mrf.mxu0
    %v5957 = vadd.f32 %v5943, %v5956
    %5958 = vdwg.mxu0
    %5959 = vmatpush.bf16.msra.mxu0 %v4989
    %5960 = vmatpush.bf16.msra.mxu0 %v4982
    %5961 = vmatpush.bf16.msra.mxu0 %v4975
    %5962 = vmatpush.bf16.msra.mxu0 %v4968
    %5963 = vmatpush.bf16.msra.mxu0 %v4961
    %5964 = vmatpush.bf16.msra.mxu0 %v4954
    %5965 = vmatpush.bf16.msra.mxu0 %v4947
    %5966 = vmatpush.bf16.msra.mxu0 %v4940
    %5967 = vmatmul.bf16.gmra.mxu0 %v2718
    %v5968 = vpop.f32.mrf.mxu0
    %v5969 = vadd.f32 %v5955, %v5968
    %v5970 = vpop.f32.mrf.mxu0
    %v5971 = vadd.f32 %v5957, %v5970
    %5972 = vdwg.mxu0
    %5973 = vmatpush.bf16.msra.mxu0 %v5045
    %5974 = vmatpush.bf16.msra.mxu0 %v5038
    %5975 = vmatpush.bf16.msra.mxu0 %v5031
    %5976 = vmatpush.bf16.msra.mxu0 %v5024
    %5977 = vmatpush.bf16.msra.mxu0 %v5017
    %5978 = vmatpush.bf16.msra.mxu0 %v5010
    %5979 = vmatpush.bf16.msra.mxu0 %v5003
    %5980 = vmatpush.bf16.msra.mxu0 %v4996
    %5981 = vmatmul.bf16.gmra.mxu0 %v2719
    %v5982 = vpop.f32.mrf.mxu0
    %v5983 = vadd.f32 %v5969, %v5982
    %v5984 = vpop.f32.mrf.mxu0
    %v5985 = vadd.f32 %v5971, %v5984
    %5986 = vdwg.mxu0
    %5987 = vmatpush.bf16.msra.mxu0 %v5101
    %5988 = vmatpush.bf16.msra.mxu0 %v5094
    %5989 = vmatpush.bf16.msra.mxu0 %v5087
    %5990 = vmatpush.bf16.msra.mxu0 %v5080
    %5991 = vmatpush.bf16.msra.mxu0 %v5073
    %5992 = vmatpush.bf16.msra.mxu0 %v5066
    %5993 = vmatpush.bf16.msra.mxu0 %v5059
    %5994 = vmatpush.bf16.msra.mxu0 %v5052
    %5995 = vmatmul.bf16.gmra.mxu0 %v2720
    %v5996 = vpop.f32.mrf.mxu0
    %v5997 = vadd.f32 %v5983, %v5996
    %v5998 = vpop.f32.mrf.mxu0
    %v5999 = vadd.f32 %v5985, %v5998
    %6000 = vdwg.mxu0
    %6001 = vmatpush.bf16.msra.mxu0 %v4710
    %6002 = vmatpush.bf16.msra.mxu0 %v4703
    %6003 = vmatpush.bf16.msra.mxu0 %v4696
    %6004 = vmatpush.bf16.msra.mxu0 %v4689
    %6005 = vmatpush.bf16.msra.mxu0 %v4682
    %6006 = vmatpush.bf16.msra.mxu0 %v4675
    %6007 = vmatpush.bf16.msra.mxu0 %v4668
    %6008 = vmatpush.bf16.msra.mxu0 %v4661
    %6009 = vmatmul.bf16.gmra.mxu0 %v2713
    %v6010 = vpop.f32.mrf.mxu0
    %v6011 = vadd.f32 %v3239, %v6010
    %v6012 = vpop.f32.mrf.mxu0
    %v6013 = vadd.f32 %v3239, %v6012
    %6014 = vdwg.mxu0
    %6015 = vmatpush.bf16.msra.mxu0 %v4766
    %6016 = vmatpush.bf16.msra.mxu0 %v4759
    %6017 = vmatpush.bf16.msra.mxu0 %v4752
    %6018 = vmatpush.bf16.msra.mxu0 %v4745
    %6019 = vmatpush.bf16.msra.mxu0 %v4738
    %6020 = vmatpush.bf16.msra.mxu0 %v4731
    %6021 = vmatpush.bf16.msra.mxu0 %v4724
    %6022 = vmatpush.bf16.msra.mxu0 %v4717
    %6023 = vmatmul.bf16.gmra.mxu0 %v2714
    %v6024 = vpop.f32.mrf.mxu0
    %v6025 = vadd.f32 %v6011, %v6024
    %v6026 = vpop.f32.mrf.mxu0
    %v6027 = vadd.f32 %v6013, %v6026
    %6028 = vdwg.mxu0
    %6029 = vmatpush.bf16.msra.mxu0 %v4822
    %6030 = vmatpush.bf16.msra.mxu0 %v4815
    %6031 = vmatpush.bf16.msra.mxu0 %v4808
    %6032 = vmatpush.bf16.msra.mxu0 %v4801
    %6033 = vmatpush.bf16.msra.mxu0 %v4794
    %6034 = vmatpush.bf16.msra.mxu0 %v4787
    %6035 = vmatpush.bf16.msra.mxu0 %v4780
    %6036 = vmatpush.bf16.msra.mxu0 %v4773
    %6037 = vmatmul.bf16.gmra.mxu0 %v2715
    %v6038 = vpop.f32.mrf.mxu0
    %v6039 = vadd.f32 %v6025, %v6038
    %v6040 = vpop.f32.mrf.mxu0
    %v6041 = vadd.f32 %v6027, %v6040
    %6042 = vdwg.mxu0
    %6043 = vmatpush.bf16.msra.mxu0 %v4878
    %6044 = vmatpush.bf16.msra.mxu0 %v4871
    %6045 = vmatpush.bf16.msra.mxu0 %v4864
    %6046 = vmatpush.bf16.msra.mxu0 %v4857
    %6047 = vmatpush.bf16.msra.mxu0 %v4850
    %6048 = vmatpush.bf16.msra.mxu0 %v4843
    %6049 = vmatpush.bf16.msra.mxu0 %v4836
    %6050 = vmatpush.bf16.msra.mxu0 %v4829
    %6051 = vmatmul.bf16.gmra.mxu0 %v2716
    %v6052 = vpop.f32.mrf.mxu0
    %v6053 = vadd.f32 %v6039, %v6052
    %v6054 = vpop.f32.mrf.mxu0
    %v6055 = vadd.f32 %v6041, %v6054
    %6056 = vdwg.mxu0
    %6057 = vmatpush.bf16.msra.mxu0 %v4934
    %6058 = vmatpush.bf16.msra.mxu0 %v4927
    %6059 = vmatpush.bf16.msra.mxu0 %v4920
    %6060 = vmatpush.bf16.msra.mxu0 %v4913
    %6061 = vmatpush.bf16.msra.mxu0 %v4906
    %6062 = vmatpush.bf16.msra.mxu0 %v4899
    %6063 = vmatpush.bf16.msra.mxu0 %v4892
    %6064 = vmatpush.bf16.msra.mxu0 %v4885
    %6065 = vmatmul.bf16.gmra.mxu0 %v2717
    %v6066 = vpop.f32.mrf.mxu0
    %v6067 = vadd.f32 %v6053, %v6066
    %v6068 = vpop.f32.mrf.mxu0
    %v6069 = vadd.f32 %v6055, %v6068
    %6070 = vdwg.mxu0
    %6071 = vmatpush.bf16.msra.mxu0 %v4990
    %6072 = vmatpush.bf16.msra.mxu0 %v4983
    %6073 = vmatpush.bf16.msra.mxu0 %v4976
    %6074 = vmatpush.bf16.msra.mxu0 %v4969
    %6075 = vmatpush.bf16.msra.mxu0 %v4962
    %6076 = vmatpush.bf16.msra.mxu0 %v4955
    %6077 = vmatpush.bf16.msra.mxu0 %v4948
    %6078 = vmatpush.bf16.msra.mxu0 %v4941
    %6079 = vmatmul.bf16.gmra.mxu0 %v2718
    %v6080 = vpop.f32.mrf.mxu0
    %v6081 = vadd.f32 %v6067, %v6080
    %v6082 = vpop.f32.mrf.mxu0
    %v6083 = vadd.f32 %v6069, %v6082
    %6084 = vdwg.mxu0
    %6085 = vmatpush.bf16.msra.mxu0 %v5046
    %6086 = vmatpush.bf16.msra.mxu0 %v5039
    %6087 = vmatpush.bf16.msra.mxu0 %v5032
    %6088 = vmatpush.bf16.msra.mxu0 %v5025
    %6089 = vmatpush.bf16.msra.mxu0 %v5018
    %6090 = vmatpush.bf16.msra.mxu0 %v5011
    %6091 = vmatpush.bf16.msra.mxu0 %v5004
    %6092 = vmatpush.bf16.msra.mxu0 %v4997
    %6093 = vmatmul.bf16.gmra.mxu0 %v2719
    %v6094 = vpop.f32.mrf.mxu0
    %v6095 = vadd.f32 %v6081, %v6094
    %v6096 = vpop.f32.mrf.mxu0
    %v6097 = vadd.f32 %v6083, %v6096
    %6098 = vdwg.mxu0
    %6099 = vmatpush.bf16.msra.mxu0 %v5102
    %6100 = vmatpush.bf16.msra.mxu0 %v5095
    %6101 = vmatpush.bf16.msra.mxu0 %v5088
    %6102 = vmatpush.bf16.msra.mxu0 %v5081
    %6103 = vmatpush.bf16.msra.mxu0 %v5074
    %6104 = vmatpush.bf16.msra.mxu0 %v5067
    %6105 = vmatpush.bf16.msra.mxu0 %v5060
    %6106 = vmatpush.bf16.msra.mxu0 %v5053
    %6107 = vmatmul.bf16.gmra.mxu0 %v2720
    %v6108 = vpop.f32.mrf.mxu0
    %v6109 = vadd.f32 %v6095, %v6108
    %v6110 = vpop.f32.mrf.mxu0
    %v6111 = vadd.f32 %v6097, %v6110
    %6112 = vdwg.mxu0
    %6113 = vmatpush.bf16.msra.mxu0 %v4711
    %6114 = vmatpush.bf16.msra.mxu0 %v4704
    %6115 = vmatpush.bf16.msra.mxu0 %v4697
    %6116 = vmatpush.bf16.msra.mxu0 %v4690
    %6117 = vmatpush.bf16.msra.mxu0 %v4683
    %6118 = vmatpush.bf16.msra.mxu0 %v4676
    %6119 = vmatpush.bf16.msra.mxu0 %v4669
    %6120 = vmatpush.bf16.msra.mxu0 %v4662
    %6121 = vmatmul.bf16.gmra.mxu0 %v2713
    %v6122 = vpop.f32.mrf.mxu0
    %v6123 = vadd.f32 %v3240, %v6122
    %v6124 = vpop.f32.mrf.mxu0
    %v6125 = vadd.f32 %v3240, %v6124
    %6126 = vdwg.mxu0
    %6127 = vmatpush.bf16.msra.mxu0 %v4767
    %6128 = vmatpush.bf16.msra.mxu0 %v4760
    %6129 = vmatpush.bf16.msra.mxu0 %v4753
    %6130 = vmatpush.bf16.msra.mxu0 %v4746
    %6131 = vmatpush.bf16.msra.mxu0 %v4739
    %6132 = vmatpush.bf16.msra.mxu0 %v4732
    %6133 = vmatpush.bf16.msra.mxu0 %v4725
    %6134 = vmatpush.bf16.msra.mxu0 %v4718
    %6135 = vmatmul.bf16.gmra.mxu0 %v2714
    %v6136 = vpop.f32.mrf.mxu0
    %v6137 = vadd.f32 %v6123, %v6136
    %v6138 = vpop.f32.mrf.mxu0
    %v6139 = vadd.f32 %v6125, %v6138
    %6140 = vdwg.mxu0
    %6141 = vmatpush.bf16.msra.mxu0 %v4823
    %6142 = vmatpush.bf16.msra.mxu0 %v4816
    %6143 = vmatpush.bf16.msra.mxu0 %v4809
    %6144 = vmatpush.bf16.msra.mxu0 %v4802
    %6145 = vmatpush.bf16.msra.mxu0 %v4795
    %6146 = vmatpush.bf16.msra.mxu0 %v4788
    %6147 = vmatpush.bf16.msra.mxu0 %v4781
    %6148 = vmatpush.bf16.msra.mxu0 %v4774
    %6149 = vmatmul.bf16.gmra.mxu0 %v2715
    %v6150 = vpop.f32.mrf.mxu0
    %v6151 = vadd.f32 %v6137, %v6150
    %v6152 = vpop.f32.mrf.mxu0
    %v6153 = vadd.f32 %v6139, %v6152
    %6154 = vdwg.mxu0
    %6155 = vmatpush.bf16.msra.mxu0 %v4879
    %6156 = vmatpush.bf16.msra.mxu0 %v4872
    %6157 = vmatpush.bf16.msra.mxu0 %v4865
    %6158 = vmatpush.bf16.msra.mxu0 %v4858
    %6159 = vmatpush.bf16.msra.mxu0 %v4851
    %6160 = vmatpush.bf16.msra.mxu0 %v4844
    %6161 = vmatpush.bf16.msra.mxu0 %v4837
    %6162 = vmatpush.bf16.msra.mxu0 %v4830
    %6163 = vmatmul.bf16.gmra.mxu0 %v2716
    %v6164 = vpop.f32.mrf.mxu0
    %v6165 = vadd.f32 %v6151, %v6164
    %v6166 = vpop.f32.mrf.mxu0
    %v6167 = vadd.f32 %v6153, %v6166
    %6168 = vdwg.mxu0
    %6169 = vmatpush.bf16.msra.mxu0 %v4935
    %6170 = vmatpush.bf16.msra.mxu0 %v4928
    %6171 = vmatpush.bf16.msra.mxu0 %v4921
    %6172 = vmatpush.bf16.msra.mxu0 %v4914
    %6173 = vmatpush.bf16.msra.mxu0 %v4907
    %6174 = vmatpush.bf16.msra.mxu0 %v4900
    %6175 = vmatpush.bf16.msra.mxu0 %v4893
    %6176 = vmatpush.bf16.msra.mxu0 %v4886
    %6177 = vmatmul.bf16.gmra.mxu0 %v2717
    %v6178 = vpop.f32.mrf.mxu0
    %v6179 = vadd.f32 %v6165, %v6178
    %v6180 = vpop.f32.mrf.mxu0
    %v6181 = vadd.f32 %v6167, %v6180
    %6182 = vdwg.mxu0
    %6183 = vmatpush.bf16.msra.mxu0 %v4991
    %6184 = vmatpush.bf16.msra.mxu0 %v4984
    %6185 = vmatpush.bf16.msra.mxu0 %v4977
    %6186 = vmatpush.bf16.msra.mxu0 %v4970
    %6187 = vmatpush.bf16.msra.mxu0 %v4963
    %6188 = vmatpush.bf16.msra.mxu0 %v4956
    %6189 = vmatpush.bf16.msra.mxu0 %v4949
    %6190 = vmatpush.bf16.msra.mxu0 %v4942
    %6191 = vmatmul.bf16.gmra.mxu0 %v2718
    %v6192 = vpop.f32.mrf.mxu0
    %v6193 = vadd.f32 %v6179, %v6192
    %v6194 = vpop.f32.mrf.mxu0
    %v6195 = vadd.f32 %v6181, %v6194
    %6196 = vdwg.mxu0
    %6197 = vmatpush.bf16.msra.mxu0 %v5047
    %6198 = vmatpush.bf16.msra.mxu0 %v5040
    %6199 = vmatpush.bf16.msra.mxu0 %v5033
    %6200 = vmatpush.bf16.msra.mxu0 %v5026
    %6201 = vmatpush.bf16.msra.mxu0 %v5019
    %6202 = vmatpush.bf16.msra.mxu0 %v5012
    %6203 = vmatpush.bf16.msra.mxu0 %v5005
    %6204 = vmatpush.bf16.msra.mxu0 %v4998
    %6205 = vmatmul.bf16.gmra.mxu0 %v2719
    %v6206 = vpop.f32.mrf.mxu0
    %v6207 = vadd.f32 %v6193, %v6206
    %v6208 = vpop.f32.mrf.mxu0
    %v6209 = vadd.f32 %v6195, %v6208
    %6210 = vdwg.mxu0
    %6211 = vmatpush.bf16.msra.mxu0 %v5103
    %6212 = vmatpush.bf16.msra.mxu0 %v5096
    %6213 = vmatpush.bf16.msra.mxu0 %v5089
    %6214 = vmatpush.bf16.msra.mxu0 %v5082
    %6215 = vmatpush.bf16.msra.mxu0 %v5075
    %6216 = vmatpush.bf16.msra.mxu0 %v5068
    %6217 = vmatpush.bf16.msra.mxu0 %v5061
    %6218 = vmatpush.bf16.msra.mxu0 %v5054
    %6219 = vmatmul.bf16.gmra.mxu0 %v2720
    %v6220 = vpop.f32.mrf.mxu0
    %v6221 = vadd.f32 %v6207, %v6220
    %v6222 = vpop.f32.mrf.mxu0
    %v6223 = vadd.f32 %v6209, %v6222
    %6224 = vdwg.mxu0
    %6225 = vmatpush.bf16.msra.mxu0 %v4712
    %6226 = vmatpush.bf16.msra.mxu0 %v4705
    %6227 = vmatpush.bf16.msra.mxu0 %v4698
    %6228 = vmatpush.bf16.msra.mxu0 %v4691
    %6229 = vmatpush.bf16.msra.mxu0 %v4684
    %6230 = vmatpush.bf16.msra.mxu0 %v4677
    %6231 = vmatpush.bf16.msra.mxu0 %v4670
    %6232 = vmatpush.bf16.msra.mxu0 %v4663
    %6233 = vmatmul.bf16.gmra.mxu0 %v2713
    %v6234 = vpop.f32.mrf.mxu0
    %v6235 = vadd.f32 %v3241, %v6234
    %v6236 = vpop.f32.mrf.mxu0
    %v6237 = vadd.f32 %v3241, %v6236
    %6238 = vdwg.mxu0
    %6239 = vmatpush.bf16.msra.mxu0 %v4768
    %6240 = vmatpush.bf16.msra.mxu0 %v4761
    %6241 = vmatpush.bf16.msra.mxu0 %v4754
    %6242 = vmatpush.bf16.msra.mxu0 %v4747
    %6243 = vmatpush.bf16.msra.mxu0 %v4740
    %6244 = vmatpush.bf16.msra.mxu0 %v4733
    %6245 = vmatpush.bf16.msra.mxu0 %v4726
    %6246 = vmatpush.bf16.msra.mxu0 %v4719
    %6247 = vmatmul.bf16.gmra.mxu0 %v2714
    %v6248 = vpop.f32.mrf.mxu0
    %v6249 = vadd.f32 %v6235, %v6248
    %v6250 = vpop.f32.mrf.mxu0
    %v6251 = vadd.f32 %v6237, %v6250
    %6252 = vdwg.mxu0
    %6253 = vmatpush.bf16.msra.mxu0 %v4824
    %6254 = vmatpush.bf16.msra.mxu0 %v4817
    %6255 = vmatpush.bf16.msra.mxu0 %v4810
    %6256 = vmatpush.bf16.msra.mxu0 %v4803
    %6257 = vmatpush.bf16.msra.mxu0 %v4796
    %6258 = vmatpush.bf16.msra.mxu0 %v4789
    %6259 = vmatpush.bf16.msra.mxu0 %v4782
    %6260 = vmatpush.bf16.msra.mxu0 %v4775
    %6261 = vmatmul.bf16.gmra.mxu0 %v2715
    %v6262 = vpop.f32.mrf.mxu0
    %v6263 = vadd.f32 %v6249, %v6262
    %v6264 = vpop.f32.mrf.mxu0
    %v6265 = vadd.f32 %v6251, %v6264
    %6266 = vdwg.mxu0
    %6267 = vmatpush.bf16.msra.mxu0 %v4880
    %6268 = vmatpush.bf16.msra.mxu0 %v4873
    %6269 = vmatpush.bf16.msra.mxu0 %v4866
    %6270 = vmatpush.bf16.msra.mxu0 %v4859
    %6271 = vmatpush.bf16.msra.mxu0 %v4852
    %6272 = vmatpush.bf16.msra.mxu0 %v4845
    %6273 = vmatpush.bf16.msra.mxu0 %v4838
    %6274 = vmatpush.bf16.msra.mxu0 %v4831
    %6275 = vmatmul.bf16.gmra.mxu0 %v2716
    %v6276 = vpop.f32.mrf.mxu0
    %v6277 = vadd.f32 %v6263, %v6276
    %v6278 = vpop.f32.mrf.mxu0
    %v6279 = vadd.f32 %v6265, %v6278
    %6280 = vdwg.mxu0
    %6281 = vmatpush.bf16.msra.mxu0 %v4936
    %6282 = vmatpush.bf16.msra.mxu0 %v4929
    %6283 = vmatpush.bf16.msra.mxu0 %v4922
    %6284 = vmatpush.bf16.msra.mxu0 %v4915
    %6285 = vmatpush.bf16.msra.mxu0 %v4908
    %6286 = vmatpush.bf16.msra.mxu0 %v4901
    %6287 = vmatpush.bf16.msra.mxu0 %v4894
    %6288 = vmatpush.bf16.msra.mxu0 %v4887
    %6289 = vmatmul.bf16.gmra.mxu0 %v2717
    %v6290 = vpop.f32.mrf.mxu0
    %v6291 = vadd.f32 %v6277, %v6290
    %v6292 = vpop.f32.mrf.mxu0
    %v6293 = vadd.f32 %v6279, %v6292
    %6294 = vdwg.mxu0
    %6295 = vmatpush.bf16.msra.mxu0 %v4992
    %6296 = vmatpush.bf16.msra.mxu0 %v4985
    %6297 = vmatpush.bf16.msra.mxu0 %v4978
    %6298 = vmatpush.bf16.msra.mxu0 %v4971
    %6299 = vmatpush.bf16.msra.mxu0 %v4964
    %6300 = vmatpush.bf16.msra.mxu0 %v4957
    %6301 = vmatpush.bf16.msra.mxu0 %v4950
    %6302 = vmatpush.bf16.msra.mxu0 %v4943
    %6303 = vmatmul.bf16.gmra.mxu0 %v2718
    %v6304 = vpop.f32.mrf.mxu0
    %v6305 = vadd.f32 %v6291, %v6304
    %v6306 = vpop.f32.mrf.mxu0
    %v6307 = vadd.f32 %v6293, %v6306
    %6308 = vdwg.mxu0
    %6309 = vmatpush.bf16.msra.mxu0 %v5048
    %6310 = vmatpush.bf16.msra.mxu0 %v5041
    %6311 = vmatpush.bf16.msra.mxu0 %v5034
    %6312 = vmatpush.bf16.msra.mxu0 %v5027
    %6313 = vmatpush.bf16.msra.mxu0 %v5020
    %6314 = vmatpush.bf16.msra.mxu0 %v5013
    %6315 = vmatpush.bf16.msra.mxu0 %v5006
    %6316 = vmatpush.bf16.msra.mxu0 %v4999
    %6317 = vmatmul.bf16.gmra.mxu0 %v2719
    %v6318 = vpop.f32.mrf.mxu0
    %v6319 = vadd.f32 %v6305, %v6318
    %v6320 = vpop.f32.mrf.mxu0
    %v6321 = vadd.f32 %v6307, %v6320
    %6322 = vdwg.mxu0
    %6323 = vmatpush.bf16.msra.mxu0 %v5104
    %6324 = vmatpush.bf16.msra.mxu0 %v5097
    %6325 = vmatpush.bf16.msra.mxu0 %v5090
    %6326 = vmatpush.bf16.msra.mxu0 %v5083
    %6327 = vmatpush.bf16.msra.mxu0 %v5076
    %6328 = vmatpush.bf16.msra.mxu0 %v5069
    %6329 = vmatpush.bf16.msra.mxu0 %v5062
    %6330 = vmatpush.bf16.msra.mxu0 %v5055
    %6331 = vmatmul.bf16.gmra.mxu0 %v2720
    %v6332 = vpop.f32.mrf.mxu0
    %v6333 = vadd.f32 %v6319, %v6332
    %v6334 = vpop.f32.mrf.mxu0
    %v6335 = vadd.f32 %v6321, %v6334
    %6336 = vdwg.mxu0
    %v6337 = vtanh.pop %v5661
    %v6338 = vtanh.pop %v5773
    %v6339 = vtanh.pop %v5885
    %v6340 = vtanh.pop %v5997
    %v6341 = vtanh.pop %v6109
    %v6342 = vtanh.pop %v6221
    %v6343 = vtanh.pop %v6333
    %v6344 = vtanh.pop %v5663
    %v6345 = vtanh.pop %v5775
    %v6346 = vtanh.pop %v5887
    %v6347 = vtanh.pop %v5999
    %v6348 = vtanh.pop %v6111
    %v6349 = vtanh.pop %v6223
    %v6350 = vtanh.pop %v6335
    %v6351 = vpack.c.bf16 %v6338, %v6337
    %v6352 = vpack.c.bf16 %v6340, %v6339
    %v6353 = vpack.c.bf16 %v6342, %v6341
    %v6354 = vpack.c.bf16 %v6343, %v6343
    %v6355 = vpack.c.bf16 %v6345, %v6344
    %v6356 = vpack.c.bf16 %v6347, %v6346
    %v6357 = vpack.c.bf16 %v6349, %v6348
    %v6358 = vpack.c.bf16 %v6350, %v6350
    %6359 = vst [vmem:[#allocation2] sm:$0xff] %v6351
    %6360 = vst [vmem:[#allocation2 + $0x8] sm:$0xff] %v6352
    %6361 = vst [vmem:[#allocation2 + $0x10] sm:$0xff] %v6353
    %vm6362 = vcmask 125952
    %6363 = vst.msk [vmem:[#allocation2 + $0x18] sm:$0xf] %vm6362, %v6354
    %6364 = vst [vmem:[#allocation2 + $0x1c] sm:$0xff] %v6355
    %6365 = vst [vmem:[#allocation2 + $0x24] sm:$0xff] %v6356
    %6366 = vst [vmem:[#allocation2 + $0x2c] sm:$0xff] %v6357
    %6367 = vst.msk [vmem:[#allocation2 + $0x34] sm:$0xf] %vm6362, %v6358
    // Predicated region
    $region38: #{tpu_custom_call.1} parent=1 // pred_check
      _
    $region39: #{tpu_custom_call.1} parent=1 // pred_check_branch
      %6369 = sbr.rel (0) target = $region41
    $region40: #{tpu_custom_call.1} parent=1 // pred_region
      %6371 = vsyncadd [#allocation3], 0
      %s6372 = sshll.u32 [#allocation2], 4
      %s6373 = int_to_ptr.vmem [resolvable:$true] %s6372
      %s6374 = sshll.u32 %s9, 4
      %s6375 = int_to_ptr.hbm [resolvable:$true] %s6374
      %6380 = dma.vmem_to_hbm [thread:$0]  %s6373, 896, %s6375, [#allocation3], 448, 448, 28
    $region41: #{tpu_custom_call.1} parent=1 // pred_fallthru
      _
    // Predicated region
    $region42: #{tpu_custom_call.1} parent=1 // pred_check
      _
    $region43: #{tpu_custom_call.1} parent=1 // pred_check_branch
      %6382 = sbr.rel (0) target = $region45
    $region44: #{tpu_custom_call.1} parent=1 // pred_region
      %6384 = dma.done [#allocation3], 896
    $region45: #{tpu_custom_call.1} parent=1 // pred_fallthru
      _
    %6385 = vsyncpa [#allocation3], 1

</llo_original>
